<compile_context>
chip_gen: v5e
topology: v5e:2x2
jax: 0.10.0
libtpu: 0.0.40
codegen_flags: <defaults>
</compile_context>

<pallas_src>
import math

import jax
import jax.numpy as jnp
from jax.experimental import pallas as pl
from jax.experimental.pallas import tpu as pltpu

EPS = 1e-12  # torch.nn.functional.normalize default eps


# ----------------------------------------------------------------------------
# Pallas kernel: bilinear pooling + scalar-folded L2 norm + normalized fc
# ----------------------------------------------------------------------------
def _dbcnn_head_kernel(x1_ref, x2_ref, w_ref, out_ref):
    # x1_ref : (nb, 512, HWp) bf16  backbone features, spatially flattened+padded
    # x2_ref : (nb, 128, HWp) bf16  scnn features,     spatially flattened+padded
    # w_ref  : (T, 512, 128)  f32   fc weights, rows pre-L2-normalized in wrapper
    # out_ref: (nb, 1, T)     f32
    x1 = x1_ref[...]
    x2 = x2_ref[...]

    # Bilinear pooling on the MXU (bf16 inputs, f32 accumulation):
    #   b[n, c, k] = sum_l x1[n, c, l] * x2[n, k, l]
    # The torch /(H*W) scale is dropped: it cancels under the L2 normalization
    # below (behavior differs only when ||b|| < EPS * H * W, i.e. never in
    # practice).  Zero-padding of the HW axis adds nothing to the sum.
    b = jnp.einsum("ncl,nkl->nck", x1, x2,
                   preferred_element_type=jnp.float32)       # (nb, 512, 128) f32

    # Per-sample L2 norm of the flattened bilinear feature, folded into a
    # scalar scale (replaces the full (nb,512,128) divide).
    norm2 = jnp.sum(jnp.sum(b * b, axis=2, keepdims=True),
                    axis=1, keepdims=True)                    # (nb, 1, 1)
    # 1 / max(||b||, EPS) == rsqrt(max(||b||^2, EPS^2))  -> EUP
    inv_norm = jax.lax.rsqrt(jnp.maximum(norm2, EPS * EPS))

    # Classifier: out[n, t] = <b[n] / ||b[n]||, w_norm[t]>.
    # T (= n_task) is tiny; a static per-task multiply-reduce avoids both the
    # (nb, T, 512, 128) broadcast intermediate and the sublane->lane relayout a
    # fully flattened (nb, 512*128) MXU dot would require inside the kernel.
    n_task = w_ref.shape[0]
    for t in range(n_task):
        s_t = jnp.sum(jnp.sum(b * w_ref[t], axis=2, keepdims=True),
                      axis=1, keepdims=True)                  # (nb, 1, 1) f32
        out_ref[:, :, t:t + 1] = s_t * inv_norm


def _pick_batch_tile(n, c1, c2, hwp, n_task,
                     requested=8, budget_bytes=40 * 1024 * 1024):
    """Largest batch tile that (a) divides N and (b) keeps double-buffered
    blocks + f32 intermediates under a VMEM budget safe for v7x (64 MiB)."""
    per_sample = (2 * (c1 + c2) * hwp * 2      # bf16 x1+x2 blocks, double-buffered
                  + 4 * c1 * c2 * 4)           # f32 b + elementwise temporaries
    fixed = 2 * n_task * c1 * c2 * 4 + (1 << 20)   # weights (x2 buffers) + slack
    cap = max(1, (budget_bytes - fixed) // per_sample)
    cap = int(min(cap, requested, n))
    for nb in range(cap, 0, -1):
        if n % nb == 0:
            return nb
    return 1


def dbcnn_head(x1, x2, fc_w, *, batch_tile=8):
    """x1: (N,512,H,W), x2: (N,128,H2,W2), fc_w: (T, 512*128) -> list of (N,1)."""
    N, C1, H, W = x1.shape
    _, C2, H2, W2 = x2.shape
    assert C1 == 512 and C2 == 128
    if (H != H2) or (W != W2):
        # F.upsample_bilinear (align_corners=True) — plain-JAX glue
        x2 = _upsample_bilinear_align_corners(x2, H, W)
    HW = H * W
    HWp = ((HW + 127) // 128) * 128          # lane-dense contraction axis

    x1f = x1.reshape(N, C1, HW).astype(jnp.float32)
    x2f = x2.reshape(N, C2, HW).astype(jnp.float32)
    if HWp != HW:
        pad = ((0, 0), (0, 0), (0, HWp - HW))
        x1f = jnp.pad(x1f, pad)
        x2f = jnp.pad(x2f, pad)
    # bf16 inputs: half the HBM->VMEM DMA bytes, bf16 MXU rate; all vector
    # math (norms / scaling) stays f32 inside the kernel.
    x1b = x1f.astype(jnp.bfloat16)
    x2b = x2f.astype(jnp.bfloat16)

    T = fc_w.shape[0]
    # fc weight row ordering matches torch's x.view(N, 512*128): idx = c*128 + k
    w3 = fc_w.reshape(T, C1, C2).astype(jnp.float32)
    # Hoisted eval-mode weight normalization (input independent):
    # fc.weight <- F.normalize(W, p=2, dim=1)
    w3n = w3 / jnp.maximum(
        jnp.sqrt(jnp.sum(w3 * w3, axis=(1, 2), keepdims=True)), EPS)

    nb = _pick_batch_tile(N, C1, C2, HWp, T, requested=batch_tile)
    grid = (N // nb,)

    flops = 2 * N * C1 * C2 * HWp + 2 * N * T * C1 * C2 + 2 * N * C1 * C2
    bytes_accessed = (N * C1 * HWp * 2 + N * C2 * HWp * 2
                      + T * C1 * C2 * 4 + N * T * 4)

    out = pl.pallas_call(
        _dbcnn_head_kernel,
        out_shape=jax.ShapeDtypeStruct((N, 1, T), jnp.float32),
        grid=grid,
        in_specs=[
            pl.BlockSpec((nb, C1, HWp), lambda i: (i, 0, 0)),
            pl.BlockSpec((nb, C2, HWp), lambda i: (i, 0, 0)),
            pl.BlockSpec((T, C1, C2), lambda i: (0, 0, 0)),
        ],
        out_specs=pl.BlockSpec((nb, 1, T), lambda i: (i, 0, 0)),
        compiler_params=pltpu.CompilerParams(
            dimension_semantics=("parallel",),
            vmem_limit_bytes=48 * 1024 * 1024),
        cost_estimate=pl.CostEstimate(
            flops=int(flops), transcendentals=int(N),
            bytes_accessed=int(bytes_accessed)),
    )(x1b, x2b, w3n)

    # DBCNN0 returns a list with one (N, 1) tensor per task
    return [out[:, 0, t:t + 1] for t in range(T)]


# ----------------------------------------------------------------------------
# Plain-JAX glue
# ----------------------------------------------------------------------------
def _upsample_bilinear_align_corners(x, out_h, out_w):
    """Matches F.upsample_bilinear (align_corners=True). x: (N, C, H, W)."""
    N, C, H, W = x.shape
    if (H, W) == (out_h, out_w):
        return x
    ys = jnp.linspace(0.0, H - 1.0, out_h) if out_h > 1 else jnp.zeros(
        (out_h,), jnp.float32)
    xs = jnp.linspace(0.0, W - 1.0, out_w) if out_w > 1 else jnp.zeros(
        (out_w,), jnp.float32)
    y0 = jnp.floor(ys).astype(jnp.int32)
    x0 = jnp.floor(xs).astype(jnp.int32)
    y1 = jnp.minimum(y0 + 1, H - 1)
    x1 = jnp.minimum(x0 + 1, W - 1)
    wy = (ys - y0)[None, None, :, None]
    wx = (xs - x0)[None, None, None, :]
    g = lambda yi, xi: x[:, :, yi, :][:, :, :, xi]
    top = g(y0, x0) * (1.0 - wx) + g(y0, x1) * wx
    bot = g(y1, x0) * (1.0 - wx) + g(y1, x1) * wx
    return top * (1.0 - wy) + bot * wy


def _standin_features(x, out_ch, key, patch=8):
    # TODO(synk): pretrained ResNet18 backbone / SCNN checkpoint (torch.load of
    # scnn.pkl) cannot be reproduced in-script; this deterministic strided-conv
    # + ReLU stand-in only provides feature maps with the correct channel count.
    cin = x.shape[1]
    w = jax.random.normal(key, (out_ch, cin, patch, patch), jnp.float32)
    w = w * (1.0 / math.sqrt(cin * patch * patch))
    y = jax.lax.conv_general_dilated(
        x, w, window_strides=(patch, patch), padding="VALID",
        dimension_numbers=("NCHW", "OIHW", "NCHW"))
    return jax.nn.relu(y)


def _ref_head(x1, x2, fc_w):
    """Pure-JAX reference for the DBCNN head (eval mode), at the kernel's
    bf16-input precision, with the torch /(H*W) scale and full normalization."""
    N, C1, H, W = x1.shape
    _, C2, H2, W2 = x2.shape
    if (H != H2) or (W != W2):
        x2 = _upsample_bilinear_align_corners(x2, H, W)
    HW = H * W
    x1f = x1.reshape(N, C1, HW).astype(jnp.bfloat16)
    x2f = x2.reshape(N, C2, HW).astype(jnp.bfloat16)
    b = jnp.einsum("ncl,nkl->nck", x1f, x2f,
                   preferred_element_type=jnp.float32) / HW
    v = b.reshape(N, -1)
    v = v / jnp.maximum(jnp.linalg.norm(v, axis=1, keepdims=True), EPS)
    wn = fc_w / jnp.maximum(jnp.linalg.norm(fc_w, axis=1, keepdims=True), EPS)
    out = v @ wn.T
    return [out[:, t:t + 1] for t in range(fc_w.shape[0])]


# ----------------------------------------------------------------------------
# Module-level forward (eval mode). The sfeat branch (AdaptiveAvgPool + L2
# normalize of x2) is dead code in the PyTorch forward (never returned), so it
# is intentionally not computed.
# ----------------------------------------------------------------------------
def dbcnn0_forward(x, params):
    x1 = _standin_features(x, 512, params["backbone_key"], patch=8)  # (N,512,H,W)
    x2 = _standin_features(x, 128, params["scnn_key"], patch=4)      # (N,128,H2,W2)
    return dbcnn_head(x1, x2, params["fc_w"])


if __name__ == "__main__":
    key = jax.random.PRNGKey(0)
    kx, kb, ks, kw = jax.random.split(key, 4)

    N, n_task = 16, 1                       # grid=(2,) with nb=8 -> pipelined
    x = jax.random.normal(kx, (N, 3, 32, 32), jnp.float32)

    # fc: Linear(512*128, 1, bias=False), kaiming_normal_ init (fan_in mode)
    fan_in = 512 * 128
    fc_w = jax.random.normal(kw, (n_task, fan_in), jnp.float32) * math.sqrt(
        2.0 / fan_in)

    params = {"backbone_key": kb, "scnn_key": ks, "fc_w": fc_w}

    outs = dbcnn0_forward(x, params)
    outs = [jax.block_until_ready(o) for o in outs]

    # correctness check of the Pallas head against a pure-JAX reference
    # (x1 is 4x4, x2 is 8x8 -> exercises the bilinear resize path too)
    x1 = _standin_features(x, 512, kb, patch=8)
    x2 = _standin_features(x, 128, ks, patch=4)
    refs = _ref_head(x1, x2, fc_w)
    for o, r in zip(outs, refs):
        assert o.shape == (N, 1)
        assert jnp.allclose(o, r, rtol=1e-3, atol=1e-5), (o, r)

    print("KERNEL_OK")
</pallas_src>

<mosaic_0001>
module attributes {stable_mosaic.version = 11 : i64} {
  func.func @_dbcnn_head_kernel(%arg0: i32, %arg1: memref<8x512x128xbf16, #tpu.memory_space<vmem>>, %arg2: memref<8x128x128xbf16, #tpu.memory_space<vmem>>, %arg3: memref<1x512x128xf32, #tpu.memory_space<vmem>>, %arg4: memref<8x1x1xf32, #tpu.memory_space<vmem>>) attributes {dimension_semantics = [#tpu.dimension_semantics<parallel>], iteration_bounds = array<i64: 2>, scalar_prefetch = 0 : i64, scratch_operands = 0 : i64, tpu.core_type = #tpu.core_type<tc>, window_params = [{transform_indices = @transform_0, window_bounds = array<i64: 8, 512, 128>}, {transform_indices = @transform_1, window_bounds = array<i64: 8, 128, 128>}, {pipeline_mode = #tpu.pipeline_mode<synchronous>, transform_indices = @transform_2, window_bounds = array<i64: 1, 512, 128>}, {transform_indices = @transform_3, window_bounds = array<i64: 8, 1, 1>}]} {
    %c0 = arith.constant 0 : index
    %c0_0 = arith.constant 0 : index
    %c0_1 = arith.constant 0 : index
    %0 = vector.load %arg1[%c0, %c0_0, %c0_1] : memref<8x512x128xbf16, #tpu.memory_space<vmem>>, vector<8x512x128xbf16>
    %c0_2 = arith.constant 0 : index
    %c0_3 = arith.constant 0 : index
    %c0_4 = arith.constant 0 : index
    %1 = vector.load %arg2[%c0_2, %c0_3, %c0_4] : memref<8x128x128xbf16, #tpu.memory_space<vmem>>, vector<8x128x128xbf16>
    "tpu.trace_start"() <{level = 10 : i32, message = "ncl,nkl->nck"}> : () -> ()
    %cst = arith.constant dense<0.000000e+00> : vector<8x512x128xf32>
    %2 = tpu.matmul %0, %1, %cst {dimension_numbers = #tpu.dot_dimension_numbers<[2], [2], [1], [1], [0, 0, 0, 1, 1, 1], [0], [0]>} : vector<8x512x128xbf16>, vector<8x128x128xbf16>, vector<8x512x128xf32> -> vector<8x512x128xf32>
    "tpu.trace_stop"() : () -> ()
    %3 = arith.mulf %2, %2 : vector<8x512x128xf32>
    %cst_5 = arith.constant dense<0.000000e+00> : vector<8x512xf32>
    %4 = vector.multi_reduction <add>, %3, %cst_5 [2] : vector<8x512x128xf32> to vector<8x512xf32>
    %5 = vector.shape_cast %4 : vector<8x512xf32> to vector<8x512x1xf32>
    %cst_6 = arith.constant dense<0.000000e+00> : vector<8x1xf32>
    %6 = vector.multi_reduction <add>, %5, %cst_6 [1] : vector<8x512x1xf32> to vector<8x1xf32>
    %7 = vector.shape_cast %6 : vector<8x1xf32> to vector<8x1x1xf32>
    %cst_7 = arith.constant 1.000000e-24 : f32
    %8 = vector.broadcast %cst_7 : f32 to vector<8x1x1xf32>
    %9 = arith.maximumf %7, %8 : vector<8x1x1xf32>
    %10 = math.rsqrt %9 : vector<8x1x1xf32>
    %c0_8 = arith.constant 0 : index
    %c0_9 = arith.constant 0 : index
    %c0_10 = arith.constant 0 : index
    %11 = vector.load %arg3[%c0_8, %c0_9, %c0_10] : memref<1x512x128xf32, #tpu.memory_space<vmem>>, vector<1x512x128xf32>
    %12 = vector.shape_cast %11 : vector<1x512x128xf32> to vector<512x128xf32>
    %13 = vector.shape_cast %12 : vector<512x128xf32> to vector<1x512x128xf32>
    %14 = vector.broadcast %13 : vector<1x512x128xf32> to vector<8x512x128xf32>
    %15 = arith.mulf %2, %14 : vector<8x512x128xf32>
    %cst_11 = arith.constant dense<0.000000e+00> : vector<8x512xf32>
    %16 = vector.multi_reduction <add>, %15, %cst_11 [2] : vector<8x512x128xf32> to vector<8x512xf32>
    %17 = vector.shape_cast %16 : vector<8x512xf32> to vector<8x512x1xf32>
    %cst_12 = arith.constant dense<0.000000e+00> : vector<8x1xf32>
    %18 = vector.multi_reduction <add>, %17, %cst_12 [1] : vector<8x512x1xf32> to vector<8x1xf32>
    %19 = vector.shape_cast %18 : vector<8x1xf32> to vector<8x1x1xf32>
    %20 = arith.mulf %19, %10 : vector<8x1x1xf32>
    %c0_13 = arith.constant 0 : index
    %c0_14 = arith.constant 0 : index
    %c0_15 = arith.constant 0 : index
    %21 = vector.load %arg4[%c0_13, %c0_14, %c0_15] : memref<8x1x1xf32, #tpu.memory_space<vmem>>, vector<8x1x1xf32>
    tpu.vector_store %arg4[%c0_13, %c0_14, %c0_15], %20 {strides = array<i32>} : memref<8x1x1xf32, #tpu.memory_space<vmem>>, vector<8x1x1xf32>,
    return
  }
  func.func @transform_0(%arg0: i32) -> (i32, i32, i32) {
    %c0_i32 = arith.constant 0 : i32
    %c0_i32_0 = arith.constant 0 : i32
    %c0_i32_1 = arith.constant 0 : i32
    return %arg0, %c0_i32, %c0_i32_0 : i32, i32, i32
  }
  func.func @transform_1(%arg0: i32) -> (i32, i32, i32) {
    %c0_i32 = arith.constant 0 : i32
    %c0_i32_0 = arith.constant 0 : i32
    %c0_i32_1 = arith.constant 0 : i32
    return %arg0, %c0_i32, %c0_i32_0 : i32, i32, i32
  }
  func.func @transform_2(%arg0: i32) -> (i32, i32, i32) {
    %c0_i32 = arith.constant 0 : i32
    %c0_i32_0 = arith.constant 0 : i32
    %c0_i32_1 = arith.constant 0 : i32
    %c0_i32_2 = arith.constant 0 : i32
    return %c0_i32, %c0_i32_0, %c0_i32_1 : i32, i32, i32
  }
  func.func @transform_3(%arg0: i32) -> (i32, i32, i32) {
    %c0_i32 = arith.constant 0 : i32
    %c0_i32_0 = arith.constant 0 : i32
    %c0_i32_1 = arith.constant 0 : i32
    return %arg0, %c0_i32, %c0_i32_0 : i32, i32, i32
  }
}

</mosaic_0001>

<llo_original>
// kernel: tpu_custom_call.1
$region0: #{tpu_custom_call.1}
  #allocation0 [shape = 'u32[]', space=smem, size = 0x4, offset = 0x4, fixed_abs, tag = 'smem constant byte address 0x4 - core index']
  #allocation1 [shape = 'u32[72,128]{1,0:T(1,128)}', space=vmem, size = 0x9000, scoped, tag = 'internal scratch']
  %s0 = inlined_call_operand.hbm [shape: bf16[16,512,128], index: 0, kind: input, shape index: {}]
  %s1 = inlined_call_operand.hbm [shape: bf16[16,128,128], index: 1, kind: input, shape index: {}]
  %s2 = inlined_call_operand.hbm [shape: f32[1,512,128], index: 2, kind: input, shape index: {}]
  %s3 = inlined_call_operand.vmem [shape: f32[16,1,1], index: 3, kind: output, shape index: {}]
  %s4 = sld [smem:[#allocation0]]
  $region57: #{tpu_custom_call.1} parent=0
    _
  %s6 = ssub.s32 1, %s4
  %s7 = scalar_select 0, %s6, %s4
  $region1: #{tpu_custom_call.1} parent=0
    #allocation2 [shape = 'u8[2097152]{0}', space=vmem, size = 0x200000, scoped, tag = 'input window, operand 0']
    #allocation3 [shape = 's32[2]{0}', space=sflag, size = 0x8, scoped, tag = 'scoped memory for tpu_custom_call.1']
    #allocation4 [shape = 'u8[524288]{0}', space=vmem, size = 0x80000, scoped, tag = 'input window, operand 1']
    #allocation5 [shape = 's32[2]{0}', space=sflag, size = 0x8, scoped, tag = 'scoped memory for tpu_custom_call.1']
    #allocation6 [shape = 'u8[262144]{0}', space=vmem, size = 0x40000, scoped, tag = 'input window, operand 2, single buffered']
    %8 = vsyncpa [#allocation3], 0
    %s9 = scalar_lea.sflag [#allocation3], 1
    %10 = vsyncpa %s9, 0
    %11 = vsyncpa [#allocation5], 0
    %s12 = scalar_lea.sflag [#allocation5], 1
    %13 = vsyncpa %s12, 0
    loop: start=0, step=1, limit=4
    $region2: #{tpu_custom_call.1} parent=1 // loop_pre_header
      _
    $region3: #{tpu_custom_call.1} parent=1 // loop_header
      %s15 = sphi 0, %s19
      %p16 = scmp.ge.s32.totalorder %s15, 4
      %s25 = sphi 0, %s27
      %s28 = sphi 0, %s25
      %s29 = sphi 0, %s28
      %s45 = sphi 0, %s29
      %s51 = sphi 0, %s53
      %s54 = sphi 0, %s51
      %s55 = sphi 0, %s54
      %s71 = sphi 0, %s55
      %s75 = sphi 0, %s75
      %s77 = sphi 0, %s75
      %s78 = sphi 0, %s77
      %s92 = sphi 0, %s78
      %s98 = sphi 0, %s100
      %s101 = sphi 0, %s98
      %s102 = sphi 0, %s101
      %s118 = sphi 0, %s102
    $region4: #{tpu_custom_call.1} parent=1 // loop_header_branch
      %18 = sbr.rel (%p16) target = $region8
    $region5: #{tpu_custom_call.1} parent=1 // loop_body
      %s20 = ssub.s32 %s15, 1
      %s21 = ssub.s32 %s15, 2
      %s22 = sadd.s32 %s15, 1
      %s23 = ssub.s32 %s15, %s22
      %p24 = scmp.eq.s32.totalorder %s23, 0
      %s26 = sadd.s32 %s25, 1
      %s27 = scalar_select %p24, %s25, %s26
      %p30 = pneg %p24
      %p31 = scmp.eq.s32.totalorder %s15, 1
      %p32 = por %p30, %p31
      %p33 = scmp.ne.s32.totalorder %s25, %s28
      %p34 = scmp.eq.s32.totalorder %s15, 0
      %p35 = por %p33, %p34
      %p36 = scmp.ne.s32.totalorder %s25, %s28
      %p37 = scmp.eq.s32.totalorder %s20, 1
      %p38 = por %p36, %p37
      %p39 = scmp.ne.s32.totalorder %s28, %s29
      %p40 = scmp.eq.s32.totalorder %s20, 0
      %p41 = por %p39, %p40
      %p42 = scmp.ne.s32.totalorder %s28, %s29
      %p43 = scmp.eq.s32.totalorder %s21, 1
      %p44 = por %p42, %p43
      %p46 = scmp.ne.s32.totalorder %s29, %s45
      %p47 = scmp.eq.s32.totalorder %s21, 0
      %p48 = por %p46, %p47
      %s49 = ssub.s32 %s15, %s22
      %p50 = scmp.eq.s32.totalorder %s49, 0
      %s52 = sadd.s32 %s51, 1
      %s53 = scalar_select %p50, %s51, %s52
      %p56 = pneg %p50
      %p57 = scmp.eq.s32.totalorder %s15, 1
      %p58 = por %p56, %p57
      %p59 = scmp.ne.s32.totalorder %s51, %s54
      %p60 = scmp.eq.s32.totalorder %s15, 0
      %p61 = por %p59, %p60
      %p62 = scmp.ne.s32.totalorder %s51, %s54
      %p63 = scmp.eq.s32.totalorder %s20, 1
      %p64 = por %p62, %p63
      %p65 = scmp.ne.s32.totalorder %s54, %s55
      %p66 = scmp.eq.s32.totalorder %s20, 0
      %p67 = por %p65, %p66
      %p68 = scmp.ne.s32.totalorder %s54, %s55
      %p69 = scmp.eq.s32.totalorder %s21, 1
      %p70 = por %p68, %p69
      %p72 = scmp.ne.s32.totalorder %s55, %s71
      %p73 = scmp.eq.s32.totalorder %s21, 0
      %p74 = por %p72, %p73
      %s76 = sadd.s32 %s75, 1
      %p79 = scmp.eq.s32.totalorder %s15, 1
      %p80 = scmp.ne.s32.totalorder %s75, %s77
      %p81 = scmp.eq.s32.totalorder %s15, 0
      %p82 = por %p80, %p81
      %p83 = scmp.ne.s32.totalorder %s75, %s77
      %p84 = scmp.eq.s32.totalorder %s20, 1
      %p85 = por %p83, %p84
      %p86 = scmp.ne.s32.totalorder %s77, %s78
      %p87 = scmp.eq.s32.totalorder %s20, 0
      %p88 = por %p86, %p87
      %p89 = scmp.ne.s32.totalorder %s77, %s78
      %p90 = scmp.eq.s32.totalorder %s21, 1
      %p91 = por %p89, %p90
      %p93 = scmp.ne.s32.totalorder %s78, %s92
      %p94 = scmp.eq.s32.totalorder %s21, 0
      %p95 = por %p93, %p94
      %s96 = ssub.s32 %s15, %s22
      %p97 = scmp.eq.s32.totalorder %s96, 0
      %s99 = sadd.s32 %s98, 1
      %s100 = scalar_select %p97, %s98, %s99
      %p103 = pneg %p97
      %p104 = scmp.eq.s32.totalorder %s15, 1
      %p105 = por %p103, %p104
      %p106 = scmp.ne.s32.totalorder %s98, %s101
      %p107 = scmp.eq.s32.totalorder %s15, 0
      %p108 = por %p106, %p107
      %p109 = scmp.ne.s32.totalorder %s98, %s101
      %p110 = scmp.eq.s32.totalorder %s20, 1
      %p111 = por %p109, %p110
      %p112 = scmp.ne.s32.totalorder %s101, %s102
      %p113 = scmp.eq.s32.totalorder %s20, 0
      %p114 = por %p112, %p113
      %p115 = scmp.ne.s32.totalorder %s101, %s102
      %p116 = scmp.eq.s32.totalorder %s21, 1
      %p117 = por %p115, %p116
      %p119 = scmp.ne.s32.totalorder %s102, %s118
      %p120 = scmp.eq.s32.totalorder %s21, 0
      %p121 = por %p119, %p120
      %p122 = scmp.le.s32.totalorder 1, %s15
      %p123 = scmp.lt.s32.totalorder %s15, 3
      %p124 = pnand %p122, %p123
      %p125 = pneg %p124
      // Predicated region
      $region9: #{tpu_custom_call.1} parent=5 // pred_check
        _
      $region10: #{tpu_custom_call.1} parent=5 // pred_check_branch
        %127 = sbr.rel (%p124) target = $region12
      $region11: #{tpu_custom_call.1} parent=5 // pred_region
        %s128 = ssub.s32 %s15, 1
        // Predicated region
        $region13: #{tpu_custom_call.1} parent=11 // pred_check
          %p129 = pneg %p88
        $region14: #{tpu_custom_call.1} parent=11 // pred_check_branch
          %131 = sbr.rel (%p129) target = $region16
        $region15: #{tpu_custom_call.1} parent=11 // pred_region
          %133 = vsyncadd [#allocation5], 0
          %s134 = sshll.u32 %s2, 4
          %s135 = int_to_ptr.hbm [resolvable:$true] %s134
          %s136 = sshll.u32 [#allocation6], 4
          %s137 = int_to_ptr.vmem [resolvable:$true] %s136
          %142 = dma.hbm_to_vmem [thread:$0]  %s135, 8192, %s137, [#allocation5], 128, 128, 8
        $region16: #{tpu_custom_call.1} parent=11 // pred_fallthru
          _
      $region12: #{tpu_custom_call.1} parent=5 // pred_fallthru
        _
      %p143 = scmp.lt.s32.totalorder %s15, 2
      // Predicated region
      $region17: #{tpu_custom_call.1} parent=5 // pred_check
        %p144 = pneg %p143
      $region18: #{tpu_custom_call.1} parent=5 // pred_check_branch
        %146 = sbr.rel (%p144) target = $region20
      $region19: #{tpu_custom_call.1} parent=5 // pred_region
        // Predicated region
        $region21: #{tpu_custom_call.1} parent=19 // pred_check
          %p147 = pneg %p35
        $region22: #{tpu_custom_call.1} parent=19 // pred_check_branch
          %149 = sbr.rel (%p147) target = $region24
        $region23: #{tpu_custom_call.1} parent=19 // pred_region
          %s150 = sand.u32 %s25, 1
          %s151 = scalar_lea.sflag [#allocation3], %s150
          %s152 = sand.u32 %s25, 1
          %s153 = smul.addr %s152, 2048
          %s154 = scalar_lea.vmem [#allocation2], %s153
          %s155 = smul.u32 8, %s15
          %157 = vsyncadd %s151, 0
          %s158 = smul.addr %s155, 64
          %s159 = smul.addr %s158, 4
          %s160 = scalar_lea.hbm %s0, %s159
          %s161 = sshll.u32 %s160, 4
          %s162 = int_to_ptr.hbm [resolvable:$true] %s161
          %s163 = sshll.u32 %s154, 4
          %s164 = int_to_ptr.vmem [resolvable:$true] %s163
          %169 = dma.hbm_to_vmem [thread:$0]  %s162, 32768, %s164, %s151, 64, 64, 4
        $region24: #{tpu_custom_call.1} parent=19 // pred_fallthru
          _
        // Predicated region
        $region25: #{tpu_custom_call.1} parent=19 // pred_check
          %p170 = pneg %p61
        $region26: #{tpu_custom_call.1} parent=19 // pred_check_branch
          %172 = sbr.rel (%p170) target = $region28
        $region27: #{tpu_custom_call.1} parent=19 // pred_region
          %s173 = sand.u32 %s15, 1
          %s174 = scalar_lea.sflag [#allocation5], %s173
          %s175 = sand.u32 %s51, 1
          %s176 = smul.addr %s175, 512
          %s177 = scalar_lea.vmem [#allocation4], %s176
          %s178 = smul.u32 8, %s15
          %180 = vsyncadd %s174, 0
          %s181 = smul.addr %s178, 16
          %s182 = smul.addr %s181, 4
          %s183 = scalar_lea.hbm %s1, %s182
          %s184 = sshll.u32 %s183, 4
          %s185 = int_to_ptr.hbm [resolvable:$true] %s184
          %s186 = sshll.u32 %s177, 4
          %s187 = int_to_ptr.vmem [resolvable:$true] %s186
          %192 = dma.hbm_to_vmem [thread:$0]  %s185, 8192, %s187, %s174, 64, 64, 4
        $region28: #{tpu_custom_call.1} parent=19 // pred_fallthru
          _
      $region20: #{tpu_custom_call.1} parent=5 // pred_fallthru
        _
      %p193 = scmp.le.s32.totalorder 1, %s15
      %p194 = scmp.lt.s32.totalorder %s15, 3
      %p195 = pnand %p193, %p194
      %p196 = pneg %p195
      // Predicated region
      $region29: #{tpu_custom_call.1} parent=5 // pred_check
        _
      $region30: #{tpu_custom_call.1} parent=5 // pred_check_branch
        %198 = sbr.rel (%p195) target = $region32
      $region31: #{tpu_custom_call.1} parent=5 // pred_region
        %s199 = ssub.s32 %s15, 1
        %s200 = sand.u32 %s28, 1
        %s201 = scalar_lea.sflag [#allocation3], %s200
        %s202 = sand.u32 %s28, 1
        %s203 = smul.addr %s202, 2048
        %s204 = scalar_lea.vmem [#allocation2], %s203
        // Predicated region
        $region33: #{tpu_custom_call.1} parent=31 // pred_check
          %p205 = pneg %p41
        $region34: #{tpu_custom_call.1} parent=31 // pred_check_branch
          %207 = sbr.rel (%p205) target = $region36
        $region35: #{tpu_custom_call.1} parent=31 // pred_region
          %209 = dma.done %s201, 32768
        $region36: #{tpu_custom_call.1} parent=31 // pred_fallthru
          _
        %s210 = sand.u32 %s20, 1
        %s211 = scalar_lea.sflag [#allocation5], %s210
        %s212 = sand.u32 %s54, 1
        %s213 = smul.addr %s212, 512
        %s214 = scalar_lea.vmem [#allocation4], %s213
        // Predicated region
        $region37: #{tpu_custom_call.1} parent=31 // pred_check
          %p215 = pneg %p67
        $region38: #{tpu_custom_call.1} parent=31 // pred_check_branch
          %217 = sbr.rel (%p215) target = $region40
        $region39: #{tpu_custom_call.1} parent=31 // pred_region
          %219 = dma.done %s211, 8192
        $region40: #{tpu_custom_call.1} parent=31 // pred_fallthru
          _
        // Predicated region
        $region41: #{tpu_custom_call.1} parent=31 // pred_check
          %p220 = pneg %p88
        $region42: #{tpu_custom_call.1} parent=31 // pred_check_branch
          %222 = sbr.rel (%p220) target = $region44
        $region43: #{tpu_custom_call.1} parent=31 // pred_region
          %224 = dma.done [#allocation5], 8192
        $region44: #{tpu_custom_call.1} parent=31 // pred_fallthru
          _
        %s225 = sand.u32 %s28, 1
        %s226 = scalar_lea.sflag [#allocation3], %s225
        %s227 = sand.u32 %s28, 1
        %s228 = smul.addr %s227, 2048
        %s229 = scalar_lea.vmem [#allocation2], %s228
        %p230 = pneg %p41
        %p231 = pneg %p38
        %s232 = sand.u32 %s20, 1
        %s233 = scalar_lea.sflag [#allocation5], %s232
        %s234 = sand.u32 %s54, 1
        %s235 = smul.addr %s234, 512
        %s236 = scalar_lea.vmem [#allocation4], %s235
        %p237 = pneg %p67
        %p238 = pneg %p64
        %p239 = pneg %p88
        %p240 = pneg %p85
        %p241 = pneg %p114
        %p242 = pneg %p111
        %s243 = smul.u32 8, %s20
        %p244 = scmp.lt.s32.totalorder %s243, 15
        %s245 = scalar_select %p244, %s243, 15
        %s246 = scalar_lea.vmem %s3, %s245
        %s247 = smul.u32 8, %s20
        %s248 = smul.u32 8, %s20
        %s249 = smul.u32 8, %s20
        %p250 = scmp.lt.s32.totalorder %s249, 15
        %s251 = scalar_select %p250, %s249, 15
        %s252 = scalar_lea.vmem %s3, %s251
        %s253 = smul.u32 8, %s20
        %v254 = vld [vmem:[%s204] sm:$0xf]
        %v255 = vld [vmem:[%s204 + $0x4] sm:$0xf]
        %v256 = vld [vmem:[%s204 + $0x8] sm:$0xf]
        %v257 = vld [vmem:[%s204 + $0xc] sm:$0xf]
        %v258 = vld [vmem:[%s204 + $0x10] sm:$0xf]
        %v259 = vld [vmem:[%s204 + $0x14] sm:$0xf]
        %v260 = vld [vmem:[%s204 + $0x18] sm:$0xf]
        %v261 = vld [vmem:[%s204 + $0x1c] sm:$0xf]
        %v262 = vld [vmem:[%s204 + $0x20] sm:$0xf]
        %v263 = vld [vmem:[%s204 + $0x24] sm:$0xf]
        %v264 = vld [vmem:[%s204 + $0x28] sm:$0xf]
        %v265 = vld [vmem:[%s204 + $0x2c] sm:$0xf]
        %v266 = vld [vmem:[%s204 + $0x30] sm:$0xf]
        %v267 = vld [vmem:[%s204 + $0x34] sm:$0xf]
        %v268 = vld [vmem:[%s204 + $0x38] sm:$0xf]
        %v269 = vld [vmem:[%s204 + $0x3c] sm:$0xf]
        %v270 = vld [vmem:[%s204 + $0x40] sm:$0xf]
        %v271 = vld [vmem:[%s204 + $0x44] sm:$0xf]
        %v272 = vld [vmem:[%s204 + $0x48] sm:$0xf]
        %v273 = vld [vmem:[%s204 + $0x4c] sm:$0xf]
        %v274 = vld [vmem:[%s204 + $0x50] sm:$0xf]
        %v275 = vld [vmem:[%s204 + $0x54] sm:$0xf]
        %v276 = vld [vmem:[%s204 + $0x58] sm:$0xf]
        %v277 = vld [vmem:[%s204 + $0x5c] sm:$0xf]
        %v278 = vld [vmem:[%s204 + $0x60] sm:$0xf]
        %v279 = vld [vmem:[%s204 + $0x64] sm:$0xf]
        %v280 = vld [vmem:[%s204 + $0x68] sm:$0xf]
        %v281 = vld [vmem:[%s204 + $0x6c] sm:$0xf]
        %v282 = vld [vmem:[%s204 + $0x70] sm:$0xf]
        %v283 = vld [vmem:[%s204 + $0x74] sm:$0xf]
        %v284 = vld [vmem:[%s204 + $0x78] sm:$0xf]
        %v285 = vld [vmem:[%s204 + $0x7c] sm:$0xf]
        %v286 = vld [vmem:[%s204 + $0x80] sm:$0xf]
        %v287 = vld [vmem:[%s204 + $0x84] sm:$0xf]
        %v288 = vld [vmem:[%s204 + $0x88] sm:$0xf]
        %v289 = vld [vmem:[%s204 + $0x8c] sm:$0xf]
        %v290 = vld [vmem:[%s204 + $0x90] sm:$0xf]
        %v291 = vld [vmem:[%s204 + $0x94] sm:$0xf]
        %v292 = vld [vmem:[%s204 + $0x98] sm:$0xf]
        %v293 = vld [vmem:[%s204 + $0x9c] sm:$0xf]
        %v294 = vld [vmem:[%s204 + $0xa0] sm:$0xf]
        %v295 = vld [vmem:[%s204 + $0xa4] sm:$0xf]
        %v296 = vld [vmem:[%s204 + $0xa8] sm:$0xf]
        %v297 = vld [vmem:[%s204 + $0xac] sm:$0xf]
        %v298 = vld [vmem:[%s204 + $0xb0] sm:$0xf]
        %v299 = vld [vmem:[%s204 + $0xb4] sm:$0xf]
        %v300 = vld [vmem:[%s204 + $0xb8] sm:$0xf]
        %v301 = vld [vmem:[%s204 + $0xbc] sm:$0xf]
        %v302 = vld [vmem:[%s204 + $0xc0] sm:$0xf]
        %v303 = vld [vmem:[%s204 + $0xc4] sm:$0xf]
        %v304 = vld [vmem:[%s204 + $0xc8] sm:$0xf]
        %v305 = vld [vmem:[%s204 + $0xcc] sm:$0xf]
        %v306 = vld [vmem:[%s204 + $0xd0] sm:$0xf]
        %v307 = vld [vmem:[%s204 + $0xd4] sm:$0xf]
        %v308 = vld [vmem:[%s204 + $0xd8] sm:$0xf]
        %v309 = vld [vmem:[%s204 + $0xdc] sm:$0xf]
        %v310 = vld [vmem:[%s204 + $0xe0] sm:$0xf]
        %v311 = vld [vmem:[%s204 + $0xe4] sm:$0xf]
        %v312 = vld [vmem:[%s204 + $0xe8] sm:$0xf]
        %v313 = vld [vmem:[%s204 + $0xec] sm:$0xf]
        %v314 = vld [vmem:[%s204 + $0xf0] sm:$0xf]
        %v315 = vld [vmem:[%s204 + $0xf4] sm:$0xf]
        %v316 = vld [vmem:[%s204 + $0xf8] sm:$0xf]
        %v317 = vld [vmem:[%s204 + $0xfc] sm:$0xf]
        %v318 = vld [vmem:[%s204 + $0x100] sm:$0xf]
        %v319 = vld [vmem:[%s204 + $0x104] sm:$0xf]
        %v320 = vld [vmem:[%s204 + $0x108] sm:$0xf]
        %v321 = vld [vmem:[%s204 + $0x10c] sm:$0xf]
        %v322 = vld [vmem:[%s204 + $0x110] sm:$0xf]
        %v323 = vld [vmem:[%s204 + $0x114] sm:$0xf]
        %v324 = vld [vmem:[%s204 + $0x118] sm:$0xf]
        %v325 = vld [vmem:[%s204 + $0x11c] sm:$0xf]
        %v326 = vld [vmem:[%s204 + $0x120] sm:$0xf]
        %v327 = vld [vmem:[%s204 + $0x124] sm:$0xf]
        %v328 = vld [vmem:[%s204 + $0x128] sm:$0xf]
        %v329 = vld [vmem:[%s204 + $0x12c] sm:$0xf]
        %v330 = vld [vmem:[%s204 + $0x130] sm:$0xf]
        %v331 = vld [vmem:[%s204 + $0x134] sm:$0xf]
        %v332 = vld [vmem:[%s204 + $0x138] sm:$0xf]
        %v333 = vld [vmem:[%s204 + $0x13c] sm:$0xf]
        %v334 = vld [vmem:[%s204 + $0x140] sm:$0xf]
        %v335 = vld [vmem:[%s204 + $0x144] sm:$0xf]
        %v336 = vld [vmem:[%s204 + $0x148] sm:$0xf]
        %v337 = vld [vmem:[%s204 + $0x14c] sm:$0xf]
        %v338 = vld [vmem:[%s204 + $0x150] sm:$0xf]
        %v339 = vld [vmem:[%s204 + $0x154] sm:$0xf]
        %v340 = vld [vmem:[%s204 + $0x158] sm:$0xf]
        %v341 = vld [vmem:[%s204 + $0x15c] sm:$0xf]
        %v342 = vld [vmem:[%s204 + $0x160] sm:$0xf]
        %v343 = vld [vmem:[%s204 + $0x164] sm:$0xf]
        %v344 = vld [vmem:[%s204 + $0x168] sm:$0xf]
        %v345 = vld [vmem:[%s204 + $0x16c] sm:$0xf]
        %v346 = vld [vmem:[%s204 + $0x170] sm:$0xf]
        %v347 = vld [vmem:[%s204 + $0x174] sm:$0xf]
        %v348 = vld [vmem:[%s204 + $0x178] sm:$0xf]
        %v349 = vld [vmem:[%s204 + $0x17c] sm:$0xf]
        %v350 = vld [vmem:[%s204 + $0x180] sm:$0xf]
        %v351 = vld [vmem:[%s204 + $0x184] sm:$0xf]
        %v352 = vld [vmem:[%s204 + $0x188] sm:$0xf]
        %v353 = vld [vmem:[%s204 + $0x18c] sm:$0xf]
        %v354 = vld [vmem:[%s204 + $0x190] sm:$0xf]
        %v355 = vld [vmem:[%s204 + $0x194] sm:$0xf]
        %v356 = vld [vmem:[%s204 + $0x198] sm:$0xf]
        %v357 = vld [vmem:[%s204 + $0x19c] sm:$0xf]
        %v358 = vld [vmem:[%s204 + $0x1a0] sm:$0xf]
        %v359 = vld [vmem:[%s204 + $0x1a4] sm:$0xf]
        %v360 = vld [vmem:[%s204 + $0x1a8] sm:$0xf]
        %v361 = vld [vmem:[%s204 + $0x1ac] sm:$0xf]
        %v362 = vld [vmem:[%s204 + $0x1b0] sm:$0xf]
        %v363 = vld [vmem:[%s204 + $0x1b4] sm:$0xf]
        %v364 = vld [vmem:[%s204 + $0x1b8] sm:$0xf]
        %v365 = vld [vmem:[%s204 + $0x1bc] sm:$0xf]
        %v366 = vld [vmem:[%s204 + $0x1c0] sm:$0xf]
        %v367 = vld [vmem:[%s204 + $0x1c4] sm:$0xf]
        %v368 = vld [vmem:[%s204 + $0x1c8] sm:$0xf]
        %v369 = vld [vmem:[%s204 + $0x1cc] sm:$0xf]
        %v370 = vld [vmem:[%s204 + $0x1d0] sm:$0xf]
        %v371 = vld [vmem:[%s204 + $0x1d4] sm:$0xf]
        %v372 = vld [vmem:[%s204 + $0x1d8] sm:$0xf]
        %v373 = vld [vmem:[%s204 + $0x1dc] sm:$0xf]
        %v374 = vld [vmem:[%s204 + $0x1e0] sm:$0xf]
        %v375 = vld [vmem:[%s204 + $0x1e4] sm:$0xf]
        %v376 = vld [vmem:[%s204 + $0x1e8] sm:$0xf]
        %v377 = vld [vmem:[%s204 + $0x1ec] sm:$0xf]
        %v378 = vld [vmem:[%s204 + $0x1f0] sm:$0xf]
        %v379 = vld [vmem:[%s204 + $0x1f4] sm:$0xf]
        %v380 = vld [vmem:[%s204 + $0x1f8] sm:$0xf]
        %v381 = vld [vmem:[%s204 + $0x1fc] sm:$0xf]
        %v382 = vld [vmem:[%s204 + $0x200] sm:$0xf]
        %v383 = vld [vmem:[%s204 + $0x204] sm:$0xf]
        %v384 = vld [vmem:[%s204 + $0x208] sm:$0xf]
        %v385 = vld [vmem:[%s204 + $0x20c] sm:$0xf]
        %v386 = vld [vmem:[%s204 + $0x210] sm:$0xf]
        %v387 = vld [vmem:[%s204 + $0x214] sm:$0xf]
        %v388 = vld [vmem:[%s204 + $0x218] sm:$0xf]
        %v389 = vld [vmem:[%s204 + $0x21c] sm:$0xf]
        %v390 = vld [vmem:[%s204 + $0x220] sm:$0xf]
        %v391 = vld [vmem:[%s204 + $0x224] sm:$0xf]
        %v392 = vld [vmem:[%s204 + $0x228] sm:$0xf]
        %v393 = vld [vmem:[%s204 + $0x22c] sm:$0xf]
        %v394 = vld [vmem:[%s204 + $0x230] sm:$0xf]
        %v395 = vld [vmem:[%s204 + $0x234] sm:$0xf]
        %v396 = vld [vmem:[%s204 + $0x238] sm:$0xf]
        %v397 = vld [vmem:[%s204 + $0x23c] sm:$0xf]
        %v398 = vld [vmem:[%s204 + $0x240] sm:$0xf]
        %v399 = vld [vmem:[%s204 + $0x244] sm:$0xf]
        %v400 = vld [vmem:[%s204 + $0x248] sm:$0xf]
        %v401 = vld [vmem:[%s204 + $0x24c] sm:$0xf]
        %v402 = vld [vmem:[%s204 + $0x250] sm:$0xf]
        %v403 = vld [vmem:[%s204 + $0x254] sm:$0xf]
        %v404 = vld [vmem:[%s204 + $0x258] sm:$0xf]
        %v405 = vld [vmem:[%s204 + $0x25c] sm:$0xf]
        %v406 = vld [vmem:[%s204 + $0x260] sm:$0xf]
        %v407 = vld [vmem:[%s204 + $0x264] sm:$0xf]
        %v408 = vld [vmem:[%s204 + $0x268] sm:$0xf]
        %v409 = vld [vmem:[%s204 + $0x26c] sm:$0xf]
        %v410 = vld [vmem:[%s204 + $0x270] sm:$0xf]
        %v411 = vld [vmem:[%s204 + $0x274] sm:$0xf]
        %v412 = vld [vmem:[%s204 + $0x278] sm:$0xf]
        %v413 = vld [vmem:[%s204 + $0x27c] sm:$0xf]
        %v414 = vld [vmem:[%s204 + $0x280] sm:$0xf]
        %v415 = vld [vmem:[%s204 + $0x284] sm:$0xf]
        %v416 = vld [vmem:[%s204 + $0x288] sm:$0xf]
        %v417 = vld [vmem:[%s204 + $0x28c] sm:$0xf]
        %v418 = vld [vmem:[%s204 + $0x290] sm:$0xf]
        %v419 = vld [vmem:[%s204 + $0x294] sm:$0xf]
        %v420 = vld [vmem:[%s204 + $0x298] sm:$0xf]
        %v421 = vld [vmem:[%s204 + $0x29c] sm:$0xf]
        %v422 = vld [vmem:[%s204 + $0x2a0] sm:$0xf]
        %v423 = vld [vmem:[%s204 + $0x2a4] sm:$0xf]
        %v424 = vld [vmem:[%s204 + $0x2a8] sm:$0xf]
        %v425 = vld [vmem:[%s204 + $0x2ac] sm:$0xf]
        %v426 = vld [vmem:[%s204 + $0x2b0] sm:$0xf]
        %v427 = vld [vmem:[%s204 + $0x2b4] sm:$0xf]
        %v428 = vld [vmem:[%s204 + $0x2b8] sm:$0xf]
        %v429 = vld [vmem:[%s204 + $0x2bc] sm:$0xf]
        %v430 = vld [vmem:[%s204 + $0x2c0] sm:$0xf]
        %v431 = vld [vmem:[%s204 + $0x2c4] sm:$0xf]
        %v432 = vld [vmem:[%s204 + $0x2c8] sm:$0xf]
        %v433 = vld [vmem:[%s204 + $0x2cc] sm:$0xf]
        %v434 = vld [vmem:[%s204 + $0x2d0] sm:$0xf]
        %v435 = vld [vmem:[%s204 + $0x2d4] sm:$0xf]
        %v436 = vld [vmem:[%s204 + $0x2d8] sm:$0xf]
        %v437 = vld [vmem:[%s204 + $0x2dc] sm:$0xf]
        %v438 = vld [vmem:[%s204 + $0x2e0] sm:$0xf]
        %v439 = vld [vmem:[%s204 + $0x2e4] sm:$0xf]
        %v440 = vld [vmem:[%s204 + $0x2e8] sm:$0xf]
        %v441 = vld [vmem:[%s204 + $0x2ec] sm:$0xf]
        %v442 = vld [vmem:[%s204 + $0x2f0] sm:$0xf]
        %v443 = vld [vmem:[%s204 + $0x2f4] sm:$0xf]
        %v444 = vld [vmem:[%s204 + $0x2f8] sm:$0xf]
        %v445 = vld [vmem:[%s204 + $0x2fc] sm:$0xf]
        %v446 = vld [vmem:[%s204 + $0x300] sm:$0xf]
        %v447 = vld [vmem:[%s204 + $0x304] sm:$0xf]
        %v448 = vld [vmem:[%s204 + $0x308] sm:$0xf]
        %v449 = vld [vmem:[%s204 + $0x30c] sm:$0xf]
        %v450 = vld [vmem:[%s204 + $0x310] sm:$0xf]
        %v451 = vld [vmem:[%s204 + $0x314] sm:$0xf]
        %v452 = vld [vmem:[%s204 + $0x318] sm:$0xf]
        %v453 = vld [vmem:[%s204 + $0x31c] sm:$0xf]
        %v454 = vld [vmem:[%s204 + $0x320] sm:$0xf]
        %v455 = vld [vmem:[%s204 + $0x324] sm:$0xf]
        %v456 = vld [vmem:[%s204 + $0x328] sm:$0xf]
        %v457 = vld [vmem:[%s204 + $0x32c] sm:$0xf]
        %v458 = vld [vmem:[%s204 + $0x330] sm:$0xf]
        %v459 = vld [vmem:[%s204 + $0x334] sm:$0xf]
        %v460 = vld [vmem:[%s204 + $0x338] sm:$0xf]
        %v461 = vld [vmem:[%s204 + $0x33c] sm:$0xf]
        %v462 = vld [vmem:[%s204 + $0x340] sm:$0xf]
        %v463 = vld [vmem:[%s204 + $0x344] sm:$0xf]
        %v464 = vld [vmem:[%s204 + $0x348] sm:$0xf]
        %v465 = vld [vmem:[%s204 + $0x34c] sm:$0xf]
        %v466 = vld [vmem:[%s204 + $0x350] sm:$0xf]
        %v467 = vld [vmem:[%s204 + $0x354] sm:$0xf]
        %v468 = vld [vmem:[%s204 + $0x358] sm:$0xf]
        %v469 = vld [vmem:[%s204 + $0x35c] sm:$0xf]
        %v470 = vld [vmem:[%s204 + $0x360] sm:$0xf]
        %v471 = vld [vmem:[%s204 + $0x364] sm:$0xf]
        %v472 = vld [vmem:[%s204 + $0x368] sm:$0xf]
        %v473 = vld [vmem:[%s204 + $0x36c] sm:$0xf]
        %v474 = vld [vmem:[%s204 + $0x370] sm:$0xf]
        %v475 = vld [vmem:[%s204 + $0x374] sm:$0xf]
        %v476 = vld [vmem:[%s204 + $0x378] sm:$0xf]
        %v477 = vld [vmem:[%s204 + $0x37c] sm:$0xf]
        %v478 = vld [vmem:[%s204 + $0x380] sm:$0xf]
        %v479 = vld [vmem:[%s204 + $0x384] sm:$0xf]
        %v480 = vld [vmem:[%s204 + $0x388] sm:$0xf]
        %v481 = vld [vmem:[%s204 + $0x38c] sm:$0xf]
        %v482 = vld [vmem:[%s204 + $0x390] sm:$0xf]
        %v483 = vld [vmem:[%s204 + $0x394] sm:$0xf]
        %v484 = vld [vmem:[%s204 + $0x398] sm:$0xf]
        %v485 = vld [vmem:[%s204 + $0x39c] sm:$0xf]
        %v486 = vld [vmem:[%s204 + $0x3a0] sm:$0xf]
        %v487 = vld [vmem:[%s204 + $0x3a4] sm:$0xf]
        %v488 = vld [vmem:[%s204 + $0x3a8] sm:$0xf]
        %v489 = vld [vmem:[%s204 + $0x3ac] sm:$0xf]
        %v490 = vld [vmem:[%s204 + $0x3b0] sm:$0xf]
        %v491 = vld [vmem:[%s204 + $0x3b4] sm:$0xf]
        %v492 = vld [vmem:[%s204 + $0x3b8] sm:$0xf]
        %v493 = vld [vmem:[%s204 + $0x3bc] sm:$0xf]
        %v494 = vld [vmem:[%s204 + $0x3c0] sm:$0xf]
        %v495 = vld [vmem:[%s204 + $0x3c4] sm:$0xf]
        %v496 = vld [vmem:[%s204 + $0x3c8] sm:$0xf]
        %v497 = vld [vmem:[%s204 + $0x3cc] sm:$0xf]
        %v498 = vld [vmem:[%s204 + $0x3d0] sm:$0xf]
        %v499 = vld [vmem:[%s204 + $0x3d4] sm:$0xf]
        %v500 = vld [vmem:[%s204 + $0x3d8] sm:$0xf]
        %v501 = vld [vmem:[%s204 + $0x3dc] sm:$0xf]
        %v502 = vld [vmem:[%s204 + $0x3e0] sm:$0xf]
        %v503 = vld [vmem:[%s204 + $0x3e4] sm:$0xf]
        %v504 = vld [vmem:[%s204 + $0x3e8] sm:$0xf]
        %v505 = vld [vmem:[%s204 + $0x3ec] sm:$0xf]
        %v506 = vld [vmem:[%s204 + $0x3f0] sm:$0xf]
        %v507 = vld [vmem:[%s204 + $0x3f4] sm:$0xf]
        %v508 = vld [vmem:[%s204 + $0x3f8] sm:$0xf]
        %v509 = vld [vmem:[%s204 + $0x3fc] sm:$0xf]
        %v510 = vld [vmem:[%s204 + $0x400] sm:$0xf]
        %v511 = vld [vmem:[%s204 + $0x404] sm:$0xf]
        %v512 = vld [vmem:[%s204 + $0x408] sm:$0xf]
        %v513 = vld [vmem:[%s204 + $0x40c] sm:$0xf]
        %v514 = vld [vmem:[%s204 + $0x410] sm:$0xf]
        %v515 = vld [vmem:[%s204 + $0x414] sm:$0xf]
        %v516 = vld [vmem:[%s204 + $0x418] sm:$0xf]
        %v517 = vld [vmem:[%s204 + $0x41c] sm:$0xf]
        %v518 = vld [vmem:[%s204 + $0x420] sm:$0xf]
        %v519 = vld [vmem:[%s204 + $0x424] sm:$0xf]
        %v520 = vld [vmem:[%s204 + $0x428] sm:$0xf]
        %v521 = vld [vmem:[%s204 + $0x42c] sm:$0xf]
        %v522 = vld [vmem:[%s204 + $0x430] sm:$0xf]
        %v523 = vld [vmem:[%s204 + $0x434] sm:$0xf]
        %v524 = vld [vmem:[%s204 + $0x438] sm:$0xf]
        %v525 = vld [vmem:[%s204 + $0x43c] sm:$0xf]
        %v526 = vld [vmem:[%s204 + $0x440] sm:$0xf]
        %v527 = vld [vmem:[%s204 + $0x444] sm:$0xf]
        %v528 = vld [vmem:[%s204 + $0x448] sm:$0xf]
        %v529 = vld [vmem:[%s204 + $0x44c] sm:$0xf]
        %v530 = vld [vmem:[%s204 + $0x450] sm:$0xf]
        %v531 = vld [vmem:[%s204 + $0x454] sm:$0xf]
        %v532 = vld [vmem:[%s204 + $0x458] sm:$0xf]
        %v533 = vld [vmem:[%s204 + $0x45c] sm:$0xf]
        %v534 = vld [vmem:[%s204 + $0x460] sm:$0xf]
        %v535 = vld [vmem:[%s204 + $0x464] sm:$0xf]
        %v536 = vld [vmem:[%s204 + $0x468] sm:$0xf]
        %v537 = vld [vmem:[%s204 + $0x46c] sm:$0xf]
        %v538 = vld [vmem:[%s204 + $0x470] sm:$0xf]
        %v539 = vld [vmem:[%s204 + $0x474] sm:$0xf]
        %v540 = vld [vmem:[%s204 + $0x478] sm:$0xf]
        %v541 = vld [vmem:[%s204 + $0x47c] sm:$0xf]
        %v542 = vld [vmem:[%s204 + $0x480] sm:$0xf]
        %v543 = vld [vmem:[%s204 + $0x484] sm:$0xf]
        %v544 = vld [vmem:[%s204 + $0x488] sm:$0xf]
        %v545 = vld [vmem:[%s204 + $0x48c] sm:$0xf]
        %v546 = vld [vmem:[%s204 + $0x490] sm:$0xf]
        %v547 = vld [vmem:[%s204 + $0x494] sm:$0xf]
        %v548 = vld [vmem:[%s204 + $0x498] sm:$0xf]
        %v549 = vld [vmem:[%s204 + $0x49c] sm:$0xf]
        %v550 = vld [vmem:[%s204 + $0x4a0] sm:$0xf]
        %v551 = vld [vmem:[%s204 + $0x4a4] sm:$0xf]
        %v552 = vld [vmem:[%s204 + $0x4a8] sm:$0xf]
        %v553 = vld [vmem:[%s204 + $0x4ac] sm:$0xf]
        %v554 = vld [vmem:[%s204 + $0x4b0] sm:$0xf]
        %v555 = vld [vmem:[%s204 + $0x4b4] sm:$0xf]
        %v556 = vld [vmem:[%s204 + $0x4b8] sm:$0xf]
        %v557 = vld [vmem:[%s204 + $0x4bc] sm:$0xf]
        %v558 = vld [vmem:[%s204 + $0x4c0] sm:$0xf]
        %v559 = vld [vmem:[%s204 + $0x4c4] sm:$0xf]
        %v560 = vld [vmem:[%s204 + $0x4c8] sm:$0xf]
        %v561 = vld [vmem:[%s204 + $0x4cc] sm:$0xf]
        %v562 = vld [vmem:[%s204 + $0x4d0] sm:$0xf]
        %v563 = vld [vmem:[%s204 + $0x4d4] sm:$0xf]
        %v564 = vld [vmem:[%s204 + $0x4d8] sm:$0xf]
        %v565 = vld [vmem:[%s204 + $0x4dc] sm:$0xf]
        %v566 = vld [vmem:[%s204 + $0x4e0] sm:$0xf]
        %v567 = vld [vmem:[%s204 + $0x4e4] sm:$0xf]
        %v568 = vld [vmem:[%s204 + $0x4e8] sm:$0xf]
        %v569 = vld [vmem:[%s204 + $0x4ec] sm:$0xf]
        %v570 = vld [vmem:[%s204 + $0x4f0] sm:$0xf]
        %v571 = vld [vmem:[%s204 + $0x4f4] sm:$0xf]
        %v572 = vld [vmem:[%s204 + $0x4f8] sm:$0xf]
        %v573 = vld [vmem:[%s204 + $0x4fc] sm:$0xf]
        %v574 = vld [vmem:[%s204 + $0x500] sm:$0xf]
        %v575 = vld [vmem:[%s204 + $0x504] sm:$0xf]
        %v576 = vld [vmem:[%s204 + $0x508] sm:$0xf]
        %v577 = vld [vmem:[%s204 + $0x50c] sm:$0xf]
        %v578 = vld [vmem:[%s204 + $0x510] sm:$0xf]
        %v579 = vld [vmem:[%s204 + $0x514] sm:$0xf]
        %v580 = vld [vmem:[%s204 + $0x518] sm:$0xf]
        %v581 = vld [vmem:[%s204 + $0x51c] sm:$0xf]
        %v582 = vld [vmem:[%s204 + $0x520] sm:$0xf]
        %v583 = vld [vmem:[%s204 + $0x524] sm:$0xf]
        %v584 = vld [vmem:[%s204 + $0x528] sm:$0xf]
        %v585 = vld [vmem:[%s204 + $0x52c] sm:$0xf]
        %v586 = vld [vmem:[%s204 + $0x530] sm:$0xf]
        %v587 = vld [vmem:[%s204 + $0x534] sm:$0xf]
        %v588 = vld [vmem:[%s204 + $0x538] sm:$0xf]
        %v589 = vld [vmem:[%s204 + $0x53c] sm:$0xf]
        %v590 = vld [vmem:[%s204 + $0x540] sm:$0xf]
        %v591 = vld [vmem:[%s204 + $0x544] sm:$0xf]
        %v592 = vld [vmem:[%s204 + $0x548] sm:$0xf]
        %v593 = vld [vmem:[%s204 + $0x54c] sm:$0xf]
        %v594 = vld [vmem:[%s204 + $0x550] sm:$0xf]
        %v595 = vld [vmem:[%s204 + $0x554] sm:$0xf]
        %v596 = vld [vmem:[%s204 + $0x558] sm:$0xf]
        %v597 = vld [vmem:[%s204 + $0x55c] sm:$0xf]
        %v598 = vld [vmem:[%s204 + $0x560] sm:$0xf]
        %v599 = vld [vmem:[%s204 + $0x564] sm:$0xf]
        %v600 = vld [vmem:[%s204 + $0x568] sm:$0xf]
        %v601 = vld [vmem:[%s204 + $0x56c] sm:$0xf]
        %v602 = vld [vmem:[%s204 + $0x570] sm:$0xf]
        %v603 = vld [vmem:[%s204 + $0x574] sm:$0xf]
        %v604 = vld [vmem:[%s204 + $0x578] sm:$0xf]
        %v605 = vld [vmem:[%s204 + $0x57c] sm:$0xf]
        %v606 = vld [vmem:[%s204 + $0x580] sm:$0xf]
        %v607 = vld [vmem:[%s204 + $0x584] sm:$0xf]
        %v608 = vld [vmem:[%s204 + $0x588] sm:$0xf]
        %v609 = vld [vmem:[%s204 + $0x58c] sm:$0xf]
        %v610 = vld [vmem:[%s204 + $0x590] sm:$0xf]
        %v611 = vld [vmem:[%s204 + $0x594] sm:$0xf]
        %v612 = vld [vmem:[%s204 + $0x598] sm:$0xf]
        %v613 = vld [vmem:[%s204 + $0x59c] sm:$0xf]
        %v614 = vld [vmem:[%s204 + $0x5a0] sm:$0xf]
        %v615 = vld [vmem:[%s204 + $0x5a4] sm:$0xf]
        %v616 = vld [vmem:[%s204 + $0x5a8] sm:$0xf]
        %v617 = vld [vmem:[%s204 + $0x5ac] sm:$0xf]
        %v618 = vld [vmem:[%s204 + $0x5b0] sm:$0xf]
        %v619 = vld [vmem:[%s204 + $0x5b4] sm:$0xf]
        %v620 = vld [vmem:[%s204 + $0x5b8] sm:$0xf]
        %v621 = vld [vmem:[%s204 + $0x5bc] sm:$0xf]
        %v622 = vld [vmem:[%s204 + $0x5c0] sm:$0xf]
        %v623 = vld [vmem:[%s204 + $0x5c4] sm:$0xf]
        %v624 = vld [vmem:[%s204 + $0x5c8] sm:$0xf]
        %v625 = vld [vmem:[%s204 + $0x5cc] sm:$0xf]
        %v626 = vld [vmem:[%s204 + $0x5d0] sm:$0xf]
        %v627 = vld [vmem:[%s204 + $0x5d4] sm:$0xf]
        %v628 = vld [vmem:[%s204 + $0x5d8] sm:$0xf]
        %v629 = vld [vmem:[%s204 + $0x5dc] sm:$0xf]
        %v630 = vld [vmem:[%s204 + $0x5e0] sm:$0xf]
        %v631 = vld [vmem:[%s204 + $0x5e4] sm:$0xf]
        %v632 = vld [vmem:[%s204 + $0x5e8] sm:$0xf]
        %v633 = vld [vmem:[%s204 + $0x5ec] sm:$0xf]
        %v634 = vld [vmem:[%s204 + $0x5f0] sm:$0xf]
        %v635 = vld [vmem:[%s204 + $0x5f4] sm:$0xf]
        %v636 = vld [vmem:[%s204 + $0x5f8] sm:$0xf]
        %v637 = vld [vmem:[%s204 + $0x5fc] sm:$0xf]
        %v638 = vld [vmem:[%s204 + $0x600] sm:$0xf]
        %v639 = vld [vmem:[%s204 + $0x604] sm:$0xf]
        %v640 = vld [vmem:[%s204 + $0x608] sm:$0xf]
        %v641 = vld [vmem:[%s204 + $0x60c] sm:$0xf]
        %v642 = vld [vmem:[%s204 + $0x610] sm:$0xf]
        %v643 = vld [vmem:[%s204 + $0x614] sm:$0xf]
        %v644 = vld [vmem:[%s204 + $0x618] sm:$0xf]
        %v645 = vld [vmem:[%s204 + $0x61c] sm:$0xf]
        %v646 = vld [vmem:[%s204 + $0x620] sm:$0xf]
        %v647 = vld [vmem:[%s204 + $0x624] sm:$0xf]
        %v648 = vld [vmem:[%s204 + $0x628] sm:$0xf]
        %v649 = vld [vmem:[%s204 + $0x62c] sm:$0xf]
        %v650 = vld [vmem:[%s204 + $0x630] sm:$0xf]
        %v651 = vld [vmem:[%s204 + $0x634] sm:$0xf]
        %v652 = vld [vmem:[%s204 + $0x638] sm:$0xf]
        %v653 = vld [vmem:[%s204 + $0x63c] sm:$0xf]
        %v654 = vld [vmem:[%s204 + $0x640] sm:$0xf]
        %v655 = vld [vmem:[%s204 + $0x644] sm:$0xf]
        %v656 = vld [vmem:[%s204 + $0x648] sm:$0xf]
        %v657 = vld [vmem:[%s204 + $0x64c] sm:$0xf]
        %v658 = vld [vmem:[%s204 + $0x650] sm:$0xf]
        %v659 = vld [vmem:[%s204 + $0x654] sm:$0xf]
        %v660 = vld [vmem:[%s204 + $0x658] sm:$0xf]
        %v661 = vld [vmem:[%s204 + $0x65c] sm:$0xf]
        %v662 = vld [vmem:[%s204 + $0x660] sm:$0xf]
        %v663 = vld [vmem:[%s204 + $0x664] sm:$0xf]
        %v664 = vld [vmem:[%s204 + $0x668] sm:$0xf]
        %v665 = vld [vmem:[%s204 + $0x66c] sm:$0xf]
        %v666 = vld [vmem:[%s204 + $0x670] sm:$0xf]
        %v667 = vld [vmem:[%s204 + $0x674] sm:$0xf]
        %v668 = vld [vmem:[%s204 + $0x678] sm:$0xf]
        %v669 = vld [vmem:[%s204 + $0x67c] sm:$0xf]
        %v670 = vld [vmem:[%s204 + $0x680] sm:$0xf]
        %v671 = vld [vmem:[%s204 + $0x684] sm:$0xf]
        %v672 = vld [vmem:[%s204 + $0x688] sm:$0xf]
        %v673 = vld [vmem:[%s204 + $0x68c] sm:$0xf]
        %v674 = vld [vmem:[%s204 + $0x690] sm:$0xf]
        %v675 = vld [vmem:[%s204 + $0x694] sm:$0xf]
        %v676 = vld [vmem:[%s204 + $0x698] sm:$0xf]
        %v677 = vld [vmem:[%s204 + $0x69c] sm:$0xf]
        %v678 = vld [vmem:[%s204 + $0x6a0] sm:$0xf]
        %v679 = vld [vmem:[%s204 + $0x6a4] sm:$0xf]
        %v680 = vld [vmem:[%s204 + $0x6a8] sm:$0xf]
        %v681 = vld [vmem:[%s204 + $0x6ac] sm:$0xf]
        %v682 = vld [vmem:[%s204 + $0x6b0] sm:$0xf]
        %v683 = vld [vmem:[%s204 + $0x6b4] sm:$0xf]
        %v684 = vld [vmem:[%s204 + $0x6b8] sm:$0xf]
        %v685 = vld [vmem:[%s204 + $0x6bc] sm:$0xf]
        %v686 = vld [vmem:[%s204 + $0x6c0] sm:$0xf]
        %v687 = vld [vmem:[%s204 + $0x6c4] sm:$0xf]
        %v688 = vld [vmem:[%s204 + $0x6c8] sm:$0xf]
        %v689 = vld [vmem:[%s204 + $0x6cc] sm:$0xf]
        %v690 = vld [vmem:[%s204 + $0x6d0] sm:$0xf]
        %v691 = vld [vmem:[%s204 + $0x6d4] sm:$0xf]
        %v692 = vld [vmem:[%s204 + $0x6d8] sm:$0xf]
        %v693 = vld [vmem:[%s204 + $0x6dc] sm:$0xf]
        %v694 = vld [vmem:[%s204 + $0x6e0] sm:$0xf]
        %v695 = vld [vmem:[%s204 + $0x6e4] sm:$0xf]
        %v696 = vld [vmem:[%s204 + $0x6e8] sm:$0xf]
        %v697 = vld [vmem:[%s204 + $0x6ec] sm:$0xf]
        %v698 = vld [vmem:[%s204 + $0x6f0] sm:$0xf]
        %v699 = vld [vmem:[%s204 + $0x6f4] sm:$0xf]
        %v700 = vld [vmem:[%s204 + $0x6f8] sm:$0xf]
        %v701 = vld [vmem:[%s204 + $0x6fc] sm:$0xf]
        %v702 = vld [vmem:[%s204 + $0x700] sm:$0xf]
        %v703 = vld [vmem:[%s204 + $0x704] sm:$0xf]
        %v704 = vld [vmem:[%s204 + $0x708] sm:$0xf]
        %v705 = vld [vmem:[%s204 + $0x70c] sm:$0xf]
        %v706 = vld [vmem:[%s204 + $0x710] sm:$0xf]
        %v707 = vld [vmem:[%s204 + $0x714] sm:$0xf]
        %v708 = vld [vmem:[%s204 + $0x718] sm:$0xf]
        %v709 = vld [vmem:[%s204 + $0x71c] sm:$0xf]
        %v710 = vld [vmem:[%s204 + $0x720] sm:$0xf]
        %v711 = vld [vmem:[%s204 + $0x724] sm:$0xf]
        %v712 = vld [vmem:[%s204 + $0x728] sm:$0xf]
        %v713 = vld [vmem:[%s204 + $0x72c] sm:$0xf]
        %v714 = vld [vmem:[%s204 + $0x730] sm:$0xf]
        %v715 = vld [vmem:[%s204 + $0x734] sm:$0xf]
        %v716 = vld [vmem:[%s204 + $0x738] sm:$0xf]
        %v717 = vld [vmem:[%s204 + $0x73c] sm:$0xf]
        %v718 = vld [vmem:[%s204 + $0x740] sm:$0xf]
        %v719 = vld [vmem:[%s204 + $0x744] sm:$0xf]
        %v720 = vld [vmem:[%s204 + $0x748] sm:$0xf]
        %v721 = vld [vmem:[%s204 + $0x74c] sm:$0xf]
        %v722 = vld [vmem:[%s204 + $0x750] sm:$0xf]
        %v723 = vld [vmem:[%s204 + $0x754] sm:$0xf]
        %v724 = vld [vmem:[%s204 + $0x758] sm:$0xf]
        %v725 = vld [vmem:[%s204 + $0x75c] sm:$0xf]
        %v726 = vld [vmem:[%s204 + $0x760] sm:$0xf]
        %v727 = vld [vmem:[%s204 + $0x764] sm:$0xf]
        %v728 = vld [vmem:[%s204 + $0x768] sm:$0xf]
        %v729 = vld [vmem:[%s204 + $0x76c] sm:$0xf]
        %v730 = vld [vmem:[%s204 + $0x770] sm:$0xf]
        %v731 = vld [vmem:[%s204 + $0x774] sm:$0xf]
        %v732 = vld [vmem:[%s204 + $0x778] sm:$0xf]
        %v733 = vld [vmem:[%s204 + $0x77c] sm:$0xf]
        %v734 = vld [vmem:[%s204 + $0x780] sm:$0xf]
        %v735 = vld [vmem:[%s204 + $0x784] sm:$0xf]
        %v736 = vld [vmem:[%s204 + $0x788] sm:$0xf]
        %v737 = vld [vmem:[%s204 + $0x78c] sm:$0xf]
        %v738 = vld [vmem:[%s204 + $0x790] sm:$0xf]
        %v739 = vld [vmem:[%s204 + $0x794] sm:$0xf]
        %v740 = vld [vmem:[%s204 + $0x798] sm:$0xf]
        %v741 = vld [vmem:[%s204 + $0x79c] sm:$0xf]
        %v742 = vld [vmem:[%s204 + $0x7a0] sm:$0xf]
        %v743 = vld [vmem:[%s204 + $0x7a4] sm:$0xf]
        %v744 = vld [vmem:[%s204 + $0x7a8] sm:$0xf]
        %v745 = vld [vmem:[%s204 + $0x7ac] sm:$0xf]
        %v746 = vld [vmem:[%s204 + $0x7b0] sm:$0xf]
        %v747 = vld [vmem:[%s204 + $0x7b4] sm:$0xf]
        %v748 = vld [vmem:[%s204 + $0x7b8] sm:$0xf]
        %v749 = vld [vmem:[%s204 + $0x7bc] sm:$0xf]
        %v750 = vld [vmem:[%s204 + $0x7c0] sm:$0xf]
        %v751 = vld [vmem:[%s204 + $0x7c4] sm:$0xf]
        %v752 = vld [vmem:[%s204 + $0x7c8] sm:$0xf]
        %v753 = vld [vmem:[%s204 + $0x7cc] sm:$0xf]
        %v754 = vld [vmem:[%s204 + $0x7d0] sm:$0xf]
        %v755 = vld [vmem:[%s204 + $0x7d4] sm:$0xf]
        %v756 = vld [vmem:[%s204 + $0x7d8] sm:$0xf]
        %v757 = vld [vmem:[%s204 + $0x7dc] sm:$0xf]
        %v758 = vld [vmem:[%s204 + $0x7e0] sm:$0xf]
        %v759 = vld [vmem:[%s204 + $0x7e4] sm:$0xf]
        %v760 = vld [vmem:[%s204 + $0x7e8] sm:$0xf]
        %v761 = vld [vmem:[%s204 + $0x7ec] sm:$0xf]
        %v762 = vld [vmem:[%s204 + $0x7f0] sm:$0xf]
        %v763 = vld [vmem:[%s204 + $0x7f4] sm:$0xf]
        %v764 = vld [vmem:[%s204 + $0x7f8] sm:$0xf]
        %v765 = vld [vmem:[%s204 + $0x7fc] sm:$0xf]
        %v766 = vld [vmem:[%s214] sm:$0xf]
        %v767 = vld [vmem:[%s214 + $0x4] sm:$0xf]
        %v768 = vld [vmem:[%s214 + $0x8] sm:$0xf]
        %v769 = vld [vmem:[%s214 + $0xc] sm:$0xf]
        %v770 = vld [vmem:[%s214 + $0x10] sm:$0xf]
        %v771 = vld [vmem:[%s214 + $0x14] sm:$0xf]
        %v772 = vld [vmem:[%s214 + $0x18] sm:$0xf]
        %v773 = vld [vmem:[%s214 + $0x1c] sm:$0xf]
        %v774 = vld [vmem:[%s214 + $0x20] sm:$0xf]
        %v775 = vld [vmem:[%s214 + $0x24] sm:$0xf]
        %v776 = vld [vmem:[%s214 + $0x28] sm:$0xf]
        %v777 = vld [vmem:[%s214 + $0x2c] sm:$0xf]
        %v778 = vld [vmem:[%s214 + $0x30] sm:$0xf]
        %v779 = vld [vmem:[%s214 + $0x34] sm:$0xf]
        %v780 = vld [vmem:[%s214 + $0x38] sm:$0xf]
        %v781 = vld [vmem:[%s214 + $0x3c] sm:$0xf]
        %v782 = vld [vmem:[%s214 + $0x40] sm:$0xf]
        %v783 = vld [vmem:[%s214 + $0x44] sm:$0xf]
        %v784 = vld [vmem:[%s214 + $0x48] sm:$0xf]
        %v785 = vld [vmem:[%s214 + $0x4c] sm:$0xf]
        %v786 = vld [vmem:[%s214 + $0x50] sm:$0xf]
        %v787 = vld [vmem:[%s214 + $0x54] sm:$0xf]
        %v788 = vld [vmem:[%s214 + $0x58] sm:$0xf]
        %v789 = vld [vmem:[%s214 + $0x5c] sm:$0xf]
        %v790 = vld [vmem:[%s214 + $0x60] sm:$0xf]
        %v791 = vld [vmem:[%s214 + $0x64] sm:$0xf]
        %v792 = vld [vmem:[%s214 + $0x68] sm:$0xf]
        %v793 = vld [vmem:[%s214 + $0x6c] sm:$0xf]
        %v794 = vld [vmem:[%s214 + $0x70] sm:$0xf]
        %v795 = vld [vmem:[%s214 + $0x74] sm:$0xf]
        %v796 = vld [vmem:[%s214 + $0x78] sm:$0xf]
        %v797 = vld [vmem:[%s214 + $0x7c] sm:$0xf]
        %v798 = vld [vmem:[%s214 + $0x80] sm:$0xf]
        %v799 = vld [vmem:[%s214 + $0x84] sm:$0xf]
        %v800 = vld [vmem:[%s214 + $0x88] sm:$0xf]
        %v801 = vld [vmem:[%s214 + $0x8c] sm:$0xf]
        %v802 = vld [vmem:[%s214 + $0x90] sm:$0xf]
        %v803 = vld [vmem:[%s214 + $0x94] sm:$0xf]
        %v804 = vld [vmem:[%s214 + $0x98] sm:$0xf]
        %v805 = vld [vmem:[%s214 + $0x9c] sm:$0xf]
        %v806 = vld [vmem:[%s214 + $0xa0] sm:$0xf]
        %v807 = vld [vmem:[%s214 + $0xa4] sm:$0xf]
        %v808 = vld [vmem:[%s214 + $0xa8] sm:$0xf]
        %v809 = vld [vmem:[%s214 + $0xac] sm:$0xf]
        %v810 = vld [vmem:[%s214 + $0xb0] sm:$0xf]
        %v811 = vld [vmem:[%s214 + $0xb4] sm:$0xf]
        %v812 = vld [vmem:[%s214 + $0xb8] sm:$0xf]
        %v813 = vld [vmem:[%s214 + $0xbc] sm:$0xf]
        %v814 = vld [vmem:[%s214 + $0xc0] sm:$0xf]
        %v815 = vld [vmem:[%s214 + $0xc4] sm:$0xf]
        %v816 = vld [vmem:[%s214 + $0xc8] sm:$0xf]
        %v817 = vld [vmem:[%s214 + $0xcc] sm:$0xf]
        %v818 = vld [vmem:[%s214 + $0xd0] sm:$0xf]
        %v819 = vld [vmem:[%s214 + $0xd4] sm:$0xf]
        %v820 = vld [vmem:[%s214 + $0xd8] sm:$0xf]
        %v821 = vld [vmem:[%s214 + $0xdc] sm:$0xf]
        %v822 = vld [vmem:[%s214 + $0xe0] sm:$0xf]
        %v823 = vld [vmem:[%s214 + $0xe4] sm:$0xf]
        %v824 = vld [vmem:[%s214 + $0xe8] sm:$0xf]
        %v825 = vld [vmem:[%s214 + $0xec] sm:$0xf]
        %v826 = vld [vmem:[%s214 + $0xf0] sm:$0xf]
        %v827 = vld [vmem:[%s214 + $0xf4] sm:$0xf]
        %v828 = vld [vmem:[%s214 + $0xf8] sm:$0xf]
        %v829 = vld [vmem:[%s214 + $0xfc] sm:$0xf]
        %v830 = vld [vmem:[%s214 + $0x100] sm:$0xf]
        %v831 = vld [vmem:[%s214 + $0x104] sm:$0xf]
        %v832 = vld [vmem:[%s214 + $0x108] sm:$0xf]
        %v833 = vld [vmem:[%s214 + $0x10c] sm:$0xf]
        %v834 = vld [vmem:[%s214 + $0x110] sm:$0xf]
        %v835 = vld [vmem:[%s214 + $0x114] sm:$0xf]
        %v836 = vld [vmem:[%s214 + $0x118] sm:$0xf]
        %v837 = vld [vmem:[%s214 + $0x11c] sm:$0xf]
        %v838 = vld [vmem:[%s214 + $0x120] sm:$0xf]
        %v839 = vld [vmem:[%s214 + $0x124] sm:$0xf]
        %v840 = vld [vmem:[%s214 + $0x128] sm:$0xf]
        %v841 = vld [vmem:[%s214 + $0x12c] sm:$0xf]
        %v842 = vld [vmem:[%s214 + $0x130] sm:$0xf]
        %v843 = vld [vmem:[%s214 + $0x134] sm:$0xf]
        %v844 = vld [vmem:[%s214 + $0x138] sm:$0xf]
        %v845 = vld [vmem:[%s214 + $0x13c] sm:$0xf]
        %v846 = vld [vmem:[%s214 + $0x140] sm:$0xf]
        %v847 = vld [vmem:[%s214 + $0x144] sm:$0xf]
        %v848 = vld [vmem:[%s214 + $0x148] sm:$0xf]
        %v849 = vld [vmem:[%s214 + $0x14c] sm:$0xf]
        %v850 = vld [vmem:[%s214 + $0x150] sm:$0xf]
        %v851 = vld [vmem:[%s214 + $0x154] sm:$0xf]
        %v852 = vld [vmem:[%s214 + $0x158] sm:$0xf]
        %v853 = vld [vmem:[%s214 + $0x15c] sm:$0xf]
        %v854 = vld [vmem:[%s214 + $0x160] sm:$0xf]
        %v855 = vld [vmem:[%s214 + $0x164] sm:$0xf]
        %v856 = vld [vmem:[%s214 + $0x168] sm:$0xf]
        %v857 = vld [vmem:[%s214 + $0x16c] sm:$0xf]
        %v858 = vld [vmem:[%s214 + $0x170] sm:$0xf]
        %v859 = vld [vmem:[%s214 + $0x174] sm:$0xf]
        %v860 = vld [vmem:[%s214 + $0x178] sm:$0xf]
        %v861 = vld [vmem:[%s214 + $0x17c] sm:$0xf]
        %v862 = vld [vmem:[%s214 + $0x180] sm:$0xf]
        %v863 = vld [vmem:[%s214 + $0x184] sm:$0xf]
        %v864 = vld [vmem:[%s214 + $0x188] sm:$0xf]
        %v865 = vld [vmem:[%s214 + $0x18c] sm:$0xf]
        %v866 = vld [vmem:[%s214 + $0x190] sm:$0xf]
        %v867 = vld [vmem:[%s214 + $0x194] sm:$0xf]
        %v868 = vld [vmem:[%s214 + $0x198] sm:$0xf]
        %v869 = vld [vmem:[%s214 + $0x19c] sm:$0xf]
        %v870 = vld [vmem:[%s214 + $0x1a0] sm:$0xf]
        %v871 = vld [vmem:[%s214 + $0x1a4] sm:$0xf]
        %v872 = vld [vmem:[%s214 + $0x1a8] sm:$0xf]
        %v873 = vld [vmem:[%s214 + $0x1ac] sm:$0xf]
        %v874 = vld [vmem:[%s214 + $0x1b0] sm:$0xf]
        %v875 = vld [vmem:[%s214 + $0x1b4] sm:$0xf]
        %v876 = vld [vmem:[%s214 + $0x1b8] sm:$0xf]
        %v877 = vld [vmem:[%s214 + $0x1bc] sm:$0xf]
        %v878 = vld [vmem:[%s214 + $0x1c0] sm:$0xf]
        %v879 = vld [vmem:[%s214 + $0x1c4] sm:$0xf]
        %v880 = vld [vmem:[%s214 + $0x1c8] sm:$0xf]
        %v881 = vld [vmem:[%s214 + $0x1cc] sm:$0xf]
        %v882 = vld [vmem:[%s214 + $0x1d0] sm:$0xf]
        %v883 = vld [vmem:[%s214 + $0x1d4] sm:$0xf]
        %v884 = vld [vmem:[%s214 + $0x1d8] sm:$0xf]
        %v885 = vld [vmem:[%s214 + $0x1dc] sm:$0xf]
        %v886 = vld [vmem:[%s214 + $0x1e0] sm:$0xf]
        %v887 = vld [vmem:[%s214 + $0x1e4] sm:$0xf]
        %v888 = vld [vmem:[%s214 + $0x1e8] sm:$0xf]
        %v889 = vld [vmem:[%s214 + $0x1ec] sm:$0xf]
        %v890 = vld [vmem:[%s214 + $0x1f0] sm:$0xf]
        %v891 = vld [vmem:[%s214 + $0x1f4] sm:$0xf]
        %v892 = vld [vmem:[%s214 + $0x1f8] sm:$0xf]
        %v893 = vld [vmem:[%s214 + $0x1fc] sm:$0xf]
        %v958 = vunpack.c.l.b16 %v254
        %v959 = vunpack.c.l.b16 %v255
        %v960 = vunpack.c.l.b16 %v256
        %v961 = vunpack.c.l.b16 %v257
        %v962 = vunpack.c.l.b16 %v258
        %v963 = vunpack.c.l.b16 %v259
        %v964 = vunpack.c.l.b16 %v260
        %v965 = vunpack.c.l.b16 %v261
        %v966 = vunpack.c.l.b16 %v262
        %v967 = vunpack.c.l.b16 %v263
        %v968 = vunpack.c.l.b16 %v264
        %v969 = vunpack.c.l.b16 %v265
        %v970 = vunpack.c.l.b16 %v266
        %v971 = vunpack.c.l.b16 %v267
        %v972 = vunpack.c.l.b16 %v268
        %v973 = vunpack.c.l.b16 %v269
        %v974 = vunpack.c.l.b16 %v270
        %v975 = vunpack.c.l.b16 %v271
        %v976 = vunpack.c.l.b16 %v272
        %v977 = vunpack.c.l.b16 %v273
        %v978 = vunpack.c.l.b16 %v274
        %v979 = vunpack.c.l.b16 %v275
        %v980 = vunpack.c.l.b16 %v276
        %v981 = vunpack.c.l.b16 %v277
        %v982 = vunpack.c.l.b16 %v278
        %v983 = vunpack.c.l.b16 %v279
        %v984 = vunpack.c.l.b16 %v280
        %v985 = vunpack.c.l.b16 %v281
        %v986 = vunpack.c.l.b16 %v282
        %v987 = vunpack.c.l.b16 %v283
        %v988 = vunpack.c.l.b16 %v284
        %v989 = vunpack.c.l.b16 %v285
        %v990 = vunpack.c.l.b16 %v286
        %v991 = vunpack.c.l.b16 %v287
        %v992 = vunpack.c.l.b16 %v288
        %v993 = vunpack.c.l.b16 %v289
        %v994 = vunpack.c.l.b16 %v290
        %v995 = vunpack.c.l.b16 %v291
        %v996 = vunpack.c.l.b16 %v292
        %v997 = vunpack.c.l.b16 %v293
        %v998 = vunpack.c.l.b16 %v294
        %v999 = vunpack.c.l.b16 %v295
        %v1000 = vunpack.c.l.b16 %v296
        %v1001 = vunpack.c.l.b16 %v297
        %v1002 = vunpack.c.l.b16 %v298
        %v1003 = vunpack.c.l.b16 %v299
        %v1004 = vunpack.c.l.b16 %v300
        %v1005 = vunpack.c.l.b16 %v301
        %v1006 = vunpack.c.l.b16 %v302
        %v1007 = vunpack.c.l.b16 %v303
        %v1008 = vunpack.c.l.b16 %v304
        %v1009 = vunpack.c.l.b16 %v305
        %v1010 = vunpack.c.l.b16 %v306
        %v1011 = vunpack.c.l.b16 %v307
        %v1012 = vunpack.c.l.b16 %v308
        %v1013 = vunpack.c.l.b16 %v309
        %v1014 = vunpack.c.l.b16 %v310
        %v1015 = vunpack.c.l.b16 %v311
        %v1016 = vunpack.c.l.b16 %v312
        %v1017 = vunpack.c.l.b16 %v313
        %v1018 = vunpack.c.l.b16 %v314
        %v1019 = vunpack.c.l.b16 %v315
        %v1020 = vunpack.c.l.b16 %v316
        %v1021 = vunpack.c.l.b16 %v317
        %v1022 = vpack.c.b16 %v959, %v958
        %v1023 = vpack.c.b16 %v961, %v960
        %v1024 = vpack.c.b16 %v963, %v962
        %v1025 = vpack.c.b16 %v965, %v964
        %v1026 = vpack.c.b16 %v967, %v966
        %v1027 = vpack.c.b16 %v969, %v968
        %v1028 = vpack.c.b16 %v971, %v970
        %v1029 = vpack.c.b16 %v973, %v972
        %v1030 = vpack.c.b16 %v975, %v974
        %v1031 = vpack.c.b16 %v977, %v976
        %v1032 = vpack.c.b16 %v979, %v978
        %v1033 = vpack.c.b16 %v981, %v980
        %v1034 = vpack.c.b16 %v983, %v982
        %v1035 = vpack.c.b16 %v985, %v984
        %v1036 = vpack.c.b16 %v987, %v986
        %v1037 = vpack.c.b16 %v989, %v988
        %v1038 = vpack.c.b16 %v991, %v990
        %v1039 = vpack.c.b16 %v993, %v992
        %v1040 = vpack.c.b16 %v995, %v994
        %v1041 = vpack.c.b16 %v997, %v996
        %v1042 = vpack.c.b16 %v999, %v998
        %v1043 = vpack.c.b16 %v1001, %v1000
        %v1044 = vpack.c.b16 %v1003, %v1002
        %v1045 = vpack.c.b16 %v1005, %v1004
        %v1046 = vpack.c.b16 %v1007, %v1006
        %v1047 = vpack.c.b16 %v1009, %v1008
        %v1048 = vpack.c.b16 %v1011, %v1010
        %v1049 = vpack.c.b16 %v1013, %v1012
        %v1050 = vpack.c.b16 %v1015, %v1014
        %v1051 = vpack.c.b16 %v1017, %v1016
        %v1052 = vpack.c.b16 %v1019, %v1018
        %v1053 = vpack.c.b16 %v1021, %v1020
        %v1102 = vunpack.c.l.b16 %v766
        %v1103 = vunpack.c.l.b16 %v767
        %v1104 = vunpack.c.l.b16 %v768
        %v1105 = vunpack.c.l.b16 %v769
        %v1106 = vunpack.c.l.b16 %v770
        %v1107 = vunpack.c.l.b16 %v771
        %v1108 = vunpack.c.l.b16 %v772
        %v1109 = vunpack.c.l.b16 %v773
        %v1110 = vunpack.c.l.b16 %v774
        %v1111 = vunpack.c.l.b16 %v775
        %v1112 = vunpack.c.l.b16 %v776
        %v1113 = vunpack.c.l.b16 %v777
        %v1114 = vunpack.c.l.b16 %v778
        %v1115 = vunpack.c.l.b16 %v779
        %v1116 = vunpack.c.l.b16 %v780
        %v1117 = vunpack.c.l.b16 %v781
        %v1118 = vpack.c.b16 %v1103, %v1102
        %v1119 = vpack.c.b16 %v1105, %v1104
        %v1120 = vpack.c.b16 %v1107, %v1106
        %v1121 = vpack.c.b16 %v1109, %v1108
        %v1122 = vpack.c.b16 %v1111, %v1110
        %v1123 = vpack.c.b16 %v1113, %v1112
        %v1124 = vpack.c.b16 %v1115, %v1114
        %v1125 = vpack.c.b16 %v1117, %v1116
        %1134 = vmatpush.bf16.xpose.msra.mxu0 %v1125
        %1135 = vmatpush.bf16.xpose.msra.mxu0 %v1124
        %1136 = vmatpush.bf16.xpose.msra.mxu0 %v1123
        %1137 = vmatpush.bf16.xpose.msra.mxu0 %v1122
        %1138 = vmatpush.bf16.xpose.msra.mxu0 %v1121
        %1139 = vmatpush.bf16.xpose.msra.mxu0 %v1120
        %1140 = vmatpush.bf16.xpose.msra.mxu0 %v1119
        %1141 = vmatpush.bf16.xpose.msra.mxu0 %v1118
        %1142 = vmatmul.bf16.gmra.mxu0 %v1022
        %v1143 = vpop.f32.mrf.mxu0
        %v1144 = vadd.f32 0.0, %v1143
        %v1145 = vpop.f32.mrf.mxu0
        %v1146 = vadd.f32 0.0, %v1145
        %1147 = vmatmul.bf16.gmra.mxu0 %v1023
        %v1148 = vpop.f32.mrf.mxu0
        %v1149 = vadd.f32 0.0, %v1148
        %v1150 = vpop.f32.mrf.mxu0
        %v1151 = vadd.f32 0.0, %v1150
        %1152 = vmatmul.bf16.gmra.mxu0 %v1024
        %v1153 = vpop.f32.mrf.mxu0
        %v1154 = vadd.f32 0.0, %v1153
        %v1155 = vpop.f32.mrf.mxu0
        %v1156 = vadd.f32 0.0, %v1155
        %1157 = vmatmul.bf16.gmra.mxu0 %v1025
        %v1158 = vpop.f32.mrf.mxu0
        %v1159 = vadd.f32 0.0, %v1158
        %v1160 = vpop.f32.mrf.mxu0
        %v1161 = vadd.f32 0.0, %v1160
        %1162 = vmatmul.bf16.gmra.mxu0 %v1026
        %v1163 = vpop.f32.mrf.mxu0
        %v1164 = vadd.f32 0.0, %v1163
        %v1165 = vpop.f32.mrf.mxu0
        %v1166 = vadd.f32 0.0, %v1165
        %1167 = vmatmul.bf16.gmra.mxu0 %v1027
        %v1168 = vpop.f32.mrf.mxu0
        %v1169 = vadd.f32 0.0, %v1168
        %v1170 = vpop.f32.mrf.mxu0
        %v1171 = vadd.f32 0.0, %v1170
        %1172 = vmatmul.bf16.gmra.mxu0 %v1028
        %v1173 = vpop.f32.mrf.mxu0
        %v1174 = vadd.f32 0.0, %v1173
        %v1175 = vpop.f32.mrf.mxu0
        %v1176 = vadd.f32 0.0, %v1175
        %1177 = vmatmul.bf16.gmra.mxu0 %v1029
        %v1178 = vpop.f32.mrf.mxu0
        %v1179 = vadd.f32 0.0, %v1178
        %v1180 = vpop.f32.mrf.mxu0
        %v1181 = vadd.f32 0.0, %v1180
        %1182 = vmatmul.bf16.gmra.mxu0 %v1030
        %v1183 = vpop.f32.mrf.mxu0
        %v1184 = vadd.f32 0.0, %v1183
        %v1185 = vpop.f32.mrf.mxu0
        %v1186 = vadd.f32 0.0, %v1185
        %1187 = vmatmul.bf16.gmra.mxu0 %v1031
        %v1188 = vpop.f32.mrf.mxu0
        %v1189 = vadd.f32 0.0, %v1188
        %v1190 = vpop.f32.mrf.mxu0
        %v1191 = vadd.f32 0.0, %v1190
        %1192 = vmatmul.bf16.gmra.mxu0 %v1032
        %v1193 = vpop.f32.mrf.mxu0
        %v1194 = vadd.f32 0.0, %v1193
        %v1195 = vpop.f32.mrf.mxu0
        %v1196 = vadd.f32 0.0, %v1195
        %1197 = vmatmul.bf16.gmra.mxu0 %v1033
        %v1198 = vpop.f32.mrf.mxu0
        %v1199 = vadd.f32 0.0, %v1198
        %v1200 = vpop.f32.mrf.mxu0
        %v1201 = vadd.f32 0.0, %v1200
        %1202 = vmatmul.bf16.gmra.mxu0 %v1034
        %v1203 = vpop.f32.mrf.mxu0
        %v1204 = vadd.f32 0.0, %v1203
        %v1205 = vpop.f32.mrf.mxu0
        %v1206 = vadd.f32 0.0, %v1205
        %1207 = vmatmul.bf16.gmra.mxu0 %v1035
        %v1208 = vpop.f32.mrf.mxu0
        %v1209 = vadd.f32 0.0, %v1208
        %v1210 = vpop.f32.mrf.mxu0
        %v1211 = vadd.f32 0.0, %v1210
        %1212 = vmatmul.bf16.gmra.mxu0 %v1036
        %v1213 = vpop.f32.mrf.mxu0
        %v1214 = vadd.f32 0.0, %v1213
        %v1215 = vpop.f32.mrf.mxu0
        %v1216 = vadd.f32 0.0, %v1215
        %1217 = vmatmul.bf16.gmra.mxu0 %v1037
        %v1218 = vpop.f32.mrf.mxu0
        %v1219 = vadd.f32 0.0, %v1218
        %v1220 = vpop.f32.mrf.mxu0
        %v1221 = vadd.f32 0.0, %v1220
        %1222 = vmatmul.bf16.gmra.mxu0 %v1038
        %v1223 = vpop.f32.mrf.mxu0
        %v1224 = vadd.f32 0.0, %v1223
        %v1225 = vpop.f32.mrf.mxu0
        %v1226 = vadd.f32 0.0, %v1225
        %1227 = vmatmul.bf16.gmra.mxu0 %v1039
        %v1228 = vpop.f32.mrf.mxu0
        %v1229 = vadd.f32 0.0, %v1228
        %v1230 = vpop.f32.mrf.mxu0
        %v1231 = vadd.f32 0.0, %v1230
        %1232 = vmatmul.bf16.gmra.mxu0 %v1040
        %v1233 = vpop.f32.mrf.mxu0
        %v1234 = vadd.f32 0.0, %v1233
        %v1235 = vpop.f32.mrf.mxu0
        %v1236 = vadd.f32 0.0, %v1235
        %1237 = vmatmul.bf16.gmra.mxu0 %v1041
        %v1238 = vpop.f32.mrf.mxu0
        %v1239 = vadd.f32 0.0, %v1238
        %v1240 = vpop.f32.mrf.mxu0
        %v1241 = vadd.f32 0.0, %v1240
        %1242 = vmatmul.bf16.gmra.mxu0 %v1042
        %v1243 = vpop.f32.mrf.mxu0
        %v1244 = vadd.f32 0.0, %v1243
        %v1245 = vpop.f32.mrf.mxu0
        %v1246 = vadd.f32 0.0, %v1245
        %1247 = vmatmul.bf16.gmra.mxu0 %v1043
        %v1248 = vpop.f32.mrf.mxu0
        %v1249 = vadd.f32 0.0, %v1248
        %v1250 = vpop.f32.mrf.mxu0
        %v1251 = vadd.f32 0.0, %v1250
        %1252 = vmatmul.bf16.gmra.mxu0 %v1044
        %v1253 = vpop.f32.mrf.mxu0
        %v1254 = vadd.f32 0.0, %v1253
        %v1255 = vpop.f32.mrf.mxu0
        %v1256 = vadd.f32 0.0, %v1255
        %1257 = vmatmul.bf16.gmra.mxu0 %v1045
        %v1258 = vpop.f32.mrf.mxu0
        %v1259 = vadd.f32 0.0, %v1258
        %v1260 = vpop.f32.mrf.mxu0
        %v1261 = vadd.f32 0.0, %v1260
        %1262 = vmatmul.bf16.gmra.mxu0 %v1046
        %v1263 = vpop.f32.mrf.mxu0
        %v1264 = vadd.f32 0.0, %v1263
        %v1265 = vpop.f32.mrf.mxu0
        %v1266 = vadd.f32 0.0, %v1265
        %1267 = vmatmul.bf16.gmra.mxu0 %v1047
        %v1268 = vpop.f32.mrf.mxu0
        %v1269 = vadd.f32 0.0, %v1268
        %v1270 = vpop.f32.mrf.mxu0
        %v1271 = vadd.f32 0.0, %v1270
        %1272 = vmatmul.bf16.gmra.mxu0 %v1048
        %v1273 = vpop.f32.mrf.mxu0
        %v1274 = vadd.f32 0.0, %v1273
        %v1275 = vpop.f32.mrf.mxu0
        %v1276 = vadd.f32 0.0, %v1275
        %1277 = vmatmul.bf16.gmra.mxu0 %v1049
        %v1278 = vpop.f32.mrf.mxu0
        %v1279 = vadd.f32 0.0, %v1278
        %v1280 = vpop.f32.mrf.mxu0
        %v1281 = vadd.f32 0.0, %v1280
        %1282 = vmatmul.bf16.gmra.mxu0 %v1050
        %v1283 = vpop.f32.mrf.mxu0
        %v1284 = vadd.f32 0.0, %v1283
        %v1285 = vpop.f32.mrf.mxu0
        %v1286 = vadd.f32 0.0, %v1285
        %1287 = vmatmul.bf16.gmra.mxu0 %v1051
        %v1288 = vpop.f32.mrf.mxu0
        %v1289 = vadd.f32 0.0, %v1288
        %v1290 = vpop.f32.mrf.mxu0
        %v1291 = vadd.f32 0.0, %v1290
        %1292 = vmatmul.bf16.gmra.mxu0 %v1052
        %v1293 = vpop.f32.mrf.mxu0
        %v1294 = vadd.f32 0.0, %v1293
        %v1295 = vpop.f32.mrf.mxu0
        %v1296 = vadd.f32 0.0, %v1295
        %1297 = vmatmul.bf16.gmra.mxu0 %v1053
        %v1298 = vpop.f32.mrf.mxu0
        %v1299 = vadd.f32 0.0, %v1298
        %v1300 = vpop.f32.mrf.mxu0
        %v1301 = vadd.f32 0.0, %v1300
        %1302 = vdwg.mxu0
        %v1367 = vunpack.c.l.b16 %v318
        %v1368 = vunpack.c.l.b16 %v319
        %v1369 = vunpack.c.l.b16 %v320
        %v1370 = vunpack.c.l.b16 %v321
        %v1371 = vunpack.c.l.b16 %v322
        %v1372 = vunpack.c.l.b16 %v323
        %v1373 = vunpack.c.l.b16 %v324
        %v1374 = vunpack.c.l.b16 %v325
        %v1375 = vunpack.c.l.b16 %v326
        %v1376 = vunpack.c.l.b16 %v327
        %v1377 = vunpack.c.l.b16 %v328
        %v1378 = vunpack.c.l.b16 %v329
        %v1379 = vunpack.c.l.b16 %v330
        %v1380 = vunpack.c.l.b16 %v331
        %v1381 = vunpack.c.l.b16 %v332
        %v1382 = vunpack.c.l.b16 %v333
        %v1383 = vunpack.c.l.b16 %v334
        %v1384 = vunpack.c.l.b16 %v335
        %v1385 = vunpack.c.l.b16 %v336
        %v1386 = vunpack.c.l.b16 %v337
        %v1387 = vunpack.c.l.b16 %v338
        %v1388 = vunpack.c.l.b16 %v339
        %v1389 = vunpack.c.l.b16 %v340
        %v1390 = vunpack.c.l.b16 %v341
        %v1391 = vunpack.c.l.b16 %v342
        %v1392 = vunpack.c.l.b16 %v343
        %v1393 = vunpack.c.l.b16 %v344
        %v1394 = vunpack.c.l.b16 %v345
        %v1395 = vunpack.c.l.b16 %v346
        %v1396 = vunpack.c.l.b16 %v347
        %v1397 = vunpack.c.l.b16 %v348
        %v1398 = vunpack.c.l.b16 %v349
        %v1399 = vunpack.c.l.b16 %v350
        %v1400 = vunpack.c.l.b16 %v351
        %v1401 = vunpack.c.l.b16 %v352
        %v1402 = vunpack.c.l.b16 %v353
        %v1403 = vunpack.c.l.b16 %v354
        %v1404 = vunpack.c.l.b16 %v355
        %v1405 = vunpack.c.l.b16 %v356
        %v1406 = vunpack.c.l.b16 %v357
        %v1407 = vunpack.c.l.b16 %v358
        %v1408 = vunpack.c.l.b16 %v359
        %v1409 = vunpack.c.l.b16 %v360
        %v1410 = vunpack.c.l.b16 %v361
        %v1411 = vunpack.c.l.b16 %v362
        %v1412 = vunpack.c.l.b16 %v363
        %v1413 = vunpack.c.l.b16 %v364
        %v1414 = vunpack.c.l.b16 %v365
        %v1415 = vunpack.c.l.b16 %v366
        %v1416 = vunpack.c.l.b16 %v367
        %v1417 = vunpack.c.l.b16 %v368
        %v1418 = vunpack.c.l.b16 %v369
        %v1419 = vunpack.c.l.b16 %v370
        %v1420 = vunpack.c.l.b16 %v371
        %v1421 = vunpack.c.l.b16 %v372
        %v1422 = vunpack.c.l.b16 %v373
        %v1423 = vunpack.c.l.b16 %v374
        %v1424 = vunpack.c.l.b16 %v375
        %v1425 = vunpack.c.l.b16 %v376
        %v1426 = vunpack.c.l.b16 %v377
        %v1427 = vunpack.c.l.b16 %v378
        %v1428 = vunpack.c.l.b16 %v379
        %v1429 = vunpack.c.l.b16 %v380
        %v1430 = vunpack.c.l.b16 %v381
        %v1431 = vpack.c.b16 %v1368, %v1367
        %v1432 = vpack.c.b16 %v1370, %v1369
        %v1433 = vpack.c.b16 %v1372, %v1371
        %v1434 = vpack.c.b16 %v1374, %v1373
        %v1435 = vpack.c.b16 %v1376, %v1375
        %v1436 = vpack.c.b16 %v1378, %v1377
        %v1437 = vpack.c.b16 %v1380, %v1379
        %v1438 = vpack.c.b16 %v1382, %v1381
        %v1439 = vpack.c.b16 %v1384, %v1383
        %v1440 = vpack.c.b16 %v1386, %v1385
        %v1441 = vpack.c.b16 %v1388, %v1387
        %v1442 = vpack.c.b16 %v1390, %v1389
        %v1443 = vpack.c.b16 %v1392, %v1391
        %v1444 = vpack.c.b16 %v1394, %v1393
        %v1445 = vpack.c.b16 %v1396, %v1395
        %v1446 = vpack.c.b16 %v1398, %v1397
        %v1447 = vpack.c.b16 %v1400, %v1399
        %v1448 = vpack.c.b16 %v1402, %v1401
        %v1449 = vpack.c.b16 %v1404, %v1403
        %v1450 = vpack.c.b16 %v1406, %v1405
        %v1451 = vpack.c.b16 %v1408, %v1407
        %v1452 = vpack.c.b16 %v1410, %v1409
        %v1453 = vpack.c.b16 %v1412, %v1411
        %v1454 = vpack.c.b16 %v1414, %v1413
        %v1455 = vpack.c.b16 %v1416, %v1415
        %v1456 = vpack.c.b16 %v1418, %v1417
        %v1457 = vpack.c.b16 %v1420, %v1419
        %v1458 = vpack.c.b16 %v1422, %v1421
        %v1459 = vpack.c.b16 %v1424, %v1423
        %v1460 = vpack.c.b16 %v1426, %v1425
        %v1461 = vpack.c.b16 %v1428, %v1427
        %v1462 = vpack.c.b16 %v1430, %v1429
        %v1511 = vunpack.c.l.b16 %v782
        %v1512 = vunpack.c.l.b16 %v783
        %v1513 = vunpack.c.l.b16 %v784
        %v1514 = vunpack.c.l.b16 %v785
        %v1515 = vunpack.c.l.b16 %v786
        %v1516 = vunpack.c.l.b16 %v787
        %v1517 = vunpack.c.l.b16 %v788
        %v1518 = vunpack.c.l.b16 %v789
        %v1519 = vunpack.c.l.b16 %v790
        %v1520 = vunpack.c.l.b16 %v791
        %v1521 = vunpack.c.l.b16 %v792
        %v1522 = vunpack.c.l.b16 %v793
        %v1523 = vunpack.c.l.b16 %v794
        %v1524 = vunpack.c.l.b16 %v795
        %v1525 = vunpack.c.l.b16 %v796
        %v1526 = vunpack.c.l.b16 %v797
        %v1527 = vpack.c.b16 %v1512, %v1511
        %v1528 = vpack.c.b16 %v1514, %v1513
        %v1529 = vpack.c.b16 %v1516, %v1515
        %v1530 = vpack.c.b16 %v1518, %v1517
        %v1531 = vpack.c.b16 %v1520, %v1519
        %v1532 = vpack.c.b16 %v1522, %v1521
        %v1533 = vpack.c.b16 %v1524, %v1523
        %v1534 = vpack.c.b16 %v1526, %v1525
        %1543 = vmatpush.bf16.xpose.msra.mxu0 %v1534
        %1544 = vmatpush.bf16.xpose.msra.mxu0 %v1533
        %1545 = vmatpush.bf16.xpose.msra.mxu0 %v1532
        %1546 = vmatpush.bf16.xpose.msra.mxu0 %v1531
        %1547 = vmatpush.bf16.xpose.msra.mxu0 %v1530
        %1548 = vmatpush.bf16.xpose.msra.mxu0 %v1529
        %1549 = vmatpush.bf16.xpose.msra.mxu0 %v1528
        %1550 = vmatpush.bf16.xpose.msra.mxu0 %v1527
        %1551 = vmatmul.bf16.gmra.mxu0 %v1431
        %v1552 = vpop.f32.mrf.mxu0
        %v1553 = vadd.f32 0.0, %v1552
        %v1554 = vpop.f32.mrf.mxu0
        %v1555 = vadd.f32 0.0, %v1554
        %1556 = vmatmul.bf16.gmra.mxu0 %v1432
        %v1557 = vpop.f32.mrf.mxu0
        %v1558 = vadd.f32 0.0, %v1557
        %v1559 = vpop.f32.mrf.mxu0
        %v1560 = vadd.f32 0.0, %v1559
        %1561 = vmatmul.bf16.gmra.mxu0 %v1433
        %v1562 = vpop.f32.mrf.mxu0
        %v1563 = vadd.f32 0.0, %v1562
        %v1564 = vpop.f32.mrf.mxu0
        %v1565 = vadd.f32 0.0, %v1564
        %1566 = vmatmul.bf16.gmra.mxu0 %v1434
        %v1567 = vpop.f32.mrf.mxu0
        %v1568 = vadd.f32 0.0, %v1567
        %v1569 = vpop.f32.mrf.mxu0
        %v1570 = vadd.f32 0.0, %v1569
        %1571 = vmatmul.bf16.gmra.mxu0 %v1435
        %v1572 = vpop.f32.mrf.mxu0
        %v1573 = vadd.f32 0.0, %v1572
        %v1574 = vpop.f32.mrf.mxu0
        %v1575 = vadd.f32 0.0, %v1574
        %1576 = vmatmul.bf16.gmra.mxu0 %v1436
        %v1577 = vpop.f32.mrf.mxu0
        %v1578 = vadd.f32 0.0, %v1577
        %v1579 = vpop.f32.mrf.mxu0
        %v1580 = vadd.f32 0.0, %v1579
        %1581 = vmatmul.bf16.gmra.mxu0 %v1437
        %v1582 = vpop.f32.mrf.mxu0
        %v1583 = vadd.f32 0.0, %v1582
        %v1584 = vpop.f32.mrf.mxu0
        %v1585 = vadd.f32 0.0, %v1584
        %1586 = vmatmul.bf16.gmra.mxu0 %v1438
        %v1587 = vpop.f32.mrf.mxu0
        %v1588 = vadd.f32 0.0, %v1587
        %v1589 = vpop.f32.mrf.mxu0
        %v1590 = vadd.f32 0.0, %v1589
        %1591 = vmatmul.bf16.gmra.mxu0 %v1439
        %v1592 = vpop.f32.mrf.mxu0
        %v1593 = vadd.f32 0.0, %v1592
        %v1594 = vpop.f32.mrf.mxu0
        %v1595 = vadd.f32 0.0, %v1594
        %1596 = vmatmul.bf16.gmra.mxu0 %v1440
        %v1597 = vpop.f32.mrf.mxu0
        %v1598 = vadd.f32 0.0, %v1597
        %v1599 = vpop.f32.mrf.mxu0
        %v1600 = vadd.f32 0.0, %v1599
        %1601 = vmatmul.bf16.gmra.mxu0 %v1441
        %v1602 = vpop.f32.mrf.mxu0
        %v1603 = vadd.f32 0.0, %v1602
        %v1604 = vpop.f32.mrf.mxu0
        %v1605 = vadd.f32 0.0, %v1604
        %1606 = vmatmul.bf16.gmra.mxu0 %v1442
        %v1607 = vpop.f32.mrf.mxu0
        %v1608 = vadd.f32 0.0, %v1607
        %v1609 = vpop.f32.mrf.mxu0
        %v1610 = vadd.f32 0.0, %v1609
        %1611 = vmatmul.bf16.gmra.mxu0 %v1443
        %v1612 = vpop.f32.mrf.mxu0
        %v1613 = vadd.f32 0.0, %v1612
        %v1614 = vpop.f32.mrf.mxu0
        %v1615 = vadd.f32 0.0, %v1614
        %1616 = vmatmul.bf16.gmra.mxu0 %v1444
        %v1617 = vpop.f32.mrf.mxu0
        %v1618 = vadd.f32 0.0, %v1617
        %v1619 = vpop.f32.mrf.mxu0
        %v1620 = vadd.f32 0.0, %v1619
        %1621 = vmatmul.bf16.gmra.mxu0 %v1445
        %v1622 = vpop.f32.mrf.mxu0
        %v1623 = vadd.f32 0.0, %v1622
        %v1624 = vpop.f32.mrf.mxu0
        %v1625 = vadd.f32 0.0, %v1624
        %1626 = vmatmul.bf16.gmra.mxu0 %v1446
        %v1627 = vpop.f32.mrf.mxu0
        %v1628 = vadd.f32 0.0, %v1627
        %v1629 = vpop.f32.mrf.mxu0
        %v1630 = vadd.f32 0.0, %v1629
        %1631 = vmatmul.bf16.gmra.mxu0 %v1447
        %v1632 = vpop.f32.mrf.mxu0
        %v1633 = vadd.f32 0.0, %v1632
        %v1634 = vpop.f32.mrf.mxu0
        %v1635 = vadd.f32 0.0, %v1634
        %1636 = vmatmul.bf16.gmra.mxu0 %v1448
        %v1637 = vpop.f32.mrf.mxu0
        %v1638 = vadd.f32 0.0, %v1637
        %v1639 = vpop.f32.mrf.mxu0
        %v1640 = vadd.f32 0.0, %v1639
        %1641 = vmatmul.bf16.gmra.mxu0 %v1449
        %v1642 = vpop.f32.mrf.mxu0
        %v1643 = vadd.f32 0.0, %v1642
        %v1644 = vpop.f32.mrf.mxu0
        %v1645 = vadd.f32 0.0, %v1644
        %1646 = vmatmul.bf16.gmra.mxu0 %v1450
        %v1647 = vpop.f32.mrf.mxu0
        %v1648 = vadd.f32 0.0, %v1647
        %v1649 = vpop.f32.mrf.mxu0
        %v1650 = vadd.f32 0.0, %v1649
        %1651 = vmatmul.bf16.gmra.mxu0 %v1451
        %v1652 = vpop.f32.mrf.mxu0
        %v1653 = vadd.f32 0.0, %v1652
        %v1654 = vpop.f32.mrf.mxu0
        %v1655 = vadd.f32 0.0, %v1654
        %1656 = vmatmul.bf16.gmra.mxu0 %v1452
        %v1657 = vpop.f32.mrf.mxu0
        %v1658 = vadd.f32 0.0, %v1657
        %v1659 = vpop.f32.mrf.mxu0
        %v1660 = vadd.f32 0.0, %v1659
        %1661 = vmatmul.bf16.gmra.mxu0 %v1453
        %v1662 = vpop.f32.mrf.mxu0
        %v1663 = vadd.f32 0.0, %v1662
        %v1664 = vpop.f32.mrf.mxu0
        %v1665 = vadd.f32 0.0, %v1664
        %1666 = vmatmul.bf16.gmra.mxu0 %v1454
        %v1667 = vpop.f32.mrf.mxu0
        %v1668 = vadd.f32 0.0, %v1667
        %v1669 = vpop.f32.mrf.mxu0
        %v1670 = vadd.f32 0.0, %v1669
        %1671 = vmatmul.bf16.gmra.mxu0 %v1455
        %v1672 = vpop.f32.mrf.mxu0
        %v1673 = vadd.f32 0.0, %v1672
        %v1674 = vpop.f32.mrf.mxu0
        %v1675 = vadd.f32 0.0, %v1674
        %1676 = vmatmul.bf16.gmra.mxu0 %v1456
        %v1677 = vpop.f32.mrf.mxu0
        %v1678 = vadd.f32 0.0, %v1677
        %v1679 = vpop.f32.mrf.mxu0
        %v1680 = vadd.f32 0.0, %v1679
        %1681 = vmatmul.bf16.gmra.mxu0 %v1457
        %v1682 = vpop.f32.mrf.mxu0
        %v1683 = vadd.f32 0.0, %v1682
        %v1684 = vpop.f32.mrf.mxu0
        %v1685 = vadd.f32 0.0, %v1684
        %1686 = vmatmul.bf16.gmra.mxu0 %v1458
        %v1687 = vpop.f32.mrf.mxu0
        %v1688 = vadd.f32 0.0, %v1687
        %v1689 = vpop.f32.mrf.mxu0
        %v1690 = vadd.f32 0.0, %v1689
        %1691 = vmatmul.bf16.gmra.mxu0 %v1459
        %v1692 = vpop.f32.mrf.mxu0
        %v1693 = vadd.f32 0.0, %v1692
        %v1694 = vpop.f32.mrf.mxu0
        %v1695 = vadd.f32 0.0, %v1694
        %1696 = vmatmul.bf16.gmra.mxu0 %v1460
        %v1697 = vpop.f32.mrf.mxu0
        %v1698 = vadd.f32 0.0, %v1697
        %v1699 = vpop.f32.mrf.mxu0
        %v1700 = vadd.f32 0.0, %v1699
        %1701 = vmatmul.bf16.gmra.mxu0 %v1461
        %v1702 = vpop.f32.mrf.mxu0
        %v1703 = vadd.f32 0.0, %v1702
        %v1704 = vpop.f32.mrf.mxu0
        %v1705 = vadd.f32 0.0, %v1704
        %1706 = vmatmul.bf16.gmra.mxu0 %v1462
        %v1707 = vpop.f32.mrf.mxu0
        %v1708 = vadd.f32 0.0, %v1707
        %v1709 = vpop.f32.mrf.mxu0
        %v1710 = vadd.f32 0.0, %v1709
        %1711 = vdwg.mxu0
        %v1776 = vunpack.c.l.b16 %v382
        %v1777 = vunpack.c.l.b16 %v383
        %v1778 = vunpack.c.l.b16 %v384
        %v1779 = vunpack.c.l.b16 %v385
        %v1780 = vunpack.c.l.b16 %v386
        %v1781 = vunpack.c.l.b16 %v387
        %v1782 = vunpack.c.l.b16 %v388
        %v1783 = vunpack.c.l.b16 %v389
        %v1784 = vunpack.c.l.b16 %v390
        %v1785 = vunpack.c.l.b16 %v391
        %v1786 = vunpack.c.l.b16 %v392
        %v1787 = vunpack.c.l.b16 %v393
        %v1788 = vunpack.c.l.b16 %v394
        %v1789 = vunpack.c.l.b16 %v395
        %v1790 = vunpack.c.l.b16 %v396
        %v1791 = vunpack.c.l.b16 %v397
        %v1792 = vunpack.c.l.b16 %v398
        %v1793 = vunpack.c.l.b16 %v399
        %v1794 = vunpack.c.l.b16 %v400
        %v1795 = vunpack.c.l.b16 %v401
        %v1796 = vunpack.c.l.b16 %v402
        %v1797 = vunpack.c.l.b16 %v403
        %v1798 = vunpack.c.l.b16 %v404
        %v1799 = vunpack.c.l.b16 %v405
        %v1800 = vunpack.c.l.b16 %v406
        %v1801 = vunpack.c.l.b16 %v407
        %v1802 = vunpack.c.l.b16 %v408
        %v1803 = vunpack.c.l.b16 %v409
        %v1804 = vunpack.c.l.b16 %v410
        %v1805 = vunpack.c.l.b16 %v411
        %v1806 = vunpack.c.l.b16 %v412
        %v1807 = vunpack.c.l.b16 %v413
        %v1808 = vunpack.c.l.b16 %v414
        %v1809 = vunpack.c.l.b16 %v415
        %v1810 = vunpack.c.l.b16 %v416
        %v1811 = vunpack.c.l.b16 %v417
        %v1812 = vunpack.c.l.b16 %v418
        %v1813 = vunpack.c.l.b16 %v419
        %v1814 = vunpack.c.l.b16 %v420
        %v1815 = vunpack.c.l.b16 %v421
        %v1816 = vunpack.c.l.b16 %v422
        %v1817 = vunpack.c.l.b16 %v423
        %v1818 = vunpack.c.l.b16 %v424
        %v1819 = vunpack.c.l.b16 %v425
        %v1820 = vunpack.c.l.b16 %v426
        %v1821 = vunpack.c.l.b16 %v427
        %v1822 = vunpack.c.l.b16 %v428
        %v1823 = vunpack.c.l.b16 %v429
        %v1824 = vunpack.c.l.b16 %v430
        %v1825 = vunpack.c.l.b16 %v431
        %v1826 = vunpack.c.l.b16 %v432
        %v1827 = vunpack.c.l.b16 %v433
        %v1828 = vunpack.c.l.b16 %v434
        %v1829 = vunpack.c.l.b16 %v435
        %v1830 = vunpack.c.l.b16 %v436
        %v1831 = vunpack.c.l.b16 %v437
        %v1832 = vunpack.c.l.b16 %v438
        %v1833 = vunpack.c.l.b16 %v439
        %v1834 = vunpack.c.l.b16 %v440
        %v1835 = vunpack.c.l.b16 %v441
        %v1836 = vunpack.c.l.b16 %v442
        %v1837 = vunpack.c.l.b16 %v443
        %v1838 = vunpack.c.l.b16 %v444
        %v1839 = vunpack.c.l.b16 %v445
        %v1840 = vpack.c.b16 %v1777, %v1776
        %v1841 = vpack.c.b16 %v1779, %v1778
        %v1842 = vpack.c.b16 %v1781, %v1780
        %v1843 = vpack.c.b16 %v1783, %v1782
        %v1844 = vpack.c.b16 %v1785, %v1784
        %v1845 = vpack.c.b16 %v1787, %v1786
        %v1846 = vpack.c.b16 %v1789, %v1788
        %v1847 = vpack.c.b16 %v1791, %v1790
        %v1848 = vpack.c.b16 %v1793, %v1792
        %v1849 = vpack.c.b16 %v1795, %v1794
        %v1850 = vpack.c.b16 %v1797, %v1796
        %v1851 = vpack.c.b16 %v1799, %v1798
        %v1852 = vpack.c.b16 %v1801, %v1800
        %v1853 = vpack.c.b16 %v1803, %v1802
        %v1854 = vpack.c.b16 %v1805, %v1804
        %v1855 = vpack.c.b16 %v1807, %v1806
        %v1856 = vpack.c.b16 %v1809, %v1808
        %v1857 = vpack.c.b16 %v1811, %v1810
        %v1858 = vpack.c.b16 %v1813, %v1812
        %v1859 = vpack.c.b16 %v1815, %v1814
        %v1860 = vpack.c.b16 %v1817, %v1816
        %v1861 = vpack.c.b16 %v1819, %v1818
        %v1862 = vpack.c.b16 %v1821, %v1820
        %v1863 = vpack.c.b16 %v1823, %v1822
        %v1864 = vpack.c.b16 %v1825, %v1824
        %v1865 = vpack.c.b16 %v1827, %v1826
        %v1866 = vpack.c.b16 %v1829, %v1828
        %v1867 = vpack.c.b16 %v1831, %v1830
        %v1868 = vpack.c.b16 %v1833, %v1832
        %v1869 = vpack.c.b16 %v1835, %v1834
        %v1870 = vpack.c.b16 %v1837, %v1836
        %v1871 = vpack.c.b16 %v1839, %v1838
        %v1920 = vunpack.c.l.b16 %v798
        %v1921 = vunpack.c.l.b16 %v799
        %v1922 = vunpack.c.l.b16 %v800
        %v1923 = vunpack.c.l.b16 %v801
        %v1924 = vunpack.c.l.b16 %v802
        %v1925 = vunpack.c.l.b16 %v803
        %v1926 = vunpack.c.l.b16 %v804
        %v1927 = vunpack.c.l.b16 %v805
        %v1928 = vunpack.c.l.b16 %v806
        %v1929 = vunpack.c.l.b16 %v807
        %v1930 = vunpack.c.l.b16 %v808
        %v1931 = vunpack.c.l.b16 %v809
        %v1932 = vunpack.c.l.b16 %v810
        %v1933 = vunpack.c.l.b16 %v811
        %v1934 = vunpack.c.l.b16 %v812
        %v1935 = vunpack.c.l.b16 %v813
        %v1936 = vpack.c.b16 %v1921, %v1920
        %v1937 = vpack.c.b16 %v1923, %v1922
        %v1938 = vpack.c.b16 %v1925, %v1924
        %v1939 = vpack.c.b16 %v1927, %v1926
        %v1940 = vpack.c.b16 %v1929, %v1928
        %v1941 = vpack.c.b16 %v1931, %v1930
        %v1942 = vpack.c.b16 %v1933, %v1932
        %v1943 = vpack.c.b16 %v1935, %v1934
        %1952 = vmatpush.bf16.xpose.msra.mxu0 %v1943
        %1953 = vmatpush.bf16.xpose.msra.mxu0 %v1942
        %1954 = vmatpush.bf16.xpose.msra.mxu0 %v1941
        %1955 = vmatpush.bf16.xpose.msra.mxu0 %v1940
        %1956 = vmatpush.bf16.xpose.msra.mxu0 %v1939
        %1957 = vmatpush.bf16.xpose.msra.mxu0 %v1938
        %1958 = vmatpush.bf16.xpose.msra.mxu0 %v1937
        %1959 = vmatpush.bf16.xpose.msra.mxu0 %v1936
        %1960 = vmatmul.bf16.gmra.mxu0 %v1840
        %v1961 = vpop.f32.mrf.mxu0
        %v1962 = vadd.f32 0.0, %v1961
        %v1963 = vpop.f32.mrf.mxu0
        %v1964 = vadd.f32 0.0, %v1963
        %1965 = vmatmul.bf16.gmra.mxu0 %v1841
        %v1966 = vpop.f32.mrf.mxu0
        %v1967 = vadd.f32 0.0, %v1966
        %v1968 = vpop.f32.mrf.mxu0
        %v1969 = vadd.f32 0.0, %v1968
        %1970 = vmatmul.bf16.gmra.mxu0 %v1842
        %v1971 = vpop.f32.mrf.mxu0
        %v1972 = vadd.f32 0.0, %v1971
        %v1973 = vpop.f32.mrf.mxu0
        %v1974 = vadd.f32 0.0, %v1973
        %1975 = vmatmul.bf16.gmra.mxu0 %v1843
        %v1976 = vpop.f32.mrf.mxu0
        %v1977 = vadd.f32 0.0, %v1976
        %v1978 = vpop.f32.mrf.mxu0
        %v1979 = vadd.f32 0.0, %v1978
        %1980 = vmatmul.bf16.gmra.mxu0 %v1844
        %v1981 = vpop.f32.mrf.mxu0
        %v1982 = vadd.f32 0.0, %v1981
        %v1983 = vpop.f32.mrf.mxu0
        %v1984 = vadd.f32 0.0, %v1983
        %1985 = vmatmul.bf16.gmra.mxu0 %v1845
        %v1986 = vpop.f32.mrf.mxu0
        %v1987 = vadd.f32 0.0, %v1986
        %v1988 = vpop.f32.mrf.mxu0
        %v1989 = vadd.f32 0.0, %v1988
        %1990 = vmatmul.bf16.gmra.mxu0 %v1846
        %v1991 = vpop.f32.mrf.mxu0
        %v1992 = vadd.f32 0.0, %v1991
        %v1993 = vpop.f32.mrf.mxu0
        %v1994 = vadd.f32 0.0, %v1993
        %1995 = vmatmul.bf16.gmra.mxu0 %v1847
        %v1996 = vpop.f32.mrf.mxu0
        %v1997 = vadd.f32 0.0, %v1996
        %v1998 = vpop.f32.mrf.mxu0
        %v1999 = vadd.f32 0.0, %v1998
        %2000 = vmatmul.bf16.gmra.mxu0 %v1848
        %v2001 = vpop.f32.mrf.mxu0
        %v2002 = vadd.f32 0.0, %v2001
        %v2003 = vpop.f32.mrf.mxu0
        %v2004 = vadd.f32 0.0, %v2003
        %2005 = vmatmul.bf16.gmra.mxu0 %v1849
        %v2006 = vpop.f32.mrf.mxu0
        %v2007 = vadd.f32 0.0, %v2006
        %v2008 = vpop.f32.mrf.mxu0
        %v2009 = vadd.f32 0.0, %v2008
        %2010 = vmatmul.bf16.gmra.mxu0 %v1850
        %v2011 = vpop.f32.mrf.mxu0
        %v2012 = vadd.f32 0.0, %v2011
        %v2013 = vpop.f32.mrf.mxu0
        %v2014 = vadd.f32 0.0, %v2013
        %2015 = vmatmul.bf16.gmra.mxu0 %v1851
        %v2016 = vpop.f32.mrf.mxu0
        %v2017 = vadd.f32 0.0, %v2016
        %v2018 = vpop.f32.mrf.mxu0
        %v2019 = vadd.f32 0.0, %v2018
        %2020 = vmatmul.bf16.gmra.mxu0 %v1852
        %v2021 = vpop.f32.mrf.mxu0
        %v2022 = vadd.f32 0.0, %v2021
        %v2023 = vpop.f32.mrf.mxu0
        %v2024 = vadd.f32 0.0, %v2023
        %2025 = vmatmul.bf16.gmra.mxu0 %v1853
        %v2026 = vpop.f32.mrf.mxu0
        %v2027 = vadd.f32 0.0, %v2026
        %v2028 = vpop.f32.mrf.mxu0
        %v2029 = vadd.f32 0.0, %v2028
        %2030 = vmatmul.bf16.gmra.mxu0 %v1854
        %v2031 = vpop.f32.mrf.mxu0
        %v2032 = vadd.f32 0.0, %v2031
        %v2033 = vpop.f32.mrf.mxu0
        %v2034 = vadd.f32 0.0, %v2033
        %2035 = vmatmul.bf16.gmra.mxu0 %v1855
        %v2036 = vpop.f32.mrf.mxu0
        %v2037 = vadd.f32 0.0, %v2036
        %v2038 = vpop.f32.mrf.mxu0
        %v2039 = vadd.f32 0.0, %v2038
        %2040 = vmatmul.bf16.gmra.mxu0 %v1856
        %v2041 = vpop.f32.mrf.mxu0
        %v2042 = vadd.f32 0.0, %v2041
        %v2043 = vpop.f32.mrf.mxu0
        %v2044 = vadd.f32 0.0, %v2043
        %2045 = vmatmul.bf16.gmra.mxu0 %v1857
        %v2046 = vpop.f32.mrf.mxu0
        %v2047 = vadd.f32 0.0, %v2046
        %v2048 = vpop.f32.mrf.mxu0
        %v2049 = vadd.f32 0.0, %v2048
        %2050 = vmatmul.bf16.gmra.mxu0 %v1858
        %v2051 = vpop.f32.mrf.mxu0
        %v2052 = vadd.f32 0.0, %v2051
        %v2053 = vpop.f32.mrf.mxu0
        %v2054 = vadd.f32 0.0, %v2053
        %2055 = vmatmul.bf16.gmra.mxu0 %v1859
        %v2056 = vpop.f32.mrf.mxu0
        %v2057 = vadd.f32 0.0, %v2056
        %v2058 = vpop.f32.mrf.mxu0
        %v2059 = vadd.f32 0.0, %v2058
        %2060 = vmatmul.bf16.gmra.mxu0 %v1860
        %v2061 = vpop.f32.mrf.mxu0
        %v2062 = vadd.f32 0.0, %v2061
        %v2063 = vpop.f32.mrf.mxu0
        %v2064 = vadd.f32 0.0, %v2063
        %2065 = vmatmul.bf16.gmra.mxu0 %v1861
        %v2066 = vpop.f32.mrf.mxu0
        %v2067 = vadd.f32 0.0, %v2066
        %v2068 = vpop.f32.mrf.mxu0
        %v2069 = vadd.f32 0.0, %v2068
        %2070 = vmatmul.bf16.gmra.mxu0 %v1862
        %v2071 = vpop.f32.mrf.mxu0
        %v2072 = vadd.f32 0.0, %v2071
        %v2073 = vpop.f32.mrf.mxu0
        %v2074 = vadd.f32 0.0, %v2073
        %2075 = vmatmul.bf16.gmra.mxu0 %v1863
        %v2076 = vpop.f32.mrf.mxu0
        %v2077 = vadd.f32 0.0, %v2076
        %v2078 = vpop.f32.mrf.mxu0
        %v2079 = vadd.f32 0.0, %v2078
        %2080 = vmatmul.bf16.gmra.mxu0 %v1864
        %v2081 = vpop.f32.mrf.mxu0
        %v2082 = vadd.f32 0.0, %v2081
        %v2083 = vpop.f32.mrf.mxu0
        %v2084 = vadd.f32 0.0, %v2083
        %2085 = vmatmul.bf16.gmra.mxu0 %v1865
        %v2086 = vpop.f32.mrf.mxu0
        %v2087 = vadd.f32 0.0, %v2086
        %v2088 = vpop.f32.mrf.mxu0
        %v2089 = vadd.f32 0.0, %v2088
        %2090 = vmatmul.bf16.gmra.mxu0 %v1866
        %v2091 = vpop.f32.mrf.mxu0
        %v2092 = vadd.f32 0.0, %v2091
        %v2093 = vpop.f32.mrf.mxu0
        %v2094 = vadd.f32 0.0, %v2093
        %2095 = vmatmul.bf16.gmra.mxu0 %v1867
        %v2096 = vpop.f32.mrf.mxu0
        %v2097 = vadd.f32 0.0, %v2096
        %v2098 = vpop.f32.mrf.mxu0
        %v2099 = vadd.f32 0.0, %v2098
        %2100 = vmatmul.bf16.gmra.mxu0 %v1868
        %v2101 = vpop.f32.mrf.mxu0
        %v2102 = vadd.f32 0.0, %v2101
        %v2103 = vpop.f32.mrf.mxu0
        %v2104 = vadd.f32 0.0, %v2103
        %2105 = vmatmul.bf16.gmra.mxu0 %v1869
        %v2106 = vpop.f32.mrf.mxu0
        %v2107 = vadd.f32 0.0, %v2106
        %v2108 = vpop.f32.mrf.mxu0
        %v2109 = vadd.f32 0.0, %v2108
        %2110 = vmatmul.bf16.gmra.mxu0 %v1870
        %v2111 = vpop.f32.mrf.mxu0
        %v2112 = vadd.f32 0.0, %v2111
        %v2113 = vpop.f32.mrf.mxu0
        %v2114 = vadd.f32 0.0, %v2113
        %2115 = vmatmul.bf16.gmra.mxu0 %v1871
        %v2116 = vpop.f32.mrf.mxu0
        %v2117 = vadd.f32 0.0, %v2116
        %v2118 = vpop.f32.mrf.mxu0
        %v2119 = vadd.f32 0.0, %v2118
        %2120 = vdwg.mxu0
        %v2185 = vunpack.c.l.b16 %v446
        %v2186 = vunpack.c.l.b16 %v447
        %v2187 = vunpack.c.l.b16 %v448
        %v2188 = vunpack.c.l.b16 %v449
        %v2189 = vunpack.c.l.b16 %v450
        %v2190 = vunpack.c.l.b16 %v451
        %v2191 = vunpack.c.l.b16 %v452
        %v2192 = vunpack.c.l.b16 %v453
        %v2193 = vunpack.c.l.b16 %v454
        %v2194 = vunpack.c.l.b16 %v455
        %v2195 = vunpack.c.l.b16 %v456
        %v2196 = vunpack.c.l.b16 %v457
        %v2197 = vunpack.c.l.b16 %v458
        %v2198 = vunpack.c.l.b16 %v459
        %v2199 = vunpack.c.l.b16 %v460
        %v2200 = vunpack.c.l.b16 %v461
        %v2201 = vunpack.c.l.b16 %v462
        %v2202 = vunpack.c.l.b16 %v463
        %v2203 = vunpack.c.l.b16 %v464
        %v2204 = vunpack.c.l.b16 %v465
        %v2205 = vunpack.c.l.b16 %v466
        %v2206 = vunpack.c.l.b16 %v467
        %v2207 = vunpack.c.l.b16 %v468
        %v2208 = vunpack.c.l.b16 %v469
        %v2209 = vunpack.c.l.b16 %v470
        %v2210 = vunpack.c.l.b16 %v471
        %v2211 = vunpack.c.l.b16 %v472
        %v2212 = vunpack.c.l.b16 %v473
        %v2213 = vunpack.c.l.b16 %v474
        %v2214 = vunpack.c.l.b16 %v475
        %v2215 = vunpack.c.l.b16 %v476
        %v2216 = vunpack.c.l.b16 %v477
        %v2217 = vunpack.c.l.b16 %v478
        %v2218 = vunpack.c.l.b16 %v479
        %v2219 = vunpack.c.l.b16 %v480
        %v2220 = vunpack.c.l.b16 %v481
        %v2221 = vunpack.c.l.b16 %v482
        %v2222 = vunpack.c.l.b16 %v483
        %v2223 = vunpack.c.l.b16 %v484
        %v2224 = vunpack.c.l.b16 %v485
        %v2225 = vunpack.c.l.b16 %v486
        %v2226 = vunpack.c.l.b16 %v487
        %v2227 = vunpack.c.l.b16 %v488
        %v2228 = vunpack.c.l.b16 %v489
        %v2229 = vunpack.c.l.b16 %v490
        %v2230 = vunpack.c.l.b16 %v491
        %v2231 = vunpack.c.l.b16 %v492
        %v2232 = vunpack.c.l.b16 %v493
        %v2233 = vunpack.c.l.b16 %v494
        %v2234 = vunpack.c.l.b16 %v495
        %v2235 = vunpack.c.l.b16 %v496
        %v2236 = vunpack.c.l.b16 %v497
        %v2237 = vunpack.c.l.b16 %v498
        %v2238 = vunpack.c.l.b16 %v499
        %v2239 = vunpack.c.l.b16 %v500
        %v2240 = vunpack.c.l.b16 %v501
        %v2241 = vunpack.c.l.b16 %v502
        %v2242 = vunpack.c.l.b16 %v503
        %v2243 = vunpack.c.l.b16 %v504
        %v2244 = vunpack.c.l.b16 %v505
        %v2245 = vunpack.c.l.b16 %v506
        %v2246 = vunpack.c.l.b16 %v507
        %v2247 = vunpack.c.l.b16 %v508
        %v2248 = vunpack.c.l.b16 %v509
        %v2249 = vpack.c.b16 %v2186, %v2185
        %v2250 = vpack.c.b16 %v2188, %v2187
        %v2251 = vpack.c.b16 %v2190, %v2189
        %v2252 = vpack.c.b16 %v2192, %v2191
        %v2253 = vpack.c.b16 %v2194, %v2193
        %v2254 = vpack.c.b16 %v2196, %v2195
        %v2255 = vpack.c.b16 %v2198, %v2197
        %v2256 = vpack.c.b16 %v2200, %v2199
        %v2257 = vpack.c.b16 %v2202, %v2201
        %v2258 = vpack.c.b16 %v2204, %v2203
        %v2259 = vpack.c.b16 %v2206, %v2205
        %v2260 = vpack.c.b16 %v2208, %v2207
        %v2261 = vpack.c.b16 %v2210, %v2209
        %v2262 = vpack.c.b16 %v2212, %v2211
        %v2263 = vpack.c.b16 %v2214, %v2213
        %v2264 = vpack.c.b16 %v2216, %v2215
        %v2265 = vpack.c.b16 %v2218, %v2217
        %v2266 = vpack.c.b16 %v2220, %v2219
        %v2267 = vpack.c.b16 %v2222, %v2221
        %v2268 = vpack.c.b16 %v2224, %v2223
        %v2269 = vpack.c.b16 %v2226, %v2225
        %v2270 = vpack.c.b16 %v2228, %v2227
        %v2271 = vpack.c.b16 %v2230, %v2229
        %v2272 = vpack.c.b16 %v2232, %v2231
        %v2273 = vpack.c.b16 %v2234, %v2233
        %v2274 = vpack.c.b16 %v2236, %v2235
        %v2275 = vpack.c.b16 %v2238, %v2237
        %v2276 = vpack.c.b16 %v2240, %v2239
        %v2277 = vpack.c.b16 %v2242, %v2241
        %v2278 = vpack.c.b16 %v2244, %v2243
        %v2279 = vpack.c.b16 %v2246, %v2245
        %v2280 = vpack.c.b16 %v2248, %v2247
        %v2329 = vunpack.c.l.b16 %v814
        %v2330 = vunpack.c.l.b16 %v815
        %v2331 = vunpack.c.l.b16 %v816
        %v2332 = vunpack.c.l.b16 %v817
        %v2333 = vunpack.c.l.b16 %v818
        %v2334 = vunpack.c.l.b16 %v819
        %v2335 = vunpack.c.l.b16 %v820
        %v2336 = vunpack.c.l.b16 %v821
        %v2337 = vunpack.c.l.b16 %v822
        %v2338 = vunpack.c.l.b16 %v823
        %v2339 = vunpack.c.l.b16 %v824
        %v2340 = vunpack.c.l.b16 %v825
        %v2341 = vunpack.c.l.b16 %v826
        %v2342 = vunpack.c.l.b16 %v827
        %v2343 = vunpack.c.l.b16 %v828
        %v2344 = vunpack.c.l.b16 %v829
        %v2345 = vpack.c.b16 %v2330, %v2329
        %v2346 = vpack.c.b16 %v2332, %v2331
        %v2347 = vpack.c.b16 %v2334, %v2333
        %v2348 = vpack.c.b16 %v2336, %v2335
        %v2349 = vpack.c.b16 %v2338, %v2337
        %v2350 = vpack.c.b16 %v2340, %v2339
        %v2351 = vpack.c.b16 %v2342, %v2341
        %v2352 = vpack.c.b16 %v2344, %v2343
        %2361 = vmatpush.bf16.xpose.msra.mxu0 %v2352
        %2362 = vmatpush.bf16.xpose.msra.mxu0 %v2351
        %2363 = vmatpush.bf16.xpose.msra.mxu0 %v2350
        %2364 = vmatpush.bf16.xpose.msra.mxu0 %v2349
        %2365 = vmatpush.bf16.xpose.msra.mxu0 %v2348
        %2366 = vmatpush.bf16.xpose.msra.mxu0 %v2347
        %2367 = vmatpush.bf16.xpose.msra.mxu0 %v2346
        %2368 = vmatpush.bf16.xpose.msra.mxu0 %v2345
        %2369 = vmatmul.bf16.gmra.mxu0 %v2249
        %v2370 = vpop.f32.mrf.mxu0
        %v2371 = vadd.f32 0.0, %v2370
        %v2372 = vpop.f32.mrf.mxu0
        %v2373 = vadd.f32 0.0, %v2372
        %2374 = vmatmul.bf16.gmra.mxu0 %v2250
        %v2375 = vpop.f32.mrf.mxu0
        %v2376 = vadd.f32 0.0, %v2375
        %v2377 = vpop.f32.mrf.mxu0
        %v2378 = vadd.f32 0.0, %v2377
        %2379 = vmatmul.bf16.gmra.mxu0 %v2251
        %v2380 = vpop.f32.mrf.mxu0
        %v2381 = vadd.f32 0.0, %v2380
        %v2382 = vpop.f32.mrf.mxu0
        %v2383 = vadd.f32 0.0, %v2382
        %2384 = vmatmul.bf16.gmra.mxu0 %v2252
        %v2385 = vpop.f32.mrf.mxu0
        %v2386 = vadd.f32 0.0, %v2385
        %v2387 = vpop.f32.mrf.mxu0
        %v2388 = vadd.f32 0.0, %v2387
        %2389 = vmatmul.bf16.gmra.mxu0 %v2253
        %v2390 = vpop.f32.mrf.mxu0
        %v2391 = vadd.f32 0.0, %v2390
        %v2392 = vpop.f32.mrf.mxu0
        %v2393 = vadd.f32 0.0, %v2392
        %2394 = vmatmul.bf16.gmra.mxu0 %v2254
        %v2395 = vpop.f32.mrf.mxu0
        %v2396 = vadd.f32 0.0, %v2395
        %v2397 = vpop.f32.mrf.mxu0
        %v2398 = vadd.f32 0.0, %v2397
        %2399 = vmatmul.bf16.gmra.mxu0 %v2255
        %v2400 = vpop.f32.mrf.mxu0
        %v2401 = vadd.f32 0.0, %v2400
        %v2402 = vpop.f32.mrf.mxu0
        %v2403 = vadd.f32 0.0, %v2402
        %2404 = vmatmul.bf16.gmra.mxu0 %v2256
        %v2405 = vpop.f32.mrf.mxu0
        %v2406 = vadd.f32 0.0, %v2405
        %v2407 = vpop.f32.mrf.mxu0
        %v2408 = vadd.f32 0.0, %v2407
        %2409 = vmatmul.bf16.gmra.mxu0 %v2257
        %v2410 = vpop.f32.mrf.mxu0
        %v2411 = vadd.f32 0.0, %v2410
        %v2412 = vpop.f32.mrf.mxu0
        %v2413 = vadd.f32 0.0, %v2412
        %2414 = vmatmul.bf16.gmra.mxu0 %v2258
        %v2415 = vpop.f32.mrf.mxu0
        %v2416 = vadd.f32 0.0, %v2415
        %v2417 = vpop.f32.mrf.mxu0
        %v2418 = vadd.f32 0.0, %v2417
        %2419 = vmatmul.bf16.gmra.mxu0 %v2259
        %v2420 = vpop.f32.mrf.mxu0
        %v2421 = vadd.f32 0.0, %v2420
        %v2422 = vpop.f32.mrf.mxu0
        %v2423 = vadd.f32 0.0, %v2422
        %2424 = vmatmul.bf16.gmra.mxu0 %v2260
        %v2425 = vpop.f32.mrf.mxu0
        %v2426 = vadd.f32 0.0, %v2425
        %v2427 = vpop.f32.mrf.mxu0
        %v2428 = vadd.f32 0.0, %v2427
        %2429 = vmatmul.bf16.gmra.mxu0 %v2261
        %v2430 = vpop.f32.mrf.mxu0
        %v2431 = vadd.f32 0.0, %v2430
        %v2432 = vpop.f32.mrf.mxu0
        %v2433 = vadd.f32 0.0, %v2432
        %2434 = vmatmul.bf16.gmra.mxu0 %v2262
        %v2435 = vpop.f32.mrf.mxu0
        %v2436 = vadd.f32 0.0, %v2435
        %v2437 = vpop.f32.mrf.mxu0
        %v2438 = vadd.f32 0.0, %v2437
        %2439 = vmatmul.bf16.gmra.mxu0 %v2263
        %v2440 = vpop.f32.mrf.mxu0
        %v2441 = vadd.f32 0.0, %v2440
        %v2442 = vpop.f32.mrf.mxu0
        %v2443 = vadd.f32 0.0, %v2442
        %2444 = vmatmul.bf16.gmra.mxu0 %v2264
        %v2445 = vpop.f32.mrf.mxu0
        %v2446 = vadd.f32 0.0, %v2445
        %v2447 = vpop.f32.mrf.mxu0
        %v2448 = vadd.f32 0.0, %v2447
        %2449 = vmatmul.bf16.gmra.mxu0 %v2265
        %v2450 = vpop.f32.mrf.mxu0
        %v2451 = vadd.f32 0.0, %v2450
        %v2452 = vpop.f32.mrf.mxu0
        %v2453 = vadd.f32 0.0, %v2452
        %2454 = vmatmul.bf16.gmra.mxu0 %v2266
        %v2455 = vpop.f32.mrf.mxu0
        %v2456 = vadd.f32 0.0, %v2455
        %v2457 = vpop.f32.mrf.mxu0
        %v2458 = vadd.f32 0.0, %v2457
        %2459 = vmatmul.bf16.gmra.mxu0 %v2267
        %v2460 = vpop.f32.mrf.mxu0
        %v2461 = vadd.f32 0.0, %v2460
        %v2462 = vpop.f32.mrf.mxu0
        %v2463 = vadd.f32 0.0, %v2462
        %2464 = vmatmul.bf16.gmra.mxu0 %v2268
        %v2465 = vpop.f32.mrf.mxu0
        %v2466 = vadd.f32 0.0, %v2465
        %v2467 = vpop.f32.mrf.mxu0
        %v2468 = vadd.f32 0.0, %v2467
        %2469 = vmatmul.bf16.gmra.mxu0 %v2269
        %v2470 = vpop.f32.mrf.mxu0
        %v2471 = vadd.f32 0.0, %v2470
        %v2472 = vpop.f32.mrf.mxu0
        %v2473 = vadd.f32 0.0, %v2472
        %2474 = vmatmul.bf16.gmra.mxu0 %v2270
        %v2475 = vpop.f32.mrf.mxu0
        %v2476 = vadd.f32 0.0, %v2475
        %v2477 = vpop.f32.mrf.mxu0
        %v2478 = vadd.f32 0.0, %v2477
        %2479 = vmatmul.bf16.gmra.mxu0 %v2271
        %v2480 = vpop.f32.mrf.mxu0
        %v2481 = vadd.f32 0.0, %v2480
        %v2482 = vpop.f32.mrf.mxu0
        %v2483 = vadd.f32 0.0, %v2482
        %2484 = vmatmul.bf16.gmra.mxu0 %v2272
        %v2485 = vpop.f32.mrf.mxu0
        %v2486 = vadd.f32 0.0, %v2485
        %v2487 = vpop.f32.mrf.mxu0
        %v2488 = vadd.f32 0.0, %v2487
        %2489 = vmatmul.bf16.gmra.mxu0 %v2273
        %v2490 = vpop.f32.mrf.mxu0
        %v2491 = vadd.f32 0.0, %v2490
        %v2492 = vpop.f32.mrf.mxu0
        %v2493 = vadd.f32 0.0, %v2492
        %2494 = vmatmul.bf16.gmra.mxu0 %v2274
        %v2495 = vpop.f32.mrf.mxu0
        %v2496 = vadd.f32 0.0, %v2495
        %v2497 = vpop.f32.mrf.mxu0
        %v2498 = vadd.f32 0.0, %v2497
        %2499 = vmatmul.bf16.gmra.mxu0 %v2275
        %v2500 = vpop.f32.mrf.mxu0
        %v2501 = vadd.f32 0.0, %v2500
        %v2502 = vpop.f32.mrf.mxu0
        %v2503 = vadd.f32 0.0, %v2502
        %2504 = vmatmul.bf16.gmra.mxu0 %v2276
        %v2505 = vpop.f32.mrf.mxu0
        %v2506 = vadd.f32 0.0, %v2505
        %v2507 = vpop.f32.mrf.mxu0
        %v2508 = vadd.f32 0.0, %v2507
        %2509 = vmatmul.bf16.gmra.mxu0 %v2277
        %v2510 = vpop.f32.mrf.mxu0
        %v2511 = vadd.f32 0.0, %v2510
        %v2512 = vpop.f32.mrf.mxu0
        %v2513 = vadd.f32 0.0, %v2512
        %2514 = vmatmul.bf16.gmra.mxu0 %v2278
        %v2515 = vpop.f32.mrf.mxu0
        %v2516 = vadd.f32 0.0, %v2515
        %v2517 = vpop.f32.mrf.mxu0
        %v2518 = vadd.f32 0.0, %v2517
        %2519 = vmatmul.bf16.gmra.mxu0 %v2279
        %v2520 = vpop.f32.mrf.mxu0
        %v2521 = vadd.f32 0.0, %v2520
        %v2522 = vpop.f32.mrf.mxu0
        %v2523 = vadd.f32 0.0, %v2522
        %2524 = vmatmul.bf16.gmra.mxu0 %v2280
        %v2525 = vpop.f32.mrf.mxu0
        %v2526 = vadd.f32 0.0, %v2525
        %v2527 = vpop.f32.mrf.mxu0
        %v2528 = vadd.f32 0.0, %v2527
        %2529 = vdwg.mxu0
        %v2594 = vunpack.c.l.b16 %v510
        %v2595 = vunpack.c.l.b16 %v511
        %v2596 = vunpack.c.l.b16 %v512
        %v2597 = vunpack.c.l.b16 %v513
        %v2598 = vunpack.c.l.b16 %v514
        %v2599 = vunpack.c.l.b16 %v515
        %v2600 = vunpack.c.l.b16 %v516
        %v2601 = vunpack.c.l.b16 %v517
        %v2602 = vunpack.c.l.b16 %v518
        %v2603 = vunpack.c.l.b16 %v519
        %v2604 = vunpack.c.l.b16 %v520
        %v2605 = vunpack.c.l.b16 %v521
        %v2606 = vunpack.c.l.b16 %v522
        %v2607 = vunpack.c.l.b16 %v523
        %v2608 = vunpack.c.l.b16 %v524
        %v2609 = vunpack.c.l.b16 %v525
        %v2610 = vunpack.c.l.b16 %v526
        %v2611 = vunpack.c.l.b16 %v527
        %v2612 = vunpack.c.l.b16 %v528
        %v2613 = vunpack.c.l.b16 %v529
        %v2614 = vunpack.c.l.b16 %v530
        %v2615 = vunpack.c.l.b16 %v531
        %v2616 = vunpack.c.l.b16 %v532
        %v2617 = vunpack.c.l.b16 %v533
        %v2618 = vunpack.c.l.b16 %v534
        %v2619 = vunpack.c.l.b16 %v535
        %v2620 = vunpack.c.l.b16 %v536
        %v2621 = vunpack.c.l.b16 %v537
        %v2622 = vunpack.c.l.b16 %v538
        %v2623 = vunpack.c.l.b16 %v539
        %v2624 = vunpack.c.l.b16 %v540
        %v2625 = vunpack.c.l.b16 %v541
        %v2626 = vunpack.c.l.b16 %v542
        %v2627 = vunpack.c.l.b16 %v543
        %v2628 = vunpack.c.l.b16 %v544
        %v2629 = vunpack.c.l.b16 %v545
        %v2630 = vunpack.c.l.b16 %v546
        %v2631 = vunpack.c.l.b16 %v547
        %v2632 = vunpack.c.l.b16 %v548
        %v2633 = vunpack.c.l.b16 %v549
        %v2634 = vunpack.c.l.b16 %v550
        %v2635 = vunpack.c.l.b16 %v551
        %v2636 = vunpack.c.l.b16 %v552
        %v2637 = vunpack.c.l.b16 %v553
        %v2638 = vunpack.c.l.b16 %v554
        %v2639 = vunpack.c.l.b16 %v555
        %v2640 = vunpack.c.l.b16 %v556
        %v2641 = vunpack.c.l.b16 %v557
        %v2642 = vunpack.c.l.b16 %v558
        %v2643 = vunpack.c.l.b16 %v559
        %v2644 = vunpack.c.l.b16 %v560
        %v2645 = vunpack.c.l.b16 %v561
        %v2646 = vunpack.c.l.b16 %v562
        %v2647 = vunpack.c.l.b16 %v563
        %v2648 = vunpack.c.l.b16 %v564
        %v2649 = vunpack.c.l.b16 %v565
        %v2650 = vunpack.c.l.b16 %v566
        %v2651 = vunpack.c.l.b16 %v567
        %v2652 = vunpack.c.l.b16 %v568
        %v2653 = vunpack.c.l.b16 %v569
        %v2654 = vunpack.c.l.b16 %v570
        %v2655 = vunpack.c.l.b16 %v571
        %v2656 = vunpack.c.l.b16 %v572
        %v2657 = vunpack.c.l.b16 %v573
        %v2658 = vpack.c.b16 %v2595, %v2594
        %v2659 = vpack.c.b16 %v2597, %v2596
        %v2660 = vpack.c.b16 %v2599, %v2598
        %v2661 = vpack.c.b16 %v2601, %v2600
        %v2662 = vpack.c.b16 %v2603, %v2602
        %v2663 = vpack.c.b16 %v2605, %v2604
        %v2664 = vpack.c.b16 %v2607, %v2606
        %v2665 = vpack.c.b16 %v2609, %v2608
        %v2666 = vpack.c.b16 %v2611, %v2610
        %v2667 = vpack.c.b16 %v2613, %v2612
        %v2668 = vpack.c.b16 %v2615, %v2614
        %v2669 = vpack.c.b16 %v2617, %v2616
        %v2670 = vpack.c.b16 %v2619, %v2618
        %v2671 = vpack.c.b16 %v2621, %v2620
        %v2672 = vpack.c.b16 %v2623, %v2622
        %v2673 = vpack.c.b16 %v2625, %v2624
        %v2674 = vpack.c.b16 %v2627, %v2626
        %v2675 = vpack.c.b16 %v2629, %v2628
        %v2676 = vpack.c.b16 %v2631, %v2630
        %v2677 = vpack.c.b16 %v2633, %v2632
        %v2678 = vpack.c.b16 %v2635, %v2634
        %v2679 = vpack.c.b16 %v2637, %v2636
        %v2680 = vpack.c.b16 %v2639, %v2638
        %v2681 = vpack.c.b16 %v2641, %v2640
        %v2682 = vpack.c.b16 %v2643, %v2642
        %v2683 = vpack.c.b16 %v2645, %v2644
        %v2684 = vpack.c.b16 %v2647, %v2646
        %v2685 = vpack.c.b16 %v2649, %v2648
        %v2686 = vpack.c.b16 %v2651, %v2650
        %v2687 = vpack.c.b16 %v2653, %v2652
        %v2688 = vpack.c.b16 %v2655, %v2654
        %v2689 = vpack.c.b16 %v2657, %v2656
        %v2738 = vunpack.c.l.b16 %v830
        %v2739 = vunpack.c.l.b16 %v831
        %v2740 = vunpack.c.l.b16 %v832
        %v2741 = vunpack.c.l.b16 %v833
        %v2742 = vunpack.c.l.b16 %v834
        %v2743 = vunpack.c.l.b16 %v835
        %v2744 = vunpack.c.l.b16 %v836
        %v2745 = vunpack.c.l.b16 %v837
        %v2746 = vunpack.c.l.b16 %v838
        %v2747 = vunpack.c.l.b16 %v839
        %v2748 = vunpack.c.l.b16 %v840
        %v2749 = vunpack.c.l.b16 %v841
        %v2750 = vunpack.c.l.b16 %v842
        %v2751 = vunpack.c.l.b16 %v843
        %v2752 = vunpack.c.l.b16 %v844
        %v2753 = vunpack.c.l.b16 %v845
        %v2754 = vpack.c.b16 %v2739, %v2738
        %v2755 = vpack.c.b16 %v2741, %v2740
        %v2756 = vpack.c.b16 %v2743, %v2742
        %v2757 = vpack.c.b16 %v2745, %v2744
        %v2758 = vpack.c.b16 %v2747, %v2746
        %v2759 = vpack.c.b16 %v2749, %v2748
        %v2760 = vpack.c.b16 %v2751, %v2750
        %v2761 = vpack.c.b16 %v2753, %v2752
        %2770 = vmatpush.bf16.xpose.msra.mxu0 %v2761
        %2771 = vmatpush.bf16.xpose.msra.mxu0 %v2760
        %2772 = vmatpush.bf16.xpose.msra.mxu0 %v2759
        %2773 = vmatpush.bf16.xpose.msra.mxu0 %v2758
        %2774 = vmatpush.bf16.xpose.msra.mxu0 %v2757
        %2775 = vmatpush.bf16.xpose.msra.mxu0 %v2756
        %2776 = vmatpush.bf16.xpose.msra.mxu0 %v2755
        %2777 = vmatpush.bf16.xpose.msra.mxu0 %v2754
        %2778 = vmatmul.bf16.gmra.mxu0 %v2658
        %v2779 = vpop.f32.mrf.mxu0
        %v2780 = vadd.f32 0.0, %v2779
        %v2781 = vpop.f32.mrf.mxu0
        %v2782 = vadd.f32 0.0, %v2781
        %2783 = vmatmul.bf16.gmra.mxu0 %v2659
        %v2784 = vpop.f32.mrf.mxu0
        %v2785 = vadd.f32 0.0, %v2784
        %v2786 = vpop.f32.mrf.mxu0
        %v2787 = vadd.f32 0.0, %v2786
        %2788 = vmatmul.bf16.gmra.mxu0 %v2660
        %v2789 = vpop.f32.mrf.mxu0
        %v2790 = vadd.f32 0.0, %v2789
        %v2791 = vpop.f32.mrf.mxu0
        %v2792 = vadd.f32 0.0, %v2791
        %2793 = vmatmul.bf16.gmra.mxu0 %v2661
        %v2794 = vpop.f32.mrf.mxu0
        %v2795 = vadd.f32 0.0, %v2794
        %v2796 = vpop.f32.mrf.mxu0
        %v2797 = vadd.f32 0.0, %v2796
        %2798 = vmatmul.bf16.gmra.mxu0 %v2662
        %v2799 = vpop.f32.mrf.mxu0
        %v2800 = vadd.f32 0.0, %v2799
        %v2801 = vpop.f32.mrf.mxu0
        %v2802 = vadd.f32 0.0, %v2801
        %2803 = vmatmul.bf16.gmra.mxu0 %v2663
        %v2804 = vpop.f32.mrf.mxu0
        %v2805 = vadd.f32 0.0, %v2804
        %v2806 = vpop.f32.mrf.mxu0
        %v2807 = vadd.f32 0.0, %v2806
        %2808 = vmatmul.bf16.gmra.mxu0 %v2664
        %v2809 = vpop.f32.mrf.mxu0
        %v2810 = vadd.f32 0.0, %v2809
        %v2811 = vpop.f32.mrf.mxu0
        %v2812 = vadd.f32 0.0, %v2811
        %2813 = vmatmul.bf16.gmra.mxu0 %v2665
        %v2814 = vpop.f32.mrf.mxu0
        %v2815 = vadd.f32 0.0, %v2814
        %v2816 = vpop.f32.mrf.mxu0
        %v2817 = vadd.f32 0.0, %v2816
        %2818 = vmatmul.bf16.gmra.mxu0 %v2666
        %v2819 = vpop.f32.mrf.mxu0
        %v2820 = vadd.f32 0.0, %v2819
        %v2821 = vpop.f32.mrf.mxu0
        %v2822 = vadd.f32 0.0, %v2821
        %2823 = vmatmul.bf16.gmra.mxu0 %v2667
        %v2824 = vpop.f32.mrf.mxu0
        %v2825 = vadd.f32 0.0, %v2824
        %v2826 = vpop.f32.mrf.mxu0
        %v2827 = vadd.f32 0.0, %v2826
        %2828 = vmatmul.bf16.gmra.mxu0 %v2668
        %v2829 = vpop.f32.mrf.mxu0
        %v2830 = vadd.f32 0.0, %v2829
        %v2831 = vpop.f32.mrf.mxu0
        %v2832 = vadd.f32 0.0, %v2831
        %2833 = vmatmul.bf16.gmra.mxu0 %v2669
        %v2834 = vpop.f32.mrf.mxu0
        %v2835 = vadd.f32 0.0, %v2834
        %v2836 = vpop.f32.mrf.mxu0
        %v2837 = vadd.f32 0.0, %v2836
        %2838 = vmatmul.bf16.gmra.mxu0 %v2670
        %v2839 = vpop.f32.mrf.mxu0
        %v2840 = vadd.f32 0.0, %v2839
        %v2841 = vpop.f32.mrf.mxu0
        %v2842 = vadd.f32 0.0, %v2841
        %2843 = vmatmul.bf16.gmra.mxu0 %v2671
        %v2844 = vpop.f32.mrf.mxu0
        %v2845 = vadd.f32 0.0, %v2844
        %v2846 = vpop.f32.mrf.mxu0
        %v2847 = vadd.f32 0.0, %v2846
        %2848 = vmatmul.bf16.gmra.mxu0 %v2672
        %v2849 = vpop.f32.mrf.mxu0
        %v2850 = vadd.f32 0.0, %v2849
        %v2851 = vpop.f32.mrf.mxu0
        %v2852 = vadd.f32 0.0, %v2851
        %2853 = vmatmul.bf16.gmra.mxu0 %v2673
        %v2854 = vpop.f32.mrf.mxu0
        %v2855 = vadd.f32 0.0, %v2854
        %v2856 = vpop.f32.mrf.mxu0
        %v2857 = vadd.f32 0.0, %v2856
        %2858 = vmatmul.bf16.gmra.mxu0 %v2674
        %v2859 = vpop.f32.mrf.mxu0
        %v2860 = vadd.f32 0.0, %v2859
        %v2861 = vpop.f32.mrf.mxu0
        %v2862 = vadd.f32 0.0, %v2861
        %2863 = vmatmul.bf16.gmra.mxu0 %v2675
        %v2864 = vpop.f32.mrf.mxu0
        %v2865 = vadd.f32 0.0, %v2864
        %v2866 = vpop.f32.mrf.mxu0
        %v2867 = vadd.f32 0.0, %v2866
        %2868 = vmatmul.bf16.gmra.mxu0 %v2676
        %v2869 = vpop.f32.mrf.mxu0
        %v2870 = vadd.f32 0.0, %v2869
        %v2871 = vpop.f32.mrf.mxu0
        %v2872 = vadd.f32 0.0, %v2871
        %2873 = vmatmul.bf16.gmra.mxu0 %v2677
        %v2874 = vpop.f32.mrf.mxu0
        %v2875 = vadd.f32 0.0, %v2874
        %v2876 = vpop.f32.mrf.mxu0
        %v2877 = vadd.f32 0.0, %v2876
        %2878 = vmatmul.bf16.gmra.mxu0 %v2678
        %v2879 = vpop.f32.mrf.mxu0
        %v2880 = vadd.f32 0.0, %v2879
        %v2881 = vpop.f32.mrf.mxu0
        %v2882 = vadd.f32 0.0, %v2881
        %2883 = vmatmul.bf16.gmra.mxu0 %v2679
        %v2884 = vpop.f32.mrf.mxu0
        %v2885 = vadd.f32 0.0, %v2884
        %v2886 = vpop.f32.mrf.mxu0
        %v2887 = vadd.f32 0.0, %v2886
        %2888 = vmatmul.bf16.gmra.mxu0 %v2680
        %v2889 = vpop.f32.mrf.mxu0
        %v2890 = vadd.f32 0.0, %v2889
        %v2891 = vpop.f32.mrf.mxu0
        %v2892 = vadd.f32 0.0, %v2891
        %2893 = vmatmul.bf16.gmra.mxu0 %v2681
        %v2894 = vpop.f32.mrf.mxu0
        %v2895 = vadd.f32 0.0, %v2894
        %v2896 = vpop.f32.mrf.mxu0
        %v2897 = vadd.f32 0.0, %v2896
        %2898 = vmatmul.bf16.gmra.mxu0 %v2682
        %v2899 = vpop.f32.mrf.mxu0
        %v2900 = vadd.f32 0.0, %v2899
        %v2901 = vpop.f32.mrf.mxu0
        %v2902 = vadd.f32 0.0, %v2901
        %2903 = vmatmul.bf16.gmra.mxu0 %v2683
        %v2904 = vpop.f32.mrf.mxu0
        %v2905 = vadd.f32 0.0, %v2904
        %v2906 = vpop.f32.mrf.mxu0
        %v2907 = vadd.f32 0.0, %v2906
        %2908 = vmatmul.bf16.gmra.mxu0 %v2684
        %v2909 = vpop.f32.mrf.mxu0
        %v2910 = vadd.f32 0.0, %v2909
        %v2911 = vpop.f32.mrf.mxu0
        %v2912 = vadd.f32 0.0, %v2911
        %2913 = vmatmul.bf16.gmra.mxu0 %v2685
        %v2914 = vpop.f32.mrf.mxu0
        %v2915 = vadd.f32 0.0, %v2914
        %v2916 = vpop.f32.mrf.mxu0
        %v2917 = vadd.f32 0.0, %v2916
        %2918 = vmatmul.bf16.gmra.mxu0 %v2686
        %v2919 = vpop.f32.mrf.mxu0
        %v2920 = vadd.f32 0.0, %v2919
        %v2921 = vpop.f32.mrf.mxu0
        %v2922 = vadd.f32 0.0, %v2921
        %2923 = vmatmul.bf16.gmra.mxu0 %v2687
        %v2924 = vpop.f32.mrf.mxu0
        %v2925 = vadd.f32 0.0, %v2924
        %v2926 = vpop.f32.mrf.mxu0
        %v2927 = vadd.f32 0.0, %v2926
        %2928 = vmatmul.bf16.gmra.mxu0 %v2688
        %v2929 = vpop.f32.mrf.mxu0
        %v2930 = vadd.f32 0.0, %v2929
        %v2931 = vpop.f32.mrf.mxu0
        %v2932 = vadd.f32 0.0, %v2931
        %2933 = vmatmul.bf16.gmra.mxu0 %v2689
        %v2934 = vpop.f32.mrf.mxu0
        %v2935 = vadd.f32 0.0, %v2934
        %v2936 = vpop.f32.mrf.mxu0
        %v2937 = vadd.f32 0.0, %v2936
        %2938 = vdwg.mxu0
        %v3003 = vunpack.c.l.b16 %v574
        %v3004 = vunpack.c.l.b16 %v575
        %v3005 = vunpack.c.l.b16 %v576
        %v3006 = vunpack.c.l.b16 %v577
        %v3007 = vunpack.c.l.b16 %v578
        %v3008 = vunpack.c.l.b16 %v579
        %v3009 = vunpack.c.l.b16 %v580
        %v3010 = vunpack.c.l.b16 %v581
        %v3011 = vunpack.c.l.b16 %v582
        %v3012 = vunpack.c.l.b16 %v583
        %v3013 = vunpack.c.l.b16 %v584
        %v3014 = vunpack.c.l.b16 %v585
        %v3015 = vunpack.c.l.b16 %v586
        %v3016 = vunpack.c.l.b16 %v587
        %v3017 = vunpack.c.l.b16 %v588
        %v3018 = vunpack.c.l.b16 %v589
        %v3019 = vunpack.c.l.b16 %v590
        %v3020 = vunpack.c.l.b16 %v591
        %v3021 = vunpack.c.l.b16 %v592
        %v3022 = vunpack.c.l.b16 %v593
        %v3023 = vunpack.c.l.b16 %v594
        %v3024 = vunpack.c.l.b16 %v595
        %v3025 = vunpack.c.l.b16 %v596
        %v3026 = vunpack.c.l.b16 %v597
        %v3027 = vunpack.c.l.b16 %v598
        %v3028 = vunpack.c.l.b16 %v599
        %v3029 = vunpack.c.l.b16 %v600
        %v3030 = vunpack.c.l.b16 %v601
        %v3031 = vunpack.c.l.b16 %v602
        %v3032 = vunpack.c.l.b16 %v603
        %v3033 = vunpack.c.l.b16 %v604
        %v3034 = vunpack.c.l.b16 %v605
        %v3035 = vunpack.c.l.b16 %v606
        %v3036 = vunpack.c.l.b16 %v607
        %v3037 = vunpack.c.l.b16 %v608
        %v3038 = vunpack.c.l.b16 %v609
        %v3039 = vunpack.c.l.b16 %v610
        %v3040 = vunpack.c.l.b16 %v611
        %v3041 = vunpack.c.l.b16 %v612
        %v3042 = vunpack.c.l.b16 %v613
        %v3043 = vunpack.c.l.b16 %v614
        %v3044 = vunpack.c.l.b16 %v615
        %v3045 = vunpack.c.l.b16 %v616
        %v3046 = vunpack.c.l.b16 %v617
        %v3047 = vunpack.c.l.b16 %v618
        %v3048 = vunpack.c.l.b16 %v619
        %v3049 = vunpack.c.l.b16 %v620
        %v3050 = vunpack.c.l.b16 %v621
        %v3051 = vunpack.c.l.b16 %v622
        %v3052 = vunpack.c.l.b16 %v623
        %v3053 = vunpack.c.l.b16 %v624
        %v3054 = vunpack.c.l.b16 %v625
        %v3055 = vunpack.c.l.b16 %v626
        %v3056 = vunpack.c.l.b16 %v627
        %v3057 = vunpack.c.l.b16 %v628
        %v3058 = vunpack.c.l.b16 %v629
        %v3059 = vunpack.c.l.b16 %v630
        %v3060 = vunpack.c.l.b16 %v631
        %v3061 = vunpack.c.l.b16 %v632
        %v3062 = vunpack.c.l.b16 %v633
        %v3063 = vunpack.c.l.b16 %v634
        %v3064 = vunpack.c.l.b16 %v635
        %v3065 = vunpack.c.l.b16 %v636
        %v3066 = vunpack.c.l.b16 %v637
        %v3067 = vpack.c.b16 %v3004, %v3003
        %v3068 = vpack.c.b16 %v3006, %v3005
        %v3069 = vpack.c.b16 %v3008, %v3007
        %v3070 = vpack.c.b16 %v3010, %v3009
        %v3071 = vpack.c.b16 %v3012, %v3011
        %v3072 = vpack.c.b16 %v3014, %v3013
        %v3073 = vpack.c.b16 %v3016, %v3015
        %v3074 = vpack.c.b16 %v3018, %v3017
        %v3075 = vpack.c.b16 %v3020, %v3019
        %v3076 = vpack.c.b16 %v3022, %v3021
        %v3077 = vpack.c.b16 %v3024, %v3023
        %v3078 = vpack.c.b16 %v3026, %v3025
        %v3079 = vpack.c.b16 %v3028, %v3027
        %v3080 = vpack.c.b16 %v3030, %v3029
        %v3081 = vpack.c.b16 %v3032, %v3031
        %v3082 = vpack.c.b16 %v3034, %v3033
        %v3083 = vpack.c.b16 %v3036, %v3035
        %v3084 = vpack.c.b16 %v3038, %v3037
        %v3085 = vpack.c.b16 %v3040, %v3039
        %v3086 = vpack.c.b16 %v3042, %v3041
        %v3087 = vpack.c.b16 %v3044, %v3043
        %v3088 = vpack.c.b16 %v3046, %v3045
        %v3089 = vpack.c.b16 %v3048, %v3047
        %v3090 = vpack.c.b16 %v3050, %v3049
        %v3091 = vpack.c.b16 %v3052, %v3051
        %v3092 = vpack.c.b16 %v3054, %v3053
        %v3093 = vpack.c.b16 %v3056, %v3055
        %v3094 = vpack.c.b16 %v3058, %v3057
        %v3095 = vpack.c.b16 %v3060, %v3059
        %v3096 = vpack.c.b16 %v3062, %v3061
        %v3097 = vpack.c.b16 %v3064, %v3063
        %v3098 = vpack.c.b16 %v3066, %v3065
        %v3147 = vunpack.c.l.b16 %v846
        %v3148 = vunpack.c.l.b16 %v847
        %v3149 = vunpack.c.l.b16 %v848
        %v3150 = vunpack.c.l.b16 %v849
        %v3151 = vunpack.c.l.b16 %v850
        %v3152 = vunpack.c.l.b16 %v851
        %v3153 = vunpack.c.l.b16 %v852
        %v3154 = vunpack.c.l.b16 %v853
        %v3155 = vunpack.c.l.b16 %v854
        %v3156 = vunpack.c.l.b16 %v855
        %v3157 = vunpack.c.l.b16 %v856
        %v3158 = vunpack.c.l.b16 %v857
        %v3159 = vunpack.c.l.b16 %v858
        %v3160 = vunpack.c.l.b16 %v859
        %v3161 = vunpack.c.l.b16 %v860
        %v3162 = vunpack.c.l.b16 %v861
        %v3163 = vpack.c.b16 %v3148, %v3147
        %v3164 = vpack.c.b16 %v3150, %v3149
        %v3165 = vpack.c.b16 %v3152, %v3151
        %v3166 = vpack.c.b16 %v3154, %v3153
        %v3167 = vpack.c.b16 %v3156, %v3155
        %v3168 = vpack.c.b16 %v3158, %v3157
        %v3169 = vpack.c.b16 %v3160, %v3159
        %v3170 = vpack.c.b16 %v3162, %v3161
        %3179 = vmatpush.bf16.xpose.msra.mxu0 %v3170
        %3180 = vmatpush.bf16.xpose.msra.mxu0 %v3169
        %3181 = vmatpush.bf16.xpose.msra.mxu0 %v3168
        %3182 = vmatpush.bf16.xpose.msra.mxu0 %v3167
        %3183 = vmatpush.bf16.xpose.msra.mxu0 %v3166
        %3184 = vmatpush.bf16.xpose.msra.mxu0 %v3165
        %3185 = vmatpush.bf16.xpose.msra.mxu0 %v3164
        %3186 = vmatpush.bf16.xpose.msra.mxu0 %v3163
        %3187 = vmatmul.bf16.gmra.mxu0 %v3067
        %v3188 = vpop.f32.mrf.mxu0
        %v3189 = vadd.f32 0.0, %v3188
        %v3190 = vpop.f32.mrf.mxu0
        %v3191 = vadd.f32 0.0, %v3190
        %3192 = vmatmul.bf16.gmra.mxu0 %v3068
        %v3193 = vpop.f32.mrf.mxu0
        %v3194 = vadd.f32 0.0, %v3193
        %v3195 = vpop.f32.mrf.mxu0
        %v3196 = vadd.f32 0.0, %v3195
        %3197 = vmatmul.bf16.gmra.mxu0 %v3069
        %v3198 = vpop.f32.mrf.mxu0
        %v3199 = vadd.f32 0.0, %v3198
        %v3200 = vpop.f32.mrf.mxu0
        %v3201 = vadd.f32 0.0, %v3200
        %3202 = vmatmul.bf16.gmra.mxu0 %v3070
        %v3203 = vpop.f32.mrf.mxu0
        %v3204 = vadd.f32 0.0, %v3203
        %v3205 = vpop.f32.mrf.mxu0
        %v3206 = vadd.f32 0.0, %v3205
        %3207 = vmatmul.bf16.gmra.mxu0 %v3071
        %v3208 = vpop.f32.mrf.mxu0
        %v3209 = vadd.f32 0.0, %v3208
        %v3210 = vpop.f32.mrf.mxu0
        %v3211 = vadd.f32 0.0, %v3210
        %3212 = vmatmul.bf16.gmra.mxu0 %v3072
        %v3213 = vpop.f32.mrf.mxu0
        %v3214 = vadd.f32 0.0, %v3213
        %v3215 = vpop.f32.mrf.mxu0
        %v3216 = vadd.f32 0.0, %v3215
        %3217 = vmatmul.bf16.gmra.mxu0 %v3073
        %v3218 = vpop.f32.mrf.mxu0
        %v3219 = vadd.f32 0.0, %v3218
        %v3220 = vpop.f32.mrf.mxu0
        %v3221 = vadd.f32 0.0, %v3220
        %3222 = vmatmul.bf16.gmra.mxu0 %v3074
        %v3223 = vpop.f32.mrf.mxu0
        %v3224 = vadd.f32 0.0, %v3223
        %v3225 = vpop.f32.mrf.mxu0
        %v3226 = vadd.f32 0.0, %v3225
        %3227 = vmatmul.bf16.gmra.mxu0 %v3075
        %v3228 = vpop.f32.mrf.mxu0
        %v3229 = vadd.f32 0.0, %v3228
        %v3230 = vpop.f32.mrf.mxu0
        %v3231 = vadd.f32 0.0, %v3230
        %3232 = vmatmul.bf16.gmra.mxu0 %v3076
        %v3233 = vpop.f32.mrf.mxu0
        %v3234 = vadd.f32 0.0, %v3233
        %v3235 = vpop.f32.mrf.mxu0
        %v3236 = vadd.f32 0.0, %v3235
        %3237 = vmatmul.bf16.gmra.mxu0 %v3077
        %v3238 = vpop.f32.mrf.mxu0
        %v3239 = vadd.f32 0.0, %v3238
        %v3240 = vpop.f32.mrf.mxu0
        %v3241 = vadd.f32 0.0, %v3240
        %3242 = vmatmul.bf16.gmra.mxu0 %v3078
        %v3243 = vpop.f32.mrf.mxu0
        %v3244 = vadd.f32 0.0, %v3243
        %v3245 = vpop.f32.mrf.mxu0
        %v3246 = vadd.f32 0.0, %v3245
        %3247 = vmatmul.bf16.gmra.mxu0 %v3079
        %v3248 = vpop.f32.mrf.mxu0
        %v3249 = vadd.f32 0.0, %v3248
        %v3250 = vpop.f32.mrf.mxu0
        %v3251 = vadd.f32 0.0, %v3250
        %3252 = vmatmul.bf16.gmra.mxu0 %v3080
        %v3253 = vpop.f32.mrf.mxu0
        %v3254 = vadd.f32 0.0, %v3253
        %v3255 = vpop.f32.mrf.mxu0
        %v3256 = vadd.f32 0.0, %v3255
        %3257 = vmatmul.bf16.gmra.mxu0 %v3081
        %v3258 = vpop.f32.mrf.mxu0
        %v3259 = vadd.f32 0.0, %v3258
        %v3260 = vpop.f32.mrf.mxu0
        %v3261 = vadd.f32 0.0, %v3260
        %3262 = vmatmul.bf16.gmra.mxu0 %v3082
        %v3263 = vpop.f32.mrf.mxu0
        %v3264 = vadd.f32 0.0, %v3263
        %v3265 = vpop.f32.mrf.mxu0
        %v3266 = vadd.f32 0.0, %v3265
        %3267 = vmatmul.bf16.gmra.mxu0 %v3083
        %v3268 = vpop.f32.mrf.mxu0
        %v3269 = vadd.f32 0.0, %v3268
        %v3270 = vpop.f32.mrf.mxu0
        %v3271 = vadd.f32 0.0, %v3270
        %3272 = vmatmul.bf16.gmra.mxu0 %v3084
        %v3273 = vpop.f32.mrf.mxu0
        %v3274 = vadd.f32 0.0, %v3273
        %v3275 = vpop.f32.mrf.mxu0
        %v3276 = vadd.f32 0.0, %v3275
        %3277 = vmatmul.bf16.gmra.mxu0 %v3085
        %v3278 = vpop.f32.mrf.mxu0
        %v3279 = vadd.f32 0.0, %v3278
        %v3280 = vpop.f32.mrf.mxu0
        %v3281 = vadd.f32 0.0, %v3280
        %3282 = vmatmul.bf16.gmra.mxu0 %v3086
        %v3283 = vpop.f32.mrf.mxu0
        %v3284 = vadd.f32 0.0, %v3283
        %v3285 = vpop.f32.mrf.mxu0
        %v3286 = vadd.f32 0.0, %v3285
        %3287 = vmatmul.bf16.gmra.mxu0 %v3087
        %v3288 = vpop.f32.mrf.mxu0
        %v3289 = vadd.f32 0.0, %v3288
        %v3290 = vpop.f32.mrf.mxu0
        %v3291 = vadd.f32 0.0, %v3290
        %3292 = vmatmul.bf16.gmra.mxu0 %v3088
        %v3293 = vpop.f32.mrf.mxu0
        %v3294 = vadd.f32 0.0, %v3293
        %v3295 = vpop.f32.mrf.mxu0
        %v3296 = vadd.f32 0.0, %v3295
        %3297 = vmatmul.bf16.gmra.mxu0 %v3089
        %v3298 = vpop.f32.mrf.mxu0
        %v3299 = vadd.f32 0.0, %v3298
        %v3300 = vpop.f32.mrf.mxu0
        %v3301 = vadd.f32 0.0, %v3300
        %3302 = vmatmul.bf16.gmra.mxu0 %v3090
        %v3303 = vpop.f32.mrf.mxu0
        %v3304 = vadd.f32 0.0, %v3303
        %v3305 = vpop.f32.mrf.mxu0
        %v3306 = vadd.f32 0.0, %v3305
        %3307 = vmatmul.bf16.gmra.mxu0 %v3091
        %v3308 = vpop.f32.mrf.mxu0
        %v3309 = vadd.f32 0.0, %v3308
        %v3310 = vpop.f32.mrf.mxu0
        %v3311 = vadd.f32 0.0, %v3310
        %3312 = vmatmul.bf16.gmra.mxu0 %v3092
        %v3313 = vpop.f32.mrf.mxu0
        %v3314 = vadd.f32 0.0, %v3313
        %v3315 = vpop.f32.mrf.mxu0
        %v3316 = vadd.f32 0.0, %v3315
        %3317 = vmatmul.bf16.gmra.mxu0 %v3093
        %v3318 = vpop.f32.mrf.mxu0
        %v3319 = vadd.f32 0.0, %v3318
        %v3320 = vpop.f32.mrf.mxu0
        %v3321 = vadd.f32 0.0, %v3320
        %3322 = vmatmul.bf16.gmra.mxu0 %v3094
        %v3323 = vpop.f32.mrf.mxu0
        %v3324 = vadd.f32 0.0, %v3323
        %v3325 = vpop.f32.mrf.mxu0
        %v3326 = vadd.f32 0.0, %v3325
        %3327 = vmatmul.bf16.gmra.mxu0 %v3095
        %v3328 = vpop.f32.mrf.mxu0
        %v3329 = vadd.f32 0.0, %v3328
        %v3330 = vpop.f32.mrf.mxu0
        %v3331 = vadd.f32 0.0, %v3330
        %3332 = vmatmul.bf16.gmra.mxu0 %v3096
        %v3333 = vpop.f32.mrf.mxu0
        %v3334 = vadd.f32 0.0, %v3333
        %v3335 = vpop.f32.mrf.mxu0
        %v3336 = vadd.f32 0.0, %v3335
        %3337 = vmatmul.bf16.gmra.mxu0 %v3097
        %v3338 = vpop.f32.mrf.mxu0
        %v3339 = vadd.f32 0.0, %v3338
        %v3340 = vpop.f32.mrf.mxu0
        %v3341 = vadd.f32 0.0, %v3340
        %3342 = vmatmul.bf16.gmra.mxu0 %v3098
        %v3343 = vpop.f32.mrf.mxu0
        %v3344 = vadd.f32 0.0, %v3343
        %v3345 = vpop.f32.mrf.mxu0
        %v3346 = vadd.f32 0.0, %v3345
        %3347 = vdwg.mxu0
        %v3412 = vunpack.c.l.b16 %v638
        %v3413 = vunpack.c.l.b16 %v639
        %v3414 = vunpack.c.l.b16 %v640
        %v3415 = vunpack.c.l.b16 %v641
        %v3416 = vunpack.c.l.b16 %v642
        %v3417 = vunpack.c.l.b16 %v643
        %v3418 = vunpack.c.l.b16 %v644
        %v3419 = vunpack.c.l.b16 %v645
        %v3420 = vunpack.c.l.b16 %v646
        %v3421 = vunpack.c.l.b16 %v647
        %v3422 = vunpack.c.l.b16 %v648
        %v3423 = vunpack.c.l.b16 %v649
        %v3424 = vunpack.c.l.b16 %v650
        %v3425 = vunpack.c.l.b16 %v651
        %v3426 = vunpack.c.l.b16 %v652
        %v3427 = vunpack.c.l.b16 %v653
        %v3428 = vunpack.c.l.b16 %v654
        %v3429 = vunpack.c.l.b16 %v655
        %v3430 = vunpack.c.l.b16 %v656
        %v3431 = vunpack.c.l.b16 %v657
        %v3432 = vunpack.c.l.b16 %v658
        %v3433 = vunpack.c.l.b16 %v659
        %v3434 = vunpack.c.l.b16 %v660
        %v3435 = vunpack.c.l.b16 %v661
        %v3436 = vunpack.c.l.b16 %v662
        %v3437 = vunpack.c.l.b16 %v663
        %v3438 = vunpack.c.l.b16 %v664
        %v3439 = vunpack.c.l.b16 %v665
        %v3440 = vunpack.c.l.b16 %v666
        %v3441 = vunpack.c.l.b16 %v667
        %v3442 = vunpack.c.l.b16 %v668
        %v3443 = vunpack.c.l.b16 %v669
        %v3444 = vunpack.c.l.b16 %v670
        %v3445 = vunpack.c.l.b16 %v671
        %v3446 = vunpack.c.l.b16 %v672
        %v3447 = vunpack.c.l.b16 %v673
        %v3448 = vunpack.c.l.b16 %v674
        %v3449 = vunpack.c.l.b16 %v675
        %v3450 = vunpack.c.l.b16 %v676
        %v3451 = vunpack.c.l.b16 %v677
        %v3452 = vunpack.c.l.b16 %v678
        %v3453 = vunpack.c.l.b16 %v679
        %v3454 = vunpack.c.l.b16 %v680
        %v3455 = vunpack.c.l.b16 %v681
        %v3456 = vunpack.c.l.b16 %v682
        %v3457 = vunpack.c.l.b16 %v683
        %v3458 = vunpack.c.l.b16 %v684
        %v3459 = vunpack.c.l.b16 %v685
        %v3460 = vunpack.c.l.b16 %v686
        %v3461 = vunpack.c.l.b16 %v687
        %v3462 = vunpack.c.l.b16 %v688
        %v3463 = vunpack.c.l.b16 %v689
        %v3464 = vunpack.c.l.b16 %v690
        %v3465 = vunpack.c.l.b16 %v691
        %v3466 = vunpack.c.l.b16 %v692
        %v3467 = vunpack.c.l.b16 %v693
        %v3468 = vunpack.c.l.b16 %v694
        %v3469 = vunpack.c.l.b16 %v695
        %v3470 = vunpack.c.l.b16 %v696
        %v3471 = vunpack.c.l.b16 %v697
        %v3472 = vunpack.c.l.b16 %v698
        %v3473 = vunpack.c.l.b16 %v699
        %v3474 = vunpack.c.l.b16 %v700
        %v3475 = vunpack.c.l.b16 %v701
        %v3476 = vpack.c.b16 %v3413, %v3412
        %v3477 = vpack.c.b16 %v3415, %v3414
        %v3478 = vpack.c.b16 %v3417, %v3416
        %v3479 = vpack.c.b16 %v3419, %v3418
        %v3480 = vpack.c.b16 %v3421, %v3420
        %v3481 = vpack.c.b16 %v3423, %v3422
        %v3482 = vpack.c.b16 %v3425, %v3424
        %v3483 = vpack.c.b16 %v3427, %v3426
        %v3484 = vpack.c.b16 %v3429, %v3428
        %v3485 = vpack.c.b16 %v3431, %v3430
        %v3486 = vpack.c.b16 %v3433, %v3432
        %v3487 = vpack.c.b16 %v3435, %v3434
        %v3488 = vpack.c.b16 %v3437, %v3436
        %v3489 = vpack.c.b16 %v3439, %v3438
        %v3490 = vpack.c.b16 %v3441, %v3440
        %v3491 = vpack.c.b16 %v3443, %v3442
        %v3492 = vpack.c.b16 %v3445, %v3444
        %v3493 = vpack.c.b16 %v3447, %v3446
        %v3494 = vpack.c.b16 %v3449, %v3448
        %v3495 = vpack.c.b16 %v3451, %v3450
        %v3496 = vpack.c.b16 %v3453, %v3452
        %v3497 = vpack.c.b16 %v3455, %v3454
        %v3498 = vpack.c.b16 %v3457, %v3456
        %v3499 = vpack.c.b16 %v3459, %v3458
        %v3500 = vpack.c.b16 %v3461, %v3460
        %v3501 = vpack.c.b16 %v3463, %v3462
        %v3502 = vpack.c.b16 %v3465, %v3464
        %v3503 = vpack.c.b16 %v3467, %v3466
        %v3504 = vpack.c.b16 %v3469, %v3468
        %v3505 = vpack.c.b16 %v3471, %v3470
        %v3506 = vpack.c.b16 %v3473, %v3472
        %v3507 = vpack.c.b16 %v3475, %v3474
        %v3556 = vunpack.c.l.b16 %v862
        %v3557 = vunpack.c.l.b16 %v863
        %v3558 = vunpack.c.l.b16 %v864
        %v3559 = vunpack.c.l.b16 %v865
        %v3560 = vunpack.c.l.b16 %v866
        %v3561 = vunpack.c.l.b16 %v867
        %v3562 = vunpack.c.l.b16 %v868
        %v3563 = vunpack.c.l.b16 %v869
        %v3564 = vunpack.c.l.b16 %v870
        %v3565 = vunpack.c.l.b16 %v871
        %v3566 = vunpack.c.l.b16 %v872
        %v3567 = vunpack.c.l.b16 %v873
        %v3568 = vunpack.c.l.b16 %v874
        %v3569 = vunpack.c.l.b16 %v875
        %v3570 = vunpack.c.l.b16 %v876
        %v3571 = vunpack.c.l.b16 %v877
        %v3572 = vpack.c.b16 %v3557, %v3556
        %v3573 = vpack.c.b16 %v3559, %v3558
        %v3574 = vpack.c.b16 %v3561, %v3560
        %v3575 = vpack.c.b16 %v3563, %v3562
        %v3576 = vpack.c.b16 %v3565, %v3564
        %v3577 = vpack.c.b16 %v3567, %v3566
        %v3578 = vpack.c.b16 %v3569, %v3568
        %v3579 = vpack.c.b16 %v3571, %v3570
        %3588 = vmatpush.bf16.xpose.msra.mxu0 %v3579
        %3589 = vmatpush.bf16.xpose.msra.mxu0 %v3578
        %3590 = vmatpush.bf16.xpose.msra.mxu0 %v3577
        %3591 = vmatpush.bf16.xpose.msra.mxu0 %v3576
        %3592 = vmatpush.bf16.xpose.msra.mxu0 %v3575
        %3593 = vmatpush.bf16.xpose.msra.mxu0 %v3574
        %3594 = vmatpush.bf16.xpose.msra.mxu0 %v3573
        %3595 = vmatpush.bf16.xpose.msra.mxu0 %v3572
        %3596 = vmatmul.bf16.gmra.mxu0 %v3476
        %v3597 = vpop.f32.mrf.mxu0
        %v3598 = vadd.f32 0.0, %v3597
        %v3599 = vpop.f32.mrf.mxu0
        %v3600 = vadd.f32 0.0, %v3599
        %3601 = vmatmul.bf16.gmra.mxu0 %v3477
        %v3602 = vpop.f32.mrf.mxu0
        %v3603 = vadd.f32 0.0, %v3602
        %v3604 = vpop.f32.mrf.mxu0
        %v3605 = vadd.f32 0.0, %v3604
        %3606 = vmatmul.bf16.gmra.mxu0 %v3478
        %v3607 = vpop.f32.mrf.mxu0
        %v3608 = vadd.f32 0.0, %v3607
        %v3609 = vpop.f32.mrf.mxu0
        %v3610 = vadd.f32 0.0, %v3609
        %3611 = vmatmul.bf16.gmra.mxu0 %v3479
        %v3612 = vpop.f32.mrf.mxu0
        %v3613 = vadd.f32 0.0, %v3612
        %v3614 = vpop.f32.mrf.mxu0
        %v3615 = vadd.f32 0.0, %v3614
        %3616 = vmatmul.bf16.gmra.mxu0 %v3480
        %v3617 = vpop.f32.mrf.mxu0
        %v3618 = vadd.f32 0.0, %v3617
        %v3619 = vpop.f32.mrf.mxu0
        %v3620 = vadd.f32 0.0, %v3619
        %3621 = vmatmul.bf16.gmra.mxu0 %v3481
        %v3622 = vpop.f32.mrf.mxu0
        %v3623 = vadd.f32 0.0, %v3622
        %v3624 = vpop.f32.mrf.mxu0
        %v3625 = vadd.f32 0.0, %v3624
        %3626 = vmatmul.bf16.gmra.mxu0 %v3482
        %v3627 = vpop.f32.mrf.mxu0
        %v3628 = vadd.f32 0.0, %v3627
        %v3629 = vpop.f32.mrf.mxu0
        %v3630 = vadd.f32 0.0, %v3629
        %3631 = vmatmul.bf16.gmra.mxu0 %v3483
        %v3632 = vpop.f32.mrf.mxu0
        %v3633 = vadd.f32 0.0, %v3632
        %v3634 = vpop.f32.mrf.mxu0
        %v3635 = vadd.f32 0.0, %v3634
        %3636 = vmatmul.bf16.gmra.mxu0 %v3484
        %v3637 = vpop.f32.mrf.mxu0
        %v3638 = vadd.f32 0.0, %v3637
        %v3639 = vpop.f32.mrf.mxu0
        %v3640 = vadd.f32 0.0, %v3639
        %3641 = vmatmul.bf16.gmra.mxu0 %v3485
        %v3642 = vpop.f32.mrf.mxu0
        %v3643 = vadd.f32 0.0, %v3642
        %v3644 = vpop.f32.mrf.mxu0
        %v3645 = vadd.f32 0.0, %v3644
        %3646 = vmatmul.bf16.gmra.mxu0 %v3486
        %v3647 = vpop.f32.mrf.mxu0
        %v3648 = vadd.f32 0.0, %v3647
        %v3649 = vpop.f32.mrf.mxu0
        %v3650 = vadd.f32 0.0, %v3649
        %3651 = vmatmul.bf16.gmra.mxu0 %v3487
        %v3652 = vpop.f32.mrf.mxu0
        %v3653 = vadd.f32 0.0, %v3652
        %v3654 = vpop.f32.mrf.mxu0
        %v3655 = vadd.f32 0.0, %v3654
        %3656 = vmatmul.bf16.gmra.mxu0 %v3488
        %v3657 = vpop.f32.mrf.mxu0
        %v3658 = vadd.f32 0.0, %v3657
        %v3659 = vpop.f32.mrf.mxu0
        %v3660 = vadd.f32 0.0, %v3659
        %3661 = vmatmul.bf16.gmra.mxu0 %v3489
        %v3662 = vpop.f32.mrf.mxu0
        %v3663 = vadd.f32 0.0, %v3662
        %v3664 = vpop.f32.mrf.mxu0
        %v3665 = vadd.f32 0.0, %v3664
        %3666 = vmatmul.bf16.gmra.mxu0 %v3490
        %v3667 = vpop.f32.mrf.mxu0
        %v3668 = vadd.f32 0.0, %v3667
        %v3669 = vpop.f32.mrf.mxu0
        %v3670 = vadd.f32 0.0, %v3669
        %3671 = vmatmul.bf16.gmra.mxu0 %v3491
        %v3672 = vpop.f32.mrf.mxu0
        %v3673 = vadd.f32 0.0, %v3672
        %v3674 = vpop.f32.mrf.mxu0
        %v3675 = vadd.f32 0.0, %v3674
        %3676 = vmatmul.bf16.gmra.mxu0 %v3492
        %v3677 = vpop.f32.mrf.mxu0
        %v3678 = vadd.f32 0.0, %v3677
        %v3679 = vpop.f32.mrf.mxu0
        %v3680 = vadd.f32 0.0, %v3679
        %3681 = vmatmul.bf16.gmra.mxu0 %v3493
        %v3682 = vpop.f32.mrf.mxu0
        %v3683 = vadd.f32 0.0, %v3682
        %v3684 = vpop.f32.mrf.mxu0
        %v3685 = vadd.f32 0.0, %v3684
        %3686 = vmatmul.bf16.gmra.mxu0 %v3494
        %v3687 = vpop.f32.mrf.mxu0
        %v3688 = vadd.f32 0.0, %v3687
        %v3689 = vpop.f32.mrf.mxu0
        %v3690 = vadd.f32 0.0, %v3689
        %3691 = vmatmul.bf16.gmra.mxu0 %v3495
        %v3692 = vpop.f32.mrf.mxu0
        %v3693 = vadd.f32 0.0, %v3692
        %v3694 = vpop.f32.mrf.mxu0
        %v3695 = vadd.f32 0.0, %v3694
        %3696 = vmatmul.bf16.gmra.mxu0 %v3496
        %v3697 = vpop.f32.mrf.mxu0
        %v3698 = vadd.f32 0.0, %v3697
        %v3699 = vpop.f32.mrf.mxu0
        %v3700 = vadd.f32 0.0, %v3699
        %3701 = vmatmul.bf16.gmra.mxu0 %v3497
        %v3702 = vpop.f32.mrf.mxu0
        %v3703 = vadd.f32 0.0, %v3702
        %v3704 = vpop.f32.mrf.mxu0
        %v3705 = vadd.f32 0.0, %v3704
        %3706 = vmatmul.bf16.gmra.mxu0 %v3498
        %v3707 = vpop.f32.mrf.mxu0
        %v3708 = vadd.f32 0.0, %v3707
        %v3709 = vpop.f32.mrf.mxu0
        %v3710 = vadd.f32 0.0, %v3709
        %3711 = vmatmul.bf16.gmra.mxu0 %v3499
        %v3712 = vpop.f32.mrf.mxu0
        %v3713 = vadd.f32 0.0, %v3712
        %v3714 = vpop.f32.mrf.mxu0
        %v3715 = vadd.f32 0.0, %v3714
        %3716 = vmatmul.bf16.gmra.mxu0 %v3500
        %v3717 = vpop.f32.mrf.mxu0
        %v3718 = vadd.f32 0.0, %v3717
        %v3719 = vpop.f32.mrf.mxu0
        %v3720 = vadd.f32 0.0, %v3719
        %3721 = vmatmul.bf16.gmra.mxu0 %v3501
        %v3722 = vpop.f32.mrf.mxu0
        %v3723 = vadd.f32 0.0, %v3722
        %v3724 = vpop.f32.mrf.mxu0
        %v3725 = vadd.f32 0.0, %v3724
        %3726 = vmatmul.bf16.gmra.mxu0 %v3502
        %v3727 = vpop.f32.mrf.mxu0
        %v3728 = vadd.f32 0.0, %v3727
        %v3729 = vpop.f32.mrf.mxu0
        %v3730 = vadd.f32 0.0, %v3729
        %3731 = vmatmul.bf16.gmra.mxu0 %v3503
        %v3732 = vpop.f32.mrf.mxu0
        %v3733 = vadd.f32 0.0, %v3732
        %v3734 = vpop.f32.mrf.mxu0
        %v3735 = vadd.f32 0.0, %v3734
        %3736 = vmatmul.bf16.gmra.mxu0 %v3504
        %v3737 = vpop.f32.mrf.mxu0
        %v3738 = vadd.f32 0.0, %v3737
        %v3739 = vpop.f32.mrf.mxu0
        %v3740 = vadd.f32 0.0, %v3739
        %3741 = vmatmul.bf16.gmra.mxu0 %v3505
        %v3742 = vpop.f32.mrf.mxu0
        %v3743 = vadd.f32 0.0, %v3742
        %v3744 = vpop.f32.mrf.mxu0
        %v3745 = vadd.f32 0.0, %v3744
        %3746 = vmatmul.bf16.gmra.mxu0 %v3506
        %v3747 = vpop.f32.mrf.mxu0
        %v3748 = vadd.f32 0.0, %v3747
        %v3749 = vpop.f32.mrf.mxu0
        %v3750 = vadd.f32 0.0, %v3749
        %3751 = vmatmul.bf16.gmra.mxu0 %v3507
        %v3752 = vpop.f32.mrf.mxu0
        %v3753 = vadd.f32 0.0, %v3752
        %v3754 = vpop.f32.mrf.mxu0
        %v3755 = vadd.f32 0.0, %v3754
        %3756 = vdwg.mxu0
        %v3821 = vunpack.c.l.b16 %v702
        %v3822 = vunpack.c.l.b16 %v703
        %v3823 = vunpack.c.l.b16 %v704
        %v3824 = vunpack.c.l.b16 %v705
        %v3825 = vunpack.c.l.b16 %v706
        %v3826 = vunpack.c.l.b16 %v707
        %v3827 = vunpack.c.l.b16 %v708
        %v3828 = vunpack.c.l.b16 %v709
        %v3829 = vunpack.c.l.b16 %v710
        %v3830 = vunpack.c.l.b16 %v711
        %v3831 = vunpack.c.l.b16 %v712
        %v3832 = vunpack.c.l.b16 %v713
        %v3833 = vunpack.c.l.b16 %v714
        %v3834 = vunpack.c.l.b16 %v715
        %v3835 = vunpack.c.l.b16 %v716
        %v3836 = vunpack.c.l.b16 %v717
        %v3837 = vunpack.c.l.b16 %v718
        %v3838 = vunpack.c.l.b16 %v719
        %v3839 = vunpack.c.l.b16 %v720
        %v3840 = vunpack.c.l.b16 %v721
        %v3841 = vunpack.c.l.b16 %v722
        %v3842 = vunpack.c.l.b16 %v723
        %v3843 = vunpack.c.l.b16 %v724
        %v3844 = vunpack.c.l.b16 %v725
        %v3845 = vunpack.c.l.b16 %v726
        %v3846 = vunpack.c.l.b16 %v727
        %v3847 = vunpack.c.l.b16 %v728
        %v3848 = vunpack.c.l.b16 %v729
        %v3849 = vunpack.c.l.b16 %v730
        %v3850 = vunpack.c.l.b16 %v731
        %v3851 = vunpack.c.l.b16 %v732
        %v3852 = vunpack.c.l.b16 %v733
        %v3853 = vunpack.c.l.b16 %v734
        %v3854 = vunpack.c.l.b16 %v735
        %v3855 = vunpack.c.l.b16 %v736
        %v3856 = vunpack.c.l.b16 %v737
        %v3857 = vunpack.c.l.b16 %v738
        %v3858 = vunpack.c.l.b16 %v739
        %v3859 = vunpack.c.l.b16 %v740
        %v3860 = vunpack.c.l.b16 %v741
        %v3861 = vunpack.c.l.b16 %v742
        %v3862 = vunpack.c.l.b16 %v743
        %v3863 = vunpack.c.l.b16 %v744
        %v3864 = vunpack.c.l.b16 %v745
        %v3865 = vunpack.c.l.b16 %v746
        %v3866 = vunpack.c.l.b16 %v747
        %v3867 = vunpack.c.l.b16 %v748
        %v3868 = vunpack.c.l.b16 %v749
        %v3869 = vunpack.c.l.b16 %v750
        %v3870 = vunpack.c.l.b16 %v751
        %v3871 = vunpack.c.l.b16 %v752
        %v3872 = vunpack.c.l.b16 %v753
        %v3873 = vunpack.c.l.b16 %v754
        %v3874 = vunpack.c.l.b16 %v755
        %v3875 = vunpack.c.l.b16 %v756
        %v3876 = vunpack.c.l.b16 %v757
        %v3877 = vunpack.c.l.b16 %v758
        %v3878 = vunpack.c.l.b16 %v759
        %v3879 = vunpack.c.l.b16 %v760
        %v3880 = vunpack.c.l.b16 %v761
        %v3881 = vunpack.c.l.b16 %v762
        %v3882 = vunpack.c.l.b16 %v763
        %v3883 = vunpack.c.l.b16 %v764
        %v3884 = vunpack.c.l.b16 %v765
        %v3885 = vpack.c.b16 %v3822, %v3821
        %v3886 = vpack.c.b16 %v3824, %v3823
        %v3887 = vpack.c.b16 %v3826, %v3825
        %v3888 = vpack.c.b16 %v3828, %v3827
        %v3889 = vpack.c.b16 %v3830, %v3829
        %v3890 = vpack.c.b16 %v3832, %v3831
        %v3891 = vpack.c.b16 %v3834, %v3833
        %v3892 = vpack.c.b16 %v3836, %v3835
        %v3893 = vpack.c.b16 %v3838, %v3837
        %v3894 = vpack.c.b16 %v3840, %v3839
        %v3895 = vpack.c.b16 %v3842, %v3841
        %v3896 = vpack.c.b16 %v3844, %v3843
        %v3897 = vpack.c.b16 %v3846, %v3845
        %v3898 = vpack.c.b16 %v3848, %v3847
        %v3899 = vpack.c.b16 %v3850, %v3849
        %v3900 = vpack.c.b16 %v3852, %v3851
        %v3901 = vpack.c.b16 %v3854, %v3853
        %v3902 = vpack.c.b16 %v3856, %v3855
        %v3903 = vpack.c.b16 %v3858, %v3857
        %v3904 = vpack.c.b16 %v3860, %v3859
        %v3905 = vpack.c.b16 %v3862, %v3861
        %v3906 = vpack.c.b16 %v3864, %v3863
        %v3907 = vpack.c.b16 %v3866, %v3865
        %v3908 = vpack.c.b16 %v3868, %v3867
        %v3909 = vpack.c.b16 %v3870, %v3869
        %v3910 = vpack.c.b16 %v3872, %v3871
        %v3911 = vpack.c.b16 %v3874, %v3873
        %v3912 = vpack.c.b16 %v3876, %v3875
        %v3913 = vpack.c.b16 %v3878, %v3877
        %v3914 = vpack.c.b16 %v3880, %v3879
        %v3915 = vpack.c.b16 %v3882, %v3881
        %v3916 = vpack.c.b16 %v3884, %v3883
        %v3965 = vunpack.c.l.b16 %v878
        %v3966 = vunpack.c.l.b16 %v879
        %v3967 = vunpack.c.l.b16 %v880
        %v3968 = vunpack.c.l.b16 %v881
        %v3969 = vunpack.c.l.b16 %v882
        %v3970 = vunpack.c.l.b16 %v883
        %v3971 = vunpack.c.l.b16 %v884
        %v3972 = vunpack.c.l.b16 %v885
        %v3973 = vunpack.c.l.b16 %v886
        %v3974 = vunpack.c.l.b16 %v887
        %v3975 = vunpack.c.l.b16 %v888
        %v3976 = vunpack.c.l.b16 %v889
        %v3977 = vunpack.c.l.b16 %v890
        %v3978 = vunpack.c.l.b16 %v891
        %v3979 = vunpack.c.l.b16 %v892
        %v3980 = vunpack.c.l.b16 %v893
        %v3981 = vpack.c.b16 %v3966, %v3965
        %v3982 = vpack.c.b16 %v3968, %v3967
        %v3983 = vpack.c.b16 %v3970, %v3969
        %v3984 = vpack.c.b16 %v3972, %v3971
        %v3985 = vpack.c.b16 %v3974, %v3973
        %v3986 = vpack.c.b16 %v3976, %v3975
        %v3987 = vpack.c.b16 %v3978, %v3977
        %v3988 = vpack.c.b16 %v3980, %v3979
        %3997 = vmatpush.bf16.xpose.msra.mxu0 %v3988
        %3998 = vmatpush.bf16.xpose.msra.mxu0 %v3987
        %3999 = vmatpush.bf16.xpose.msra.mxu0 %v3986
        %4000 = vmatpush.bf16.xpose.msra.mxu0 %v3985
        %4001 = vmatpush.bf16.xpose.msra.mxu0 %v3984
        %4002 = vmatpush.bf16.xpose.msra.mxu0 %v3983
        %4003 = vmatpush.bf16.xpose.msra.mxu0 %v3982
        %4004 = vmatpush.bf16.xpose.msra.mxu0 %v3981
        %4005 = vmatmul.bf16.gmra.mxu0 %v3885
        %v4006 = vpop.f32.mrf.mxu0
        %v4007 = vadd.f32 0.0, %v4006
        %v4008 = vpop.f32.mrf.mxu0
        %v4009 = vadd.f32 0.0, %v4008
        %4010 = vmatmul.bf16.gmra.mxu0 %v3886
        %v4011 = vpop.f32.mrf.mxu0
        %v4012 = vadd.f32 0.0, %v4011
        %v4013 = vpop.f32.mrf.mxu0
        %v4014 = vadd.f32 0.0, %v4013
        %4015 = vmatmul.bf16.gmra.mxu0 %v3887
        %v4016 = vpop.f32.mrf.mxu0
        %v4017 = vadd.f32 0.0, %v4016
        %v4018 = vpop.f32.mrf.mxu0
        %v4019 = vadd.f32 0.0, %v4018
        %4020 = vmatmul.bf16.gmra.mxu0 %v3888
        %v4021 = vpop.f32.mrf.mxu0
        %v4022 = vadd.f32 0.0, %v4021
        %v4023 = vpop.f32.mrf.mxu0
        %v4024 = vadd.f32 0.0, %v4023
        %4025 = vmatmul.bf16.gmra.mxu0 %v3889
        %v4026 = vpop.f32.mrf.mxu0
        %v4027 = vadd.f32 0.0, %v4026
        %v4028 = vpop.f32.mrf.mxu0
        %v4029 = vadd.f32 0.0, %v4028
        %4030 = vmatmul.bf16.gmra.mxu0 %v3890
        %v4031 = vpop.f32.mrf.mxu0
        %v4032 = vadd.f32 0.0, %v4031
        %v4033 = vpop.f32.mrf.mxu0
        %v4034 = vadd.f32 0.0, %v4033
        %4035 = vmatmul.bf16.gmra.mxu0 %v3891
        %v4036 = vpop.f32.mrf.mxu0
        %v4037 = vadd.f32 0.0, %v4036
        %v4038 = vpop.f32.mrf.mxu0
        %v4039 = vadd.f32 0.0, %v4038
        %4040 = vmatmul.bf16.gmra.mxu0 %v3892
        %v4041 = vpop.f32.mrf.mxu0
        %v4042 = vadd.f32 0.0, %v4041
        %v4043 = vpop.f32.mrf.mxu0
        %v4044 = vadd.f32 0.0, %v4043
        %4045 = vmatmul.bf16.gmra.mxu0 %v3893
        %v4046 = vpop.f32.mrf.mxu0
        %v4047 = vadd.f32 0.0, %v4046
        %v4048 = vpop.f32.mrf.mxu0
        %v4049 = vadd.f32 0.0, %v4048
        %4050 = vmatmul.bf16.gmra.mxu0 %v3894
        %v4051 = vpop.f32.mrf.mxu0
        %v4052 = vadd.f32 0.0, %v4051
        %v4053 = vpop.f32.mrf.mxu0
        %v4054 = vadd.f32 0.0, %v4053
        %4055 = vmatmul.bf16.gmra.mxu0 %v3895
        %v4056 = vpop.f32.mrf.mxu0
        %v4057 = vadd.f32 0.0, %v4056
        %v4058 = vpop.f32.mrf.mxu0
        %v4059 = vadd.f32 0.0, %v4058
        %4060 = vmatmul.bf16.gmra.mxu0 %v3896
        %v4061 = vpop.f32.mrf.mxu0
        %v4062 = vadd.f32 0.0, %v4061
        %v4063 = vpop.f32.mrf.mxu0
        %v4064 = vadd.f32 0.0, %v4063
        %4065 = vmatmul.bf16.gmra.mxu0 %v3897
        %v4066 = vpop.f32.mrf.mxu0
        %v4067 = vadd.f32 0.0, %v4066
        %v4068 = vpop.f32.mrf.mxu0
        %v4069 = vadd.f32 0.0, %v4068
        %4070 = vmatmul.bf16.gmra.mxu0 %v3898
        %v4071 = vpop.f32.mrf.mxu0
        %v4072 = vadd.f32 0.0, %v4071
        %v4073 = vpop.f32.mrf.mxu0
        %v4074 = vadd.f32 0.0, %v4073
        %4075 = vmatmul.bf16.gmra.mxu0 %v3899
        %v4076 = vpop.f32.mrf.mxu0
        %v4077 = vadd.f32 0.0, %v4076
        %v4078 = vpop.f32.mrf.mxu0
        %v4079 = vadd.f32 0.0, %v4078
        %4080 = vmatmul.bf16.gmra.mxu0 %v3900
        %v4081 = vpop.f32.mrf.mxu0
        %v4082 = vadd.f32 0.0, %v4081
        %v4083 = vpop.f32.mrf.mxu0
        %v4084 = vadd.f32 0.0, %v4083
        %4085 = vmatmul.bf16.gmra.mxu0 %v3901
        %v4086 = vpop.f32.mrf.mxu0
        %v4087 = vadd.f32 0.0, %v4086
        %v4088 = vpop.f32.mrf.mxu0
        %v4089 = vadd.f32 0.0, %v4088
        %4090 = vmatmul.bf16.gmra.mxu0 %v3902
        %v4091 = vpop.f32.mrf.mxu0
        %v4092 = vadd.f32 0.0, %v4091
        %v4093 = vpop.f32.mrf.mxu0
        %v4094 = vadd.f32 0.0, %v4093
        %4095 = vmatmul.bf16.gmra.mxu0 %v3903
        %v4096 = vpop.f32.mrf.mxu0
        %v4097 = vadd.f32 0.0, %v4096
        %v4098 = vpop.f32.mrf.mxu0
        %v4099 = vadd.f32 0.0, %v4098
        %4100 = vmatmul.bf16.gmra.mxu0 %v3904
        %v4101 = vpop.f32.mrf.mxu0
        %v4102 = vadd.f32 0.0, %v4101
        %v4103 = vpop.f32.mrf.mxu0
        %v4104 = vadd.f32 0.0, %v4103
        %4105 = vmatmul.bf16.gmra.mxu0 %v3905
        %v4106 = vpop.f32.mrf.mxu0
        %v4107 = vadd.f32 0.0, %v4106
        %v4108 = vpop.f32.mrf.mxu0
        %v4109 = vadd.f32 0.0, %v4108
        %4110 = vmatmul.bf16.gmra.mxu0 %v3906
        %v4111 = vpop.f32.mrf.mxu0
        %v4112 = vadd.f32 0.0, %v4111
        %v4113 = vpop.f32.mrf.mxu0
        %v4114 = vadd.f32 0.0, %v4113
        %4115 = vmatmul.bf16.gmra.mxu0 %v3907
        %v4116 = vpop.f32.mrf.mxu0
        %v4117 = vadd.f32 0.0, %v4116
        %v4118 = vpop.f32.mrf.mxu0
        %v4119 = vadd.f32 0.0, %v4118
        %4120 = vmatmul.bf16.gmra.mxu0 %v3908
        %v4121 = vpop.f32.mrf.mxu0
        %v4122 = vadd.f32 0.0, %v4121
        %v4123 = vpop.f32.mrf.mxu0
        %v4124 = vadd.f32 0.0, %v4123
        %4125 = vmatmul.bf16.gmra.mxu0 %v3909
        %v4126 = vpop.f32.mrf.mxu0
        %v4127 = vadd.f32 0.0, %v4126
        %v4128 = vpop.f32.mrf.mxu0
        %v4129 = vadd.f32 0.0, %v4128
        %4130 = vmatmul.bf16.gmra.mxu0 %v3910
        %v4131 = vpop.f32.mrf.mxu0
        %v4132 = vadd.f32 0.0, %v4131
        %v4133 = vpop.f32.mrf.mxu0
        %v4134 = vadd.f32 0.0, %v4133
        %4135 = vmatmul.bf16.gmra.mxu0 %v3911
        %v4136 = vpop.f32.mrf.mxu0
        %v4137 = vadd.f32 0.0, %v4136
        %v4138 = vpop.f32.mrf.mxu0
        %v4139 = vadd.f32 0.0, %v4138
        %4140 = vmatmul.bf16.gmra.mxu0 %v3912
        %v4141 = vpop.f32.mrf.mxu0
        %v4142 = vadd.f32 0.0, %v4141
        %v4143 = vpop.f32.mrf.mxu0
        %v4144 = vadd.f32 0.0, %v4143
        %4145 = vmatmul.bf16.gmra.mxu0 %v3913
        %v4146 = vpop.f32.mrf.mxu0
        %v4147 = vadd.f32 0.0, %v4146
        %v4148 = vpop.f32.mrf.mxu0
        %v4149 = vadd.f32 0.0, %v4148
        %4150 = vmatmul.bf16.gmra.mxu0 %v3914
        %v4151 = vpop.f32.mrf.mxu0
        %v4152 = vadd.f32 0.0, %v4151
        %v4153 = vpop.f32.mrf.mxu0
        %v4154 = vadd.f32 0.0, %v4153
        %4155 = vmatmul.bf16.gmra.mxu0 %v3915
        %v4156 = vpop.f32.mrf.mxu0
        %v4157 = vadd.f32 0.0, %v4156
        %v4158 = vpop.f32.mrf.mxu0
        %v4159 = vadd.f32 0.0, %v4158
        %4160 = vmatmul.bf16.gmra.mxu0 %v3916
        %v4161 = vpop.f32.mrf.mxu0
        %v4162 = vadd.f32 0.0, %v4161
        %v4163 = vpop.f32.mrf.mxu0
        %v4164 = vadd.f32 0.0, %v4163
        %4165 = vdwg.mxu0
        %v4166 = vmul.f32 %v1144, %v1144
        %v4167 = vmul.f32 %v1146, %v1146
        %v4168 = vmul.f32 %v1149, %v1149
        %v4169 = vmul.f32 %v1151, %v1151
        %v4170 = vmul.f32 %v1154, %v1154
        %v4171 = vmul.f32 %v1156, %v1156
        %v4172 = vmul.f32 %v1159, %v1159
        %v4173 = vmul.f32 %v1161, %v1161
        %v4174 = vmul.f32 %v1164, %v1164
        %v4175 = vmul.f32 %v1166, %v1166
        %v4176 = vmul.f32 %v1169, %v1169
        %v4177 = vmul.f32 %v1171, %v1171
        %v4178 = vmul.f32 %v1174, %v1174
        %v4179 = vmul.f32 %v1176, %v1176
        %v4180 = vmul.f32 %v1179, %v1179
        %v4181 = vmul.f32 %v1181, %v1181
        %v4182 = vmul.f32 %v1184, %v1184
        %v4183 = vmul.f32 %v1186, %v1186
        %v4184 = vmul.f32 %v1189, %v1189
        %v4185 = vmul.f32 %v1191, %v1191
        %v4186 = vmul.f32 %v1194, %v1194
        %v4187 = vmul.f32 %v1196, %v1196
        %v4188 = vmul.f32 %v1199, %v1199
        %v4189 = vmul.f32 %v1201, %v1201
        %v4190 = vmul.f32 %v1204, %v1204
        %v4191 = vmul.f32 %v1206, %v1206
        %v4192 = vmul.f32 %v1209, %v1209
        %v4193 = vmul.f32 %v1211, %v1211
        %v4194 = vmul.f32 %v1214, %v1214
        %v4195 = vmul.f32 %v1216, %v1216
        %v4196 = vmul.f32 %v1219, %v1219
        %v4197 = vmul.f32 %v1221, %v1221
        %v4198 = vmul.f32 %v1224, %v1224
        %v4199 = vmul.f32 %v1226, %v1226
        %v4200 = vmul.f32 %v1229, %v1229
        %v4201 = vmul.f32 %v1231, %v1231
        %v4202 = vmul.f32 %v1234, %v1234
        %v4203 = vmul.f32 %v1236, %v1236
        %v4204 = vmul.f32 %v1239, %v1239
        %v4205 = vmul.f32 %v1241, %v1241
        %v4206 = vmul.f32 %v1244, %v1244
        %v4207 = vmul.f32 %v1246, %v1246
        %v4208 = vmul.f32 %v1249, %v1249
        %v4209 = vmul.f32 %v1251, %v1251
        %v4210 = vmul.f32 %v1254, %v1254
        %v4211 = vmul.f32 %v1256, %v1256
        %v4212 = vmul.f32 %v1259, %v1259
        %v4213 = vmul.f32 %v1261, %v1261
        %v4214 = vmul.f32 %v1264, %v1264
        %v4215 = vmul.f32 %v1266, %v1266
        %v4216 = vmul.f32 %v1269, %v1269
        %v4217 = vmul.f32 %v1271, %v1271
        %v4218 = vmul.f32 %v1274, %v1274
        %v4219 = vmul.f32 %v1276, %v1276
        %v4220 = vmul.f32 %v1279, %v1279
        %v4221 = vmul.f32 %v1281, %v1281
        %v4222 = vmul.f32 %v1284, %v1284
        %v4223 = vmul.f32 %v1286, %v1286
        %v4224 = vmul.f32 %v1289, %v1289
        %v4225 = vmul.f32 %v1291, %v1291
        %v4226 = vmul.f32 %v1294, %v1294
        %v4227 = vmul.f32 %v1296, %v1296
        %v4228 = vmul.f32 %v1299, %v1299
        %v4229 = vmul.f32 %v1301, %v1301
        %v4230 = vmul.f32 %v1553, %v1553
        %v4231 = vmul.f32 %v1555, %v1555
        %v4232 = vmul.f32 %v1558, %v1558
        %v4233 = vmul.f32 %v1560, %v1560
        %v4234 = vmul.f32 %v1563, %v1563
        %v4235 = vmul.f32 %v1565, %v1565
        %v4236 = vmul.f32 %v1568, %v1568
        %v4237 = vmul.f32 %v1570, %v1570
        %v4238 = vmul.f32 %v1573, %v1573
        %v4239 = vmul.f32 %v1575, %v1575
        %v4240 = vmul.f32 %v1578, %v1578
        %v4241 = vmul.f32 %v1580, %v1580
        %v4242 = vmul.f32 %v1583, %v1583
        %v4243 = vmul.f32 %v1585, %v1585
        %v4244 = vmul.f32 %v1588, %v1588
        %v4245 = vmul.f32 %v1590, %v1590
        %v4246 = vmul.f32 %v1593, %v1593
        %v4247 = vmul.f32 %v1595, %v1595
        %v4248 = vmul.f32 %v1598, %v1598
        %v4249 = vmul.f32 %v1600, %v1600
        %v4250 = vmul.f32 %v1603, %v1603
        %v4251 = vmul.f32 %v1605, %v1605
        %v4252 = vmul.f32 %v1608, %v1608
        %v4253 = vmul.f32 %v1610, %v1610
        %v4254 = vmul.f32 %v1613, %v1613
        %v4255 = vmul.f32 %v1615, %v1615
        %v4256 = vmul.f32 %v1618, %v1618
        %v4257 = vmul.f32 %v1620, %v1620
        %v4258 = vmul.f32 %v1623, %v1623
        %v4259 = vmul.f32 %v1625, %v1625
        %v4260 = vmul.f32 %v1628, %v1628
        %v4261 = vmul.f32 %v1630, %v1630
        %v4262 = vmul.f32 %v1633, %v1633
        %v4263 = vmul.f32 %v1635, %v1635
        %v4264 = vmul.f32 %v1638, %v1638
        %v4265 = vmul.f32 %v1640, %v1640
        %v4266 = vmul.f32 %v1643, %v1643
        %v4267 = vmul.f32 %v1645, %v1645
        %v4268 = vmul.f32 %v1648, %v1648
        %v4269 = vmul.f32 %v1650, %v1650
        %v4270 = vmul.f32 %v1653, %v1653
        %v4271 = vmul.f32 %v1655, %v1655
        %v4272 = vmul.f32 %v1658, %v1658
        %v4273 = vmul.f32 %v1660, %v1660
        %v4274 = vmul.f32 %v1663, %v1663
        %v4275 = vmul.f32 %v1665, %v1665
        %v4276 = vmul.f32 %v1668, %v1668
        %v4277 = vmul.f32 %v1670, %v1670
        %v4278 = vmul.f32 %v1673, %v1673
        %v4279 = vmul.f32 %v1675, %v1675
        %v4280 = vmul.f32 %v1678, %v1678
        %v4281 = vmul.f32 %v1680, %v1680
        %v4282 = vmul.f32 %v1683, %v1683
        %v4283 = vmul.f32 %v1685, %v1685
        %v4284 = vmul.f32 %v1688, %v1688
        %v4285 = vmul.f32 %v1690, %v1690
        %v4286 = vmul.f32 %v1693, %v1693
        %v4287 = vmul.f32 %v1695, %v1695
        %v4288 = vmul.f32 %v1698, %v1698
        %v4289 = vmul.f32 %v1700, %v1700
        %v4290 = vmul.f32 %v1703, %v1703
        %v4291 = vmul.f32 %v1705, %v1705
        %v4292 = vmul.f32 %v1708, %v1708
        %v4293 = vmul.f32 %v1710, %v1710
        %v4294 = vmul.f32 %v1962, %v1962
        %v4295 = vmul.f32 %v1964, %v1964
        %v4296 = vmul.f32 %v1967, %v1967
        %v4297 = vmul.f32 %v1969, %v1969
        %v4298 = vmul.f32 %v1972, %v1972
        %v4299 = vmul.f32 %v1974, %v1974
        %v4300 = vmul.f32 %v1977, %v1977
        %v4301 = vmul.f32 %v1979, %v1979
        %v4302 = vmul.f32 %v1982, %v1982
        %v4303 = vmul.f32 %v1984, %v1984
        %v4304 = vmul.f32 %v1987, %v1987
        %v4305 = vmul.f32 %v1989, %v1989
        %v4306 = vmul.f32 %v1992, %v1992
        %v4307 = vmul.f32 %v1994, %v1994
        %v4308 = vmul.f32 %v1997, %v1997
        %v4309 = vmul.f32 %v1999, %v1999
        %v4310 = vmul.f32 %v2002, %v2002
        %v4311 = vmul.f32 %v2004, %v2004
        %v4312 = vmul.f32 %v2007, %v2007
        %v4313 = vmul.f32 %v2009, %v2009
        %v4314 = vmul.f32 %v2012, %v2012
        %v4315 = vmul.f32 %v2014, %v2014
        %v4316 = vmul.f32 %v2017, %v2017
        %v4317 = vmul.f32 %v2019, %v2019
        %v4318 = vmul.f32 %v2022, %v2022
        %v4319 = vmul.f32 %v2024, %v2024
        %v4320 = vmul.f32 %v2027, %v2027
        %v4321 = vmul.f32 %v2029, %v2029
        %v4322 = vmul.f32 %v2032, %v2032
        %v4323 = vmul.f32 %v2034, %v2034
        %v4324 = vmul.f32 %v2037, %v2037
        %v4325 = vmul.f32 %v2039, %v2039
        %v4326 = vmul.f32 %v2042, %v2042
        %v4327 = vmul.f32 %v2044, %v2044
        %v4328 = vmul.f32 %v2047, %v2047
        %v4329 = vmul.f32 %v2049, %v2049
        %v4330 = vmul.f32 %v2052, %v2052
        %v4331 = vmul.f32 %v2054, %v2054
        %v4332 = vmul.f32 %v2057, %v2057
        %v4333 = vmul.f32 %v2059, %v2059
        %v4334 = vmul.f32 %v2062, %v2062
        %v4335 = vmul.f32 %v2064, %v2064
        %v4336 = vmul.f32 %v2067, %v2067
        %v4337 = vmul.f32 %v2069, %v2069
        %v4338 = vmul.f32 %v2072, %v2072
        %v4339 = vmul.f32 %v2074, %v2074
        %v4340 = vmul.f32 %v2077, %v2077
        %v4341 = vmul.f32 %v2079, %v2079
        %v4342 = vmul.f32 %v2082, %v2082
        %v4343 = vmul.f32 %v2084, %v2084
        %v4344 = vmul.f32 %v2087, %v2087
        %v4345 = vmul.f32 %v2089, %v2089
        %v4346 = vmul.f32 %v2092, %v2092
        %v4347 = vmul.f32 %v2094, %v2094
        %v4348 = vmul.f32 %v2097, %v2097
        %v4349 = vmul.f32 %v2099, %v2099
        %v4350 = vmul.f32 %v2102, %v2102
        %v4351 = vmul.f32 %v2104, %v2104
        %v4352 = vmul.f32 %v2107, %v2107
        %v4353 = vmul.f32 %v2109, %v2109
        %v4354 = vmul.f32 %v2112, %v2112
        %v4355 = vmul.f32 %v2114, %v2114
        %v4356 = vmul.f32 %v2117, %v2117
        %v4357 = vmul.f32 %v2119, %v2119
        %v4358 = vmul.f32 %v2371, %v2371
        %v4359 = vmul.f32 %v2373, %v2373
        %v4360 = vmul.f32 %v2376, %v2376
        %v4361 = vmul.f32 %v2378, %v2378
        %v4362 = vmul.f32 %v2381, %v2381
        %v4363 = vmul.f32 %v2383, %v2383
        %v4364 = vmul.f32 %v2386, %v2386
        %v4365 = vmul.f32 %v2388, %v2388
        %v4366 = vmul.f32 %v2391, %v2391
        %v4367 = vmul.f32 %v2393, %v2393
        %v4368 = vmul.f32 %v2396, %v2396
        %v4369 = vmul.f32 %v2398, %v2398
        %v4370 = vmul.f32 %v2401, %v2401
        %v4371 = vmul.f32 %v2403, %v2403
        %v4372 = vmul.f32 %v2406, %v2406
        %v4373 = vmul.f32 %v2408, %v2408
        %v4374 = vmul.f32 %v2411, %v2411
        %v4375 = vmul.f32 %v2413, %v2413
        %v4376 = vmul.f32 %v2416, %v2416
        %v4377 = vmul.f32 %v2418, %v2418
        %v4378 = vmul.f32 %v2421, %v2421
        %v4379 = vmul.f32 %v2423, %v2423
        %v4380 = vmul.f32 %v2426, %v2426
        %v4381 = vmul.f32 %v2428, %v2428
        %v4382 = vmul.f32 %v2431, %v2431
        %v4383 = vmul.f32 %v2433, %v2433
        %v4384 = vmul.f32 %v2436, %v2436
        %v4385 = vmul.f32 %v2438, %v2438
        %v4386 = vmul.f32 %v2441, %v2441
        %v4387 = vmul.f32 %v2443, %v2443
        %v4388 = vmul.f32 %v2446, %v2446
        %v4389 = vmul.f32 %v2448, %v2448
        %v4390 = vmul.f32 %v2451, %v2451
        %v4391 = vmul.f32 %v2453, %v2453
        %v4392 = vmul.f32 %v2456, %v2456
        %v4393 = vmul.f32 %v2458, %v2458
        %v4394 = vmul.f32 %v2461, %v2461
        %v4395 = vmul.f32 %v2463, %v2463
        %v4396 = vmul.f32 %v2466, %v2466
        %v4397 = vmul.f32 %v2468, %v2468
        %v4398 = vmul.f32 %v2471, %v2471
        %v4399 = vmul.f32 %v2473, %v2473
        %v4400 = vmul.f32 %v2476, %v2476
        %v4401 = vmul.f32 %v2478, %v2478
        %v4402 = vmul.f32 %v2481, %v2481
        %v4403 = vmul.f32 %v2483, %v2483
        %v4404 = vmul.f32 %v2486, %v2486
        %v4405 = vmul.f32 %v2488, %v2488
        %v4406 = vmul.f32 %v2491, %v2491
        %v4407 = vmul.f32 %v2493, %v2493
        %v4408 = vmul.f32 %v2496, %v2496
        %v4409 = vmul.f32 %v2498, %v2498
        %v4410 = vmul.f32 %v2501, %v2501
        %v4411 = vmul.f32 %v2503, %v2503
        %v4412 = vmul.f32 %v2506, %v2506
        %v4413 = vmul.f32 %v2508, %v2508
        %v4414 = vmul.f32 %v2511, %v2511
        %v4415 = vmul.f32 %v2513, %v2513
        %v4416 = vmul.f32 %v2516, %v2516
        %v4417 = vmul.f32 %v2518, %v2518
        %v4418 = vmul.f32 %v2521, %v2521
        %v4419 = vmul.f32 %v2523, %v2523
        %v4420 = vmul.f32 %v2526, %v2526
        %v4421 = vmul.f32 %v2528, %v2528
        %v4422 = vmul.f32 %v2780, %v2780
        %v4423 = vmul.f32 %v2782, %v2782
        %v4424 = vmul.f32 %v2785, %v2785
        %v4425 = vmul.f32 %v2787, %v2787
        %v4426 = vmul.f32 %v2790, %v2790
        %v4427 = vmul.f32 %v2792, %v2792
        %v4428 = vmul.f32 %v2795, %v2795
        %v4429 = vmul.f32 %v2797, %v2797
        %v4430 = vmul.f32 %v2800, %v2800
        %v4431 = vmul.f32 %v2802, %v2802
        %v4432 = vmul.f32 %v2805, %v2805
        %v4433 = vmul.f32 %v2807, %v2807
        %v4434 = vmul.f32 %v2810, %v2810
        %v4435 = vmul.f32 %v2812, %v2812
        %v4436 = vmul.f32 %v2815, %v2815
        %v4437 = vmul.f32 %v2817, %v2817
        %v4438 = vmul.f32 %v2820, %v2820
        %v4439 = vmul.f32 %v2822, %v2822
        %v4440 = vmul.f32 %v2825, %v2825
        %v4441 = vmul.f32 %v2827, %v2827
        %v4442 = vmul.f32 %v2830, %v2830
        %v4443 = vmul.f32 %v2832, %v2832
        %v4444 = vmul.f32 %v2835, %v2835
        %v4445 = vmul.f32 %v2837, %v2837
        %v4446 = vmul.f32 %v2840, %v2840
        %v4447 = vmul.f32 %v2842, %v2842
        %v4448 = vmul.f32 %v2845, %v2845
        %v4449 = vmul.f32 %v2847, %v2847
        %v4450 = vmul.f32 %v2850, %v2850
        %v4451 = vmul.f32 %v2852, %v2852
        %v4452 = vmul.f32 %v2855, %v2855
        %v4453 = vmul.f32 %v2857, %v2857
        %v4454 = vmul.f32 %v2860, %v2860
        %v4455 = vmul.f32 %v2862, %v2862
        %v4456 = vmul.f32 %v2865, %v2865
        %v4457 = vmul.f32 %v2867, %v2867
        %v4458 = vmul.f32 %v2870, %v2870
        %v4459 = vmul.f32 %v2872, %v2872
        %v4460 = vmul.f32 %v2875, %v2875
        %v4461 = vmul.f32 %v2877, %v2877
        %v4462 = vmul.f32 %v2880, %v2880
        %v4463 = vmul.f32 %v2882, %v2882
        %v4464 = vmul.f32 %v2885, %v2885
        %v4465 = vmul.f32 %v2887, %v2887
        %v4466 = vmul.f32 %v2890, %v2890
        %v4467 = vmul.f32 %v2892, %v2892
        %v4468 = vmul.f32 %v2895, %v2895
        %v4469 = vmul.f32 %v2897, %v2897
        %v4470 = vmul.f32 %v2900, %v2900
        %v4471 = vmul.f32 %v2902, %v2902
        %v4472 = vmul.f32 %v2905, %v2905
        %v4473 = vmul.f32 %v2907, %v2907
        %v4474 = vmul.f32 %v2910, %v2910
        %v4475 = vmul.f32 %v2912, %v2912
        %v4476 = vmul.f32 %v2915, %v2915
        %v4477 = vmul.f32 %v2917, %v2917
        %v4478 = vmul.f32 %v2920, %v2920
        %v4479 = vmul.f32 %v2922, %v2922
        %v4480 = vmul.f32 %v2925, %v2925
        %v4481 = vmul.f32 %v2927, %v2927
        %v4482 = vmul.f32 %v2930, %v2930
        %v4483 = vmul.f32 %v2932, %v2932
        %v4484 = vmul.f32 %v2935, %v2935
        %v4485 = vmul.f32 %v2937, %v2937
        %v4486 = vmul.f32 %v3189, %v3189
        %v4487 = vmul.f32 %v3191, %v3191
        %v4488 = vmul.f32 %v3194, %v3194
        %v4489 = vmul.f32 %v3196, %v3196
        %v4490 = vmul.f32 %v3199, %v3199
        %v4491 = vmul.f32 %v3201, %v3201
        %v4492 = vmul.f32 %v3204, %v3204
        %v4493 = vmul.f32 %v3206, %v3206
        %v4494 = vmul.f32 %v3209, %v3209
        %v4495 = vmul.f32 %v3211, %v3211
        %v4496 = vmul.f32 %v3214, %v3214
        %v4497 = vmul.f32 %v3216, %v3216
        %v4498 = vmul.f32 %v3219, %v3219
        %v4499 = vmul.f32 %v3221, %v3221
        %v4500 = vmul.f32 %v3224, %v3224
        %v4501 = vmul.f32 %v3226, %v3226
        %v4502 = vmul.f32 %v3229, %v3229
        %v4503 = vmul.f32 %v3231, %v3231
        %v4504 = vmul.f32 %v3234, %v3234
        %v4505 = vmul.f32 %v3236, %v3236
        %v4506 = vmul.f32 %v3239, %v3239
        %v4507 = vmul.f32 %v3241, %v3241
        %v4508 = vmul.f32 %v3244, %v3244
        %v4509 = vmul.f32 %v3246, %v3246
        %v4510 = vmul.f32 %v3249, %v3249
        %v4511 = vmul.f32 %v3251, %v3251
        %v4512 = vmul.f32 %v3254, %v3254
        %v4513 = vmul.f32 %v3256, %v3256
        %v4514 = vmul.f32 %v3259, %v3259
        %v4515 = vmul.f32 %v3261, %v3261
        %v4516 = vmul.f32 %v3264, %v3264
        %v4517 = vmul.f32 %v3266, %v3266
        %v4518 = vmul.f32 %v3269, %v3269
        %v4519 = vmul.f32 %v3271, %v3271
        %v4520 = vmul.f32 %v3274, %v3274
        %v4521 = vmul.f32 %v3276, %v3276
        %v4522 = vmul.f32 %v3279, %v3279
        %v4523 = vmul.f32 %v3281, %v3281
        %v4524 = vmul.f32 %v3284, %v3284
        %v4525 = vmul.f32 %v3286, %v3286
        %v4526 = vmul.f32 %v3289, %v3289
        %v4527 = vmul.f32 %v3291, %v3291
        %v4528 = vmul.f32 %v3294, %v3294
        %v4529 = vmul.f32 %v3296, %v3296
        %v4530 = vmul.f32 %v3299, %v3299
        %v4531 = vmul.f32 %v3301, %v3301
        %v4532 = vmul.f32 %v3304, %v3304
        %v4533 = vmul.f32 %v3306, %v3306
        %v4534 = vmul.f32 %v3309, %v3309
        %v4535 = vmul.f32 %v3311, %v3311
        %v4536 = vmul.f32 %v3314, %v3314
        %v4537 = vmul.f32 %v3316, %v3316
        %v4538 = vmul.f32 %v3319, %v3319
        %v4539 = vmul.f32 %v3321, %v3321
        %v4540 = vmul.f32 %v3324, %v3324
        %v4541 = vmul.f32 %v3326, %v3326
        %v4542 = vmul.f32 %v3329, %v3329
        %v4543 = vmul.f32 %v3331, %v3331
        %v4544 = vmul.f32 %v3334, %v3334
        %v4545 = vmul.f32 %v3336, %v3336
        %v4546 = vmul.f32 %v3339, %v3339
        %v4547 = vmul.f32 %v3341, %v3341
        %v4548 = vmul.f32 %v3344, %v3344
        %v4549 = vmul.f32 %v3346, %v3346
        %v4550 = vmul.f32 %v3598, %v3598
        %v4551 = vmul.f32 %v3600, %v3600
        %v4552 = vmul.f32 %v3603, %v3603
        %v4553 = vmul.f32 %v3605, %v3605
        %v4554 = vmul.f32 %v3608, %v3608
        %v4555 = vmul.f32 %v3610, %v3610
        %v4556 = vmul.f32 %v3613, %v3613
        %v4557 = vmul.f32 %v3615, %v3615
        %v4558 = vmul.f32 %v3618, %v3618
        %v4559 = vmul.f32 %v3620, %v3620
        %v4560 = vmul.f32 %v3623, %v3623
        %v4561 = vmul.f32 %v3625, %v3625
        %v4562 = vmul.f32 %v3628, %v3628
        %v4563 = vmul.f32 %v3630, %v3630
        %v4564 = vmul.f32 %v3633, %v3633
        %v4565 = vmul.f32 %v3635, %v3635
        %v4566 = vmul.f32 %v3638, %v3638
        %v4567 = vmul.f32 %v3640, %v3640
        %v4568 = vmul.f32 %v3643, %v3643
        %v4569 = vmul.f32 %v3645, %v3645
        %v4570 = vmul.f32 %v3648, %v3648
        %v4571 = vmul.f32 %v3650, %v3650
        %v4572 = vmul.f32 %v3653, %v3653
        %v4573 = vmul.f32 %v3655, %v3655
        %v4574 = vmul.f32 %v3658, %v3658
        %v4575 = vmul.f32 %v3660, %v3660
        %v4576 = vmul.f32 %v3663, %v3663
        %v4577 = vmul.f32 %v3665, %v3665
        %v4578 = vmul.f32 %v3668, %v3668
        %v4579 = vmul.f32 %v3670, %v3670
        %v4580 = vmul.f32 %v3673, %v3673
        %v4581 = vmul.f32 %v3675, %v3675
        %v4582 = vmul.f32 %v3678, %v3678
        %v4583 = vmul.f32 %v3680, %v3680
        %v4584 = vmul.f32 %v3683, %v3683
        %v4585 = vmul.f32 %v3685, %v3685
        %v4586 = vmul.f32 %v3688, %v3688
        %v4587 = vmul.f32 %v3690, %v3690
        %v4588 = vmul.f32 %v3693, %v3693
        %v4589 = vmul.f32 %v3695, %v3695
        %v4590 = vmul.f32 %v3698, %v3698
        %v4591 = vmul.f32 %v3700, %v3700
        %v4592 = vmul.f32 %v3703, %v3703
        %v4593 = vmul.f32 %v3705, %v3705
        %v4594 = vmul.f32 %v3708, %v3708
        %v4595 = vmul.f32 %v3710, %v3710
        %v4596 = vmul.f32 %v3713, %v3713
        %v4597 = vmul.f32 %v3715, %v3715
        %v4598 = vmul.f32 %v3718, %v3718
        %v4599 = vmul.f32 %v3720, %v3720
        %v4600 = vmul.f32 %v3723, %v3723
        %v4601 = vmul.f32 %v3725, %v3725
        %v4602 = vmul.f32 %v3728, %v3728
        %v4603 = vmul.f32 %v3730, %v3730
        %v4604 = vmul.f32 %v3733, %v3733
        %v4605 = vmul.f32 %v3735, %v3735
        %v4606 = vmul.f32 %v3738, %v3738
        %v4607 = vmul.f32 %v3740, %v3740
        %v4608 = vmul.f32 %v3743, %v3743
        %v4609 = vmul.f32 %v3745, %v3745
        %v4610 = vmul.f32 %v3748, %v3748
        %v4611 = vmul.f32 %v3750, %v3750
        %v4612 = vmul.f32 %v3753, %v3753
        %v4613 = vmul.f32 %v3755, %v3755
        %v4614 = vmul.f32 %v4007, %v4007
        %v4615 = vmul.f32 %v4009, %v4009
        %v4616 = vmul.f32 %v4012, %v4012
        %v4617 = vmul.f32 %v4014, %v4014
        %v4618 = vmul.f32 %v4017, %v4017
        %v4619 = vmul.f32 %v4019, %v4019
        %v4620 = vmul.f32 %v4022, %v4022
        %v4621 = vmul.f32 %v4024, %v4024
        %v4622 = vmul.f32 %v4027, %v4027
        %v4623 = vmul.f32 %v4029, %v4029
        %v4624 = vmul.f32 %v4032, %v4032
        %v4625 = vmul.f32 %v4034, %v4034
        %v4626 = vmul.f32 %v4037, %v4037
        %v4627 = vmul.f32 %v4039, %v4039
        %v4628 = vmul.f32 %v4042, %v4042
        %v4629 = vmul.f32 %v4044, %v4044
        %v4630 = vmul.f32 %v4047, %v4047
        %v4631 = vmul.f32 %v4049, %v4049
        %v4632 = vmul.f32 %v4052, %v4052
        %v4633 = vmul.f32 %v4054, %v4054
        %v4634 = vmul.f32 %v4057, %v4057
        %v4635 = vmul.f32 %v4059, %v4059
        %v4636 = vmul.f32 %v4062, %v4062
        %v4637 = vmul.f32 %v4064, %v4064
        %v4638 = vmul.f32 %v4067, %v4067
        %v4639 = vmul.f32 %v4069, %v4069
        %v4640 = vmul.f32 %v4072, %v4072
        %v4641 = vmul.f32 %v4074, %v4074
        %v4642 = vmul.f32 %v4077, %v4077
        %v4643 = vmul.f32 %v4079, %v4079
        %v4644 = vmul.f32 %v4082, %v4082
        %v4645 = vmul.f32 %v4084, %v4084
        %v4646 = vmul.f32 %v4087, %v4087
        %v4647 = vmul.f32 %v4089, %v4089
        %v4648 = vmul.f32 %v4092, %v4092
        %v4649 = vmul.f32 %v4094, %v4094
        %v4650 = vmul.f32 %v4097, %v4097
        %v4651 = vmul.f32 %v4099, %v4099
        %v4652 = vmul.f32 %v4102, %v4102
        %v4653 = vmul.f32 %v4104, %v4104
        %v4654 = vmul.f32 %v4107, %v4107
        %v4655 = vmul.f32 %v4109, %v4109
        %v4656 = vmul.f32 %v4112, %v4112
        %v4657 = vmul.f32 %v4114, %v4114
        %v4658 = vmul.f32 %v4117, %v4117
        %v4659 = vmul.f32 %v4119, %v4119
        %v4660 = vmul.f32 %v4122, %v4122
        %v4661 = vmul.f32 %v4124, %v4124
        %v4662 = vmul.f32 %v4127, %v4127
        %v4663 = vmul.f32 %v4129, %v4129
        %v4664 = vmul.f32 %v4132, %v4132
        %v4665 = vmul.f32 %v4134, %v4134
        %v4666 = vmul.f32 %v4137, %v4137
        %v4667 = vmul.f32 %v4139, %v4139
        %v4668 = vmul.f32 %v4142, %v4142
        %v4669 = vmul.f32 %v4144, %v4144
        %v4670 = vmul.f32 %v4147, %v4147
        %v4671 = vmul.f32 %v4149, %v4149
        %v4672 = vmul.f32 %v4152, %v4152
        %v4673 = vmul.f32 %v4154, %v4154
        %v4674 = vmul.f32 %v4157, %v4157
        %v4675 = vmul.f32 %v4159, %v4159
        %v4676 = vmul.f32 %v4162, %v4162
        %v4677 = vmul.f32 %v4164, %v4164
        %4678 = vadd.xlane.f32.xlu0 %v4166
        %v4679 = vpop.xlane.xlu0 %4678
        %4680 = vadd.xlane.f32.xlu0 %v4167
        %v4681 = vpop.xlane.xlu0 %4680
        %4682 = vadd.xlane.f32.xlu0 %v4168
        %v4683 = vpop.xlane.xlu0 %4682
        %4684 = vadd.xlane.f32.xlu0 %v4169
        %v4685 = vpop.xlane.xlu0 %4684
        %4686 = vadd.xlane.f32.xlu0 %v4170
        %v4687 = vpop.xlane.xlu0 %4686
        %4688 = vadd.xlane.f32.xlu0 %v4171
        %v4689 = vpop.xlane.xlu0 %4688
        %4690 = vadd.xlane.f32.xlu0 %v4172
        %v4691 = vpop.xlane.xlu0 %4690
        %4692 = vadd.xlane.f32.xlu0 %v4173
        %v4693 = vpop.xlane.xlu0 %4692
        %4694 = vadd.xlane.f32.xlu0 %v4174
        %v4695 = vpop.xlane.xlu0 %4694
        %4696 = vadd.xlane.f32.xlu0 %v4175
        %v4697 = vpop.xlane.xlu0 %4696
        %4698 = vadd.xlane.f32.xlu0 %v4176
        %v4699 = vpop.xlane.xlu0 %4698
        %4700 = vadd.xlane.f32.xlu0 %v4177
        %v4701 = vpop.xlane.xlu0 %4700
        %4702 = vadd.xlane.f32.xlu0 %v4178
        %v4703 = vpop.xlane.xlu0 %4702
        %4704 = vadd.xlane.f32.xlu0 %v4179
        %v4705 = vpop.xlane.xlu0 %4704
        %4706 = vadd.xlane.f32.xlu0 %v4180
        %v4707 = vpop.xlane.xlu0 %4706
        %4708 = vadd.xlane.f32.xlu0 %v4181
        %v4709 = vpop.xlane.xlu0 %4708
        %4710 = vadd.xlane.f32.xlu0 %v4182
        %v4711 = vpop.xlane.xlu0 %4710
        %4712 = vadd.xlane.f32.xlu0 %v4183
        %v4713 = vpop.xlane.xlu0 %4712
        %4714 = vadd.xlane.f32.xlu0 %v4184
        %v4715 = vpop.xlane.xlu0 %4714
        %4716 = vadd.xlane.f32.xlu0 %v4185
        %v4717 = vpop.xlane.xlu0 %4716
        %4718 = vadd.xlane.f32.xlu0 %v4186
        %v4719 = vpop.xlane.xlu0 %4718
        %4720 = vadd.xlane.f32.xlu0 %v4187
        %v4721 = vpop.xlane.xlu0 %4720
        %4722 = vadd.xlane.f32.xlu0 %v4188
        %v4723 = vpop.xlane.xlu0 %4722
        %4724 = vadd.xlane.f32.xlu0 %v4189
        %v4725 = vpop.xlane.xlu0 %4724
        %4726 = vadd.xlane.f32.xlu0 %v4190
        %v4727 = vpop.xlane.xlu0 %4726
        %4728 = vadd.xlane.f32.xlu0 %v4191
        %v4729 = vpop.xlane.xlu0 %4728
        %4730 = vadd.xlane.f32.xlu0 %v4192
        %v4731 = vpop.xlane.xlu0 %4730
        %4732 = vadd.xlane.f32.xlu0 %v4193
        %v4733 = vpop.xlane.xlu0 %4732
        %4734 = vadd.xlane.f32.xlu0 %v4194
        %v4735 = vpop.xlane.xlu0 %4734
        %4736 = vadd.xlane.f32.xlu0 %v4195
        %v4737 = vpop.xlane.xlu0 %4736
        %4738 = vadd.xlane.f32.xlu0 %v4196
        %v4739 = vpop.xlane.xlu0 %4738
        %4740 = vadd.xlane.f32.xlu0 %v4197
        %v4741 = vpop.xlane.xlu0 %4740
        %4742 = vadd.xlane.f32.xlu0 %v4198
        %v4743 = vpop.xlane.xlu0 %4742
        %4744 = vadd.xlane.f32.xlu0 %v4199
        %v4745 = vpop.xlane.xlu0 %4744
        %4746 = vadd.xlane.f32.xlu0 %v4200
        %v4747 = vpop.xlane.xlu0 %4746
        %4748 = vadd.xlane.f32.xlu0 %v4201
        %v4749 = vpop.xlane.xlu0 %4748
        %4750 = vadd.xlane.f32.xlu0 %v4202
        %v4751 = vpop.xlane.xlu0 %4750
        %4752 = vadd.xlane.f32.xlu0 %v4203
        %v4753 = vpop.xlane.xlu0 %4752
        %4754 = vadd.xlane.f32.xlu0 %v4204
        %v4755 = vpop.xlane.xlu0 %4754
        %4756 = vadd.xlane.f32.xlu0 %v4205
        %v4757 = vpop.xlane.xlu0 %4756
        %4758 = vadd.xlane.f32.xlu0 %v4206
        %v4759 = vpop.xlane.xlu0 %4758
        %4760 = vadd.xlane.f32.xlu0 %v4207
        %v4761 = vpop.xlane.xlu0 %4760
        %4762 = vadd.xlane.f32.xlu0 %v4208
        %v4763 = vpop.xlane.xlu0 %4762
        %4764 = vadd.xlane.f32.xlu0 %v4209
        %v4765 = vpop.xlane.xlu0 %4764
        %4766 = vadd.xlane.f32.xlu0 %v4210
        %v4767 = vpop.xlane.xlu0 %4766
        %4768 = vadd.xlane.f32.xlu0 %v4211
        %v4769 = vpop.xlane.xlu0 %4768
        %4770 = vadd.xlane.f32.xlu0 %v4212
        %v4771 = vpop.xlane.xlu0 %4770
        %4772 = vadd.xlane.f32.xlu0 %v4213
        %v4773 = vpop.xlane.xlu0 %4772
        %4774 = vadd.xlane.f32.xlu0 %v4214
        %v4775 = vpop.xlane.xlu0 %4774
        %4776 = vadd.xlane.f32.xlu0 %v4215
        %v4777 = vpop.xlane.xlu0 %4776
        %4778 = vadd.xlane.f32.xlu0 %v4216
        %v4779 = vpop.xlane.xlu0 %4778
        %4780 = vadd.xlane.f32.xlu0 %v4217
        %v4781 = vpop.xlane.xlu0 %4780
        %4782 = vadd.xlane.f32.xlu0 %v4218
        %v4783 = vpop.xlane.xlu0 %4782
        %4784 = vadd.xlane.f32.xlu0 %v4219
        %v4785 = vpop.xlane.xlu0 %4784
        %4786 = vadd.xlane.f32.xlu0 %v4220
        %v4787 = vpop.xlane.xlu0 %4786
        %4788 = vadd.xlane.f32.xlu0 %v4221
        %v4789 = vpop.xlane.xlu0 %4788
        %4790 = vadd.xlane.f32.xlu0 %v4222
        %v4791 = vpop.xlane.xlu0 %4790
        %4792 = vadd.xlane.f32.xlu0 %v4223
        %v4793 = vpop.xlane.xlu0 %4792
        %4794 = vadd.xlane.f32.xlu0 %v4224
        %v4795 = vpop.xlane.xlu0 %4794
        %4796 = vadd.xlane.f32.xlu0 %v4225
        %v4797 = vpop.xlane.xlu0 %4796
        %4798 = vadd.xlane.f32.xlu0 %v4226
        %v4799 = vpop.xlane.xlu0 %4798
        %4800 = vadd.xlane.f32.xlu0 %v4227
        %v4801 = vpop.xlane.xlu0 %4800
        %4802 = vadd.xlane.f32.xlu0 %v4228
        %v4803 = vpop.xlane.xlu0 %4802
        %4804 = vadd.xlane.f32.xlu0 %v4229
        %v4805 = vpop.xlane.xlu0 %4804
        %4806 = vadd.xlane.f32.xlu0 %v4230
        %v4807 = vpop.xlane.xlu0 %4806
        %4808 = vadd.xlane.f32.xlu0 %v4231
        %v4809 = vpop.xlane.xlu0 %4808
        %4810 = vadd.xlane.f32.xlu0 %v4232
        %v4811 = vpop.xlane.xlu0 %4810
        %4812 = vadd.xlane.f32.xlu0 %v4233
        %v4813 = vpop.xlane.xlu0 %4812
        %4814 = vadd.xlane.f32.xlu0 %v4234
        %v4815 = vpop.xlane.xlu0 %4814
        %4816 = vadd.xlane.f32.xlu0 %v4235
        %v4817 = vpop.xlane.xlu0 %4816
        %4818 = vadd.xlane.f32.xlu0 %v4236
        %v4819 = vpop.xlane.xlu0 %4818
        %4820 = vadd.xlane.f32.xlu0 %v4237
        %v4821 = vpop.xlane.xlu0 %4820
        %4822 = vadd.xlane.f32.xlu0 %v4238
        %v4823 = vpop.xlane.xlu0 %4822
        %4824 = vadd.xlane.f32.xlu0 %v4239
        %v4825 = vpop.xlane.xlu0 %4824
        %4826 = vadd.xlane.f32.xlu0 %v4240
        %v4827 = vpop.xlane.xlu0 %4826
        %4828 = vadd.xlane.f32.xlu0 %v4241
        %v4829 = vpop.xlane.xlu0 %4828
        %4830 = vadd.xlane.f32.xlu0 %v4242
        %v4831 = vpop.xlane.xlu0 %4830
        %4832 = vadd.xlane.f32.xlu0 %v4243
        %v4833 = vpop.xlane.xlu0 %4832
        %4834 = vadd.xlane.f32.xlu0 %v4244
        %v4835 = vpop.xlane.xlu0 %4834
        %4836 = vadd.xlane.f32.xlu0 %v4245
        %v4837 = vpop.xlane.xlu0 %4836
        %4838 = vadd.xlane.f32.xlu0 %v4246
        %v4839 = vpop.xlane.xlu0 %4838
        %4840 = vadd.xlane.f32.xlu0 %v4247
        %v4841 = vpop.xlane.xlu0 %4840
        %4842 = vadd.xlane.f32.xlu0 %v4248
        %v4843 = vpop.xlane.xlu0 %4842
        %4844 = vadd.xlane.f32.xlu0 %v4249
        %v4845 = vpop.xlane.xlu0 %4844
        %4846 = vadd.xlane.f32.xlu0 %v4250
        %v4847 = vpop.xlane.xlu0 %4846
        %4848 = vadd.xlane.f32.xlu0 %v4251
        %v4849 = vpop.xlane.xlu0 %4848
        %4850 = vadd.xlane.f32.xlu0 %v4252
        %v4851 = vpop.xlane.xlu0 %4850
        %4852 = vadd.xlane.f32.xlu0 %v4253
        %v4853 = vpop.xlane.xlu0 %4852
        %4854 = vadd.xlane.f32.xlu0 %v4254
        %v4855 = vpop.xlane.xlu0 %4854
        %4856 = vadd.xlane.f32.xlu0 %v4255
        %v4857 = vpop.xlane.xlu0 %4856
        %4858 = vadd.xlane.f32.xlu0 %v4256
        %v4859 = vpop.xlane.xlu0 %4858
        %4860 = vadd.xlane.f32.xlu0 %v4257
        %v4861 = vpop.xlane.xlu0 %4860
        %4862 = vadd.xlane.f32.xlu0 %v4258
        %v4863 = vpop.xlane.xlu0 %4862
        %4864 = vadd.xlane.f32.xlu0 %v4259
        %v4865 = vpop.xlane.xlu0 %4864
        %4866 = vadd.xlane.f32.xlu0 %v4260
        %v4867 = vpop.xlane.xlu0 %4866
        %4868 = vadd.xlane.f32.xlu0 %v4261
        %v4869 = vpop.xlane.xlu0 %4868
        %4870 = vadd.xlane.f32.xlu0 %v4262
        %v4871 = vpop.xlane.xlu0 %4870
        %4872 = vadd.xlane.f32.xlu0 %v4263
        %v4873 = vpop.xlane.xlu0 %4872
        %4874 = vadd.xlane.f32.xlu0 %v4264
        %v4875 = vpop.xlane.xlu0 %4874
        %4876 = vadd.xlane.f32.xlu0 %v4265
        %v4877 = vpop.xlane.xlu0 %4876
        %4878 = vadd.xlane.f32.xlu0 %v4266
        %v4879 = vpop.xlane.xlu0 %4878
        %4880 = vadd.xlane.f32.xlu0 %v4267
        %v4881 = vpop.xlane.xlu0 %4880
        %4882 = vadd.xlane.f32.xlu0 %v4268
        %v4883 = vpop.xlane.xlu0 %4882
        %4884 = vadd.xlane.f32.xlu0 %v4269
        %v4885 = vpop.xlane.xlu0 %4884
        %4886 = vadd.xlane.f32.xlu0 %v4270
        %v4887 = vpop.xlane.xlu0 %4886
        %4888 = vadd.xlane.f32.xlu0 %v4271
        %v4889 = vpop.xlane.xlu0 %4888
        %4890 = vadd.xlane.f32.xlu0 %v4272
        %v4891 = vpop.xlane.xlu0 %4890
        %4892 = vadd.xlane.f32.xlu0 %v4273
        %v4893 = vpop.xlane.xlu0 %4892
        %4894 = vadd.xlane.f32.xlu0 %v4274
        %v4895 = vpop.xlane.xlu0 %4894
        %4896 = vadd.xlane.f32.xlu0 %v4275
        %v4897 = vpop.xlane.xlu0 %4896
        %4898 = vadd.xlane.f32.xlu0 %v4276
        %v4899 = vpop.xlane.xlu0 %4898
        %4900 = vadd.xlane.f32.xlu0 %v4277
        %v4901 = vpop.xlane.xlu0 %4900
        %4902 = vadd.xlane.f32.xlu0 %v4278
        %v4903 = vpop.xlane.xlu0 %4902
        %4904 = vadd.xlane.f32.xlu0 %v4279
        %v4905 = vpop.xlane.xlu0 %4904
        %4906 = vadd.xlane.f32.xlu0 %v4280
        %v4907 = vpop.xlane.xlu0 %4906
        %4908 = vadd.xlane.f32.xlu0 %v4281
        %v4909 = vpop.xlane.xlu0 %4908
        %4910 = vadd.xlane.f32.xlu0 %v4282
        %v4911 = vpop.xlane.xlu0 %4910
        %4912 = vadd.xlane.f32.xlu0 %v4283
        %v4913 = vpop.xlane.xlu0 %4912
        %4914 = vadd.xlane.f32.xlu0 %v4284
        %v4915 = vpop.xlane.xlu0 %4914
        %4916 = vadd.xlane.f32.xlu0 %v4285
        %v4917 = vpop.xlane.xlu0 %4916
        %4918 = vadd.xlane.f32.xlu0 %v4286
        %v4919 = vpop.xlane.xlu0 %4918
        %4920 = vadd.xlane.f32.xlu0 %v4287
        %v4921 = vpop.xlane.xlu0 %4920
        %4922 = vadd.xlane.f32.xlu0 %v4288
        %v4923 = vpop.xlane.xlu0 %4922
        %4924 = vadd.xlane.f32.xlu0 %v4289
        %v4925 = vpop.xlane.xlu0 %4924
        %4926 = vadd.xlane.f32.xlu0 %v4290
        %v4927 = vpop.xlane.xlu0 %4926
        %4928 = vadd.xlane.f32.xlu0 %v4291
        %v4929 = vpop.xlane.xlu0 %4928
        %4930 = vadd.xlane.f32.xlu0 %v4292
        %v4931 = vpop.xlane.xlu0 %4930
        %4932 = vadd.xlane.f32.xlu0 %v4293
        %v4933 = vpop.xlane.xlu0 %4932
        %4934 = vadd.xlane.f32.xlu0 %v4294
        %v4935 = vpop.xlane.xlu0 %4934
        %4936 = vadd.xlane.f32.xlu0 %v4295
        %v4937 = vpop.xlane.xlu0 %4936
        %4938 = vadd.xlane.f32.xlu0 %v4296
        %v4939 = vpop.xlane.xlu0 %4938
        %4940 = vadd.xlane.f32.xlu0 %v4297
        %v4941 = vpop.xlane.xlu0 %4940
        %4942 = vadd.xlane.f32.xlu0 %v4298
        %v4943 = vpop.xlane.xlu0 %4942
        %4944 = vadd.xlane.f32.xlu0 %v4299
        %v4945 = vpop.xlane.xlu0 %4944
        %4946 = vadd.xlane.f32.xlu0 %v4300
        %v4947 = vpop.xlane.xlu0 %4946
        %4948 = vadd.xlane.f32.xlu0 %v4301
        %v4949 = vpop.xlane.xlu0 %4948
        %4950 = vadd.xlane.f32.xlu0 %v4302
        %v4951 = vpop.xlane.xlu0 %4950
        %4952 = vadd.xlane.f32.xlu0 %v4303
        %v4953 = vpop.xlane.xlu0 %4952
        %4954 = vadd.xlane.f32.xlu0 %v4304
        %v4955 = vpop.xlane.xlu0 %4954
        %4956 = vadd.xlane.f32.xlu0 %v4305
        %v4957 = vpop.xlane.xlu0 %4956
        %4958 = vadd.xlane.f32.xlu0 %v4306
        %v4959 = vpop.xlane.xlu0 %4958
        %4960 = vadd.xlane.f32.xlu0 %v4307
        %v4961 = vpop.xlane.xlu0 %4960
        %4962 = vadd.xlane.f32.xlu0 %v4308
        %v4963 = vpop.xlane.xlu0 %4962
        %4964 = vadd.xlane.f32.xlu0 %v4309
        %v4965 = vpop.xlane.xlu0 %4964
        %4966 = vadd.xlane.f32.xlu0 %v4310
        %v4967 = vpop.xlane.xlu0 %4966
        %4968 = vadd.xlane.f32.xlu0 %v4311
        %v4969 = vpop.xlane.xlu0 %4968
        %4970 = vadd.xlane.f32.xlu0 %v4312
        %v4971 = vpop.xlane.xlu0 %4970
        %4972 = vadd.xlane.f32.xlu0 %v4313
        %v4973 = vpop.xlane.xlu0 %4972
        %4974 = vadd.xlane.f32.xlu0 %v4314
        %v4975 = vpop.xlane.xlu0 %4974
        %4976 = vadd.xlane.f32.xlu0 %v4315
        %v4977 = vpop.xlane.xlu0 %4976
        %4978 = vadd.xlane.f32.xlu0 %v4316
        %v4979 = vpop.xlane.xlu0 %4978
        %4980 = vadd.xlane.f32.xlu0 %v4317
        %v4981 = vpop.xlane.xlu0 %4980
        %4982 = vadd.xlane.f32.xlu0 %v4318
        %v4983 = vpop.xlane.xlu0 %4982
        %4984 = vadd.xlane.f32.xlu0 %v4319
        %v4985 = vpop.xlane.xlu0 %4984
        %4986 = vadd.xlane.f32.xlu0 %v4320
        %v4987 = vpop.xlane.xlu0 %4986
        %4988 = vadd.xlane.f32.xlu0 %v4321
        %v4989 = vpop.xlane.xlu0 %4988
        %4990 = vadd.xlane.f32.xlu0 %v4322
        %v4991 = vpop.xlane.xlu0 %4990
        %4992 = vadd.xlane.f32.xlu0 %v4323
        %v4993 = vpop.xlane.xlu0 %4992
        %4994 = vadd.xlane.f32.xlu0 %v4324
        %v4995 = vpop.xlane.xlu0 %4994
        %4996 = vadd.xlane.f32.xlu0 %v4325
        %v4997 = vpop.xlane.xlu0 %4996
        %4998 = vadd.xlane.f32.xlu0 %v4326
        %v4999 = vpop.xlane.xlu0 %4998
        %5000 = vadd.xlane.f32.xlu0 %v4327
        %v5001 = vpop.xlane.xlu0 %5000
        %5002 = vadd.xlane.f32.xlu0 %v4328
        %v5003 = vpop.xlane.xlu0 %5002
        %5004 = vadd.xlane.f32.xlu0 %v4329
        %v5005 = vpop.xlane.xlu0 %5004
        %5006 = vadd.xlane.f32.xlu0 %v4330
        %v5007 = vpop.xlane.xlu0 %5006
        %5008 = vadd.xlane.f32.xlu0 %v4331
        %v5009 = vpop.xlane.xlu0 %5008
        %5010 = vadd.xlane.f32.xlu0 %v4332
        %v5011 = vpop.xlane.xlu0 %5010
        %5012 = vadd.xlane.f32.xlu0 %v4333
        %v5013 = vpop.xlane.xlu0 %5012
        %5014 = vadd.xlane.f32.xlu0 %v4334
        %v5015 = vpop.xlane.xlu0 %5014
        %5016 = vadd.xlane.f32.xlu0 %v4335
        %v5017 = vpop.xlane.xlu0 %5016
        %5018 = vadd.xlane.f32.xlu0 %v4336
        %v5019 = vpop.xlane.xlu0 %5018
        %5020 = vadd.xlane.f32.xlu0 %v4337
        %v5021 = vpop.xlane.xlu0 %5020
        %5022 = vadd.xlane.f32.xlu0 %v4338
        %v5023 = vpop.xlane.xlu0 %5022
        %5024 = vadd.xlane.f32.xlu0 %v4339
        %v5025 = vpop.xlane.xlu0 %5024
        %5026 = vadd.xlane.f32.xlu0 %v4340
        %v5027 = vpop.xlane.xlu0 %5026
        %5028 = vadd.xlane.f32.xlu0 %v4341
        %v5029 = vpop.xlane.xlu0 %5028
        %5030 = vadd.xlane.f32.xlu0 %v4342
        %v5031 = vpop.xlane.xlu0 %5030
        %5032 = vadd.xlane.f32.xlu0 %v4343
        %v5033 = vpop.xlane.xlu0 %5032
        %5034 = vadd.xlane.f32.xlu0 %v4344
        %v5035 = vpop.xlane.xlu0 %5034
        %5036 = vadd.xlane.f32.xlu0 %v4345
        %v5037 = vpop.xlane.xlu0 %5036
        %5038 = vadd.xlane.f32.xlu0 %v4346
        %v5039 = vpop.xlane.xlu0 %5038
        %5040 = vadd.xlane.f32.xlu0 %v4347
        %v5041 = vpop.xlane.xlu0 %5040
        %5042 = vadd.xlane.f32.xlu0 %v4348
        %v5043 = vpop.xlane.xlu0 %5042
        %5044 = vadd.xlane.f32.xlu0 %v4349
        %v5045 = vpop.xlane.xlu0 %5044
        %5046 = vadd.xlane.f32.xlu0 %v4350
        %v5047 = vpop.xlane.xlu0 %5046
        %5048 = vadd.xlane.f32.xlu0 %v4351
        %v5049 = vpop.xlane.xlu0 %5048
        %5050 = vadd.xlane.f32.xlu0 %v4352
        %v5051 = vpop.xlane.xlu0 %5050
        %5052 = vadd.xlane.f32.xlu0 %v4353
        %v5053 = vpop.xlane.xlu0 %5052
        %5054 = vadd.xlane.f32.xlu0 %v4354
        %v5055 = vpop.xlane.xlu0 %5054
        %5056 = vadd.xlane.f32.xlu0 %v4355
        %v5057 = vpop.xlane.xlu0 %5056
        %5058 = vadd.xlane.f32.xlu0 %v4356
        %v5059 = vpop.xlane.xlu0 %5058
        %5060 = vadd.xlane.f32.xlu0 %v4357
        %v5061 = vpop.xlane.xlu0 %5060
        %5062 = vadd.xlane.f32.xlu0 %v4358
        %v5063 = vpop.xlane.xlu0 %5062
        %5064 = vadd.xlane.f32.xlu0 %v4359
        %v5065 = vpop.xlane.xlu0 %5064
        %5066 = vadd.xlane.f32.xlu0 %v4360
        %v5067 = vpop.xlane.xlu0 %5066
        %5068 = vadd.xlane.f32.xlu0 %v4361
        %v5069 = vpop.xlane.xlu0 %5068
        %5070 = vadd.xlane.f32.xlu0 %v4362
        %v5071 = vpop.xlane.xlu0 %5070
        %5072 = vadd.xlane.f32.xlu0 %v4363
        %v5073 = vpop.xlane.xlu0 %5072
        %5074 = vadd.xlane.f32.xlu0 %v4364
        %v5075 = vpop.xlane.xlu0 %5074
        %5076 = vadd.xlane.f32.xlu0 %v4365
        %v5077 = vpop.xlane.xlu0 %5076
        %5078 = vadd.xlane.f32.xlu0 %v4366
        %v5079 = vpop.xlane.xlu0 %5078
        %5080 = vadd.xlane.f32.xlu0 %v4367
        %v5081 = vpop.xlane.xlu0 %5080
        %5082 = vadd.xlane.f32.xlu0 %v4368
        %v5083 = vpop.xlane.xlu0 %5082
        %5084 = vadd.xlane.f32.xlu0 %v4369
        %v5085 = vpop.xlane.xlu0 %5084
        %5086 = vadd.xlane.f32.xlu0 %v4370
        %v5087 = vpop.xlane.xlu0 %5086
        %5088 = vadd.xlane.f32.xlu0 %v4371
        %v5089 = vpop.xlane.xlu0 %5088
        %5090 = vadd.xlane.f32.xlu0 %v4372
        %v5091 = vpop.xlane.xlu0 %5090
        %5092 = vadd.xlane.f32.xlu0 %v4373
        %v5093 = vpop.xlane.xlu0 %5092
        %5094 = vadd.xlane.f32.xlu0 %v4374
        %v5095 = vpop.xlane.xlu0 %5094
        %5096 = vadd.xlane.f32.xlu0 %v4375
        %v5097 = vpop.xlane.xlu0 %5096
        %5098 = vadd.xlane.f32.xlu0 %v4376
        %v5099 = vpop.xlane.xlu0 %5098
        %5100 = vadd.xlane.f32.xlu0 %v4377
        %v5101 = vpop.xlane.xlu0 %5100
        %5102 = vadd.xlane.f32.xlu0 %v4378
        %v5103 = vpop.xlane.xlu0 %5102
        %5104 = vadd.xlane.f32.xlu0 %v4379
        %v5105 = vpop.xlane.xlu0 %5104
        %5106 = vadd.xlane.f32.xlu0 %v4380
        %v5107 = vpop.xlane.xlu0 %5106
        %5108 = vadd.xlane.f32.xlu0 %v4381
        %v5109 = vpop.xlane.xlu0 %5108
        %5110 = vadd.xlane.f32.xlu0 %v4382
        %v5111 = vpop.xlane.xlu0 %5110
        %5112 = vadd.xlane.f32.xlu0 %v4383
        %v5113 = vpop.xlane.xlu0 %5112
        %5114 = vadd.xlane.f32.xlu0 %v4384
        %v5115 = vpop.xlane.xlu0 %5114
        %5116 = vadd.xlane.f32.xlu0 %v4385
        %v5117 = vpop.xlane.xlu0 %5116
        %5118 = vadd.xlane.f32.xlu0 %v4386
        %v5119 = vpop.xlane.xlu0 %5118
        %5120 = vadd.xlane.f32.xlu0 %v4387
        %v5121 = vpop.xlane.xlu0 %5120
        %5122 = vadd.xlane.f32.xlu0 %v4388
        %v5123 = vpop.xlane.xlu0 %5122
        %5124 = vadd.xlane.f32.xlu0 %v4389
        %v5125 = vpop.xlane.xlu0 %5124
        %5126 = vadd.xlane.f32.xlu0 %v4390
        %v5127 = vpop.xlane.xlu0 %5126
        %5128 = vadd.xlane.f32.xlu0 %v4391
        %v5129 = vpop.xlane.xlu0 %5128
        %5130 = vadd.xlane.f32.xlu0 %v4392
        %v5131 = vpop.xlane.xlu0 %5130
        %5132 = vadd.xlane.f32.xlu0 %v4393
        %v5133 = vpop.xlane.xlu0 %5132
        %5134 = vadd.xlane.f32.xlu0 %v4394
        %v5135 = vpop.xlane.xlu0 %5134
        %5136 = vadd.xlane.f32.xlu0 %v4395
        %v5137 = vpop.xlane.xlu0 %5136
        %5138 = vadd.xlane.f32.xlu0 %v4396
        %v5139 = vpop.xlane.xlu0 %5138
        %5140 = vadd.xlane.f32.xlu0 %v4397
        %v5141 = vpop.xlane.xlu0 %5140
        %5142 = vadd.xlane.f32.xlu0 %v4398
        %v5143 = vpop.xlane.xlu0 %5142
        %5144 = vadd.xlane.f32.xlu0 %v4399
        %v5145 = vpop.xlane.xlu0 %5144
        %5146 = vadd.xlane.f32.xlu0 %v4400
        %v5147 = vpop.xlane.xlu0 %5146
        %5148 = vadd.xlane.f32.xlu0 %v4401
        %v5149 = vpop.xlane.xlu0 %5148
        %5150 = vadd.xlane.f32.xlu0 %v4402
        %v5151 = vpop.xlane.xlu0 %5150
        %5152 = vadd.xlane.f32.xlu0 %v4403
        %v5153 = vpop.xlane.xlu0 %5152
        %5154 = vadd.xlane.f32.xlu0 %v4404
        %v5155 = vpop.xlane.xlu0 %5154
        %5156 = vadd.xlane.f32.xlu0 %v4405
        %v5157 = vpop.xlane.xlu0 %5156
        %5158 = vadd.xlane.f32.xlu0 %v4406
        %v5159 = vpop.xlane.xlu0 %5158
        %5160 = vadd.xlane.f32.xlu0 %v4407
        %v5161 = vpop.xlane.xlu0 %5160
        %5162 = vadd.xlane.f32.xlu0 %v4408
        %v5163 = vpop.xlane.xlu0 %5162
        %5164 = vadd.xlane.f32.xlu0 %v4409
        %v5165 = vpop.xlane.xlu0 %5164
        %5166 = vadd.xlane.f32.xlu0 %v4410
        %v5167 = vpop.xlane.xlu0 %5166
        %5168 = vadd.xlane.f32.xlu0 %v4411
        %v5169 = vpop.xlane.xlu0 %5168
        %5170 = vadd.xlane.f32.xlu0 %v4412
        %v5171 = vpop.xlane.xlu0 %5170
        %5172 = vadd.xlane.f32.xlu0 %v4413
        %v5173 = vpop.xlane.xlu0 %5172
        %5174 = vadd.xlane.f32.xlu0 %v4414
        %v5175 = vpop.xlane.xlu0 %5174
        %5176 = vadd.xlane.f32.xlu0 %v4415
        %v5177 = vpop.xlane.xlu0 %5176
        %5178 = vadd.xlane.f32.xlu0 %v4416
        %v5179 = vpop.xlane.xlu0 %5178
        %5180 = vadd.xlane.f32.xlu0 %v4417
        %v5181 = vpop.xlane.xlu0 %5180
        %5182 = vadd.xlane.f32.xlu0 %v4418
        %v5183 = vpop.xlane.xlu0 %5182
        %5184 = vadd.xlane.f32.xlu0 %v4419
        %v5185 = vpop.xlane.xlu0 %5184
        %5186 = vadd.xlane.f32.xlu0 %v4420
        %v5187 = vpop.xlane.xlu0 %5186
        %5188 = vadd.xlane.f32.xlu0 %v4421
        %v5189 = vpop.xlane.xlu0 %5188
        %5190 = vadd.xlane.f32.xlu0 %v4422
        %v5191 = vpop.xlane.xlu0 %5190
        %5192 = vadd.xlane.f32.xlu0 %v4423
        %v5193 = vpop.xlane.xlu0 %5192
        %5194 = vadd.xlane.f32.xlu0 %v4424
        %v5195 = vpop.xlane.xlu0 %5194
        %5196 = vadd.xlane.f32.xlu0 %v4425
        %v5197 = vpop.xlane.xlu0 %5196
        %5198 = vadd.xlane.f32.xlu0 %v4426
        %v5199 = vpop.xlane.xlu0 %5198
        %5200 = vadd.xlane.f32.xlu0 %v4427
        %v5201 = vpop.xlane.xlu0 %5200
        %5202 = vadd.xlane.f32.xlu0 %v4428
        %v5203 = vpop.xlane.xlu0 %5202
        %5204 = vadd.xlane.f32.xlu0 %v4429
        %v5205 = vpop.xlane.xlu0 %5204
        %5206 = vadd.xlane.f32.xlu0 %v4430
        %v5207 = vpop.xlane.xlu0 %5206
        %5208 = vadd.xlane.f32.xlu0 %v4431
        %v5209 = vpop.xlane.xlu0 %5208
        %5210 = vadd.xlane.f32.xlu0 %v4432
        %v5211 = vpop.xlane.xlu0 %5210
        %5212 = vadd.xlane.f32.xlu0 %v4433
        %v5213 = vpop.xlane.xlu0 %5212
        %5214 = vadd.xlane.f32.xlu0 %v4434
        %v5215 = vpop.xlane.xlu0 %5214
        %5216 = vadd.xlane.f32.xlu0 %v4435
        %v5217 = vpop.xlane.xlu0 %5216
        %5218 = vadd.xlane.f32.xlu0 %v4436
        %v5219 = vpop.xlane.xlu0 %5218
        %5220 = vadd.xlane.f32.xlu0 %v4437
        %v5221 = vpop.xlane.xlu0 %5220
        %5222 = vadd.xlane.f32.xlu0 %v4438
        %v5223 = vpop.xlane.xlu0 %5222
        %5224 = vadd.xlane.f32.xlu0 %v4439
        %v5225 = vpop.xlane.xlu0 %5224
        %5226 = vadd.xlane.f32.xlu0 %v4440
        %v5227 = vpop.xlane.xlu0 %5226
        %5228 = vadd.xlane.f32.xlu0 %v4441
        %v5229 = vpop.xlane.xlu0 %5228
        %5230 = vadd.xlane.f32.xlu0 %v4442
        %v5231 = vpop.xlane.xlu0 %5230
        %5232 = vadd.xlane.f32.xlu0 %v4443
        %v5233 = vpop.xlane.xlu0 %5232
        %5234 = vadd.xlane.f32.xlu0 %v4444
        %v5235 = vpop.xlane.xlu0 %5234
        %5236 = vadd.xlane.f32.xlu0 %v4445
        %v5237 = vpop.xlane.xlu0 %5236
        %5238 = vadd.xlane.f32.xlu0 %v4446
        %v5239 = vpop.xlane.xlu0 %5238
        %5240 = vadd.xlane.f32.xlu0 %v4447
        %v5241 = vpop.xlane.xlu0 %5240
        %5242 = vadd.xlane.f32.xlu0 %v4448
        %v5243 = vpop.xlane.xlu0 %5242
        %5244 = vadd.xlane.f32.xlu0 %v4449
        %v5245 = vpop.xlane.xlu0 %5244
        %5246 = vadd.xlane.f32.xlu0 %v4450
        %v5247 = vpop.xlane.xlu0 %5246
        %5248 = vadd.xlane.f32.xlu0 %v4451
        %v5249 = vpop.xlane.xlu0 %5248
        %5250 = vadd.xlane.f32.xlu0 %v4452
        %v5251 = vpop.xlane.xlu0 %5250
        %5252 = vadd.xlane.f32.xlu0 %v4453
        %v5253 = vpop.xlane.xlu0 %5252
        %5254 = vadd.xlane.f32.xlu0 %v4454
        %v5255 = vpop.xlane.xlu0 %5254
        %5256 = vadd.xlane.f32.xlu0 %v4455
        %v5257 = vpop.xlane.xlu0 %5256
        %5258 = vadd.xlane.f32.xlu0 %v4456
        %v5259 = vpop.xlane.xlu0 %5258
        %5260 = vadd.xlane.f32.xlu0 %v4457
        %v5261 = vpop.xlane.xlu0 %5260
        %5262 = vadd.xlane.f32.xlu0 %v4458
        %v5263 = vpop.xlane.xlu0 %5262
        %5264 = vadd.xlane.f32.xlu0 %v4459
        %v5265 = vpop.xlane.xlu0 %5264
        %5266 = vadd.xlane.f32.xlu0 %v4460
        %v5267 = vpop.xlane.xlu0 %5266
        %5268 = vadd.xlane.f32.xlu0 %v4461
        %v5269 = vpop.xlane.xlu0 %5268
        %5270 = vadd.xlane.f32.xlu0 %v4462
        %v5271 = vpop.xlane.xlu0 %5270
        %5272 = vadd.xlane.f32.xlu0 %v4463
        %v5273 = vpop.xlane.xlu0 %5272
        %5274 = vadd.xlane.f32.xlu0 %v4464
        %v5275 = vpop.xlane.xlu0 %5274
        %5276 = vadd.xlane.f32.xlu0 %v4465
        %v5277 = vpop.xlane.xlu0 %5276
        %5278 = vadd.xlane.f32.xlu0 %v4466
        %v5279 = vpop.xlane.xlu0 %5278
        %5280 = vadd.xlane.f32.xlu0 %v4467
        %v5281 = vpop.xlane.xlu0 %5280
        %5282 = vadd.xlane.f32.xlu0 %v4468
        %v5283 = vpop.xlane.xlu0 %5282
        %5284 = vadd.xlane.f32.xlu0 %v4469
        %v5285 = vpop.xlane.xlu0 %5284
        %5286 = vadd.xlane.f32.xlu0 %v4470
        %v5287 = vpop.xlane.xlu0 %5286
        %5288 = vadd.xlane.f32.xlu0 %v4471
        %v5289 = vpop.xlane.xlu0 %5288
        %5290 = vadd.xlane.f32.xlu0 %v4472
        %v5291 = vpop.xlane.xlu0 %5290
        %5292 = vadd.xlane.f32.xlu0 %v4473
        %v5293 = vpop.xlane.xlu0 %5292
        %5294 = vadd.xlane.f32.xlu0 %v4474
        %v5295 = vpop.xlane.xlu0 %5294
        %5296 = vadd.xlane.f32.xlu0 %v4475
        %v5297 = vpop.xlane.xlu0 %5296
        %5298 = vadd.xlane.f32.xlu0 %v4476
        %v5299 = vpop.xlane.xlu0 %5298
        %5300 = vadd.xlane.f32.xlu0 %v4477
        %v5301 = vpop.xlane.xlu0 %5300
        %5302 = vadd.xlane.f32.xlu0 %v4478
        %v5303 = vpop.xlane.xlu0 %5302
        %5304 = vadd.xlane.f32.xlu0 %v4479
        %v5305 = vpop.xlane.xlu0 %5304
        %5306 = vadd.xlane.f32.xlu0 %v4480
        %v5307 = vpop.xlane.xlu0 %5306
        %5308 = vadd.xlane.f32.xlu0 %v4481
        %v5309 = vpop.xlane.xlu0 %5308
        %5310 = vadd.xlane.f32.xlu0 %v4482
        %v5311 = vpop.xlane.xlu0 %5310
        %5312 = vadd.xlane.f32.xlu0 %v4483
        %v5313 = vpop.xlane.xlu0 %5312
        %5314 = vadd.xlane.f32.xlu0 %v4484
        %v5315 = vpop.xlane.xlu0 %5314
        %5316 = vadd.xlane.f32.xlu0 %v4485
        %v5317 = vpop.xlane.xlu0 %5316
        %5318 = vadd.xlane.f32.xlu0 %v4486
        %v5319 = vpop.xlane.xlu0 %5318
        %5320 = vadd.xlane.f32.xlu0 %v4487
        %v5321 = vpop.xlane.xlu0 %5320
        %5322 = vadd.xlane.f32.xlu0 %v4488
        %v5323 = vpop.xlane.xlu0 %5322
        %5324 = vadd.xlane.f32.xlu0 %v4489
        %v5325 = vpop.xlane.xlu0 %5324
        %5326 = vadd.xlane.f32.xlu0 %v4490
        %v5327 = vpop.xlane.xlu0 %5326
        %5328 = vadd.xlane.f32.xlu0 %v4491
        %v5329 = vpop.xlane.xlu0 %5328
        %5330 = vadd.xlane.f32.xlu0 %v4492
        %v5331 = vpop.xlane.xlu0 %5330
        %5332 = vadd.xlane.f32.xlu0 %v4493
        %v5333 = vpop.xlane.xlu0 %5332
        %5334 = vadd.xlane.f32.xlu0 %v4494
        %v5335 = vpop.xlane.xlu0 %5334
        %5336 = vadd.xlane.f32.xlu0 %v4495
        %v5337 = vpop.xlane.xlu0 %5336
        %5338 = vadd.xlane.f32.xlu0 %v4496
        %v5339 = vpop.xlane.xlu0 %5338
        %5340 = vadd.xlane.f32.xlu0 %v4497
        %v5341 = vpop.xlane.xlu0 %5340
        %5342 = vadd.xlane.f32.xlu0 %v4498
        %v5343 = vpop.xlane.xlu0 %5342
        %5344 = vadd.xlane.f32.xlu0 %v4499
        %v5345 = vpop.xlane.xlu0 %5344
        %5346 = vadd.xlane.f32.xlu0 %v4500
        %v5347 = vpop.xlane.xlu0 %5346
        %5348 = vadd.xlane.f32.xlu0 %v4501
        %v5349 = vpop.xlane.xlu0 %5348
        %5350 = vadd.xlane.f32.xlu0 %v4502
        %v5351 = vpop.xlane.xlu0 %5350
        %5352 = vadd.xlane.f32.xlu0 %v4503
        %v5353 = vpop.xlane.xlu0 %5352
        %5354 = vadd.xlane.f32.xlu0 %v4504
        %v5355 = vpop.xlane.xlu0 %5354
        %5356 = vadd.xlane.f32.xlu0 %v4505
        %v5357 = vpop.xlane.xlu0 %5356
        %5358 = vadd.xlane.f32.xlu0 %v4506
        %v5359 = vpop.xlane.xlu0 %5358
        %5360 = vadd.xlane.f32.xlu0 %v4507
        %v5361 = vpop.xlane.xlu0 %5360
        %5362 = vadd.xlane.f32.xlu0 %v4508
        %v5363 = vpop.xlane.xlu0 %5362
        %5364 = vadd.xlane.f32.xlu0 %v4509
        %v5365 = vpop.xlane.xlu0 %5364
        %5366 = vadd.xlane.f32.xlu0 %v4510
        %v5367 = vpop.xlane.xlu0 %5366
        %5368 = vadd.xlane.f32.xlu0 %v4511
        %v5369 = vpop.xlane.xlu0 %5368
        %5370 = vadd.xlane.f32.xlu0 %v4512
        %v5371 = vpop.xlane.xlu0 %5370
        %5372 = vadd.xlane.f32.xlu0 %v4513
        %v5373 = vpop.xlane.xlu0 %5372
        %5374 = vadd.xlane.f32.xlu0 %v4514
        %v5375 = vpop.xlane.xlu0 %5374
        %5376 = vadd.xlane.f32.xlu0 %v4515
        %v5377 = vpop.xlane.xlu0 %5376
        %5378 = vadd.xlane.f32.xlu0 %v4516
        %v5379 = vpop.xlane.xlu0 %5378
        %5380 = vadd.xlane.f32.xlu0 %v4517
        %v5381 = vpop.xlane.xlu0 %5380
        %5382 = vadd.xlane.f32.xlu0 %v4518
        %v5383 = vpop.xlane.xlu0 %5382
        %5384 = vadd.xlane.f32.xlu0 %v4519
        %v5385 = vpop.xlane.xlu0 %5384
        %5386 = vadd.xlane.f32.xlu0 %v4520
        %v5387 = vpop.xlane.xlu0 %5386
        %5388 = vadd.xlane.f32.xlu0 %v4521
        %v5389 = vpop.xlane.xlu0 %5388
        %5390 = vadd.xlane.f32.xlu0 %v4522
        %v5391 = vpop.xlane.xlu0 %5390
        %5392 = vadd.xlane.f32.xlu0 %v4523
        %v5393 = vpop.xlane.xlu0 %5392
        %5394 = vadd.xlane.f32.xlu0 %v4524
        %v5395 = vpop.xlane.xlu0 %5394
        %5396 = vadd.xlane.f32.xlu0 %v4525
        %v5397 = vpop.xlane.xlu0 %5396
        %5398 = vadd.xlane.f32.xlu0 %v4526
        %v5399 = vpop.xlane.xlu0 %5398
        %5400 = vadd.xlane.f32.xlu0 %v4527
        %v5401 = vpop.xlane.xlu0 %5400
        %5402 = vadd.xlane.f32.xlu0 %v4528
        %v5403 = vpop.xlane.xlu0 %5402
        %5404 = vadd.xlane.f32.xlu0 %v4529
        %v5405 = vpop.xlane.xlu0 %5404
        %5406 = vadd.xlane.f32.xlu0 %v4530
        %v5407 = vpop.xlane.xlu0 %5406
        %5408 = vadd.xlane.f32.xlu0 %v4531
        %v5409 = vpop.xlane.xlu0 %5408
        %5410 = vadd.xlane.f32.xlu0 %v4532
        %v5411 = vpop.xlane.xlu0 %5410
        %5412 = vadd.xlane.f32.xlu0 %v4533
        %v5413 = vpop.xlane.xlu0 %5412
        %5414 = vadd.xlane.f32.xlu0 %v4534
        %v5415 = vpop.xlane.xlu0 %5414
        %5416 = vadd.xlane.f32.xlu0 %v4535
        %v5417 = vpop.xlane.xlu0 %5416
        %5418 = vadd.xlane.f32.xlu0 %v4536
        %v5419 = vpop.xlane.xlu0 %5418
        %5420 = vadd.xlane.f32.xlu0 %v4537
        %v5421 = vpop.xlane.xlu0 %5420
        %5422 = vadd.xlane.f32.xlu0 %v4538
        %v5423 = vpop.xlane.xlu0 %5422
        %5424 = vadd.xlane.f32.xlu0 %v4539
        %v5425 = vpop.xlane.xlu0 %5424
        %5426 = vadd.xlane.f32.xlu0 %v4540
        %v5427 = vpop.xlane.xlu0 %5426
        %5428 = vadd.xlane.f32.xlu0 %v4541
        %v5429 = vpop.xlane.xlu0 %5428
        %5430 = vadd.xlane.f32.xlu0 %v4542
        %v5431 = vpop.xlane.xlu0 %5430
        %5432 = vadd.xlane.f32.xlu0 %v4543
        %v5433 = vpop.xlane.xlu0 %5432
        %5434 = vadd.xlane.f32.xlu0 %v4544
        %v5435 = vpop.xlane.xlu0 %5434
        %5436 = vadd.xlane.f32.xlu0 %v4545
        %v5437 = vpop.xlane.xlu0 %5436
        %5438 = vadd.xlane.f32.xlu0 %v4546
        %v5439 = vpop.xlane.xlu0 %5438
        %5440 = vadd.xlane.f32.xlu0 %v4547
        %v5441 = vpop.xlane.xlu0 %5440
        %5442 = vadd.xlane.f32.xlu0 %v4548
        %v5443 = vpop.xlane.xlu0 %5442
        %5444 = vadd.xlane.f32.xlu0 %v4549
        %v5445 = vpop.xlane.xlu0 %5444
        %5446 = vadd.xlane.f32.xlu0 %v4550
        %v5447 = vpop.xlane.xlu0 %5446
        %5448 = vadd.xlane.f32.xlu0 %v4551
        %v5449 = vpop.xlane.xlu0 %5448
        %5450 = vadd.xlane.f32.xlu0 %v4552
        %v5451 = vpop.xlane.xlu0 %5450
        %5452 = vadd.xlane.f32.xlu0 %v4553
        %v5453 = vpop.xlane.xlu0 %5452
        %5454 = vadd.xlane.f32.xlu0 %v4554
        %v5455 = vpop.xlane.xlu0 %5454
        %5456 = vadd.xlane.f32.xlu0 %v4555
        %v5457 = vpop.xlane.xlu0 %5456
        %5458 = vadd.xlane.f32.xlu0 %v4556
        %v5459 = vpop.xlane.xlu0 %5458
        %5460 = vadd.xlane.f32.xlu0 %v4557
        %v5461 = vpop.xlane.xlu0 %5460
        %5462 = vadd.xlane.f32.xlu0 %v4558
        %v5463 = vpop.xlane.xlu0 %5462
        %5464 = vadd.xlane.f32.xlu0 %v4559
        %v5465 = vpop.xlane.xlu0 %5464
        %5466 = vadd.xlane.f32.xlu0 %v4560
        %v5467 = vpop.xlane.xlu0 %5466
        %5468 = vadd.xlane.f32.xlu0 %v4561
        %v5469 = vpop.xlane.xlu0 %5468
        %5470 = vadd.xlane.f32.xlu0 %v4562
        %v5471 = vpop.xlane.xlu0 %5470
        %5472 = vadd.xlane.f32.xlu0 %v4563
        %v5473 = vpop.xlane.xlu0 %5472
        %5474 = vadd.xlane.f32.xlu0 %v4564
        %v5475 = vpop.xlane.xlu0 %5474
        %5476 = vadd.xlane.f32.xlu0 %v4565
        %v5477 = vpop.xlane.xlu0 %5476
        %5478 = vadd.xlane.f32.xlu0 %v4566
        %v5479 = vpop.xlane.xlu0 %5478
        %5480 = vadd.xlane.f32.xlu0 %v4567
        %v5481 = vpop.xlane.xlu0 %5480
        %5482 = vadd.xlane.f32.xlu0 %v4568
        %v5483 = vpop.xlane.xlu0 %5482
        %5484 = vadd.xlane.f32.xlu0 %v4569
        %v5485 = vpop.xlane.xlu0 %5484
        %5486 = vadd.xlane.f32.xlu0 %v4570
        %v5487 = vpop.xlane.xlu0 %5486
        %5488 = vadd.xlane.f32.xlu0 %v4571
        %v5489 = vpop.xlane.xlu0 %5488
        %5490 = vadd.xlane.f32.xlu0 %v4572
        %v5491 = vpop.xlane.xlu0 %5490
        %5492 = vadd.xlane.f32.xlu0 %v4573
        %v5493 = vpop.xlane.xlu0 %5492
        %5494 = vadd.xlane.f32.xlu0 %v4574
        %v5495 = vpop.xlane.xlu0 %5494
        %5496 = vadd.xlane.f32.xlu0 %v4575
        %v5497 = vpop.xlane.xlu0 %5496
        %5498 = vadd.xlane.f32.xlu0 %v4576
        %v5499 = vpop.xlane.xlu0 %5498
        %5500 = vadd.xlane.f32.xlu0 %v4577
        %v5501 = vpop.xlane.xlu0 %5500
        %5502 = vadd.xlane.f32.xlu0 %v4578
        %v5503 = vpop.xlane.xlu0 %5502
        %5504 = vadd.xlane.f32.xlu0 %v4579
        %v5505 = vpop.xlane.xlu0 %5504
        %5506 = vadd.xlane.f32.xlu0 %v4580
        %v5507 = vpop.xlane.xlu0 %5506
        %5508 = vadd.xlane.f32.xlu0 %v4581
        %v5509 = vpop.xlane.xlu0 %5508
        %5510 = vadd.xlane.f32.xlu0 %v4582
        %v5511 = vpop.xlane.xlu0 %5510
        %5512 = vadd.xlane.f32.xlu0 %v4583
        %v5513 = vpop.xlane.xlu0 %5512
        %5514 = vadd.xlane.f32.xlu0 %v4584
        %v5515 = vpop.xlane.xlu0 %5514
        %5516 = vadd.xlane.f32.xlu0 %v4585
        %v5517 = vpop.xlane.xlu0 %5516
        %5518 = vadd.xlane.f32.xlu0 %v4586
        %v5519 = vpop.xlane.xlu0 %5518
        %5520 = vadd.xlane.f32.xlu0 %v4587
        %v5521 = vpop.xlane.xlu0 %5520
        %5522 = vadd.xlane.f32.xlu0 %v4588
        %v5523 = vpop.xlane.xlu0 %5522
        %5524 = vadd.xlane.f32.xlu0 %v4589
        %v5525 = vpop.xlane.xlu0 %5524
        %5526 = vadd.xlane.f32.xlu0 %v4590
        %v5527 = vpop.xlane.xlu0 %5526
        %5528 = vadd.xlane.f32.xlu0 %v4591
        %v5529 = vpop.xlane.xlu0 %5528
        %5530 = vadd.xlane.f32.xlu0 %v4592
        %v5531 = vpop.xlane.xlu0 %5530
        %5532 = vadd.xlane.f32.xlu0 %v4593
        %v5533 = vpop.xlane.xlu0 %5532
        %5534 = vadd.xlane.f32.xlu0 %v4594
        %v5535 = vpop.xlane.xlu0 %5534
        %5536 = vadd.xlane.f32.xlu0 %v4595
        %v5537 = vpop.xlane.xlu0 %5536
        %5538 = vadd.xlane.f32.xlu0 %v4596
        %v5539 = vpop.xlane.xlu0 %5538
        %5540 = vadd.xlane.f32.xlu0 %v4597
        %v5541 = vpop.xlane.xlu0 %5540
        %5542 = vadd.xlane.f32.xlu0 %v4598
        %v5543 = vpop.xlane.xlu0 %5542
        %5544 = vadd.xlane.f32.xlu0 %v4599
        %v5545 = vpop.xlane.xlu0 %5544
        %5546 = vadd.xlane.f32.xlu0 %v4600
        %v5547 = vpop.xlane.xlu0 %5546
        %5548 = vadd.xlane.f32.xlu0 %v4601
        %v5549 = vpop.xlane.xlu0 %5548
        %5550 = vadd.xlane.f32.xlu0 %v4602
        %v5551 = vpop.xlane.xlu0 %5550
        %5552 = vadd.xlane.f32.xlu0 %v4603
        %v5553 = vpop.xlane.xlu0 %5552
        %5554 = vadd.xlane.f32.xlu0 %v4604
        %v5555 = vpop.xlane.xlu0 %5554
        %5556 = vadd.xlane.f32.xlu0 %v4605
        %v5557 = vpop.xlane.xlu0 %5556
        %5558 = vadd.xlane.f32.xlu0 %v4606
        %v5559 = vpop.xlane.xlu0 %5558
        %5560 = vadd.xlane.f32.xlu0 %v4607
        %v5561 = vpop.xlane.xlu0 %5560
        %5562 = vadd.xlane.f32.xlu0 %v4608
        %v5563 = vpop.xlane.xlu0 %5562
        %5564 = vadd.xlane.f32.xlu0 %v4609
        %v5565 = vpop.xlane.xlu0 %5564
        %5566 = vadd.xlane.f32.xlu0 %v4610
        %v5567 = vpop.xlane.xlu0 %5566
        %5568 = vadd.xlane.f32.xlu0 %v4611
        %v5569 = vpop.xlane.xlu0 %5568
        %5570 = vadd.xlane.f32.xlu0 %v4612
        %v5571 = vpop.xlane.xlu0 %5570
        %5572 = vadd.xlane.f32.xlu0 %v4613
        %v5573 = vpop.xlane.xlu0 %5572
        %5574 = vadd.xlane.f32.xlu0 %v4614
        %v5575 = vpop.xlane.xlu0 %5574
        %5576 = vadd.xlane.f32.xlu0 %v4615
        %v5577 = vpop.xlane.xlu0 %5576
        %5578 = vadd.xlane.f32.xlu0 %v4616
        %v5579 = vpop.xlane.xlu0 %5578
        %5580 = vadd.xlane.f32.xlu0 %v4617
        %v5581 = vpop.xlane.xlu0 %5580
        %5582 = vadd.xlane.f32.xlu0 %v4618
        %v5583 = vpop.xlane.xlu0 %5582
        %5584 = vadd.xlane.f32.xlu0 %v4619
        %v5585 = vpop.xlane.xlu0 %5584
        %5586 = vadd.xlane.f32.xlu0 %v4620
        %v5587 = vpop.xlane.xlu0 %5586
        %5588 = vadd.xlane.f32.xlu0 %v4621
        %v5589 = vpop.xlane.xlu0 %5588
        %5590 = vadd.xlane.f32.xlu0 %v4622
        %v5591 = vpop.xlane.xlu0 %5590
        %5592 = vadd.xlane.f32.xlu0 %v4623
        %v5593 = vpop.xlane.xlu0 %5592
        %5594 = vadd.xlane.f32.xlu0 %v4624
        %v5595 = vpop.xlane.xlu0 %5594
        %5596 = vadd.xlane.f32.xlu0 %v4625
        %v5597 = vpop.xlane.xlu0 %5596
        %5598 = vadd.xlane.f32.xlu0 %v4626
        %v5599 = vpop.xlane.xlu0 %5598
        %5600 = vadd.xlane.f32.xlu0 %v4627
        %v5601 = vpop.xlane.xlu0 %5600
        %5602 = vadd.xlane.f32.xlu0 %v4628
        %v5603 = vpop.xlane.xlu0 %5602
        %5604 = vadd.xlane.f32.xlu0 %v4629
        %v5605 = vpop.xlane.xlu0 %5604
        %5606 = vadd.xlane.f32.xlu0 %v4630
        %v5607 = vpop.xlane.xlu0 %5606
        %5608 = vadd.xlane.f32.xlu0 %v4631
        %v5609 = vpop.xlane.xlu0 %5608
        %5610 = vadd.xlane.f32.xlu0 %v4632
        %v5611 = vpop.xlane.xlu0 %5610
        %5612 = vadd.xlane.f32.xlu0 %v4633
        %v5613 = vpop.xlane.xlu0 %5612
        %5614 = vadd.xlane.f32.xlu0 %v4634
        %v5615 = vpop.xlane.xlu0 %5614
        %5616 = vadd.xlane.f32.xlu0 %v4635
        %v5617 = vpop.xlane.xlu0 %5616
        %5618 = vadd.xlane.f32.xlu0 %v4636
        %v5619 = vpop.xlane.xlu0 %5618
        %5620 = vadd.xlane.f32.xlu0 %v4637
        %v5621 = vpop.xlane.xlu0 %5620
        %5622 = vadd.xlane.f32.xlu0 %v4638
        %v5623 = vpop.xlane.xlu0 %5622
        %5624 = vadd.xlane.f32.xlu0 %v4639
        %v5625 = vpop.xlane.xlu0 %5624
        %5626 = vadd.xlane.f32.xlu0 %v4640
        %v5627 = vpop.xlane.xlu0 %5626
        %5628 = vadd.xlane.f32.xlu0 %v4641
        %v5629 = vpop.xlane.xlu0 %5628
        %5630 = vadd.xlane.f32.xlu0 %v4642
        %v5631 = vpop.xlane.xlu0 %5630
        %5632 = vadd.xlane.f32.xlu0 %v4643
        %v5633 = vpop.xlane.xlu0 %5632
        %5634 = vadd.xlane.f32.xlu0 %v4644
        %v5635 = vpop.xlane.xlu0 %5634
        %5636 = vadd.xlane.f32.xlu0 %v4645
        %v5637 = vpop.xlane.xlu0 %5636
        %5638 = vadd.xlane.f32.xlu0 %v4646
        %v5639 = vpop.xlane.xlu0 %5638
        %5640 = vadd.xlane.f32.xlu0 %v4647
        %v5641 = vpop.xlane.xlu0 %5640
        %5642 = vadd.xlane.f32.xlu0 %v4648
        %v5643 = vpop.xlane.xlu0 %5642
        %5644 = vadd.xlane.f32.xlu0 %v4649
        %v5645 = vpop.xlane.xlu0 %5644
        %5646 = vadd.xlane.f32.xlu0 %v4650
        %v5647 = vpop.xlane.xlu0 %5646
        %5648 = vadd.xlane.f32.xlu0 %v4651
        %v5649 = vpop.xlane.xlu0 %5648
        %5650 = vadd.xlane.f32.xlu0 %v4652
        %v5651 = vpop.xlane.xlu0 %5650
        %5652 = vadd.xlane.f32.xlu0 %v4653
        %v5653 = vpop.xlane.xlu0 %5652
        %5654 = vadd.xlane.f32.xlu0 %v4654
        %v5655 = vpop.xlane.xlu0 %5654
        %5656 = vadd.xlane.f32.xlu0 %v4655
        %v5657 = vpop.xlane.xlu0 %5656
        %5658 = vadd.xlane.f32.xlu0 %v4656
        %v5659 = vpop.xlane.xlu0 %5658
        %5660 = vadd.xlane.f32.xlu0 %v4657
        %v5661 = vpop.xlane.xlu0 %5660
        %5662 = vadd.xlane.f32.xlu0 %v4658
        %v5663 = vpop.xlane.xlu0 %5662
        %5664 = vadd.xlane.f32.xlu0 %v4659
        %v5665 = vpop.xlane.xlu0 %5664
        %5666 = vadd.xlane.f32.xlu0 %v4660
        %v5667 = vpop.xlane.xlu0 %5666
        %5668 = vadd.xlane.f32.xlu0 %v4661
        %v5669 = vpop.xlane.xlu0 %5668
        %5670 = vadd.xlane.f32.xlu0 %v4662
        %v5671 = vpop.xlane.xlu0 %5670
        %5672 = vadd.xlane.f32.xlu0 %v4663
        %v5673 = vpop.xlane.xlu0 %5672
        %5674 = vadd.xlane.f32.xlu0 %v4664
        %v5675 = vpop.xlane.xlu0 %5674
        %5676 = vadd.xlane.f32.xlu0 %v4665
        %v5677 = vpop.xlane.xlu0 %5676
        %5678 = vadd.xlane.f32.xlu0 %v4666
        %v5679 = vpop.xlane.xlu0 %5678
        %5680 = vadd.xlane.f32.xlu0 %v4667
        %v5681 = vpop.xlane.xlu0 %5680
        %5682 = vadd.xlane.f32.xlu0 %v4668
        %v5683 = vpop.xlane.xlu0 %5682
        %5684 = vadd.xlane.f32.xlu0 %v4669
        %v5685 = vpop.xlane.xlu0 %5684
        %5686 = vadd.xlane.f32.xlu0 %v4670
        %v5687 = vpop.xlane.xlu0 %5686
        %5688 = vadd.xlane.f32.xlu0 %v4671
        %v5689 = vpop.xlane.xlu0 %5688
        %5690 = vadd.xlane.f32.xlu0 %v4672
        %v5691 = vpop.xlane.xlu0 %5690
        %5692 = vadd.xlane.f32.xlu0 %v4673
        %v5693 = vpop.xlane.xlu0 %5692
        %5694 = vadd.xlane.f32.xlu0 %v4674
        %v5695 = vpop.xlane.xlu0 %5694
        %5696 = vadd.xlane.f32.xlu0 %v4675
        %v5697 = vpop.xlane.xlu0 %5696
        %5698 = vadd.xlane.f32.xlu0 %v4676
        %v5699 = vpop.xlane.xlu0 %5698
        %5700 = vadd.xlane.f32.xlu0 %v4677
        %v5701 = vpop.xlane.xlu0 %5700
        %v5702 = vadd.f32 %v4679, %v4681
        %v5703 = vadd.f32 %v5702, %v4683
        %v5704 = vadd.f32 %v5703, %v4685
        %v5705 = vadd.f32 %v5704, %v4687
        %v5706 = vadd.f32 %v5705, %v4689
        %v5707 = vadd.f32 %v5706, %v4691
        %v5708 = vadd.f32 %v5707, %v4693
        %v5709 = vadd.f32 %v5708, %v4695
        %v5710 = vadd.f32 %v5709, %v4697
        %v5711 = vadd.f32 %v5710, %v4699
        %v5712 = vadd.f32 %v5711, %v4701
        %v5713 = vadd.f32 %v5712, %v4703
        %v5714 = vadd.f32 %v5713, %v4705
        %v5715 = vadd.f32 %v5714, %v4707
        %v5716 = vadd.f32 %v5715, %v4709
        %v5717 = vadd.f32 %v5716, %v4711
        %v5718 = vadd.f32 %v5717, %v4713
        %v5719 = vadd.f32 %v5718, %v4715
        %v5720 = vadd.f32 %v5719, %v4717
        %v5721 = vadd.f32 %v5720, %v4719
        %v5722 = vadd.f32 %v5721, %v4721
        %v5723 = vadd.f32 %v5722, %v4723
        %v5724 = vadd.f32 %v5723, %v4725
        %v5725 = vadd.f32 %v5724, %v4727
        %v5726 = vadd.f32 %v5725, %v4729
        %v5727 = vadd.f32 %v5726, %v4731
        %v5728 = vadd.f32 %v5727, %v4733
        %v5729 = vadd.f32 %v5728, %v4735
        %v5730 = vadd.f32 %v5729, %v4737
        %v5731 = vadd.f32 %v5730, %v4739
        %v5732 = vadd.f32 %v5731, %v4741
        %v5733 = vadd.f32 %v5732, %v4743
        %v5734 = vadd.f32 %v5733, %v4745
        %v5735 = vadd.f32 %v5734, %v4747
        %v5736 = vadd.f32 %v5735, %v4749
        %v5737 = vadd.f32 %v5736, %v4751
        %v5738 = vadd.f32 %v5737, %v4753
        %v5739 = vadd.f32 %v5738, %v4755
        %v5740 = vadd.f32 %v5739, %v4757
        %v5741 = vadd.f32 %v5740, %v4759
        %v5742 = vadd.f32 %v5741, %v4761
        %v5743 = vadd.f32 %v5742, %v4763
        %v5744 = vadd.f32 %v5743, %v4765
        %v5745 = vadd.f32 %v5744, %v4767
        %v5746 = vadd.f32 %v5745, %v4769
        %v5747 = vadd.f32 %v5746, %v4771
        %v5748 = vadd.f32 %v5747, %v4773
        %v5749 = vadd.f32 %v5748, %v4775
        %v5750 = vadd.f32 %v5749, %v4777
        %v5751 = vadd.f32 %v5750, %v4779
        %v5752 = vadd.f32 %v5751, %v4781
        %v5753 = vadd.f32 %v5752, %v4783
        %v5754 = vadd.f32 %v5753, %v4785
        %v5755 = vadd.f32 %v5754, %v4787
        %v5756 = vadd.f32 %v5755, %v4789
        %v5757 = vadd.f32 %v5756, %v4791
        %v5758 = vadd.f32 %v5757, %v4793
        %v5759 = vadd.f32 %v5758, %v4795
        %v5760 = vadd.f32 %v5759, %v4797
        %v5761 = vadd.f32 %v5760, %v4799
        %v5762 = vadd.f32 %v5761, %v4801
        %v5763 = vadd.f32 %v5762, %v4803
        %v5764 = vadd.f32 %v5763, %v4805
        %v5765 = vrot.slane %v5764, 4
        %v5766 = vadd.f32 %v5764, %v5765
        %v5767 = vrot.slane %v5766, 2
        %v5768 = vadd.f32 %v5766, %v5767
        %v5769 = vrot.slane %v5768, 1
        %v5770 = vadd.f32 %v5768, %v5769
        %v5771 = vadd.f32 %v4807, %v4809
        %v5772 = vadd.f32 %v5771, %v4811
        %v5773 = vadd.f32 %v5772, %v4813
        %v5774 = vadd.f32 %v5773, %v4815
        %v5775 = vadd.f32 %v5774, %v4817
        %v5776 = vadd.f32 %v5775, %v4819
        %v5777 = vadd.f32 %v5776, %v4821
        %v5778 = vadd.f32 %v5777, %v4823
        %v5779 = vadd.f32 %v5778, %v4825
        %v5780 = vadd.f32 %v5779, %v4827
        %v5781 = vadd.f32 %v5780, %v4829
        %v5782 = vadd.f32 %v5781, %v4831
        %v5783 = vadd.f32 %v5782, %v4833
        %v5784 = vadd.f32 %v5783, %v4835
        %v5785 = vadd.f32 %v5784, %v4837
        %v5786 = vadd.f32 %v5785, %v4839
        %v5787 = vadd.f32 %v5786, %v4841
        %v5788 = vadd.f32 %v5787, %v4843
        %v5789 = vadd.f32 %v5788, %v4845
        %v5790 = vadd.f32 %v5789, %v4847
        %v5791 = vadd.f32 %v5790, %v4849
        %v5792 = vadd.f32 %v5791, %v4851
        %v5793 = vadd.f32 %v5792, %v4853
        %v5794 = vadd.f32 %v5793, %v4855
        %v5795 = vadd.f32 %v5794, %v4857
        %v5796 = vadd.f32 %v5795, %v4859
        %v5797 = vadd.f32 %v5796, %v4861
        %v5798 = vadd.f32 %v5797, %v4863
        %v5799 = vadd.f32 %v5798, %v4865
        %v5800 = vadd.f32 %v5799, %v4867
        %v5801 = vadd.f32 %v5800, %v4869
        %v5802 = vadd.f32 %v5801, %v4871
        %v5803 = vadd.f32 %v5802, %v4873
        %v5804 = vadd.f32 %v5803, %v4875
        %v5805 = vadd.f32 %v5804, %v4877
        %v5806 = vadd.f32 %v5805, %v4879
        %v5807 = vadd.f32 %v5806, %v4881
        %v5808 = vadd.f32 %v5807, %v4883
        %v5809 = vadd.f32 %v5808, %v4885
        %v5810 = vadd.f32 %v5809, %v4887
        %v5811 = vadd.f32 %v5810, %v4889
        %v5812 = vadd.f32 %v5811, %v4891
        %v5813 = vadd.f32 %v5812, %v4893
        %v5814 = vadd.f32 %v5813, %v4895
        %v5815 = vadd.f32 %v5814, %v4897
        %v5816 = vadd.f32 %v5815, %v4899
        %v5817 = vadd.f32 %v5816, %v4901
        %v5818 = vadd.f32 %v5817, %v4903
        %v5819 = vadd.f32 %v5818, %v4905
        %v5820 = vadd.f32 %v5819, %v4907
        %v5821 = vadd.f32 %v5820, %v4909
        %v5822 = vadd.f32 %v5821, %v4911
        %v5823 = vadd.f32 %v5822, %v4913
        %v5824 = vadd.f32 %v5823, %v4915
        %v5825 = vadd.f32 %v5824, %v4917
        %v5826 = vadd.f32 %v5825, %v4919
        %v5827 = vadd.f32 %v5826, %v4921
        %v5828 = vadd.f32 %v5827, %v4923
        %v5829 = vadd.f32 %v5828, %v4925
        %v5830 = vadd.f32 %v5829, %v4927
        %v5831 = vadd.f32 %v5830, %v4929
        %v5832 = vadd.f32 %v5831, %v4931
        %v5833 = vadd.f32 %v5832, %v4933
        %v5834 = vrot.slane %v5833, 4
        %v5835 = vadd.f32 %v5833, %v5834
        %v5836 = vrot.slane %v5835, 2
        %v5837 = vadd.f32 %v5835, %v5836
        %v5838 = vrot.slane %v5837, 1
        %v5839 = vadd.f32 %v5837, %v5838
        %v5840 = vadd.f32 %v4935, %v4937
        %v5841 = vadd.f32 %v5840, %v4939
        %v5842 = vadd.f32 %v5841, %v4941
        %v5843 = vadd.f32 %v5842, %v4943
        %v5844 = vadd.f32 %v5843, %v4945
        %v5845 = vadd.f32 %v5844, %v4947
        %v5846 = vadd.f32 %v5845, %v4949
        %v5847 = vadd.f32 %v5846, %v4951
        %v5848 = vadd.f32 %v5847, %v4953
        %v5849 = vadd.f32 %v5848, %v4955
        %v5850 = vadd.f32 %v5849, %v4957
        %v5851 = vadd.f32 %v5850, %v4959
        %v5852 = vadd.f32 %v5851, %v4961
        %v5853 = vadd.f32 %v5852, %v4963
        %v5854 = vadd.f32 %v5853, %v4965
        %v5855 = vadd.f32 %v5854, %v4967
        %v5856 = vadd.f32 %v5855, %v4969
        %v5857 = vadd.f32 %v5856, %v4971
        %v5858 = vadd.f32 %v5857, %v4973
        %v5859 = vadd.f32 %v5858, %v4975
        %v5860 = vadd.f32 %v5859, %v4977
        %v5861 = vadd.f32 %v5860, %v4979
        %v5862 = vadd.f32 %v5861, %v4981
        %v5863 = vadd.f32 %v5862, %v4983
        %v5864 = vadd.f32 %v5863, %v4985
        %v5865 = vadd.f32 %v5864, %v4987
        %v5866 = vadd.f32 %v5865, %v4989
        %v5867 = vadd.f32 %v5866, %v4991
        %v5868 = vadd.f32 %v5867, %v4993
        %v5869 = vadd.f32 %v5868, %v4995
        %v5870 = vadd.f32 %v5869, %v4997
        %v5871 = vadd.f32 %v5870, %v4999
        %v5872 = vadd.f32 %v5871, %v5001
        %v5873 = vadd.f32 %v5872, %v5003
        %v5874 = vadd.f32 %v5873, %v5005
        %v5875 = vadd.f32 %v5874, %v5007
        %v5876 = vadd.f32 %v5875, %v5009
        %v5877 = vadd.f32 %v5876, %v5011
        %v5878 = vadd.f32 %v5877, %v5013
        %v5879 = vadd.f32 %v5878, %v5015
        %v5880 = vadd.f32 %v5879, %v5017
        %v5881 = vadd.f32 %v5880, %v5019
        %v5882 = vadd.f32 %v5881, %v5021
        %v5883 = vadd.f32 %v5882, %v5023
        %v5884 = vadd.f32 %v5883, %v5025
        %v5885 = vadd.f32 %v5884, %v5027
        %v5886 = vadd.f32 %v5885, %v5029
        %v5887 = vadd.f32 %v5886, %v5031
        %v5888 = vadd.f32 %v5887, %v5033
        %v5889 = vadd.f32 %v5888, %v5035
        %v5890 = vadd.f32 %v5889, %v5037
        %v5891 = vadd.f32 %v5890, %v5039
        %v5892 = vadd.f32 %v5891, %v5041
        %v5893 = vadd.f32 %v5892, %v5043
        %v5894 = vadd.f32 %v5893, %v5045
        %v5895 = vadd.f32 %v5894, %v5047
        %v5896 = vadd.f32 %v5895, %v5049
        %v5897 = vadd.f32 %v5896, %v5051
        %v5898 = vadd.f32 %v5897, %v5053
        %v5899 = vadd.f32 %v5898, %v5055
        %v5900 = vadd.f32 %v5899, %v5057
        %v5901 = vadd.f32 %v5900, %v5059
        %v5902 = vadd.f32 %v5901, %v5061
        %v5903 = vrot.slane %v5902, 4
        %v5904 = vadd.f32 %v5902, %v5903
        %v5905 = vrot.slane %v5904, 2
        %v5906 = vadd.f32 %v5904, %v5905
        %v5907 = vrot.slane %v5906, 1
        %v5908 = vadd.f32 %v5906, %v5907
        %v5909 = vadd.f32 %v5063, %v5065
        %v5910 = vadd.f32 %v5909, %v5067
        %v5911 = vadd.f32 %v5910, %v5069
        %v5912 = vadd.f32 %v5911, %v5071
        %v5913 = vadd.f32 %v5912, %v5073
        %v5914 = vadd.f32 %v5913, %v5075
        %v5915 = vadd.f32 %v5914, %v5077
        %v5916 = vadd.f32 %v5915, %v5079
        %v5917 = vadd.f32 %v5916, %v5081
        %v5918 = vadd.f32 %v5917, %v5083
        %v5919 = vadd.f32 %v5918, %v5085
        %v5920 = vadd.f32 %v5919, %v5087
        %v5921 = vadd.f32 %v5920, %v5089
        %v5922 = vadd.f32 %v5921, %v5091
        %v5923 = vadd.f32 %v5922, %v5093
        %v5924 = vadd.f32 %v5923, %v5095
        %v5925 = vadd.f32 %v5924, %v5097
        %v5926 = vadd.f32 %v5925, %v5099
        %v5927 = vadd.f32 %v5926, %v5101
        %v5928 = vadd.f32 %v5927, %v5103
        %v5929 = vadd.f32 %v5928, %v5105
        %v5930 = vadd.f32 %v5929, %v5107
        %v5931 = vadd.f32 %v5930, %v5109
        %v5932 = vadd.f32 %v5931, %v5111
        %v5933 = vadd.f32 %v5932, %v5113
        %v5934 = vadd.f32 %v5933, %v5115
        %v5935 = vadd.f32 %v5934, %v5117
        %v5936 = vadd.f32 %v5935, %v5119
        %v5937 = vadd.f32 %v5936, %v5121
        %v5938 = vadd.f32 %v5937, %v5123
        %v5939 = vadd.f32 %v5938, %v5125
        %v5940 = vadd.f32 %v5939, %v5127
        %v5941 = vadd.f32 %v5940, %v5129
        %v5942 = vadd.f32 %v5941, %v5131
        %v5943 = vadd.f32 %v5942, %v5133
        %v5944 = vadd.f32 %v5943, %v5135
        %v5945 = vadd.f32 %v5944, %v5137
        %v5946 = vadd.f32 %v5945, %v5139
        %v5947 = vadd.f32 %v5946, %v5141
        %v5948 = vadd.f32 %v5947, %v5143
        %v5949 = vadd.f32 %v5948, %v5145
        %v5950 = vadd.f32 %v5949, %v5147
        %v5951 = vadd.f32 %v5950, %v5149
        %v5952 = vadd.f32 %v5951, %v5151
        %v5953 = vadd.f32 %v5952, %v5153
        %v5954 = vadd.f32 %v5953, %v5155
        %v5955 = vadd.f32 %v5954, %v5157
        %v5956 = vadd.f32 %v5955, %v5159
        %v5957 = vadd.f32 %v5956, %v5161
        %v5958 = vadd.f32 %v5957, %v5163
        %v5959 = vadd.f32 %v5958, %v5165
        %v5960 = vadd.f32 %v5959, %v5167
        %v5961 = vadd.f32 %v5960, %v5169
        %v5962 = vadd.f32 %v5961, %v5171
        %v5963 = vadd.f32 %v5962, %v5173
        %v5964 = vadd.f32 %v5963, %v5175
        %v5965 = vadd.f32 %v5964, %v5177
        %v5966 = vadd.f32 %v5965, %v5179
        %v5967 = vadd.f32 %v5966, %v5181
        %v5968 = vadd.f32 %v5967, %v5183
        %v5969 = vadd.f32 %v5968, %v5185
        %v5970 = vadd.f32 %v5969, %v5187
        %v5971 = vadd.f32 %v5970, %v5189
        %v5972 = vrot.slane %v5971, 4
        %v5973 = vadd.f32 %v5971, %v5972
        %v5974 = vrot.slane %v5973, 2
        %v5975 = vadd.f32 %v5973, %v5974
        %v5976 = vrot.slane %v5975, 1
        %v5977 = vadd.f32 %v5975, %v5976
        %v5978 = vadd.f32 %v5191, %v5193
        %v5979 = vadd.f32 %v5978, %v5195
        %v5980 = vadd.f32 %v5979, %v5197
        %v5981 = vadd.f32 %v5980, %v5199
        %v5982 = vadd.f32 %v5981, %v5201
        %v5983 = vadd.f32 %v5982, %v5203
        %v5984 = vadd.f32 %v5983, %v5205
        %v5985 = vadd.f32 %v5984, %v5207
        %v5986 = vadd.f32 %v5985, %v5209
        %v5987 = vadd.f32 %v5986, %v5211
        %v5988 = vadd.f32 %v5987, %v5213
        %v5989 = vadd.f32 %v5988, %v5215
        %v5990 = vadd.f32 %v5989, %v5217
        %v5991 = vadd.f32 %v5990, %v5219
        %v5992 = vadd.f32 %v5991, %v5221
        %v5993 = vadd.f32 %v5992, %v5223
        %v5994 = vadd.f32 %v5993, %v5225
        %v5995 = vadd.f32 %v5994, %v5227
        %v5996 = vadd.f32 %v5995, %v5229
        %v5997 = vadd.f32 %v5996, %v5231
        %v5998 = vadd.f32 %v5997, %v5233
        %v5999 = vadd.f32 %v5998, %v5235
        %v6000 = vadd.f32 %v5999, %v5237
        %v6001 = vadd.f32 %v6000, %v5239
        %v6002 = vadd.f32 %v6001, %v5241
        %v6003 = vadd.f32 %v6002, %v5243
        %v6004 = vadd.f32 %v6003, %v5245
        %v6005 = vadd.f32 %v6004, %v5247
        %v6006 = vadd.f32 %v6005, %v5249
        %v6007 = vadd.f32 %v6006, %v5251
        %v6008 = vadd.f32 %v6007, %v5253
        %v6009 = vadd.f32 %v6008, %v5255
        %v6010 = vadd.f32 %v6009, %v5257
        %v6011 = vadd.f32 %v6010, %v5259
        %v6012 = vadd.f32 %v6011, %v5261
        %v6013 = vadd.f32 %v6012, %v5263
        %v6014 = vadd.f32 %v6013, %v5265
        %v6015 = vadd.f32 %v6014, %v5267
        %v6016 = vadd.f32 %v6015, %v5269
        %v6017 = vadd.f32 %v6016, %v5271
        %v6018 = vadd.f32 %v6017, %v5273
        %v6019 = vadd.f32 %v6018, %v5275
        %v6020 = vadd.f32 %v6019, %v5277
        %v6021 = vadd.f32 %v6020, %v5279
        %v6022 = vadd.f32 %v6021, %v5281
        %v6023 = vadd.f32 %v6022, %v5283
        %v6024 = vadd.f32 %v6023, %v5285
        %v6025 = vadd.f32 %v6024, %v5287
        %v6026 = vadd.f32 %v6025, %v5289
        %v6027 = vadd.f32 %v6026, %v5291
        %v6028 = vadd.f32 %v6027, %v5293
        %v6029 = vadd.f32 %v6028, %v5295
        %v6030 = vadd.f32 %v6029, %v5297
        %v6031 = vadd.f32 %v6030, %v5299
        %v6032 = vadd.f32 %v6031, %v5301
        %v6033 = vadd.f32 %v6032, %v5303
        %v6034 = vadd.f32 %v6033, %v5305
        %v6035 = vadd.f32 %v6034, %v5307
        %v6036 = vadd.f32 %v6035, %v5309
        %v6037 = vadd.f32 %v6036, %v5311
        %v6038 = vadd.f32 %v6037, %v5313
        %v6039 = vadd.f32 %v6038, %v5315
        %v6040 = vadd.f32 %v6039, %v5317
        %v6041 = vrot.slane %v6040, 4
        %v6042 = vadd.f32 %v6040, %v6041
        %v6043 = vrot.slane %v6042, 2
        %v6044 = vadd.f32 %v6042, %v6043
        %v6045 = vrot.slane %v6044, 1
        %v6046 = vadd.f32 %v6044, %v6045
        %v6047 = vadd.f32 %v5319, %v5321
        %v6048 = vadd.f32 %v6047, %v5323
        %v6049 = vadd.f32 %v6048, %v5325
        %v6050 = vadd.f32 %v6049, %v5327
        %v6051 = vadd.f32 %v6050, %v5329
        %v6052 = vadd.f32 %v6051, %v5331
        %v6053 = vadd.f32 %v6052, %v5333
        %v6054 = vadd.f32 %v6053, %v5335
        %v6055 = vadd.f32 %v6054, %v5337
        %v6056 = vadd.f32 %v6055, %v5339
        %v6057 = vadd.f32 %v6056, %v5341
        %v6058 = vadd.f32 %v6057, %v5343
        %v6059 = vadd.f32 %v6058, %v5345
        %v6060 = vadd.f32 %v6059, %v5347
        %v6061 = vadd.f32 %v6060, %v5349
        %v6062 = vadd.f32 %v6061, %v5351
        %v6063 = vadd.f32 %v6062, %v5353
        %v6064 = vadd.f32 %v6063, %v5355
        %v6065 = vadd.f32 %v6064, %v5357
        %v6066 = vadd.f32 %v6065, %v5359
        %v6067 = vadd.f32 %v6066, %v5361
        %v6068 = vadd.f32 %v6067, %v5363
        %v6069 = vadd.f32 %v6068, %v5365
        %v6070 = vadd.f32 %v6069, %v5367
        %v6071 = vadd.f32 %v6070, %v5369
        %v6072 = vadd.f32 %v6071, %v5371
        %v6073 = vadd.f32 %v6072, %v5373
        %v6074 = vadd.f32 %v6073, %v5375
        %v6075 = vadd.f32 %v6074, %v5377
        %v6076 = vadd.f32 %v6075, %v5379
        %v6077 = vadd.f32 %v6076, %v5381
        %v6078 = vadd.f32 %v6077, %v5383
        %v6079 = vadd.f32 %v6078, %v5385
        %v6080 = vadd.f32 %v6079, %v5387
        %v6081 = vadd.f32 %v6080, %v5389
        %v6082 = vadd.f32 %v6081, %v5391
        %v6083 = vadd.f32 %v6082, %v5393
        %v6084 = vadd.f32 %v6083, %v5395
        %v6085 = vadd.f32 %v6084, %v5397
        %v6086 = vadd.f32 %v6085, %v5399
        %v6087 = vadd.f32 %v6086, %v5401
        %v6088 = vadd.f32 %v6087, %v5403
        %v6089 = vadd.f32 %v6088, %v5405
        %v6090 = vadd.f32 %v6089, %v5407
        %v6091 = vadd.f32 %v6090, %v5409
        %v6092 = vadd.f32 %v6091, %v5411
        %v6093 = vadd.f32 %v6092, %v5413
        %v6094 = vadd.f32 %v6093, %v5415
        %v6095 = vadd.f32 %v6094, %v5417
        %v6096 = vadd.f32 %v6095, %v5419
        %v6097 = vadd.f32 %v6096, %v5421
        %v6098 = vadd.f32 %v6097, %v5423
        %v6099 = vadd.f32 %v6098, %v5425
        %v6100 = vadd.f32 %v6099, %v5427
        %v6101 = vadd.f32 %v6100, %v5429
        %v6102 = vadd.f32 %v6101, %v5431
        %v6103 = vadd.f32 %v6102, %v5433
        %v6104 = vadd.f32 %v6103, %v5435
        %v6105 = vadd.f32 %v6104, %v5437
        %v6106 = vadd.f32 %v6105, %v5439
        %v6107 = vadd.f32 %v6106, %v5441
        %v6108 = vadd.f32 %v6107, %v5443
        %v6109 = vadd.f32 %v6108, %v5445
        %v6110 = vrot.slane %v6109, 4
        %v6111 = vadd.f32 %v6109, %v6110
        %v6112 = vrot.slane %v6111, 2
        %v6113 = vadd.f32 %v6111, %v6112
        %v6114 = vrot.slane %v6113, 1
        %v6115 = vadd.f32 %v6113, %v6114
        %v6116 = vadd.f32 %v5447, %v5449
        %v6117 = vadd.f32 %v6116, %v5451
        %v6118 = vadd.f32 %v6117, %v5453
        %v6119 = vadd.f32 %v6118, %v5455
        %v6120 = vadd.f32 %v6119, %v5457
        %v6121 = vadd.f32 %v6120, %v5459
        %v6122 = vadd.f32 %v6121, %v5461
        %v6123 = vadd.f32 %v6122, %v5463
        %v6124 = vadd.f32 %v6123, %v5465
        %v6125 = vadd.f32 %v6124, %v5467
        %v6126 = vadd.f32 %v6125, %v5469
        %v6127 = vadd.f32 %v6126, %v5471
        %v6128 = vadd.f32 %v6127, %v5473
        %v6129 = vadd.f32 %v6128, %v5475
        %v6130 = vadd.f32 %v6129, %v5477
        %v6131 = vadd.f32 %v6130, %v5479
        %v6132 = vadd.f32 %v6131, %v5481
        %v6133 = vadd.f32 %v6132, %v5483
        %v6134 = vadd.f32 %v6133, %v5485
        %v6135 = vadd.f32 %v6134, %v5487
        %v6136 = vadd.f32 %v6135, %v5489
        %v6137 = vadd.f32 %v6136, %v5491
        %v6138 = vadd.f32 %v6137, %v5493
        %v6139 = vadd.f32 %v6138, %v5495
        %v6140 = vadd.f32 %v6139, %v5497
        %v6141 = vadd.f32 %v6140, %v5499
        %v6142 = vadd.f32 %v6141, %v5501
        %v6143 = vadd.f32 %v6142, %v5503
        %v6144 = vadd.f32 %v6143, %v5505
        %v6145 = vadd.f32 %v6144, %v5507
        %v6146 = vadd.f32 %v6145, %v5509
        %v6147 = vadd.f32 %v6146, %v5511
        %v6148 = vadd.f32 %v6147, %v5513
        %v6149 = vadd.f32 %v6148, %v5515
        %v6150 = vadd.f32 %v6149, %v5517
        %v6151 = vadd.f32 %v6150, %v5519
        %v6152 = vadd.f32 %v6151, %v5521
        %v6153 = vadd.f32 %v6152, %v5523
        %v6154 = vadd.f32 %v6153, %v5525
        %v6155 = vadd.f32 %v6154, %v5527
        %v6156 = vadd.f32 %v6155, %v5529
        %v6157 = vadd.f32 %v6156, %v5531
        %v6158 = vadd.f32 %v6157, %v5533
        %v6159 = vadd.f32 %v6158, %v5535
        %v6160 = vadd.f32 %v6159, %v5537
        %v6161 = vadd.f32 %v6160, %v5539
        %v6162 = vadd.f32 %v6161, %v5541
        %v6163 = vadd.f32 %v6162, %v5543
        %v6164 = vadd.f32 %v6163, %v5545
        %v6165 = vadd.f32 %v6164, %v5547
        %v6166 = vadd.f32 %v6165, %v5549
        %v6167 = vadd.f32 %v6166, %v5551
        %v6168 = vadd.f32 %v6167, %v5553
        %v6169 = vadd.f32 %v6168, %v5555
        %v6170 = vadd.f32 %v6169, %v5557
        %v6171 = vadd.f32 %v6170, %v5559
        %v6172 = vadd.f32 %v6171, %v5561
        %v6173 = vadd.f32 %v6172, %v5563
        %v6174 = vadd.f32 %v6173, %v5565
        %v6175 = vadd.f32 %v6174, %v5567
        %v6176 = vadd.f32 %v6175, %v5569
        %v6177 = vadd.f32 %v6176, %v5571
        %v6178 = vadd.f32 %v6177, %v5573
        %v6179 = vrot.slane %v6178, 4
        %v6180 = vadd.f32 %v6178, %v6179
        %v6181 = vrot.slane %v6180, 2
        %v6182 = vadd.f32 %v6180, %v6181
        %v6183 = vrot.slane %v6182, 1
        %v6184 = vadd.f32 %v6182, %v6183
        %v6185 = vadd.f32 %v5575, %v5577
        %v6186 = vadd.f32 %v6185, %v5579
        %v6187 = vadd.f32 %v6186, %v5581
        %v6188 = vadd.f32 %v6187, %v5583
        %v6189 = vadd.f32 %v6188, %v5585
        %v6190 = vadd.f32 %v6189, %v5587
        %v6191 = vadd.f32 %v6190, %v5589
        %v6192 = vadd.f32 %v6191, %v5591
        %v6193 = vadd.f32 %v6192, %v5593
        %v6194 = vadd.f32 %v6193, %v5595
        %v6195 = vadd.f32 %v6194, %v5597
        %v6196 = vadd.f32 %v6195, %v5599
        %v6197 = vadd.f32 %v6196, %v5601
        %v6198 = vadd.f32 %v6197, %v5603
        %v6199 = vadd.f32 %v6198, %v5605
        %v6200 = vadd.f32 %v6199, %v5607
        %v6201 = vadd.f32 %v6200, %v5609
        %v6202 = vadd.f32 %v6201, %v5611
        %v6203 = vadd.f32 %v6202, %v5613
        %v6204 = vadd.f32 %v6203, %v5615
        %v6205 = vadd.f32 %v6204, %v5617
        %v6206 = vadd.f32 %v6205, %v5619
        %v6207 = vadd.f32 %v6206, %v5621
        %v6208 = vadd.f32 %v6207, %v5623
        %v6209 = vadd.f32 %v6208, %v5625
        %v6210 = vadd.f32 %v6209, %v5627
        %v6211 = vadd.f32 %v6210, %v5629
        %v6212 = vadd.f32 %v6211, %v5631
        %v6213 = vadd.f32 %v6212, %v5633
        %v6214 = vadd.f32 %v6213, %v5635
        %v6215 = vadd.f32 %v6214, %v5637
        %v6216 = vadd.f32 %v6215, %v5639
        %v6217 = vadd.f32 %v6216, %v5641
        %v6218 = vadd.f32 %v6217, %v5643
        %v6219 = vadd.f32 %v6218, %v5645
        %v6220 = vadd.f32 %v6219, %v5647
        %v6221 = vadd.f32 %v6220, %v5649
        %v6222 = vadd.f32 %v6221, %v5651
        %v6223 = vadd.f32 %v6222, %v5653
        %v6224 = vadd.f32 %v6223, %v5655
        %v6225 = vadd.f32 %v6224, %v5657
        %v6226 = vadd.f32 %v6225, %v5659
        %v6227 = vadd.f32 %v6226, %v5661
        %v6228 = vadd.f32 %v6227, %v5663
        %v6229 = vadd.f32 %v6228, %v5665
        %v6230 = vadd.f32 %v6229, %v5667
        %v6231 = vadd.f32 %v6230, %v5669
        %v6232 = vadd.f32 %v6231, %v5671
        %v6233 = vadd.f32 %v6232, %v5673
        %v6234 = vadd.f32 %v6233, %v5675
        %v6235 = vadd.f32 %v6234, %v5677
        %v6236 = vadd.f32 %v6235, %v5679
        %v6237 = vadd.f32 %v6236, %v5681
        %v6238 = vadd.f32 %v6237, %v5683
        %v6239 = vadd.f32 %v6238, %v5685
        %v6240 = vadd.f32 %v6239, %v5687
        %v6241 = vadd.f32 %v6240, %v5689
        %v6242 = vadd.f32 %v6241, %v5691
        %v6243 = vadd.f32 %v6242, %v5693
        %v6244 = vadd.f32 %v6243, %v5695
        %v6245 = vadd.f32 %v6244, %v5697
        %v6246 = vadd.f32 %v6245, %v5699
        %v6247 = vadd.f32 %v6246, %v5701
        %v6248 = vrot.slane %v6247, 4
        %v6249 = vadd.f32 %v6247, %v6248
        %v6250 = vrot.slane %v6249, 2
        %v6251 = vadd.f32 %v6249, %v6250
        %v6252 = vrot.slane %v6251, 1
        %v6253 = vadd.f32 %v6251, %v6252
        %v6254 = vmax.f32 %v5770, 1e-24
        %v6255 = vmax.f32 %v5839, 1e-24
        %v6256 = vmax.f32 %v5908, 1e-24
        %v6257 = vmax.f32 %v5977, 1e-24
        %v6258 = vmax.f32 %v6046, 1e-24
        %v6259 = vmax.f32 %v6115, 1e-24
        %v6260 = vmax.f32 %v6184, 1e-24
        %v6261 = vmax.f32 %v6253, 1e-24
        %v6262 = vrsqrt.pop %v6254
        %v6263 = vmul.f32 %v6262, %v6254
        %v6264 = vmul.f32 %v6263, %v6262
        %v6265 = vmul.f32 0.5, %v6264
        %v6266 = vsub.f32 1.5, %v6265
        %v6267 = vmul.f32 %v6262, %v6266
        %vm6268 = vweird.f32 %v6254
        %vm6269 = vweird.f32 %v6262
        %vm6270 = vmor %vm6268, %vm6269
        %v6271 = vsel %vm6270, %v6262, %v6267
        %v6272 = vrsqrt.pop %v6255
        %v6273 = vmul.f32 %v6272, %v6255
        %v6274 = vmul.f32 %v6273, %v6272
        %v6275 = vmul.f32 0.5, %v6274
        %v6276 = vsub.f32 1.5, %v6275
        %v6277 = vmul.f32 %v6272, %v6276
        %vm6278 = vweird.f32 %v6255
        %vm6279 = vweird.f32 %v6272
        %vm6280 = vmor %vm6278, %vm6279
        %v6281 = vsel %vm6280, %v6272, %v6277
        %v6282 = vrsqrt.pop %v6256
        %v6283 = vmul.f32 %v6282, %v6256
        %v6284 = vmul.f32 %v6283, %v6282
        %v6285 = vmul.f32 0.5, %v6284
        %v6286 = vsub.f32 1.5, %v6285
        %v6287 = vmul.f32 %v6282, %v6286
        %vm6288 = vweird.f32 %v6256
        %vm6289 = vweird.f32 %v6282
        %vm6290 = vmor %vm6288, %vm6289
        %v6291 = vsel %vm6290, %v6282, %v6287
        %v6292 = vrsqrt.pop %v6257
        %v6293 = vmul.f32 %v6292, %v6257
        %v6294 = vmul.f32 %v6293, %v6292
        %v6295 = vmul.f32 0.5, %v6294
        %v6296 = vsub.f32 1.5, %v6295
        %v6297 = vmul.f32 %v6292, %v6296
        %vm6298 = vweird.f32 %v6257
        %vm6299 = vweird.f32 %v6292
        %vm6300 = vmor %vm6298, %vm6299
        %v6301 = vsel %vm6300, %v6292, %v6297
        %v6302 = vrsqrt.pop %v6258
        %v6303 = vmul.f32 %v6302, %v6258
        %v6304 = vmul.f32 %v6303, %v6302
        %v6305 = vmul.f32 0.5, %v6304
        %v6306 = vsub.f32 1.5, %v6305
        %v6307 = vmul.f32 %v6302, %v6306
        %vm6308 = vweird.f32 %v6258
        %vm6309 = vweird.f32 %v6302
        %vm6310 = vmor %vm6308, %vm6309
        %v6311 = vsel %vm6310, %v6302, %v6307
        %v6312 = vrsqrt.pop %v6259
        %v6313 = vmul.f32 %v6312, %v6259
        %v6314 = vmul.f32 %v6313, %v6312
        %v6315 = vmul.f32 0.5, %v6314
        %v6316 = vsub.f32 1.5, %v6315
        %v6317 = vmul.f32 %v6312, %v6316
        %vm6318 = vweird.f32 %v6259
        %vm6319 = vweird.f32 %v6312
        %vm6320 = vmor %vm6318, %vm6319
        %v6321 = vsel %vm6320, %v6312, %v6317
        %v6322 = vrsqrt.pop %v6260
        %v6323 = vmul.f32 %v6322, %v6260
        %v6324 = vmul.f32 %v6323, %v6322
        %v6325 = vmul.f32 0.5, %v6324
        %v6326 = vsub.f32 1.5, %v6325
        %v6327 = vmul.f32 %v6322, %v6326
        %vm6328 = vweird.f32 %v6260
        %vm6329 = vweird.f32 %v6322
        %vm6330 = vmor %vm6328, %vm6329
        %v6331 = vsel %vm6330, %v6322, %v6327
        %v6332 = vrsqrt.pop %v6261
        %v6333 = vmul.f32 %v6332, %v6261
        %v6334 = vmul.f32 %v6333, %v6332
        %v6335 = vmul.f32 0.5, %v6334
        %v6336 = vsub.f32 1.5, %v6335
        %v6337 = vmul.f32 %v6332, %v6336
        %vm6338 = vweird.f32 %v6261
        %vm6339 = vweird.f32 %v6332
        %vm6340 = vmor %vm6338, %vm6339
        %v6341 = vsel %vm6340, %v6332, %v6337
        %v6342 = vld [vmem:[#allocation6] sm:$0xff]
        %v6343 = vld [vmem:[#allocation6 + $0x8] sm:$0xff]
        %v6344 = vld [vmem:[#allocation6 + $0x10] sm:$0xff]
        %v6345 = vld [vmem:[#allocation6 + $0x18] sm:$0xff]
        %v6346 = vld [vmem:[#allocation6 + $0x20] sm:$0xff]
        %v6347 = vld [vmem:[#allocation6 + $0x28] sm:$0xff]
        %v6348 = vld [vmem:[#allocation6 + $0x30] sm:$0xff]
        %v6349 = vld [vmem:[#allocation6 + $0x38] sm:$0xff]
        %v6350 = vld [vmem:[#allocation6 + $0x40] sm:$0xff]
        %v6351 = vld [vmem:[#allocation6 + $0x48] sm:$0xff]
        %v6352 = vld [vmem:[#allocation6 + $0x50] sm:$0xff]
        %v6353 = vld [vmem:[#allocation6 + $0x58] sm:$0xff]
        %v6354 = vld [vmem:[#allocation6 + $0x60] sm:$0xff]
        %v6355 = vld [vmem:[#allocation6 + $0x68] sm:$0xff]
        %v6356 = vld [vmem:[#allocation6 + $0x70] sm:$0xff]
        %v6357 = vld [vmem:[#allocation6 + $0x78] sm:$0xff]
        %v6358 = vld [vmem:[#allocation6 + $0x80] sm:$0xff]
        %v6359 = vld [vmem:[#allocation6 + $0x88] sm:$0xff]
        %v6360 = vld [vmem:[#allocation6 + $0x90] sm:$0xff]
        %v6361 = vld [vmem:[#allocation6 + $0x98] sm:$0xff]
        %v6362 = vld [vmem:[#allocation6 + $0xa0] sm:$0xff]
        %v6363 = vld [vmem:[#allocation6 + $0xa8] sm:$0xff]
        %v6364 = vld [vmem:[#allocation6 + $0xb0] sm:$0xff]
        %v6365 = vld [vmem:[#allocation6 + $0xb8] sm:$0xff]
        %v6366 = vld [vmem:[#allocation6 + $0xc0] sm:$0xff]
        %v6367 = vld [vmem:[#allocation6 + $0xc8] sm:$0xff]
        %v6368 = vld [vmem:[#allocation6 + $0xd0] sm:$0xff]
        %v6369 = vld [vmem:[#allocation6 + $0xd8] sm:$0xff]
        %v6370 = vld [vmem:[#allocation6 + $0xe0] sm:$0xff]
        %v6371 = vld [vmem:[#allocation6 + $0xe8] sm:$0xff]
        %v6372 = vld [vmem:[#allocation6 + $0xf0] sm:$0xff]
        %v6373 = vld [vmem:[#allocation6 + $0xf8] sm:$0xff]
        %v6374 = vld [vmem:[#allocation6 + $0x100] sm:$0xff]
        %v6375 = vld [vmem:[#allocation6 + $0x108] sm:$0xff]
        %v6376 = vld [vmem:[#allocation6 + $0x110] sm:$0xff]
        %v6377 = vld [vmem:[#allocation6 + $0x118] sm:$0xff]
        %v6378 = vld [vmem:[#allocation6 + $0x120] sm:$0xff]
        %v6379 = vld [vmem:[#allocation6 + $0x128] sm:$0xff]
        %v6380 = vld [vmem:[#allocation6 + $0x130] sm:$0xff]
        %v6381 = vld [vmem:[#allocation6 + $0x138] sm:$0xff]
        %v6382 = vld [vmem:[#allocation6 + $0x140] sm:$0xff]
        %v6383 = vld [vmem:[#allocation6 + $0x148] sm:$0xff]
        %v6384 = vld [vmem:[#allocation6 + $0x150] sm:$0xff]
        %v6385 = vld [vmem:[#allocation6 + $0x158] sm:$0xff]
        %v6386 = vld [vmem:[#allocation6 + $0x160] sm:$0xff]
        %v6387 = vld [vmem:[#allocation6 + $0x168] sm:$0xff]
        %v6388 = vld [vmem:[#allocation6 + $0x170] sm:$0xff]
        %v6389 = vld [vmem:[#allocation6 + $0x178] sm:$0xff]
        %v6390 = vld [vmem:[#allocation6 + $0x180] sm:$0xff]
        %v6391 = vld [vmem:[#allocation6 + $0x188] sm:$0xff]
        %v6392 = vld [vmem:[#allocation6 + $0x190] sm:$0xff]
        %v6393 = vld [vmem:[#allocation6 + $0x198] sm:$0xff]
        %v6394 = vld [vmem:[#allocation6 + $0x1a0] sm:$0xff]
        %v6395 = vld [vmem:[#allocation6 + $0x1a8] sm:$0xff]
        %v6396 = vld [vmem:[#allocation6 + $0x1b0] sm:$0xff]
        %v6397 = vld [vmem:[#allocation6 + $0x1b8] sm:$0xff]
        %v6398 = vld [vmem:[#allocation6 + $0x1c0] sm:$0xff]
        %v6399 = vld [vmem:[#allocation6 + $0x1c8] sm:$0xff]
        %v6400 = vld [vmem:[#allocation6 + $0x1d0] sm:$0xff]
        %v6401 = vld [vmem:[#allocation6 + $0x1d8] sm:$0xff]
        %v6402 = vld [vmem:[#allocation6 + $0x1e0] sm:$0xff]
        %v6403 = vld [vmem:[#allocation6 + $0x1e8] sm:$0xff]
        %v6404 = vld [vmem:[#allocation6 + $0x1f0] sm:$0xff]
        %v6405 = vld [vmem:[#allocation6 + $0x1f8] sm:$0xff]
        %v6406 = vmul.f32 %v1144, %v6342
        %v6407 = vmul.f32 %v1146, %v6343
        %v6408 = vmul.f32 %v1149, %v6344
        %v6409 = vmul.f32 %v1151, %v6345
        %v6410 = vmul.f32 %v1154, %v6346
        %v6411 = vmul.f32 %v1156, %v6347
        %v6412 = vmul.f32 %v1159, %v6348
        %v6413 = vmul.f32 %v1161, %v6349
        %v6414 = vmul.f32 %v1164, %v6350
        %v6415 = vmul.f32 %v1166, %v6351
        %v6416 = vmul.f32 %v1169, %v6352
        %v6417 = vmul.f32 %v1171, %v6353
        %v6418 = vmul.f32 %v1174, %v6354
        %v6419 = vmul.f32 %v1176, %v6355
        %v6420 = vmul.f32 %v1179, %v6356
        %v6421 = vmul.f32 %v1181, %v6357
        %v6422 = vmul.f32 %v1184, %v6358
        %v6423 = vmul.f32 %v1186, %v6359
        %v6424 = vmul.f32 %v1189, %v6360
        %v6425 = vmul.f32 %v1191, %v6361
        %v6426 = vmul.f32 %v1194, %v6362
        %v6427 = vmul.f32 %v1196, %v6363
        %v6428 = vmul.f32 %v1199, %v6364
        %v6429 = vmul.f32 %v1201, %v6365
        %v6430 = vmul.f32 %v1204, %v6366
        %v6431 = vmul.f32 %v1206, %v6367
        %v6432 = vmul.f32 %v1209, %v6368
        %v6433 = vmul.f32 %v1211, %v6369
        %v6434 = vmul.f32 %v1214, %v6370
        %v6435 = vmul.f32 %v1216, %v6371
        %v6436 = vmul.f32 %v1219, %v6372
        %v6437 = vmul.f32 %v1221, %v6373
        %v6438 = vmul.f32 %v1224, %v6374
        %v6439 = vmul.f32 %v1226, %v6375
        %v6440 = vmul.f32 %v1229, %v6376
        %v6441 = vmul.f32 %v1231, %v6377
        %v6442 = vmul.f32 %v1234, %v6378
        %v6443 = vmul.f32 %v1236, %v6379
        %v6444 = vmul.f32 %v1239, %v6380
        %v6445 = vmul.f32 %v1241, %v6381
        %v6446 = vmul.f32 %v1244, %v6382
        %v6447 = vmul.f32 %v1246, %v6383
        %v6448 = vmul.f32 %v1249, %v6384
        %v6449 = vmul.f32 %v1251, %v6385
        %v6450 = vmul.f32 %v1254, %v6386
        %v6451 = vmul.f32 %v1256, %v6387
        %v6452 = vmul.f32 %v1259, %v6388
        %v6453 = vmul.f32 %v1261, %v6389
        %v6454 = vmul.f32 %v1264, %v6390
        %v6455 = vmul.f32 %v1266, %v6391
        %v6456 = vmul.f32 %v1269, %v6392
        %v6457 = vmul.f32 %v1271, %v6393
        %v6458 = vmul.f32 %v1274, %v6394
        %v6459 = vmul.f32 %v1276, %v6395
        %v6460 = vmul.f32 %v1279, %v6396
        %v6461 = vmul.f32 %v1281, %v6397
        %v6462 = vmul.f32 %v1284, %v6398
        %v6463 = vmul.f32 %v1286, %v6399
        %v6464 = vmul.f32 %v1289, %v6400
        %v6465 = vmul.f32 %v1291, %v6401
        %v6466 = vmul.f32 %v1294, %v6402
        %v6467 = vmul.f32 %v1296, %v6403
        %v6468 = vmul.f32 %v1299, %v6404
        %v6469 = vmul.f32 %v1301, %v6405
        %v6470 = vmul.f32 %v1553, %v6342
        %v6471 = vmul.f32 %v1555, %v6343
        %v6472 = vmul.f32 %v1558, %v6344
        %v6473 = vmul.f32 %v1560, %v6345
        %v6474 = vmul.f32 %v1563, %v6346
        %v6475 = vmul.f32 %v1565, %v6347
        %v6476 = vmul.f32 %v1568, %v6348
        %v6477 = vmul.f32 %v1570, %v6349
        %v6478 = vmul.f32 %v1573, %v6350
        %v6479 = vmul.f32 %v1575, %v6351
        %v6480 = vmul.f32 %v1578, %v6352
        %v6481 = vmul.f32 %v1580, %v6353
        %v6482 = vmul.f32 %v1583, %v6354
        %v6483 = vmul.f32 %v1585, %v6355
        %v6484 = vmul.f32 %v1588, %v6356
        %v6485 = vmul.f32 %v1590, %v6357
        %v6486 = vmul.f32 %v1593, %v6358
        %v6487 = vmul.f32 %v1595, %v6359
        %v6488 = vmul.f32 %v1598, %v6360
        %v6489 = vmul.f32 %v1600, %v6361
        %v6490 = vmul.f32 %v1603, %v6362
        %v6491 = vmul.f32 %v1605, %v6363
        %v6492 = vmul.f32 %v1608, %v6364
        %v6493 = vmul.f32 %v1610, %v6365
        %v6494 = vmul.f32 %v1613, %v6366
        %v6495 = vmul.f32 %v1615, %v6367
        %v6496 = vmul.f32 %v1618, %v6368
        %v6497 = vmul.f32 %v1620, %v6369
        %v6498 = vmul.f32 %v1623, %v6370
        %v6499 = vmul.f32 %v1625, %v6371
        %v6500 = vmul.f32 %v1628, %v6372
        %v6501 = vmul.f32 %v1630, %v6373
        %v6502 = vmul.f32 %v1633, %v6374
        %v6503 = vmul.f32 %v1635, %v6375
        %v6504 = vmul.f32 %v1638, %v6376
        %v6505 = vmul.f32 %v1640, %v6377
        %v6506 = vmul.f32 %v1643, %v6378
        %v6507 = vmul.f32 %v1645, %v6379
        %v6508 = vmul.f32 %v1648, %v6380
        %v6509 = vmul.f32 %v1650, %v6381
        %v6510 = vmul.f32 %v1653, %v6382
        %v6511 = vmul.f32 %v1655, %v6383
        %v6512 = vmul.f32 %v1658, %v6384
        %v6513 = vmul.f32 %v1660, %v6385
        %v6514 = vmul.f32 %v1663, %v6386
        %v6515 = vmul.f32 %v1665, %v6387
        %v6516 = vmul.f32 %v1668, %v6388
        %v6517 = vmul.f32 %v1670, %v6389
        %v6518 = vmul.f32 %v1673, %v6390
        %v6519 = vmul.f32 %v1675, %v6391
        %v6520 = vmul.f32 %v1678, %v6392
        %v6521 = vmul.f32 %v1680, %v6393
        %v6522 = vmul.f32 %v1683, %v6394
        %v6523 = vmul.f32 %v1685, %v6395
        %v6524 = vmul.f32 %v1688, %v6396
        %v6525 = vmul.f32 %v1690, %v6397
        %v6526 = vmul.f32 %v1693, %v6398
        %v6527 = vmul.f32 %v1695, %v6399
        %v6528 = vmul.f32 %v1698, %v6400
        %v6529 = vmul.f32 %v1700, %v6401
        %v6530 = vmul.f32 %v1703, %v6402
        %v6531 = vmul.f32 %v1705, %v6403
        %v6532 = vmul.f32 %v1708, %v6404
        %v6533 = vmul.f32 %v1710, %v6405
        %v6534 = vmul.f32 %v1962, %v6342
        %v6535 = vmul.f32 %v1964, %v6343
        %v6536 = vmul.f32 %v1967, %v6344
        %v6537 = vmul.f32 %v1969, %v6345
        %v6538 = vmul.f32 %v1972, %v6346
        %v6539 = vmul.f32 %v1974, %v6347
        %v6540 = vmul.f32 %v1977, %v6348
        %v6541 = vmul.f32 %v1979, %v6349
        %v6542 = vmul.f32 %v1982, %v6350
        %v6543 = vmul.f32 %v1984, %v6351
        %v6544 = vmul.f32 %v1987, %v6352
        %v6545 = vmul.f32 %v1989, %v6353
        %v6546 = vmul.f32 %v1992, %v6354
        %v6547 = vmul.f32 %v1994, %v6355
        %v6548 = vmul.f32 %v1997, %v6356
        %v6549 = vmul.f32 %v1999, %v6357
        %v6550 = vmul.f32 %v2002, %v6358
        %v6551 = vmul.f32 %v2004, %v6359
        %v6552 = vmul.f32 %v2007, %v6360
        %v6553 = vmul.f32 %v2009, %v6361
        %v6554 = vmul.f32 %v2012, %v6362
        %v6555 = vmul.f32 %v2014, %v6363
        %v6556 = vmul.f32 %v2017, %v6364
        %v6557 = vmul.f32 %v2019, %v6365
        %v6558 = vmul.f32 %v2022, %v6366
        %v6559 = vmul.f32 %v2024, %v6367
        %v6560 = vmul.f32 %v2027, %v6368
        %v6561 = vmul.f32 %v2029, %v6369
        %v6562 = vmul.f32 %v2032, %v6370
        %v6563 = vmul.f32 %v2034, %v6371
        %v6564 = vmul.f32 %v2037, %v6372
        %v6565 = vmul.f32 %v2039, %v6373
        %v6566 = vmul.f32 %v2042, %v6374
        %v6567 = vmul.f32 %v2044, %v6375
        %v6568 = vmul.f32 %v2047, %v6376
        %v6569 = vmul.f32 %v2049, %v6377
        %v6570 = vmul.f32 %v2052, %v6378
        %v6571 = vmul.f32 %v2054, %v6379
        %v6572 = vmul.f32 %v2057, %v6380
        %v6573 = vmul.f32 %v2059, %v6381
        %v6574 = vmul.f32 %v2062, %v6382
        %v6575 = vmul.f32 %v2064, %v6383
        %v6576 = vmul.f32 %v2067, %v6384
        %v6577 = vmul.f32 %v2069, %v6385
        %v6578 = vmul.f32 %v2072, %v6386
        %v6579 = vmul.f32 %v2074, %v6387
        %v6580 = vmul.f32 %v2077, %v6388
        %v6581 = vmul.f32 %v2079, %v6389
        %v6582 = vmul.f32 %v2082, %v6390
        %v6583 = vmul.f32 %v2084, %v6391
        %v6584 = vmul.f32 %v2087, %v6392
        %v6585 = vmul.f32 %v2089, %v6393
        %v6586 = vmul.f32 %v2092, %v6394
        %v6587 = vmul.f32 %v2094, %v6395
        %v6588 = vmul.f32 %v2097, %v6396
        %v6589 = vmul.f32 %v2099, %v6397
        %v6590 = vmul.f32 %v2102, %v6398
        %v6591 = vmul.f32 %v2104, %v6399
        %v6592 = vmul.f32 %v2107, %v6400
        %v6593 = vmul.f32 %v2109, %v6401
        %v6594 = vmul.f32 %v2112, %v6402
        %v6595 = vmul.f32 %v2114, %v6403
        %v6596 = vmul.f32 %v2117, %v6404
        %v6597 = vmul.f32 %v2119, %v6405
        %v6598 = vmul.f32 %v2371, %v6342
        %v6599 = vmul.f32 %v2373, %v6343
        %v6600 = vmul.f32 %v2376, %v6344
        %v6601 = vmul.f32 %v2378, %v6345
        %v6602 = vmul.f32 %v2381, %v6346
        %v6603 = vmul.f32 %v2383, %v6347
        %v6604 = vmul.f32 %v2386, %v6348
        %v6605 = vmul.f32 %v2388, %v6349
        %v6606 = vmul.f32 %v2391, %v6350
        %v6607 = vmul.f32 %v2393, %v6351
        %v6608 = vmul.f32 %v2396, %v6352
        %v6609 = vmul.f32 %v2398, %v6353
        %v6610 = vmul.f32 %v2401, %v6354
        %v6611 = vmul.f32 %v2403, %v6355
        %v6612 = vmul.f32 %v2406, %v6356
        %v6613 = vmul.f32 %v2408, %v6357
        %v6614 = vmul.f32 %v2411, %v6358
        %v6615 = vmul.f32 %v2413, %v6359
        %v6616 = vmul.f32 %v2416, %v6360
        %v6617 = vmul.f32 %v2418, %v6361
        %v6618 = vmul.f32 %v2421, %v6362
        %v6619 = vmul.f32 %v2423, %v6363
        %v6620 = vmul.f32 %v2426, %v6364
        %v6621 = vmul.f32 %v2428, %v6365
        %v6622 = vmul.f32 %v2431, %v6366
        %v6623 = vmul.f32 %v2433, %v6367
        %v6624 = vmul.f32 %v2436, %v6368
        %v6625 = vmul.f32 %v2438, %v6369
        %v6626 = vmul.f32 %v2441, %v6370
        %v6627 = vmul.f32 %v2443, %v6371
        %v6628 = vmul.f32 %v2446, %v6372
        %v6629 = vmul.f32 %v2448, %v6373
        %v6630 = vmul.f32 %v2451, %v6374
        %v6631 = vmul.f32 %v2453, %v6375
        %v6632 = vmul.f32 %v2456, %v6376
        %v6633 = vmul.f32 %v2458, %v6377
        %v6634 = vmul.f32 %v2461, %v6378
        %v6635 = vmul.f32 %v2463, %v6379
        %v6636 = vmul.f32 %v2466, %v6380
        %v6637 = vmul.f32 %v2468, %v6381
        %v6638 = vmul.f32 %v2471, %v6382
        %v6639 = vmul.f32 %v2473, %v6383
        %v6640 = vmul.f32 %v2476, %v6384
        %v6641 = vmul.f32 %v2478, %v6385
        %v6642 = vmul.f32 %v2481, %v6386
        %v6643 = vmul.f32 %v2483, %v6387
        %v6644 = vmul.f32 %v2486, %v6388
        %v6645 = vmul.f32 %v2488, %v6389
        %v6646 = vmul.f32 %v2491, %v6390
        %v6647 = vmul.f32 %v2493, %v6391
        %v6648 = vmul.f32 %v2496, %v6392
        %v6649 = vmul.f32 %v2498, %v6393
        %v6650 = vmul.f32 %v2501, %v6394
        %v6651 = vmul.f32 %v2503, %v6395
        %v6652 = vmul.f32 %v2506, %v6396
        %v6653 = vmul.f32 %v2508, %v6397
        %v6654 = vmul.f32 %v2511, %v6398
        %v6655 = vmul.f32 %v2513, %v6399
        %v6656 = vmul.f32 %v2516, %v6400
        %v6657 = vmul.f32 %v2518, %v6401
        %v6658 = vmul.f32 %v2521, %v6402
        %v6659 = vmul.f32 %v2523, %v6403
        %v6660 = vmul.f32 %v2526, %v6404
        %v6661 = vmul.f32 %v2528, %v6405
        %v6662 = vmul.f32 %v2780, %v6342
        %v6663 = vmul.f32 %v2782, %v6343
        %v6664 = vmul.f32 %v2785, %v6344
        %v6665 = vmul.f32 %v2787, %v6345
        %v6666 = vmul.f32 %v2790, %v6346
        %v6667 = vmul.f32 %v2792, %v6347
        %v6668 = vmul.f32 %v2795, %v6348
        %v6669 = vmul.f32 %v2797, %v6349
        %v6670 = vmul.f32 %v2800, %v6350
        %v6671 = vmul.f32 %v2802, %v6351
        %v6672 = vmul.f32 %v2805, %v6352
        %v6673 = vmul.f32 %v2807, %v6353
        %v6674 = vmul.f32 %v2810, %v6354
        %v6675 = vmul.f32 %v2812, %v6355
        %v6676 = vmul.f32 %v2815, %v6356
        %v6677 = vmul.f32 %v2817, %v6357
        %v6678 = vmul.f32 %v2820, %v6358
        %v6679 = vmul.f32 %v2822, %v6359
        %v6680 = vmul.f32 %v2825, %v6360
        %v6681 = vmul.f32 %v2827, %v6361
        %v6682 = vmul.f32 %v2830, %v6362
        %v6683 = vmul.f32 %v2832, %v6363
        %v6684 = vmul.f32 %v2835, %v6364
        %v6685 = vmul.f32 %v2837, %v6365
        %v6686 = vmul.f32 %v2840, %v6366
        %v6687 = vmul.f32 %v2842, %v6367
        %v6688 = vmul.f32 %v2845, %v6368
        %v6689 = vmul.f32 %v2847, %v6369
        %v6690 = vmul.f32 %v2850, %v6370
        %v6691 = vmul.f32 %v2852, %v6371
        %v6692 = vmul.f32 %v2855, %v6372
        %v6693 = vmul.f32 %v2857, %v6373
        %v6694 = vmul.f32 %v2860, %v6374
        %v6695 = vmul.f32 %v2862, %v6375
        %v6696 = vmul.f32 %v2865, %v6376
        %v6697 = vmul.f32 %v2867, %v6377
        %v6698 = vmul.f32 %v2870, %v6378
        %v6699 = vmul.f32 %v2872, %v6379
        %v6700 = vmul.f32 %v2875, %v6380
        %v6701 = vmul.f32 %v2877, %v6381
        %v6702 = vmul.f32 %v2880, %v6382
        %v6703 = vmul.f32 %v2882, %v6383
        %v6704 = vmul.f32 %v2885, %v6384
        %v6705 = vmul.f32 %v2887, %v6385
        %v6706 = vmul.f32 %v2890, %v6386
        %v6707 = vmul.f32 %v2892, %v6387
        %v6708 = vmul.f32 %v2895, %v6388
        %v6709 = vmul.f32 %v2897, %v6389
        %v6710 = vmul.f32 %v2900, %v6390
        %v6711 = vmul.f32 %v2902, %v6391
        %v6712 = vmul.f32 %v2905, %v6392
        %v6713 = vmul.f32 %v2907, %v6393
        %v6714 = vmul.f32 %v2910, %v6394
        %v6715 = vmul.f32 %v2912, %v6395
        %v6716 = vmul.f32 %v2915, %v6396
        %v6717 = vmul.f32 %v2917, %v6397
        %v6718 = vmul.f32 %v2920, %v6398
        %v6719 = vmul.f32 %v2922, %v6399
        %v6720 = vmul.f32 %v2925, %v6400
        %v6721 = vmul.f32 %v2927, %v6401
        %v6722 = vmul.f32 %v2930, %v6402
        %v6723 = vmul.f32 %v2932, %v6403
        %v6724 = vmul.f32 %v2935, %v6404
        %v6725 = vmul.f32 %v2937, %v6405
        %v6726 = vmul.f32 %v3189, %v6342
        %v6727 = vmul.f32 %v3191, %v6343
        %v6728 = vmul.f32 %v3194, %v6344
        %v6729 = vmul.f32 %v3196, %v6345
        %v6730 = vmul.f32 %v3199, %v6346
        %v6731 = vmul.f32 %v3201, %v6347
        %v6732 = vmul.f32 %v3204, %v6348
        %v6733 = vmul.f32 %v3206, %v6349
        %v6734 = vmul.f32 %v3209, %v6350
        %v6735 = vmul.f32 %v3211, %v6351
        %v6736 = vmul.f32 %v3214, %v6352
        %v6737 = vmul.f32 %v3216, %v6353
        %v6738 = vmul.f32 %v3219, %v6354
        %v6739 = vmul.f32 %v3221, %v6355
        %v6740 = vmul.f32 %v3224, %v6356
        %v6741 = vmul.f32 %v3226, %v6357
        %v6742 = vmul.f32 %v3229, %v6358
        %v6743 = vmul.f32 %v3231, %v6359
        %v6744 = vmul.f32 %v3234, %v6360
        %v6745 = vmul.f32 %v3236, %v6361
        %v6746 = vmul.f32 %v3239, %v6362
        %v6747 = vmul.f32 %v3241, %v6363
        %v6748 = vmul.f32 %v3244, %v6364
        %v6749 = vmul.f32 %v3246, %v6365
        %v6750 = vmul.f32 %v3249, %v6366
        %v6751 = vmul.f32 %v3251, %v6367
        %v6752 = vmul.f32 %v3254, %v6368
        %v6753 = vmul.f32 %v3256, %v6369
        %v6754 = vmul.f32 %v3259, %v6370
        %v6755 = vmul.f32 %v3261, %v6371
        %v6756 = vmul.f32 %v3264, %v6372
        %v6757 = vmul.f32 %v3266, %v6373
        %v6758 = vmul.f32 %v3269, %v6374
        %v6759 = vmul.f32 %v3271, %v6375
        %v6760 = vmul.f32 %v3274, %v6376
        %v6761 = vmul.f32 %v3276, %v6377
        %v6762 = vmul.f32 %v3279, %v6378
        %v6763 = vmul.f32 %v3281, %v6379
        %v6764 = vmul.f32 %v3284, %v6380
        %v6765 = vmul.f32 %v3286, %v6381
        %v6766 = vmul.f32 %v3289, %v6382
        %v6767 = vmul.f32 %v3291, %v6383
        %v6768 = vmul.f32 %v3294, %v6384
        %v6769 = vmul.f32 %v3296, %v6385
        %v6770 = vmul.f32 %v3299, %v6386
        %v6771 = vmul.f32 %v3301, %v6387
        %v6772 = vmul.f32 %v3304, %v6388
        %v6773 = vmul.f32 %v3306, %v6389
        %v6774 = vmul.f32 %v3309, %v6390
        %v6775 = vmul.f32 %v3311, %v6391
        %v6776 = vmul.f32 %v3314, %v6392
        %v6777 = vmul.f32 %v3316, %v6393
        %v6778 = vmul.f32 %v3319, %v6394
        %v6779 = vmul.f32 %v3321, %v6395
        %v6780 = vmul.f32 %v3324, %v6396
        %v6781 = vmul.f32 %v3326, %v6397
        %v6782 = vmul.f32 %v3329, %v6398
        %v6783 = vmul.f32 %v3331, %v6399
        %v6784 = vmul.f32 %v3334, %v6400
        %v6785 = vmul.f32 %v3336, %v6401
        %v6786 = vmul.f32 %v3339, %v6402
        %v6787 = vmul.f32 %v3341, %v6403
        %v6788 = vmul.f32 %v3344, %v6404
        %v6789 = vmul.f32 %v3346, %v6405
        %v6790 = vmul.f32 %v3598, %v6342
        %v6791 = vmul.f32 %v3600, %v6343
        %v6792 = vmul.f32 %v3603, %v6344
        %v6793 = vmul.f32 %v3605, %v6345
        %v6794 = vmul.f32 %v3608, %v6346
        %v6795 = vmul.f32 %v3610, %v6347
        %v6796 = vmul.f32 %v3613, %v6348
        %v6797 = vmul.f32 %v3615, %v6349
        %v6798 = vmul.f32 %v3618, %v6350
        %v6799 = vmul.f32 %v3620, %v6351
        %v6800 = vmul.f32 %v3623, %v6352
        %v6801 = vmul.f32 %v3625, %v6353
        %v6802 = vmul.f32 %v3628, %v6354
        %v6803 = vmul.f32 %v3630, %v6355
        %v6804 = vmul.f32 %v3633, %v6356
        %v6805 = vmul.f32 %v3635, %v6357
        %v6806 = vmul.f32 %v3638, %v6358
        %v6807 = vmul.f32 %v3640, %v6359
        %v6808 = vmul.f32 %v3643, %v6360
        %v6809 = vmul.f32 %v3645, %v6361
        %v6810 = vmul.f32 %v3648, %v6362
        %v6811 = vmul.f32 %v3650, %v6363
        %v6812 = vmul.f32 %v3653, %v6364
        %v6813 = vmul.f32 %v3655, %v6365
        %v6814 = vmul.f32 %v3658, %v6366
        %v6815 = vmul.f32 %v3660, %v6367
        %v6816 = vmul.f32 %v3663, %v6368
        %v6817 = vmul.f32 %v3665, %v6369
        %v6818 = vmul.f32 %v3668, %v6370
        %v6819 = vmul.f32 %v3670, %v6371
        %v6820 = vmul.f32 %v3673, %v6372
        %v6821 = vmul.f32 %v3675, %v6373
        %v6822 = vmul.f32 %v3678, %v6374
        %v6823 = vmul.f32 %v3680, %v6375
        %v6824 = vmul.f32 %v3683, %v6376
        %v6825 = vmul.f32 %v3685, %v6377
        %v6826 = vmul.f32 %v3688, %v6378
        %v6827 = vmul.f32 %v3690, %v6379
        %v6828 = vmul.f32 %v3693, %v6380
        %v6829 = vmul.f32 %v3695, %v6381
        %v6830 = vmul.f32 %v3698, %v6382
        %v6831 = vmul.f32 %v3700, %v6383
        %v6832 = vmul.f32 %v3703, %v6384
        %v6833 = vmul.f32 %v3705, %v6385
        %v6834 = vmul.f32 %v3708, %v6386
        %v6835 = vmul.f32 %v3710, %v6387
        %v6836 = vmul.f32 %v3713, %v6388
        %v6837 = vmul.f32 %v3715, %v6389
        %v6838 = vmul.f32 %v3718, %v6390
        %v6839 = vmul.f32 %v3720, %v6391
        %v6840 = vmul.f32 %v3723, %v6392
        %v6841 = vmul.f32 %v3725, %v6393
        %v6842 = vmul.f32 %v3728, %v6394
        %v6843 = vmul.f32 %v3730, %v6395
        %v6844 = vmul.f32 %v3733, %v6396
        %v6845 = vmul.f32 %v3735, %v6397
        %v6846 = vmul.f32 %v3738, %v6398
        %v6847 = vmul.f32 %v3740, %v6399
        %v6848 = vmul.f32 %v3743, %v6400
        %v6849 = vmul.f32 %v3745, %v6401
        %v6850 = vmul.f32 %v3748, %v6402
        %v6851 = vmul.f32 %v3750, %v6403
        %v6852 = vmul.f32 %v3753, %v6404
        %v6853 = vmul.f32 %v3755, %v6405
        %v6854 = vmul.f32 %v4007, %v6342
        %v6855 = vmul.f32 %v4009, %v6343
        %v6856 = vmul.f32 %v4012, %v6344
        %v6857 = vmul.f32 %v4014, %v6345
        %v6858 = vmul.f32 %v4017, %v6346
        %v6859 = vmul.f32 %v4019, %v6347
        %v6860 = vmul.f32 %v4022, %v6348
        %v6861 = vmul.f32 %v4024, %v6349
        %v6862 = vmul.f32 %v4027, %v6350
        %v6863 = vmul.f32 %v4029, %v6351
        %v6864 = vmul.f32 %v4032, %v6352
        %v6865 = vmul.f32 %v4034, %v6353
        %v6866 = vmul.f32 %v4037, %v6354
        %v6867 = vmul.f32 %v4039, %v6355
        %v6868 = vmul.f32 %v4042, %v6356
        %v6869 = vmul.f32 %v4044, %v6357
        %v6870 = vmul.f32 %v4047, %v6358
        %v6871 = vmul.f32 %v4049, %v6359
        %v6872 = vmul.f32 %v4052, %v6360
        %v6873 = vmul.f32 %v4054, %v6361
        %v6874 = vmul.f32 %v4057, %v6362
        %v6875 = vmul.f32 %v4059, %v6363
        %v6876 = vmul.f32 %v4062, %v6364
        %v6877 = vmul.f32 %v4064, %v6365
        %v6878 = vmul.f32 %v4067, %v6366
        %v6879 = vmul.f32 %v4069, %v6367
        %v6880 = vmul.f32 %v4072, %v6368
        %v6881 = vmul.f32 %v4074, %v6369
        %v6882 = vmul.f32 %v4077, %v6370
        %v6883 = vmul.f32 %v4079, %v6371
        %v6884 = vmul.f32 %v4082, %v6372
        %v6885 = vmul.f32 %v4084, %v6373
        %v6886 = vmul.f32 %v4087, %v6374
        %v6887 = vmul.f32 %v4089, %v6375
        %v6888 = vmul.f32 %v4092, %v6376
        %v6889 = vmul.f32 %v4094, %v6377
        %v6890 = vmul.f32 %v4097, %v6378
        %v6891 = vmul.f32 %v4099, %v6379
        %v6892 = vmul.f32 %v4102, %v6380
        %v6893 = vmul.f32 %v4104, %v6381
        %v6894 = vmul.f32 %v4107, %v6382
        %v6895 = vmul.f32 %v4109, %v6383
        %v6896 = vmul.f32 %v4112, %v6384
        %v6897 = vmul.f32 %v4114, %v6385
        %v6898 = vmul.f32 %v4117, %v6386
        %v6899 = vmul.f32 %v4119, %v6387
        %v6900 = vmul.f32 %v4122, %v6388
        %v6901 = vmul.f32 %v4124, %v6389
        %v6902 = vmul.f32 %v4127, %v6390
        %v6903 = vmul.f32 %v4129, %v6391
        %v6904 = vmul.f32 %v4132, %v6392
        %v6905 = vmul.f32 %v4134, %v6393
        %v6906 = vmul.f32 %v4137, %v6394
        %v6907 = vmul.f32 %v4139, %v6395
        %v6908 = vmul.f32 %v4142, %v6396
        %v6909 = vmul.f32 %v4144, %v6397
        %v6910 = vmul.f32 %v4147, %v6398
        %v6911 = vmul.f32 %v4149, %v6399
        %v6912 = vmul.f32 %v4152, %v6400
        %v6913 = vmul.f32 %v4154, %v6401
        %v6914 = vmul.f32 %v4157, %v6402
        %v6915 = vmul.f32 %v4159, %v6403
        %v6916 = vmul.f32 %v4162, %v6404
        %v6917 = vmul.f32 %v4164, %v6405
        %6918 = vadd.xlane.f32.xlu0 %v6406
        %v6919 = vpop.xlane.xlu0 %6918
        %6920 = vadd.xlane.f32.xlu0 %v6407
        %v6921 = vpop.xlane.xlu0 %6920
        %6922 = vadd.xlane.f32.xlu0 %v6408
        %v6923 = vpop.xlane.xlu0 %6922
        %6924 = vadd.xlane.f32.xlu0 %v6409
        %v6925 = vpop.xlane.xlu0 %6924
        %6926 = vadd.xlane.f32.xlu0 %v6410
        %v6927 = vpop.xlane.xlu0 %6926
        %6928 = vadd.xlane.f32.xlu0 %v6411
        %v6929 = vpop.xlane.xlu0 %6928
        %6930 = vadd.xlane.f32.xlu0 %v6412
        %v6931 = vpop.xlane.xlu0 %6930
        %6932 = vadd.xlane.f32.xlu0 %v6413
        %v6933 = vpop.xlane.xlu0 %6932
        %6934 = vadd.xlane.f32.xlu0 %v6414
        %v6935 = vpop.xlane.xlu0 %6934
        %6936 = vadd.xlane.f32.xlu0 %v6415
        %v6937 = vpop.xlane.xlu0 %6936
        %6938 = vadd.xlane.f32.xlu0 %v6416
        %v6939 = vpop.xlane.xlu0 %6938
        %6940 = vadd.xlane.f32.xlu0 %v6417
        %v6941 = vpop.xlane.xlu0 %6940
        %6942 = vadd.xlane.f32.xlu0 %v6418
        %v6943 = vpop.xlane.xlu0 %6942
        %6944 = vadd.xlane.f32.xlu0 %v6419
        %v6945 = vpop.xlane.xlu0 %6944
        %6946 = vadd.xlane.f32.xlu0 %v6420
        %v6947 = vpop.xlane.xlu0 %6946
        %6948 = vadd.xlane.f32.xlu0 %v6421
        %v6949 = vpop.xlane.xlu0 %6948
        %6950 = vadd.xlane.f32.xlu0 %v6422
        %v6951 = vpop.xlane.xlu0 %6950
        %6952 = vadd.xlane.f32.xlu0 %v6423
        %v6953 = vpop.xlane.xlu0 %6952
        %6954 = vadd.xlane.f32.xlu0 %v6424
        %v6955 = vpop.xlane.xlu0 %6954
        %6956 = vadd.xlane.f32.xlu0 %v6425
        %v6957 = vpop.xlane.xlu0 %6956
        %6958 = vadd.xlane.f32.xlu0 %v6426
        %v6959 = vpop.xlane.xlu0 %6958
        %6960 = vadd.xlane.f32.xlu0 %v6427
        %v6961 = vpop.xlane.xlu0 %6960
        %6962 = vadd.xlane.f32.xlu0 %v6428
        %v6963 = vpop.xlane.xlu0 %6962
        %6964 = vadd.xlane.f32.xlu0 %v6429
        %v6965 = vpop.xlane.xlu0 %6964
        %6966 = vadd.xlane.f32.xlu0 %v6430
        %v6967 = vpop.xlane.xlu0 %6966
        %6968 = vadd.xlane.f32.xlu0 %v6431
        %v6969 = vpop.xlane.xlu0 %6968
        %6970 = vadd.xlane.f32.xlu0 %v6432
        %v6971 = vpop.xlane.xlu0 %6970
        %6972 = vadd.xlane.f32.xlu0 %v6433
        %v6973 = vpop.xlane.xlu0 %6972
        %6974 = vadd.xlane.f32.xlu0 %v6434
        %v6975 = vpop.xlane.xlu0 %6974
        %6976 = vadd.xlane.f32.xlu0 %v6435
        %v6977 = vpop.xlane.xlu0 %6976
        %6978 = vadd.xlane.f32.xlu0 %v6436
        %v6979 = vpop.xlane.xlu0 %6978
        %6980 = vadd.xlane.f32.xlu0 %v6437
        %v6981 = vpop.xlane.xlu0 %6980
        %6982 = vadd.xlane.f32.xlu0 %v6438
        %v6983 = vpop.xlane.xlu0 %6982
        %6984 = vadd.xlane.f32.xlu0 %v6439
        %v6985 = vpop.xlane.xlu0 %6984
        %6986 = vadd.xlane.f32.xlu0 %v6440
        %v6987 = vpop.xlane.xlu0 %6986
        %6988 = vadd.xlane.f32.xlu0 %v6441
        %v6989 = vpop.xlane.xlu0 %6988
        %6990 = vadd.xlane.f32.xlu0 %v6442
        %v6991 = vpop.xlane.xlu0 %6990
        %6992 = vadd.xlane.f32.xlu0 %v6443
        %v6993 = vpop.xlane.xlu0 %6992
        %6994 = vadd.xlane.f32.xlu0 %v6444
        %v6995 = vpop.xlane.xlu0 %6994
        %6996 = vadd.xlane.f32.xlu0 %v6445
        %v6997 = vpop.xlane.xlu0 %6996
        %6998 = vadd.xlane.f32.xlu0 %v6446
        %v6999 = vpop.xlane.xlu0 %6998
        %7000 = vadd.xlane.f32.xlu0 %v6447
        %v7001 = vpop.xlane.xlu0 %7000
        %7002 = vadd.xlane.f32.xlu0 %v6448
        %v7003 = vpop.xlane.xlu0 %7002
        %7004 = vadd.xlane.f32.xlu0 %v6449
        %v7005 = vpop.xlane.xlu0 %7004
        %7006 = vadd.xlane.f32.xlu0 %v6450
        %v7007 = vpop.xlane.xlu0 %7006
        %7008 = vadd.xlane.f32.xlu0 %v6451
        %v7009 = vpop.xlane.xlu0 %7008
        %7010 = vadd.xlane.f32.xlu0 %v6452
        %v7011 = vpop.xlane.xlu0 %7010
        %7012 = vadd.xlane.f32.xlu0 %v6453
        %v7013 = vpop.xlane.xlu0 %7012
        %7014 = vadd.xlane.f32.xlu0 %v6454
        %v7015 = vpop.xlane.xlu0 %7014
        %7016 = vadd.xlane.f32.xlu0 %v6455
        %v7017 = vpop.xlane.xlu0 %7016
        %7018 = vadd.xlane.f32.xlu0 %v6456
        %v7019 = vpop.xlane.xlu0 %7018
        %7020 = vadd.xlane.f32.xlu0 %v6457
        %v7021 = vpop.xlane.xlu0 %7020
        %7022 = vadd.xlane.f32.xlu0 %v6458
        %v7023 = vpop.xlane.xlu0 %7022
        %7024 = vadd.xlane.f32.xlu0 %v6459
        %v7025 = vpop.xlane.xlu0 %7024
        %7026 = vadd.xlane.f32.xlu0 %v6460
        %v7027 = vpop.xlane.xlu0 %7026
        %7028 = vadd.xlane.f32.xlu0 %v6461
        %v7029 = vpop.xlane.xlu0 %7028
        %7030 = vadd.xlane.f32.xlu0 %v6462
        %v7031 = vpop.xlane.xlu0 %7030
        %7032 = vadd.xlane.f32.xlu0 %v6463
        %v7033 = vpop.xlane.xlu0 %7032
        %7034 = vadd.xlane.f32.xlu0 %v6464
        %v7035 = vpop.xlane.xlu0 %7034
        %7036 = vadd.xlane.f32.xlu0 %v6465
        %v7037 = vpop.xlane.xlu0 %7036
        %7038 = vadd.xlane.f32.xlu0 %v6466
        %v7039 = vpop.xlane.xlu0 %7038
        %7040 = vadd.xlane.f32.xlu0 %v6467
        %v7041 = vpop.xlane.xlu0 %7040
        %7042 = vadd.xlane.f32.xlu0 %v6468
        %v7043 = vpop.xlane.xlu0 %7042
        %7044 = vadd.xlane.f32.xlu0 %v6469
        %v7045 = vpop.xlane.xlu0 %7044
        %7046 = vadd.xlane.f32.xlu0 %v6470
        %v7047 = vpop.xlane.xlu0 %7046
        %7048 = vadd.xlane.f32.xlu0 %v6471
        %v7049 = vpop.xlane.xlu0 %7048
        %7050 = vadd.xlane.f32.xlu0 %v6472
        %v7051 = vpop.xlane.xlu0 %7050
        %7052 = vadd.xlane.f32.xlu0 %v6473
        %v7053 = vpop.xlane.xlu0 %7052
        %7054 = vadd.xlane.f32.xlu0 %v6474
        %v7055 = vpop.xlane.xlu0 %7054
        %7056 = vadd.xlane.f32.xlu0 %v6475
        %v7057 = vpop.xlane.xlu0 %7056
        %7058 = vadd.xlane.f32.xlu0 %v6476
        %v7059 = vpop.xlane.xlu0 %7058
        %7060 = vadd.xlane.f32.xlu0 %v6477
        %v7061 = vpop.xlane.xlu0 %7060
        %7062 = vadd.xlane.f32.xlu0 %v6478
        %v7063 = vpop.xlane.xlu0 %7062
        %7064 = vadd.xlane.f32.xlu0 %v6479
        %v7065 = vpop.xlane.xlu0 %7064
        %7066 = vadd.xlane.f32.xlu0 %v6480
        %v7067 = vpop.xlane.xlu0 %7066
        %7068 = vadd.xlane.f32.xlu0 %v6481
        %v7069 = vpop.xlane.xlu0 %7068
        %7070 = vadd.xlane.f32.xlu0 %v6482
        %v7071 = vpop.xlane.xlu0 %7070
        %7072 = vadd.xlane.f32.xlu0 %v6483
        %v7073 = vpop.xlane.xlu0 %7072
        %7074 = vadd.xlane.f32.xlu0 %v6484
        %v7075 = vpop.xlane.xlu0 %7074
        %7076 = vadd.xlane.f32.xlu0 %v6485
        %v7077 = vpop.xlane.xlu0 %7076
        %7078 = vadd.xlane.f32.xlu0 %v6486
        %v7079 = vpop.xlane.xlu0 %7078
        %7080 = vadd.xlane.f32.xlu0 %v6487
        %v7081 = vpop.xlane.xlu0 %7080
        %7082 = vadd.xlane.f32.xlu0 %v6488
        %v7083 = vpop.xlane.xlu0 %7082
        %7084 = vadd.xlane.f32.xlu0 %v6489
        %v7085 = vpop.xlane.xlu0 %7084
        %7086 = vadd.xlane.f32.xlu0 %v6490
        %v7087 = vpop.xlane.xlu0 %7086
        %7088 = vadd.xlane.f32.xlu0 %v6491
        %v7089 = vpop.xlane.xlu0 %7088
        %7090 = vadd.xlane.f32.xlu0 %v6492
        %v7091 = vpop.xlane.xlu0 %7090
        %7092 = vadd.xlane.f32.xlu0 %v6493
        %v7093 = vpop.xlane.xlu0 %7092
        %7094 = vadd.xlane.f32.xlu0 %v6494
        %v7095 = vpop.xlane.xlu0 %7094
        %7096 = vadd.xlane.f32.xlu0 %v6495
        %v7097 = vpop.xlane.xlu0 %7096
        %7098 = vadd.xlane.f32.xlu0 %v6496
        %v7099 = vpop.xlane.xlu0 %7098
        %7100 = vadd.xlane.f32.xlu0 %v6497
        %v7101 = vpop.xlane.xlu0 %7100
        %7102 = vadd.xlane.f32.xlu0 %v6498
        %v7103 = vpop.xlane.xlu0 %7102
        %7104 = vadd.xlane.f32.xlu0 %v6499
        %v7105 = vpop.xlane.xlu0 %7104
        %7106 = vadd.xlane.f32.xlu0 %v6500
        %v7107 = vpop.xlane.xlu0 %7106
        %7108 = vadd.xlane.f32.xlu0 %v6501
        %v7109 = vpop.xlane.xlu0 %7108
        %7110 = vadd.xlane.f32.xlu0 %v6502
        %v7111 = vpop.xlane.xlu0 %7110
        %7112 = vadd.xlane.f32.xlu0 %v6503
        %v7113 = vpop.xlane.xlu0 %7112
        %7114 = vadd.xlane.f32.xlu0 %v6504
        %v7115 = vpop.xlane.xlu0 %7114
        %7116 = vadd.xlane.f32.xlu0 %v6505
        %v7117 = vpop.xlane.xlu0 %7116
        %7118 = vadd.xlane.f32.xlu0 %v6506
        %v7119 = vpop.xlane.xlu0 %7118
        %7120 = vadd.xlane.f32.xlu0 %v6507
        %v7121 = vpop.xlane.xlu0 %7120
        %7122 = vadd.xlane.f32.xlu0 %v6508
        %v7123 = vpop.xlane.xlu0 %7122
        %7124 = vadd.xlane.f32.xlu0 %v6509
        %v7125 = vpop.xlane.xlu0 %7124
        %7126 = vadd.xlane.f32.xlu0 %v6510
        %v7127 = vpop.xlane.xlu0 %7126
        %7128 = vadd.xlane.f32.xlu0 %v6511
        %v7129 = vpop.xlane.xlu0 %7128
        %7130 = vadd.xlane.f32.xlu0 %v6512
        %v7131 = vpop.xlane.xlu0 %7130
        %7132 = vadd.xlane.f32.xlu0 %v6513
        %v7133 = vpop.xlane.xlu0 %7132
        %7134 = vadd.xlane.f32.xlu0 %v6514
        %v7135 = vpop.xlane.xlu0 %7134
        %7136 = vadd.xlane.f32.xlu0 %v6515
        %v7137 = vpop.xlane.xlu0 %7136
        %7138 = vadd.xlane.f32.xlu0 %v6516
        %v7139 = vpop.xlane.xlu0 %7138
        %7140 = vadd.xlane.f32.xlu0 %v6517
        %v7141 = vpop.xlane.xlu0 %7140
        %7142 = vadd.xlane.f32.xlu0 %v6518
        %v7143 = vpop.xlane.xlu0 %7142
        %7144 = vadd.xlane.f32.xlu0 %v6519
        %v7145 = vpop.xlane.xlu0 %7144
        %7146 = vadd.xlane.f32.xlu0 %v6520
        %v7147 = vpop.xlane.xlu0 %7146
        %7148 = vadd.xlane.f32.xlu0 %v6521
        %v7149 = vpop.xlane.xlu0 %7148
        %7150 = vadd.xlane.f32.xlu0 %v6522
        %v7151 = vpop.xlane.xlu0 %7150
        %7152 = vadd.xlane.f32.xlu0 %v6523
        %v7153 = vpop.xlane.xlu0 %7152
        %7154 = vadd.xlane.f32.xlu0 %v6524
        %v7155 = vpop.xlane.xlu0 %7154
        %7156 = vadd.xlane.f32.xlu0 %v6525
        %v7157 = vpop.xlane.xlu0 %7156
        %7158 = vadd.xlane.f32.xlu0 %v6526
        %v7159 = vpop.xlane.xlu0 %7158
        %7160 = vadd.xlane.f32.xlu0 %v6527
        %v7161 = vpop.xlane.xlu0 %7160
        %7162 = vadd.xlane.f32.xlu0 %v6528
        %v7163 = vpop.xlane.xlu0 %7162
        %7164 = vadd.xlane.f32.xlu0 %v6529
        %v7165 = vpop.xlane.xlu0 %7164
        %7166 = vadd.xlane.f32.xlu0 %v6530
        %v7167 = vpop.xlane.xlu0 %7166
        %7168 = vadd.xlane.f32.xlu0 %v6531
        %v7169 = vpop.xlane.xlu0 %7168
        %7170 = vadd.xlane.f32.xlu0 %v6532
        %v7171 = vpop.xlane.xlu0 %7170
        %7172 = vadd.xlane.f32.xlu0 %v6533
        %v7173 = vpop.xlane.xlu0 %7172
        %7174 = vadd.xlane.f32.xlu0 %v6534
        %v7175 = vpop.xlane.xlu0 %7174
        %7176 = vadd.xlane.f32.xlu0 %v6535
        %v7177 = vpop.xlane.xlu0 %7176
        %7178 = vadd.xlane.f32.xlu0 %v6536
        %v7179 = vpop.xlane.xlu0 %7178
        %7180 = vadd.xlane.f32.xlu0 %v6537
        %v7181 = vpop.xlane.xlu0 %7180
        %7182 = vadd.xlane.f32.xlu0 %v6538
        %v7183 = vpop.xlane.xlu0 %7182
        %7184 = vadd.xlane.f32.xlu0 %v6539
        %v7185 = vpop.xlane.xlu0 %7184
        %7186 = vadd.xlane.f32.xlu0 %v6540
        %v7187 = vpop.xlane.xlu0 %7186
        %7188 = vadd.xlane.f32.xlu0 %v6541
        %v7189 = vpop.xlane.xlu0 %7188
        %7190 = vadd.xlane.f32.xlu0 %v6542
        %v7191 = vpop.xlane.xlu0 %7190
        %7192 = vadd.xlane.f32.xlu0 %v6543
        %v7193 = vpop.xlane.xlu0 %7192
        %7194 = vadd.xlane.f32.xlu0 %v6544
        %v7195 = vpop.xlane.xlu0 %7194
        %7196 = vadd.xlane.f32.xlu0 %v6545
        %v7197 = vpop.xlane.xlu0 %7196
        %7198 = vadd.xlane.f32.xlu0 %v6546
        %v7199 = vpop.xlane.xlu0 %7198
        %7200 = vadd.xlane.f32.xlu0 %v6547
        %v7201 = vpop.xlane.xlu0 %7200
        %7202 = vadd.xlane.f32.xlu0 %v6548
        %v7203 = vpop.xlane.xlu0 %7202
        %7204 = vadd.xlane.f32.xlu0 %v6549
        %v7205 = vpop.xlane.xlu0 %7204
        %7206 = vadd.xlane.f32.xlu0 %v6550
        %v7207 = vpop.xlane.xlu0 %7206
        %7208 = vadd.xlane.f32.xlu0 %v6551
        %v7209 = vpop.xlane.xlu0 %7208
        %7210 = vadd.xlane.f32.xlu0 %v6552
        %v7211 = vpop.xlane.xlu0 %7210
        %7212 = vadd.xlane.f32.xlu0 %v6553
        %v7213 = vpop.xlane.xlu0 %7212
        %7214 = vadd.xlane.f32.xlu0 %v6554
        %v7215 = vpop.xlane.xlu0 %7214
        %7216 = vadd.xlane.f32.xlu0 %v6555
        %v7217 = vpop.xlane.xlu0 %7216
        %7218 = vadd.xlane.f32.xlu0 %v6556
        %v7219 = vpop.xlane.xlu0 %7218
        %7220 = vadd.xlane.f32.xlu0 %v6557
        %v7221 = vpop.xlane.xlu0 %7220
        %7222 = vadd.xlane.f32.xlu0 %v6558
        %v7223 = vpop.xlane.xlu0 %7222
        %7224 = vadd.xlane.f32.xlu0 %v6559
        %v7225 = vpop.xlane.xlu0 %7224
        %7226 = vadd.xlane.f32.xlu0 %v6560
        %v7227 = vpop.xlane.xlu0 %7226
        %7228 = vadd.xlane.f32.xlu0 %v6561
        %v7229 = vpop.xlane.xlu0 %7228
        %7230 = vadd.xlane.f32.xlu0 %v6562
        %v7231 = vpop.xlane.xlu0 %7230
        %7232 = vadd.xlane.f32.xlu0 %v6563
        %v7233 = vpop.xlane.xlu0 %7232
        %7234 = vadd.xlane.f32.xlu0 %v6564
        %v7235 = vpop.xlane.xlu0 %7234
        %7236 = vadd.xlane.f32.xlu0 %v6565
        %v7237 = vpop.xlane.xlu0 %7236
        %7238 = vadd.xlane.f32.xlu0 %v6566
        %v7239 = vpop.xlane.xlu0 %7238
        %7240 = vadd.xlane.f32.xlu0 %v6567
        %v7241 = vpop.xlane.xlu0 %7240
        %7242 = vadd.xlane.f32.xlu0 %v6568
        %v7243 = vpop.xlane.xlu0 %7242
        %7244 = vadd.xlane.f32.xlu0 %v6569
        %v7245 = vpop.xlane.xlu0 %7244
        %7246 = vadd.xlane.f32.xlu0 %v6570
        %v7247 = vpop.xlane.xlu0 %7246
        %7248 = vadd.xlane.f32.xlu0 %v6571
        %v7249 = vpop.xlane.xlu0 %7248
        %7250 = vadd.xlane.f32.xlu0 %v6572
        %v7251 = vpop.xlane.xlu0 %7250
        %7252 = vadd.xlane.f32.xlu0 %v6573
        %v7253 = vpop.xlane.xlu0 %7252
        %7254 = vadd.xlane.f32.xlu0 %v6574
        %v7255 = vpop.xlane.xlu0 %7254
        %7256 = vadd.xlane.f32.xlu0 %v6575
        %v7257 = vpop.xlane.xlu0 %7256
        %7258 = vadd.xlane.f32.xlu0 %v6576
        %v7259 = vpop.xlane.xlu0 %7258
        %7260 = vadd.xlane.f32.xlu0 %v6577
        %v7261 = vpop.xlane.xlu0 %7260
        %7262 = vadd.xlane.f32.xlu0 %v6578
        %v7263 = vpop.xlane.xlu0 %7262
        %7264 = vadd.xlane.f32.xlu0 %v6579
        %v7265 = vpop.xlane.xlu0 %7264
        %7266 = vadd.xlane.f32.xlu0 %v6580
        %v7267 = vpop.xlane.xlu0 %7266
        %7268 = vadd.xlane.f32.xlu0 %v6581
        %v7269 = vpop.xlane.xlu0 %7268
        %7270 = vadd.xlane.f32.xlu0 %v6582
        %v7271 = vpop.xlane.xlu0 %7270
        %7272 = vadd.xlane.f32.xlu0 %v6583
        %v7273 = vpop.xlane.xlu0 %7272
        %7274 = vadd.xlane.f32.xlu0 %v6584
        %v7275 = vpop.xlane.xlu0 %7274
        %7276 = vadd.xlane.f32.xlu0 %v6585
        %v7277 = vpop.xlane.xlu0 %7276
        %7278 = vadd.xlane.f32.xlu0 %v6586
        %v7279 = vpop.xlane.xlu0 %7278
        %7280 = vadd.xlane.f32.xlu0 %v6587
        %v7281 = vpop.xlane.xlu0 %7280
        %7282 = vadd.xlane.f32.xlu0 %v6588
        %v7283 = vpop.xlane.xlu0 %7282
        %7284 = vadd.xlane.f32.xlu0 %v6589
        %v7285 = vpop.xlane.xlu0 %7284
        %7286 = vadd.xlane.f32.xlu0 %v6590
        %v7287 = vpop.xlane.xlu0 %7286
        %7288 = vadd.xlane.f32.xlu0 %v6591
        %v7289 = vpop.xlane.xlu0 %7288
        %7290 = vadd.xlane.f32.xlu0 %v6592
        %v7291 = vpop.xlane.xlu0 %7290
        %7292 = vadd.xlane.f32.xlu0 %v6593
        %v7293 = vpop.xlane.xlu0 %7292
        %7294 = vadd.xlane.f32.xlu0 %v6594
        %v7295 = vpop.xlane.xlu0 %7294
        %7296 = vadd.xlane.f32.xlu0 %v6595
        %v7297 = vpop.xlane.xlu0 %7296
        %7298 = vadd.xlane.f32.xlu0 %v6596
        %v7299 = vpop.xlane.xlu0 %7298
        %7300 = vadd.xlane.f32.xlu0 %v6597
        %v7301 = vpop.xlane.xlu0 %7300
        %7302 = vadd.xlane.f32.xlu0 %v6598
        %v7303 = vpop.xlane.xlu0 %7302
        %7304 = vadd.xlane.f32.xlu0 %v6599
        %v7305 = vpop.xlane.xlu0 %7304
        %7306 = vadd.xlane.f32.xlu0 %v6600
        %v7307 = vpop.xlane.xlu0 %7306
        %7308 = vadd.xlane.f32.xlu0 %v6601
        %v7309 = vpop.xlane.xlu0 %7308
        %7310 = vadd.xlane.f32.xlu0 %v6602
        %v7311 = vpop.xlane.xlu0 %7310
        %7312 = vadd.xlane.f32.xlu0 %v6603
        %v7313 = vpop.xlane.xlu0 %7312
        %7314 = vadd.xlane.f32.xlu0 %v6604
        %v7315 = vpop.xlane.xlu0 %7314
        %7316 = vadd.xlane.f32.xlu0 %v6605
        %v7317 = vpop.xlane.xlu0 %7316
        %7318 = vadd.xlane.f32.xlu0 %v6606
        %v7319 = vpop.xlane.xlu0 %7318
        %7320 = vadd.xlane.f32.xlu0 %v6607
        %v7321 = vpop.xlane.xlu0 %7320
        %7322 = vadd.xlane.f32.xlu0 %v6608
        %v7323 = vpop.xlane.xlu0 %7322
        %7324 = vadd.xlane.f32.xlu0 %v6609
        %v7325 = vpop.xlane.xlu0 %7324
        %7326 = vadd.xlane.f32.xlu0 %v6610
        %v7327 = vpop.xlane.xlu0 %7326
        %7328 = vadd.xlane.f32.xlu0 %v6611
        %v7329 = vpop.xlane.xlu0 %7328
        %7330 = vadd.xlane.f32.xlu0 %v6612
        %v7331 = vpop.xlane.xlu0 %7330
        %7332 = vadd.xlane.f32.xlu0 %v6613
        %v7333 = vpop.xlane.xlu0 %7332
        %7334 = vadd.xlane.f32.xlu0 %v6614
        %v7335 = vpop.xlane.xlu0 %7334
        %7336 = vadd.xlane.f32.xlu0 %v6615
        %v7337 = vpop.xlane.xlu0 %7336
        %7338 = vadd.xlane.f32.xlu0 %v6616
        %v7339 = vpop.xlane.xlu0 %7338
        %7340 = vadd.xlane.f32.xlu0 %v6617
        %v7341 = vpop.xlane.xlu0 %7340
        %7342 = vadd.xlane.f32.xlu0 %v6618
        %v7343 = vpop.xlane.xlu0 %7342
        %7344 = vadd.xlane.f32.xlu0 %v6619
        %v7345 = vpop.xlane.xlu0 %7344
        %7346 = vadd.xlane.f32.xlu0 %v6620
        %v7347 = vpop.xlane.xlu0 %7346
        %7348 = vadd.xlane.f32.xlu0 %v6621
        %v7349 = vpop.xlane.xlu0 %7348
        %7350 = vadd.xlane.f32.xlu0 %v6622
        %v7351 = vpop.xlane.xlu0 %7350
        %7352 = vadd.xlane.f32.xlu0 %v6623
        %v7353 = vpop.xlane.xlu0 %7352
        %7354 = vadd.xlane.f32.xlu0 %v6624
        %v7355 = vpop.xlane.xlu0 %7354
        %7356 = vadd.xlane.f32.xlu0 %v6625
        %v7357 = vpop.xlane.xlu0 %7356
        %7358 = vadd.xlane.f32.xlu0 %v6626
        %v7359 = vpop.xlane.xlu0 %7358
        %7360 = vadd.xlane.f32.xlu0 %v6627
        %v7361 = vpop.xlane.xlu0 %7360
        %7362 = vadd.xlane.f32.xlu0 %v6628
        %v7363 = vpop.xlane.xlu0 %7362
        %7364 = vadd.xlane.f32.xlu0 %v6629
        %v7365 = vpop.xlane.xlu0 %7364
        %7366 = vadd.xlane.f32.xlu0 %v6630
        %v7367 = vpop.xlane.xlu0 %7366
        %7368 = vadd.xlane.f32.xlu0 %v6631
        %v7369 = vpop.xlane.xlu0 %7368
        %7370 = vadd.xlane.f32.xlu0 %v6632
        %v7371 = vpop.xlane.xlu0 %7370
        %7372 = vadd.xlane.f32.xlu0 %v6633
        %v7373 = vpop.xlane.xlu0 %7372
        %7374 = vadd.xlane.f32.xlu0 %v6634
        %v7375 = vpop.xlane.xlu0 %7374
        %7376 = vadd.xlane.f32.xlu0 %v6635
        %v7377 = vpop.xlane.xlu0 %7376
        %7378 = vadd.xlane.f32.xlu0 %v6636
        %v7379 = vpop.xlane.xlu0 %7378
        %7380 = vadd.xlane.f32.xlu0 %v6637
        %v7381 = vpop.xlane.xlu0 %7380
        %7382 = vadd.xlane.f32.xlu0 %v6638
        %v7383 = vpop.xlane.xlu0 %7382
        %7384 = vadd.xlane.f32.xlu0 %v6639
        %v7385 = vpop.xlane.xlu0 %7384
        %7386 = vadd.xlane.f32.xlu0 %v6640
        %v7387 = vpop.xlane.xlu0 %7386
        %7388 = vadd.xlane.f32.xlu0 %v6641
        %v7389 = vpop.xlane.xlu0 %7388
        %7390 = vadd.xlane.f32.xlu0 %v6642
        %v7391 = vpop.xlane.xlu0 %7390
        %7392 = vadd.xlane.f32.xlu0 %v6643
        %v7393 = vpop.xlane.xlu0 %7392
        %7394 = vadd.xlane.f32.xlu0 %v6644
        %v7395 = vpop.xlane.xlu0 %7394
        %7396 = vadd.xlane.f32.xlu0 %v6645
        %v7397 = vpop.xlane.xlu0 %7396
        %7398 = vadd.xlane.f32.xlu0 %v6646
        %v7399 = vpop.xlane.xlu0 %7398
        %7400 = vadd.xlane.f32.xlu0 %v6647
        %v7401 = vpop.xlane.xlu0 %7400
        %7402 = vadd.xlane.f32.xlu0 %v6648
        %v7403 = vpop.xlane.xlu0 %7402
        %7404 = vadd.xlane.f32.xlu0 %v6649
        %v7405 = vpop.xlane.xlu0 %7404
        %7406 = vadd.xlane.f32.xlu0 %v6650
        %v7407 = vpop.xlane.xlu0 %7406
        %7408 = vadd.xlane.f32.xlu0 %v6651
        %v7409 = vpop.xlane.xlu0 %7408
        %7410 = vadd.xlane.f32.xlu0 %v6652
        %v7411 = vpop.xlane.xlu0 %7410
        %7412 = vadd.xlane.f32.xlu0 %v6653
        %v7413 = vpop.xlane.xlu0 %7412
        %7414 = vadd.xlane.f32.xlu0 %v6654
        %v7415 = vpop.xlane.xlu0 %7414
        %7416 = vadd.xlane.f32.xlu0 %v6655
        %v7417 = vpop.xlane.xlu0 %7416
        %7418 = vadd.xlane.f32.xlu0 %v6656
        %v7419 = vpop.xlane.xlu0 %7418
        %7420 = vadd.xlane.f32.xlu0 %v6657
        %v7421 = vpop.xlane.xlu0 %7420
        %7422 = vadd.xlane.f32.xlu0 %v6658
        %v7423 = vpop.xlane.xlu0 %7422
        %7424 = vadd.xlane.f32.xlu0 %v6659
        %v7425 = vpop.xlane.xlu0 %7424
        %7426 = vadd.xlane.f32.xlu0 %v6660
        %v7427 = vpop.xlane.xlu0 %7426
        %7428 = vadd.xlane.f32.xlu0 %v6661
        %v7429 = vpop.xlane.xlu0 %7428
        %7430 = vadd.xlane.f32.xlu0 %v6662
        %v7431 = vpop.xlane.xlu0 %7430
        %7432 = vadd.xlane.f32.xlu0 %v6663
        %v7433 = vpop.xlane.xlu0 %7432
        %7434 = vadd.xlane.f32.xlu0 %v6664
        %v7435 = vpop.xlane.xlu0 %7434
        %7436 = vadd.xlane.f32.xlu0 %v6665
        %v7437 = vpop.xlane.xlu0 %7436
        %7438 = vadd.xlane.f32.xlu0 %v6666
        %v7439 = vpop.xlane.xlu0 %7438
        %7440 = vadd.xlane.f32.xlu0 %v6667
        %v7441 = vpop.xlane.xlu0 %7440
        %7442 = vadd.xlane.f32.xlu0 %v6668
        %v7443 = vpop.xlane.xlu0 %7442
        %7444 = vadd.xlane.f32.xlu0 %v6669
        %v7445 = vpop.xlane.xlu0 %7444
        %7446 = vadd.xlane.f32.xlu0 %v6670
        %v7447 = vpop.xlane.xlu0 %7446
        %7448 = vadd.xlane.f32.xlu0 %v6671
        %v7449 = vpop.xlane.xlu0 %7448
        %7450 = vadd.xlane.f32.xlu0 %v6672
        %v7451 = vpop.xlane.xlu0 %7450
        %7452 = vadd.xlane.f32.xlu0 %v6673
        %v7453 = vpop.xlane.xlu0 %7452
        %7454 = vadd.xlane.f32.xlu0 %v6674
        %v7455 = vpop.xlane.xlu0 %7454
        %7456 = vadd.xlane.f32.xlu0 %v6675
        %v7457 = vpop.xlane.xlu0 %7456
        %7458 = vadd.xlane.f32.xlu0 %v6676
        %v7459 = vpop.xlane.xlu0 %7458
        %7460 = vadd.xlane.f32.xlu0 %v6677
        %v7461 = vpop.xlane.xlu0 %7460
        %7462 = vadd.xlane.f32.xlu0 %v6678
        %v7463 = vpop.xlane.xlu0 %7462
        %7464 = vadd.xlane.f32.xlu0 %v6679
        %v7465 = vpop.xlane.xlu0 %7464
        %7466 = vadd.xlane.f32.xlu0 %v6680
        %v7467 = vpop.xlane.xlu0 %7466
        %7468 = vadd.xlane.f32.xlu0 %v6681
        %v7469 = vpop.xlane.xlu0 %7468
        %7470 = vadd.xlane.f32.xlu0 %v6682
        %v7471 = vpop.xlane.xlu0 %7470
        %7472 = vadd.xlane.f32.xlu0 %v6683
        %v7473 = vpop.xlane.xlu0 %7472
        %7474 = vadd.xlane.f32.xlu0 %v6684
        %v7475 = vpop.xlane.xlu0 %7474
        %7476 = vadd.xlane.f32.xlu0 %v6685
        %v7477 = vpop.xlane.xlu0 %7476
        %7478 = vadd.xlane.f32.xlu0 %v6686
        %v7479 = vpop.xlane.xlu0 %7478
        %7480 = vadd.xlane.f32.xlu0 %v6687
        %v7481 = vpop.xlane.xlu0 %7480
        %7482 = vadd.xlane.f32.xlu0 %v6688
        %v7483 = vpop.xlane.xlu0 %7482
        %7484 = vadd.xlane.f32.xlu0 %v6689
        %v7485 = vpop.xlane.xlu0 %7484
        %7486 = vadd.xlane.f32.xlu0 %v6690
        %v7487 = vpop.xlane.xlu0 %7486
        %7488 = vadd.xlane.f32.xlu0 %v6691
        %v7489 = vpop.xlane.xlu0 %7488
        %7490 = vadd.xlane.f32.xlu0 %v6692
        %v7491 = vpop.xlane.xlu0 %7490
        %7492 = vadd.xlane.f32.xlu0 %v6693
        %v7493 = vpop.xlane.xlu0 %7492
        %7494 = vadd.xlane.f32.xlu0 %v6694
        %v7495 = vpop.xlane.xlu0 %7494
        %7496 = vadd.xlane.f32.xlu0 %v6695
        %v7497 = vpop.xlane.xlu0 %7496
        %7498 = vadd.xlane.f32.xlu0 %v6696
        %v7499 = vpop.xlane.xlu0 %7498
        %7500 = vadd.xlane.f32.xlu0 %v6697
        %v7501 = vpop.xlane.xlu0 %7500
        %7502 = vadd.xlane.f32.xlu0 %v6698
        %v7503 = vpop.xlane.xlu0 %7502
        %7504 = vadd.xlane.f32.xlu0 %v6699
        %v7505 = vpop.xlane.xlu0 %7504
        %7506 = vadd.xlane.f32.xlu0 %v6700
        %v7507 = vpop.xlane.xlu0 %7506
        %7508 = vadd.xlane.f32.xlu0 %v6701
        %v7509 = vpop.xlane.xlu0 %7508
        %7510 = vadd.xlane.f32.xlu0 %v6702
        %v7511 = vpop.xlane.xlu0 %7510
        %7512 = vadd.xlane.f32.xlu0 %v6703
        %v7513 = vpop.xlane.xlu0 %7512
        %7514 = vadd.xlane.f32.xlu0 %v6704
        %v7515 = vpop.xlane.xlu0 %7514
        %7516 = vadd.xlane.f32.xlu0 %v6705
        %v7517 = vpop.xlane.xlu0 %7516
        %7518 = vadd.xlane.f32.xlu0 %v6706
        %v7519 = vpop.xlane.xlu0 %7518
        %7520 = vadd.xlane.f32.xlu0 %v6707
        %v7521 = vpop.xlane.xlu0 %7520
        %7522 = vadd.xlane.f32.xlu0 %v6708
        %v7523 = vpop.xlane.xlu0 %7522
        %7524 = vadd.xlane.f32.xlu0 %v6709
        %v7525 = vpop.xlane.xlu0 %7524
        %7526 = vadd.xlane.f32.xlu0 %v6710
        %v7527 = vpop.xlane.xlu0 %7526
        %7528 = vadd.xlane.f32.xlu0 %v6711
        %v7529 = vpop.xlane.xlu0 %7528
        %7530 = vadd.xlane.f32.xlu0 %v6712
        %v7531 = vpop.xlane.xlu0 %7530
        %7532 = vadd.xlane.f32.xlu0 %v6713
        %v7533 = vpop.xlane.xlu0 %7532
        %7534 = vadd.xlane.f32.xlu0 %v6714
        %v7535 = vpop.xlane.xlu0 %7534
        %7536 = vadd.xlane.f32.xlu0 %v6715
        %v7537 = vpop.xlane.xlu0 %7536
        %7538 = vadd.xlane.f32.xlu0 %v6716
        %v7539 = vpop.xlane.xlu0 %7538
        %7540 = vadd.xlane.f32.xlu0 %v6717
        %v7541 = vpop.xlane.xlu0 %7540
        %7542 = vadd.xlane.f32.xlu0 %v6718
        %v7543 = vpop.xlane.xlu0 %7542
        %7544 = vadd.xlane.f32.xlu0 %v6719
        %v7545 = vpop.xlane.xlu0 %7544
        %7546 = vadd.xlane.f32.xlu0 %v6720
        %v7547 = vpop.xlane.xlu0 %7546
        %7548 = vadd.xlane.f32.xlu0 %v6721
        %v7549 = vpop.xlane.xlu0 %7548
        %7550 = vadd.xlane.f32.xlu0 %v6722
        %v7551 = vpop.xlane.xlu0 %7550
        %7552 = vadd.xlane.f32.xlu0 %v6723
        %v7553 = vpop.xlane.xlu0 %7552
        %7554 = vadd.xlane.f32.xlu0 %v6724
        %v7555 = vpop.xlane.xlu0 %7554
        %7556 = vadd.xlane.f32.xlu0 %v6725
        %v7557 = vpop.xlane.xlu0 %7556
        %7558 = vadd.xlane.f32.xlu0 %v6726
        %v7559 = vpop.xlane.xlu0 %7558
        %7560 = vadd.xlane.f32.xlu0 %v6727
        %v7561 = vpop.xlane.xlu0 %7560
        %7562 = vadd.xlane.f32.xlu0 %v6728
        %v7563 = vpop.xlane.xlu0 %7562
        %7564 = vadd.xlane.f32.xlu0 %v6729
        %v7565 = vpop.xlane.xlu0 %7564
        %7566 = vadd.xlane.f32.xlu0 %v6730
        %v7567 = vpop.xlane.xlu0 %7566
        %7568 = vadd.xlane.f32.xlu0 %v6731
        %v7569 = vpop.xlane.xlu0 %7568
        %7570 = vadd.xlane.f32.xlu0 %v6732
        %v7571 = vpop.xlane.xlu0 %7570
        %7572 = vadd.xlane.f32.xlu0 %v6733
        %v7573 = vpop.xlane.xlu0 %7572
        %7574 = vadd.xlane.f32.xlu0 %v6734
        %v7575 = vpop.xlane.xlu0 %7574
        %7576 = vadd.xlane.f32.xlu0 %v6735
        %v7577 = vpop.xlane.xlu0 %7576
        %7578 = vadd.xlane.f32.xlu0 %v6736
        %v7579 = vpop.xlane.xlu0 %7578
        %7580 = vadd.xlane.f32.xlu0 %v6737
        %v7581 = vpop.xlane.xlu0 %7580
        %7582 = vadd.xlane.f32.xlu0 %v6738
        %v7583 = vpop.xlane.xlu0 %7582
        %7584 = vadd.xlane.f32.xlu0 %v6739
        %v7585 = vpop.xlane.xlu0 %7584
        %7586 = vadd.xlane.f32.xlu0 %v6740
        %v7587 = vpop.xlane.xlu0 %7586
        %7588 = vadd.xlane.f32.xlu0 %v6741
        %v7589 = vpop.xlane.xlu0 %7588
        %7590 = vadd.xlane.f32.xlu0 %v6742
        %v7591 = vpop.xlane.xlu0 %7590
        %7592 = vadd.xlane.f32.xlu0 %v6743
        %v7593 = vpop.xlane.xlu0 %7592
        %7594 = vadd.xlane.f32.xlu0 %v6744
        %v7595 = vpop.xlane.xlu0 %7594
        %7596 = vadd.xlane.f32.xlu0 %v6745
        %v7597 = vpop.xlane.xlu0 %7596
        %7598 = vadd.xlane.f32.xlu0 %v6746
        %v7599 = vpop.xlane.xlu0 %7598
        %7600 = vadd.xlane.f32.xlu0 %v6747
        %v7601 = vpop.xlane.xlu0 %7600
        %7602 = vadd.xlane.f32.xlu0 %v6748
        %v7603 = vpop.xlane.xlu0 %7602
        %7604 = vadd.xlane.f32.xlu0 %v6749
        %v7605 = vpop.xlane.xlu0 %7604
        %7606 = vadd.xlane.f32.xlu0 %v6750
        %v7607 = vpop.xlane.xlu0 %7606
        %7608 = vadd.xlane.f32.xlu0 %v6751
        %v7609 = vpop.xlane.xlu0 %7608
        %7610 = vadd.xlane.f32.xlu0 %v6752
        %v7611 = vpop.xlane.xlu0 %7610
        %7612 = vadd.xlane.f32.xlu0 %v6753
        %v7613 = vpop.xlane.xlu0 %7612
        %7614 = vadd.xlane.f32.xlu0 %v6754
        %v7615 = vpop.xlane.xlu0 %7614
        %7616 = vadd.xlane.f32.xlu0 %v6755
        %v7617 = vpop.xlane.xlu0 %7616
        %7618 = vadd.xlane.f32.xlu0 %v6756
        %v7619 = vpop.xlane.xlu0 %7618
        %7620 = vadd.xlane.f32.xlu0 %v6757
        %v7621 = vpop.xlane.xlu0 %7620
        %7622 = vadd.xlane.f32.xlu0 %v6758
        %v7623 = vpop.xlane.xlu0 %7622
        %7624 = vadd.xlane.f32.xlu0 %v6759
        %v7625 = vpop.xlane.xlu0 %7624
        %7626 = vadd.xlane.f32.xlu0 %v6760
        %v7627 = vpop.xlane.xlu0 %7626
        %7628 = vadd.xlane.f32.xlu0 %v6761
        %v7629 = vpop.xlane.xlu0 %7628
        %7630 = vadd.xlane.f32.xlu0 %v6762
        %v7631 = vpop.xlane.xlu0 %7630
        %7632 = vadd.xlane.f32.xlu0 %v6763
        %v7633 = vpop.xlane.xlu0 %7632
        %7634 = vadd.xlane.f32.xlu0 %v6764
        %v7635 = vpop.xlane.xlu0 %7634
        %7636 = vadd.xlane.f32.xlu0 %v6765
        %v7637 = vpop.xlane.xlu0 %7636
        %7638 = vadd.xlane.f32.xlu0 %v6766
        %v7639 = vpop.xlane.xlu0 %7638
        %7640 = vadd.xlane.f32.xlu0 %v6767
        %v7641 = vpop.xlane.xlu0 %7640
        %7642 = vadd.xlane.f32.xlu0 %v6768
        %v7643 = vpop.xlane.xlu0 %7642
        %7644 = vadd.xlane.f32.xlu0 %v6769
        %v7645 = vpop.xlane.xlu0 %7644
        %7646 = vadd.xlane.f32.xlu0 %v6770
        %v7647 = vpop.xlane.xlu0 %7646
        %7648 = vadd.xlane.f32.xlu0 %v6771
        %v7649 = vpop.xlane.xlu0 %7648
        %7650 = vadd.xlane.f32.xlu0 %v6772
        %v7651 = vpop.xlane.xlu0 %7650
        %7652 = vadd.xlane.f32.xlu0 %v6773
        %v7653 = vpop.xlane.xlu0 %7652
        %7654 = vadd.xlane.f32.xlu0 %v6774
        %v7655 = vpop.xlane.xlu0 %7654
        %7656 = vadd.xlane.f32.xlu0 %v6775
        %v7657 = vpop.xlane.xlu0 %7656
        %7658 = vadd.xlane.f32.xlu0 %v6776
        %v7659 = vpop.xlane.xlu0 %7658
        %7660 = vadd.xlane.f32.xlu0 %v6777
        %v7661 = vpop.xlane.xlu0 %7660
        %7662 = vadd.xlane.f32.xlu0 %v6778
        %v7663 = vpop.xlane.xlu0 %7662
        %7664 = vadd.xlane.f32.xlu0 %v6779
        %v7665 = vpop.xlane.xlu0 %7664
        %7666 = vadd.xlane.f32.xlu0 %v6780
        %v7667 = vpop.xlane.xlu0 %7666
        %7668 = vadd.xlane.f32.xlu0 %v6781
        %v7669 = vpop.xlane.xlu0 %7668
        %7670 = vadd.xlane.f32.xlu0 %v6782
        %v7671 = vpop.xlane.xlu0 %7670
        %7672 = vadd.xlane.f32.xlu0 %v6783
        %v7673 = vpop.xlane.xlu0 %7672
        %7674 = vadd.xlane.f32.xlu0 %v6784
        %v7675 = vpop.xlane.xlu0 %7674
        %7676 = vadd.xlane.f32.xlu0 %v6785
        %v7677 = vpop.xlane.xlu0 %7676
        %7678 = vadd.xlane.f32.xlu0 %v6786
        %v7679 = vpop.xlane.xlu0 %7678
        %7680 = vadd.xlane.f32.xlu0 %v6787
        %v7681 = vpop.xlane.xlu0 %7680
        %7682 = vadd.xlane.f32.xlu0 %v6788
        %v7683 = vpop.xlane.xlu0 %7682
        %7684 = vadd.xlane.f32.xlu0 %v6789
        %v7685 = vpop.xlane.xlu0 %7684
        %7686 = vadd.xlane.f32.xlu0 %v6790
        %v7687 = vpop.xlane.xlu0 %7686
        %7688 = vadd.xlane.f32.xlu0 %v6791
        %v7689 = vpop.xlane.xlu0 %7688
        %7690 = vadd.xlane.f32.xlu0 %v6792
        %v7691 = vpop.xlane.xlu0 %7690
        %7692 = vadd.xlane.f32.xlu0 %v6793
        %v7693 = vpop.xlane.xlu0 %7692
        %7694 = vadd.xlane.f32.xlu0 %v6794
        %v7695 = vpop.xlane.xlu0 %7694
        %7696 = vadd.xlane.f32.xlu0 %v6795
        %v7697 = vpop.xlane.xlu0 %7696
        %7698 = vadd.xlane.f32.xlu0 %v6796
        %v7699 = vpop.xlane.xlu0 %7698
        %7700 = vadd.xlane.f32.xlu0 %v6797
        %v7701 = vpop.xlane.xlu0 %7700
        %7702 = vadd.xlane.f32.xlu0 %v6798
        %v7703 = vpop.xlane.xlu0 %7702
        %7704 = vadd.xlane.f32.xlu0 %v6799
        %v7705 = vpop.xlane.xlu0 %7704
        %7706 = vadd.xlane.f32.xlu0 %v6800
        %v7707 = vpop.xlane.xlu0 %7706
        %7708 = vadd.xlane.f32.xlu0 %v6801
        %v7709 = vpop.xlane.xlu0 %7708
        %7710 = vadd.xlane.f32.xlu0 %v6802
        %v7711 = vpop.xlane.xlu0 %7710
        %7712 = vadd.xlane.f32.xlu0 %v6803
        %v7713 = vpop.xlane.xlu0 %7712
        %7714 = vadd.xlane.f32.xlu0 %v6804
        %v7715 = vpop.xlane.xlu0 %7714
        %7716 = vadd.xlane.f32.xlu0 %v6805
        %v7717 = vpop.xlane.xlu0 %7716
        %7718 = vadd.xlane.f32.xlu0 %v6806
        %v7719 = vpop.xlane.xlu0 %7718
        %7720 = vadd.xlane.f32.xlu0 %v6807
        %v7721 = vpop.xlane.xlu0 %7720
        %7722 = vadd.xlane.f32.xlu0 %v6808
        %v7723 = vpop.xlane.xlu0 %7722
        %7724 = vadd.xlane.f32.xlu0 %v6809
        %v7725 = vpop.xlane.xlu0 %7724
        %7726 = vadd.xlane.f32.xlu0 %v6810
        %v7727 = vpop.xlane.xlu0 %7726
        %7728 = vadd.xlane.f32.xlu0 %v6811
        %v7729 = vpop.xlane.xlu0 %7728
        %7730 = vadd.xlane.f32.xlu0 %v6812
        %v7731 = vpop.xlane.xlu0 %7730
        %7732 = vadd.xlane.f32.xlu0 %v6813
        %v7733 = vpop.xlane.xlu0 %7732
        %7734 = vadd.xlane.f32.xlu0 %v6814
        %v7735 = vpop.xlane.xlu0 %7734
        %7736 = vadd.xlane.f32.xlu0 %v6815
        %v7737 = vpop.xlane.xlu0 %7736
        %7738 = vadd.xlane.f32.xlu0 %v6816
        %v7739 = vpop.xlane.xlu0 %7738
        %7740 = vadd.xlane.f32.xlu0 %v6817
        %v7741 = vpop.xlane.xlu0 %7740
        %7742 = vadd.xlane.f32.xlu0 %v6818
        %v7743 = vpop.xlane.xlu0 %7742
        %7744 = vadd.xlane.f32.xlu0 %v6819
        %v7745 = vpop.xlane.xlu0 %7744
        %7746 = vadd.xlane.f32.xlu0 %v6820
        %v7747 = vpop.xlane.xlu0 %7746
        %7748 = vadd.xlane.f32.xlu0 %v6821
        %v7749 = vpop.xlane.xlu0 %7748
        %7750 = vadd.xlane.f32.xlu0 %v6822
        %v7751 = vpop.xlane.xlu0 %7750
        %7752 = vadd.xlane.f32.xlu0 %v6823
        %v7753 = vpop.xlane.xlu0 %7752
        %7754 = vadd.xlane.f32.xlu0 %v6824
        %v7755 = vpop.xlane.xlu0 %7754
        %7756 = vadd.xlane.f32.xlu0 %v6825
        %v7757 = vpop.xlane.xlu0 %7756
        %7758 = vadd.xlane.f32.xlu0 %v6826
        %v7759 = vpop.xlane.xlu0 %7758
        %7760 = vadd.xlane.f32.xlu0 %v6827
        %v7761 = vpop.xlane.xlu0 %7760
        %7762 = vadd.xlane.f32.xlu0 %v6828
        %v7763 = vpop.xlane.xlu0 %7762
        %7764 = vadd.xlane.f32.xlu0 %v6829
        %v7765 = vpop.xlane.xlu0 %7764
        %7766 = vadd.xlane.f32.xlu0 %v6830
        %v7767 = vpop.xlane.xlu0 %7766
        %7768 = vadd.xlane.f32.xlu0 %v6831
        %v7769 = vpop.xlane.xlu0 %7768
        %7770 = vadd.xlane.f32.xlu0 %v6832
        %v7771 = vpop.xlane.xlu0 %7770
        %7772 = vadd.xlane.f32.xlu0 %v6833
        %v7773 = vpop.xlane.xlu0 %7772
        %7774 = vadd.xlane.f32.xlu0 %v6834
        %v7775 = vpop.xlane.xlu0 %7774
        %7776 = vadd.xlane.f32.xlu0 %v6835
        %v7777 = vpop.xlane.xlu0 %7776
        %7778 = vadd.xlane.f32.xlu0 %v6836
        %v7779 = vpop.xlane.xlu0 %7778
        %7780 = vadd.xlane.f32.xlu0 %v6837
        %v7781 = vpop.xlane.xlu0 %7780
        %7782 = vadd.xlane.f32.xlu0 %v6838
        %v7783 = vpop.xlane.xlu0 %7782
        %7784 = vadd.xlane.f32.xlu0 %v6839
        %v7785 = vpop.xlane.xlu0 %7784
        %7786 = vadd.xlane.f32.xlu0 %v6840
        %v7787 = vpop.xlane.xlu0 %7786
        %7788 = vadd.xlane.f32.xlu0 %v6841
        %v7789 = vpop.xlane.xlu0 %7788
        %7790 = vadd.xlane.f32.xlu0 %v6842
        %v7791 = vpop.xlane.xlu0 %7790
        %7792 = vadd.xlane.f32.xlu0 %v6843
        %v7793 = vpop.xlane.xlu0 %7792
        %7794 = vadd.xlane.f32.xlu0 %v6844
        %v7795 = vpop.xlane.xlu0 %7794
        %7796 = vadd.xlane.f32.xlu0 %v6845
        %v7797 = vpop.xlane.xlu0 %7796
        %7798 = vadd.xlane.f32.xlu0 %v6846
        %v7799 = vpop.xlane.xlu0 %7798
        %7800 = vadd.xlane.f32.xlu0 %v6847
        %v7801 = vpop.xlane.xlu0 %7800
        %7802 = vadd.xlane.f32.xlu0 %v6848
        %v7803 = vpop.xlane.xlu0 %7802
        %7804 = vadd.xlane.f32.xlu0 %v6849
        %v7805 = vpop.xlane.xlu0 %7804
        %7806 = vadd.xlane.f32.xlu0 %v6850
        %v7807 = vpop.xlane.xlu0 %7806
        %7808 = vadd.xlane.f32.xlu0 %v6851
        %v7809 = vpop.xlane.xlu0 %7808
        %7810 = vadd.xlane.f32.xlu0 %v6852
        %v7811 = vpop.xlane.xlu0 %7810
        %7812 = vadd.xlane.f32.xlu0 %v6853
        %v7813 = vpop.xlane.xlu0 %7812
        %7814 = vadd.xlane.f32.xlu0 %v6854
        %v7815 = vpop.xlane.xlu0 %7814
        %7816 = vadd.xlane.f32.xlu0 %v6855
        %v7817 = vpop.xlane.xlu0 %7816
        %7818 = vadd.xlane.f32.xlu0 %v6856
        %v7819 = vpop.xlane.xlu0 %7818
        %7820 = vadd.xlane.f32.xlu0 %v6857
        %v7821 = vpop.xlane.xlu0 %7820
        %7822 = vadd.xlane.f32.xlu0 %v6858
        %v7823 = vpop.xlane.xlu0 %7822
        %7824 = vadd.xlane.f32.xlu0 %v6859
        %v7825 = vpop.xlane.xlu0 %7824
        %7826 = vadd.xlane.f32.xlu0 %v6860
        %v7827 = vpop.xlane.xlu0 %7826
        %7828 = vadd.xlane.f32.xlu0 %v6861
        %v7829 = vpop.xlane.xlu0 %7828
        %7830 = vadd.xlane.f32.xlu0 %v6862
        %v7831 = vpop.xlane.xlu0 %7830
        %7832 = vadd.xlane.f32.xlu0 %v6863
        %v7833 = vpop.xlane.xlu0 %7832
        %7834 = vadd.xlane.f32.xlu0 %v6864
        %v7835 = vpop.xlane.xlu0 %7834
        %7836 = vadd.xlane.f32.xlu0 %v6865
        %v7837 = vpop.xlane.xlu0 %7836
        %7838 = vadd.xlane.f32.xlu0 %v6866
        %v7839 = vpop.xlane.xlu0 %7838
        %7840 = vadd.xlane.f32.xlu0 %v6867
        %v7841 = vpop.xlane.xlu0 %7840
        %7842 = vadd.xlane.f32.xlu0 %v6868
        %v7843 = vpop.xlane.xlu0 %7842
        %7844 = vadd.xlane.f32.xlu0 %v6869
        %v7845 = vpop.xlane.xlu0 %7844
        %7846 = vadd.xlane.f32.xlu0 %v6870
        %v7847 = vpop.xlane.xlu0 %7846
        %7848 = vadd.xlane.f32.xlu0 %v6871
        %v7849 = vpop.xlane.xlu0 %7848
        %7850 = vadd.xlane.f32.xlu0 %v6872
        %v7851 = vpop.xlane.xlu0 %7850
        %7852 = vadd.xlane.f32.xlu0 %v6873
        %v7853 = vpop.xlane.xlu0 %7852
        %7854 = vadd.xlane.f32.xlu0 %v6874
        %v7855 = vpop.xlane.xlu0 %7854
        %7856 = vadd.xlane.f32.xlu0 %v6875
        %v7857 = vpop.xlane.xlu0 %7856
        %7858 = vadd.xlane.f32.xlu0 %v6876
        %v7859 = vpop.xlane.xlu0 %7858
        %7860 = vadd.xlane.f32.xlu0 %v6877
        %v7861 = vpop.xlane.xlu0 %7860
        %7862 = vadd.xlane.f32.xlu0 %v6878
        %v7863 = vpop.xlane.xlu0 %7862
        %7864 = vadd.xlane.f32.xlu0 %v6879
        %v7865 = vpop.xlane.xlu0 %7864
        %7866 = vadd.xlane.f32.xlu0 %v6880
        %v7867 = vpop.xlane.xlu0 %7866
        %7868 = vadd.xlane.f32.xlu0 %v6881
        %v7869 = vpop.xlane.xlu0 %7868
        %7870 = vadd.xlane.f32.xlu0 %v6882
        %v7871 = vpop.xlane.xlu0 %7870
        %7872 = vadd.xlane.f32.xlu0 %v6883
        %v7873 = vpop.xlane.xlu0 %7872
        %7874 = vadd.xlane.f32.xlu0 %v6884
        %v7875 = vpop.xlane.xlu0 %7874
        %7876 = vadd.xlane.f32.xlu0 %v6885
        %v7877 = vpop.xlane.xlu0 %7876
        %7878 = vadd.xlane.f32.xlu0 %v6886
        %v7879 = vpop.xlane.xlu0 %7878
        %7880 = vadd.xlane.f32.xlu0 %v6887
        %v7881 = vpop.xlane.xlu0 %7880
        %7882 = vadd.xlane.f32.xlu0 %v6888
        %v7883 = vpop.xlane.xlu0 %7882
        %7884 = vadd.xlane.f32.xlu0 %v6889
        %v7885 = vpop.xlane.xlu0 %7884
        %7886 = vadd.xlane.f32.xlu0 %v6890
        %v7887 = vpop.xlane.xlu0 %7886
        %7888 = vadd.xlane.f32.xlu0 %v6891
        %v7889 = vpop.xlane.xlu0 %7888
        %7890 = vadd.xlane.f32.xlu0 %v6892
        %v7891 = vpop.xlane.xlu0 %7890
        %7892 = vadd.xlane.f32.xlu0 %v6893
        %v7893 = vpop.xlane.xlu0 %7892
        %7894 = vadd.xlane.f32.xlu0 %v6894
        %v7895 = vpop.xlane.xlu0 %7894
        %7896 = vadd.xlane.f32.xlu0 %v6895
        %v7897 = vpop.xlane.xlu0 %7896
        %7898 = vadd.xlane.f32.xlu0 %v6896
        %v7899 = vpop.xlane.xlu0 %7898
        %7900 = vadd.xlane.f32.xlu0 %v6897
        %v7901 = vpop.xlane.xlu0 %7900
        %7902 = vadd.xlane.f32.xlu0 %v6898
        %v7903 = vpop.xlane.xlu0 %7902
        %7904 = vadd.xlane.f32.xlu0 %v6899
        %v7905 = vpop.xlane.xlu0 %7904
        %7906 = vadd.xlane.f32.xlu0 %v6900
        %v7907 = vpop.xlane.xlu0 %7906
        %7908 = vadd.xlane.f32.xlu0 %v6901
        %v7909 = vpop.xlane.xlu0 %7908
        %7910 = vadd.xlane.f32.xlu0 %v6902
        %v7911 = vpop.xlane.xlu0 %7910
        %7912 = vadd.xlane.f32.xlu0 %v6903
        %v7913 = vpop.xlane.xlu0 %7912
        %7914 = vadd.xlane.f32.xlu0 %v6904
        %v7915 = vpop.xlane.xlu0 %7914
        %7916 = vadd.xlane.f32.xlu0 %v6905
        %v7917 = vpop.xlane.xlu0 %7916
        %7918 = vadd.xlane.f32.xlu0 %v6906
        %v7919 = vpop.xlane.xlu0 %7918
        %7920 = vadd.xlane.f32.xlu0 %v6907
        %v7921 = vpop.xlane.xlu0 %7920
        %7922 = vadd.xlane.f32.xlu0 %v6908
        %v7923 = vpop.xlane.xlu0 %7922
        %7924 = vadd.xlane.f32.xlu0 %v6909
        %v7925 = vpop.xlane.xlu0 %7924
        %7926 = vadd.xlane.f32.xlu0 %v6910
        %v7927 = vpop.xlane.xlu0 %7926
        %7928 = vadd.xlane.f32.xlu0 %v6911
        %v7929 = vpop.xlane.xlu0 %7928
        %7930 = vadd.xlane.f32.xlu0 %v6912
        %v7931 = vpop.xlane.xlu0 %7930
        %7932 = vadd.xlane.f32.xlu0 %v6913
        %v7933 = vpop.xlane.xlu0 %7932
        %7934 = vadd.xlane.f32.xlu0 %v6914
        %v7935 = vpop.xlane.xlu0 %7934
        %7936 = vadd.xlane.f32.xlu0 %v6915
        %v7937 = vpop.xlane.xlu0 %7936
        %7938 = vadd.xlane.f32.xlu0 %v6916
        %v7939 = vpop.xlane.xlu0 %7938
        %7940 = vadd.xlane.f32.xlu0 %v6917
        %v7941 = vpop.xlane.xlu0 %7940
        %v7942 = vadd.f32 %v6919, %v6921
        %v7943 = vadd.f32 %v7942, %v6923
        %v7944 = vadd.f32 %v7943, %v6925
        %v7945 = vadd.f32 %v7944, %v6927
        %v7946 = vadd.f32 %v7945, %v6929
        %v7947 = vadd.f32 %v7946, %v6931
        %v7948 = vadd.f32 %v7947, %v6933
        %v7949 = vadd.f32 %v7948, %v6935
        %v7950 = vadd.f32 %v7949, %v6937
        %v7951 = vadd.f32 %v7950, %v6939
        %v7952 = vadd.f32 %v7951, %v6941
        %v7953 = vadd.f32 %v7952, %v6943
        %v7954 = vadd.f32 %v7953, %v6945
        %v7955 = vadd.f32 %v7954, %v6947
        %v7956 = vadd.f32 %v7955, %v6949
        %v7957 = vadd.f32 %v7956, %v6951
        %v7958 = vadd.f32 %v7957, %v6953
        %v7959 = vadd.f32 %v7958, %v6955
        %v7960 = vadd.f32 %v7959, %v6957
        %v7961 = vadd.f32 %v7960, %v6959
        %v7962 = vadd.f32 %v7961, %v6961
        %v7963 = vadd.f32 %v7962, %v6963
        %v7964 = vadd.f32 %v7963, %v6965
        %v7965 = vadd.f32 %v7964, %v6967
        %v7966 = vadd.f32 %v7965, %v6969
        %v7967 = vadd.f32 %v7966, %v6971
        %v7968 = vadd.f32 %v7967, %v6973
        %v7969 = vadd.f32 %v7968, %v6975
        %v7970 = vadd.f32 %v7969, %v6977
        %v7971 = vadd.f32 %v7970, %v6979
        %v7972 = vadd.f32 %v7971, %v6981
        %v7973 = vadd.f32 %v7972, %v6983
        %v7974 = vadd.f32 %v7973, %v6985
        %v7975 = vadd.f32 %v7974, %v6987
        %v7976 = vadd.f32 %v7975, %v6989
        %v7977 = vadd.f32 %v7976, %v6991
        %v7978 = vadd.f32 %v7977, %v6993
        %v7979 = vadd.f32 %v7978, %v6995
        %v7980 = vadd.f32 %v7979, %v6997
        %v7981 = vadd.f32 %v7980, %v6999
        %v7982 = vadd.f32 %v7981, %v7001
        %v7983 = vadd.f32 %v7982, %v7003
        %v7984 = vadd.f32 %v7983, %v7005
        %v7985 = vadd.f32 %v7984, %v7007
        %v7986 = vadd.f32 %v7985, %v7009
        %v7987 = vadd.f32 %v7986, %v7011
        %v7988 = vadd.f32 %v7987, %v7013
        %v7989 = vadd.f32 %v7988, %v7015
        %v7990 = vadd.f32 %v7989, %v7017
        %v7991 = vadd.f32 %v7990, %v7019
        %v7992 = vadd.f32 %v7991, %v7021
        %v7993 = vadd.f32 %v7992, %v7023
        %v7994 = vadd.f32 %v7993, %v7025
        %v7995 = vadd.f32 %v7994, %v7027
        %v7996 = vadd.f32 %v7995, %v7029
        %v7997 = vadd.f32 %v7996, %v7031
        %v7998 = vadd.f32 %v7997, %v7033
        %v7999 = vadd.f32 %v7998, %v7035
        %v8000 = vadd.f32 %v7999, %v7037
        %v8001 = vadd.f32 %v8000, %v7039
        %v8002 = vadd.f32 %v8001, %v7041
        %v8003 = vadd.f32 %v8002, %v7043
        %v8004 = vadd.f32 %v8003, %v7045
        %v8005 = vrot.slane %v8004, 4
        %v8006 = vadd.f32 %v8004, %v8005
        %v8007 = vrot.slane %v8006, 2
        %v8008 = vadd.f32 %v8006, %v8007
        %v8009 = vrot.slane %v8008, 1
        %v8010 = vadd.f32 %v8008, %v8009
        %v8011 = vadd.f32 %v7047, %v7049
        %v8012 = vadd.f32 %v8011, %v7051
        %v8013 = vadd.f32 %v8012, %v7053
        %v8014 = vadd.f32 %v8013, %v7055
        %v8015 = vadd.f32 %v8014, %v7057
        %v8016 = vadd.f32 %v8015, %v7059
        %v8017 = vadd.f32 %v8016, %v7061
        %v8018 = vadd.f32 %v8017, %v7063
        %v8019 = vadd.f32 %v8018, %v7065
        %v8020 = vadd.f32 %v8019, %v7067
        %v8021 = vadd.f32 %v8020, %v7069
        %v8022 = vadd.f32 %v8021, %v7071
        %v8023 = vadd.f32 %v8022, %v7073
        %v8024 = vadd.f32 %v8023, %v7075
        %v8025 = vadd.f32 %v8024, %v7077
        %v8026 = vadd.f32 %v8025, %v7079
        %v8027 = vadd.f32 %v8026, %v7081
        %v8028 = vadd.f32 %v8027, %v7083
        %v8029 = vadd.f32 %v8028, %v7085
        %v8030 = vadd.f32 %v8029, %v7087
        %v8031 = vadd.f32 %v8030, %v7089
        %v8032 = vadd.f32 %v8031, %v7091
        %v8033 = vadd.f32 %v8032, %v7093
        %v8034 = vadd.f32 %v8033, %v7095
        %v8035 = vadd.f32 %v8034, %v7097
        %v8036 = vadd.f32 %v8035, %v7099
        %v8037 = vadd.f32 %v8036, %v7101
        %v8038 = vadd.f32 %v8037, %v7103
        %v8039 = vadd.f32 %v8038, %v7105
        %v8040 = vadd.f32 %v8039, %v7107
        %v8041 = vadd.f32 %v8040, %v7109
        %v8042 = vadd.f32 %v8041, %v7111
        %v8043 = vadd.f32 %v8042, %v7113
        %v8044 = vadd.f32 %v8043, %v7115
        %v8045 = vadd.f32 %v8044, %v7117
        %v8046 = vadd.f32 %v8045, %v7119
        %v8047 = vadd.f32 %v8046, %v7121
        %v8048 = vadd.f32 %v8047, %v7123
        %v8049 = vadd.f32 %v8048, %v7125
        %v8050 = vadd.f32 %v8049, %v7127
        %v8051 = vadd.f32 %v8050, %v7129
        %v8052 = vadd.f32 %v8051, %v7131
        %v8053 = vadd.f32 %v8052, %v7133
        %v8054 = vadd.f32 %v8053, %v7135
        %v8055 = vadd.f32 %v8054, %v7137
        %v8056 = vadd.f32 %v8055, %v7139
        %v8057 = vadd.f32 %v8056, %v7141
        %v8058 = vadd.f32 %v8057, %v7143
        %v8059 = vadd.f32 %v8058, %v7145
        %v8060 = vadd.f32 %v8059, %v7147
        %v8061 = vadd.f32 %v8060, %v7149
        %v8062 = vadd.f32 %v8061, %v7151
        %v8063 = vadd.f32 %v8062, %v7153
        %v8064 = vadd.f32 %v8063, %v7155
        %v8065 = vadd.f32 %v8064, %v7157
        %v8066 = vadd.f32 %v8065, %v7159
        %v8067 = vadd.f32 %v8066, %v7161
        %v8068 = vadd.f32 %v8067, %v7163
        %v8069 = vadd.f32 %v8068, %v7165
        %v8070 = vadd.f32 %v8069, %v7167
        %v8071 = vadd.f32 %v8070, %v7169
        %v8072 = vadd.f32 %v8071, %v7171
        %v8073 = vadd.f32 %v8072, %v7173
        %v8074 = vrot.slane %v8073, 4
        %v8075 = vadd.f32 %v8073, %v8074
        %v8076 = vrot.slane %v8075, 2
        %v8077 = vadd.f32 %v8075, %v8076
        %v8078 = vrot.slane %v8077, 1
        %v8079 = vadd.f32 %v8077, %v8078
        %v8080 = vadd.f32 %v7175, %v7177
        %v8081 = vadd.f32 %v8080, %v7179
        %v8082 = vadd.f32 %v8081, %v7181
        %v8083 = vadd.f32 %v8082, %v7183
        %v8084 = vadd.f32 %v8083, %v7185
        %v8085 = vadd.f32 %v8084, %v7187
        %v8086 = vadd.f32 %v8085, %v7189
        %v8087 = vadd.f32 %v8086, %v7191
        %v8088 = vadd.f32 %v8087, %v7193
        %v8089 = vadd.f32 %v8088, %v7195
        %v8090 = vadd.f32 %v8089, %v7197
        %v8091 = vadd.f32 %v8090, %v7199
        %v8092 = vadd.f32 %v8091, %v7201
        %v8093 = vadd.f32 %v8092, %v7203
        %v8094 = vadd.f32 %v8093, %v7205
        %v8095 = vadd.f32 %v8094, %v7207
        %v8096 = vadd.f32 %v8095, %v7209
        %v8097 = vadd.f32 %v8096, %v7211
        %v8098 = vadd.f32 %v8097, %v7213
        %v8099 = vadd.f32 %v8098, %v7215
        %v8100 = vadd.f32 %v8099, %v7217
        %v8101 = vadd.f32 %v8100, %v7219
        %v8102 = vadd.f32 %v8101, %v7221
        %v8103 = vadd.f32 %v8102, %v7223
        %v8104 = vadd.f32 %v8103, %v7225
        %v8105 = vadd.f32 %v8104, %v7227
        %v8106 = vadd.f32 %v8105, %v7229
        %v8107 = vadd.f32 %v8106, %v7231
        %v8108 = vadd.f32 %v8107, %v7233
        %v8109 = vadd.f32 %v8108, %v7235
        %v8110 = vadd.f32 %v8109, %v7237
        %v8111 = vadd.f32 %v8110, %v7239
        %v8112 = vadd.f32 %v8111, %v7241
        %v8113 = vadd.f32 %v8112, %v7243
        %v8114 = vadd.f32 %v8113, %v7245
        %v8115 = vadd.f32 %v8114, %v7247
        %v8116 = vadd.f32 %v8115, %v7249
        %v8117 = vadd.f32 %v8116, %v7251
        %v8118 = vadd.f32 %v8117, %v7253
        %v8119 = vadd.f32 %v8118, %v7255
        %v8120 = vadd.f32 %v8119, %v7257
        %v8121 = vadd.f32 %v8120, %v7259
        %v8122 = vadd.f32 %v8121, %v7261
        %v8123 = vadd.f32 %v8122, %v7263
        %v8124 = vadd.f32 %v8123, %v7265
        %v8125 = vadd.f32 %v8124, %v7267
        %v8126 = vadd.f32 %v8125, %v7269
        %v8127 = vadd.f32 %v8126, %v7271
        %v8128 = vadd.f32 %v8127, %v7273
        %v8129 = vadd.f32 %v8128, %v7275
        %v8130 = vadd.f32 %v8129, %v7277
        %v8131 = vadd.f32 %v8130, %v7279
        %v8132 = vadd.f32 %v8131, %v7281
        %v8133 = vadd.f32 %v8132, %v7283
        %v8134 = vadd.f32 %v8133, %v7285
        %v8135 = vadd.f32 %v8134, %v7287
        %v8136 = vadd.f32 %v8135, %v7289
        %v8137 = vadd.f32 %v8136, %v7291
        %v8138 = vadd.f32 %v8137, %v7293
        %v8139 = vadd.f32 %v8138, %v7295
        %v8140 = vadd.f32 %v8139, %v7297
        %v8141 = vadd.f32 %v8140, %v7299
        %v8142 = vadd.f32 %v8141, %v7301
        %v8143 = vrot.slane %v8142, 4
        %v8144 = vadd.f32 %v8142, %v8143
        %v8145 = vrot.slane %v8144, 2
        %v8146 = vadd.f32 %v8144, %v8145
        %v8147 = vrot.slane %v8146, 1
        %v8148 = vadd.f32 %v8146, %v8147
        %v8149 = vadd.f32 %v7303, %v7305
        %v8150 = vadd.f32 %v8149, %v7307
        %v8151 = vadd.f32 %v8150, %v7309
        %v8152 = vadd.f32 %v8151, %v7311
        %v8153 = vadd.f32 %v8152, %v7313
        %v8154 = vadd.f32 %v8153, %v7315
        %v8155 = vadd.f32 %v8154, %v7317
        %v8156 = vadd.f32 %v8155, %v7319
        %v8157 = vadd.f32 %v8156, %v7321
        %v8158 = vadd.f32 %v8157, %v7323
        %v8159 = vadd.f32 %v8158, %v7325
        %v8160 = vadd.f32 %v8159, %v7327
        %v8161 = vadd.f32 %v8160, %v7329
        %v8162 = vadd.f32 %v8161, %v7331
        %v8163 = vadd.f32 %v8162, %v7333
        %v8164 = vadd.f32 %v8163, %v7335
        %v8165 = vadd.f32 %v8164, %v7337
        %v8166 = vadd.f32 %v8165, %v7339
        %v8167 = vadd.f32 %v8166, %v7341
        %v8168 = vadd.f32 %v8167, %v7343
        %v8169 = vadd.f32 %v8168, %v7345
        %v8170 = vadd.f32 %v8169, %v7347
        %v8171 = vadd.f32 %v8170, %v7349
        %v8172 = vadd.f32 %v8171, %v7351
        %v8173 = vadd.f32 %v8172, %v7353
        %v8174 = vadd.f32 %v8173, %v7355
        %v8175 = vadd.f32 %v8174, %v7357
        %v8176 = vadd.f32 %v8175, %v7359
        %v8177 = vadd.f32 %v8176, %v7361
        %v8178 = vadd.f32 %v8177, %v7363
        %v8179 = vadd.f32 %v8178, %v7365
        %v8180 = vadd.f32 %v8179, %v7367
        %v8181 = vadd.f32 %v8180, %v7369
        %v8182 = vadd.f32 %v8181, %v7371
        %v8183 = vadd.f32 %v8182, %v7373
        %v8184 = vadd.f32 %v8183, %v7375
        %v8185 = vadd.f32 %v8184, %v7377
        %v8186 = vadd.f32 %v8185, %v7379
        %v8187 = vadd.f32 %v8186, %v7381
        %v8188 = vadd.f32 %v8187, %v7383
        %v8189 = vadd.f32 %v8188, %v7385
        %v8190 = vadd.f32 %v8189, %v7387
        %v8191 = vadd.f32 %v8190, %v7389
        %v8192 = vadd.f32 %v8191, %v7391
        %v8193 = vadd.f32 %v8192, %v7393
        %v8194 = vadd.f32 %v8193, %v7395
        %v8195 = vadd.f32 %v8194, %v7397
        %v8196 = vadd.f32 %v8195, %v7399
        %v8197 = vadd.f32 %v8196, %v7401
        %v8198 = vadd.f32 %v8197, %v7403
        %v8199 = vadd.f32 %v8198, %v7405
        %v8200 = vadd.f32 %v8199, %v7407
        %v8201 = vadd.f32 %v8200, %v7409
        %v8202 = vadd.f32 %v8201, %v7411
        %v8203 = vadd.f32 %v8202, %v7413
        %v8204 = vadd.f32 %v8203, %v7415
        %v8205 = vadd.f32 %v8204, %v7417
        %v8206 = vadd.f32 %v8205, %v7419
        %v8207 = vadd.f32 %v8206, %v7421
        %v8208 = vadd.f32 %v8207, %v7423
        %v8209 = vadd.f32 %v8208, %v7425
        %v8210 = vadd.f32 %v8209, %v7427
        %v8211 = vadd.f32 %v8210, %v7429
        %v8212 = vrot.slane %v8211, 4
        %v8213 = vadd.f32 %v8211, %v8212
        %v8214 = vrot.slane %v8213, 2
        %v8215 = vadd.f32 %v8213, %v8214
        %v8216 = vrot.slane %v8215, 1
        %v8217 = vadd.f32 %v8215, %v8216
        %v8218 = vadd.f32 %v7431, %v7433
        %v8219 = vadd.f32 %v8218, %v7435
        %v8220 = vadd.f32 %v8219, %v7437
        %v8221 = vadd.f32 %v8220, %v7439
        %v8222 = vadd.f32 %v8221, %v7441
        %v8223 = vadd.f32 %v8222, %v7443
        %v8224 = vadd.f32 %v8223, %v7445
        %v8225 = vadd.f32 %v8224, %v7447
        %v8226 = vadd.f32 %v8225, %v7449
        %v8227 = vadd.f32 %v8226, %v7451
        %v8228 = vadd.f32 %v8227, %v7453
        %v8229 = vadd.f32 %v8228, %v7455
        %v8230 = vadd.f32 %v8229, %v7457
        %v8231 = vadd.f32 %v8230, %v7459
        %v8232 = vadd.f32 %v8231, %v7461
        %v8233 = vadd.f32 %v8232, %v7463
        %v8234 = vadd.f32 %v8233, %v7465
        %v8235 = vadd.f32 %v8234, %v7467
        %v8236 = vadd.f32 %v8235, %v7469
        %v8237 = vadd.f32 %v8236, %v7471
        %v8238 = vadd.f32 %v8237, %v7473
        %v8239 = vadd.f32 %v8238, %v7475
        %v8240 = vadd.f32 %v8239, %v7477
        %v8241 = vadd.f32 %v8240, %v7479
        %v8242 = vadd.f32 %v8241, %v7481
        %v8243 = vadd.f32 %v8242, %v7483
        %v8244 = vadd.f32 %v8243, %v7485
        %v8245 = vadd.f32 %v8244, %v7487
        %v8246 = vadd.f32 %v8245, %v7489
        %v8247 = vadd.f32 %v8246, %v7491
        %v8248 = vadd.f32 %v8247, %v7493
        %v8249 = vadd.f32 %v8248, %v7495
        %v8250 = vadd.f32 %v8249, %v7497
        %v8251 = vadd.f32 %v8250, %v7499
        %v8252 = vadd.f32 %v8251, %v7501
        %v8253 = vadd.f32 %v8252, %v7503
        %v8254 = vadd.f32 %v8253, %v7505
        %v8255 = vadd.f32 %v8254, %v7507
        %v8256 = vadd.f32 %v8255, %v7509
        %v8257 = vadd.f32 %v8256, %v7511
        %v8258 = vadd.f32 %v8257, %v7513
        %v8259 = vadd.f32 %v8258, %v7515
        %v8260 = vadd.f32 %v8259, %v7517
        %v8261 = vadd.f32 %v8260, %v7519
        %v8262 = vadd.f32 %v8261, %v7521
        %v8263 = vadd.f32 %v8262, %v7523
        %v8264 = vadd.f32 %v8263, %v7525
        %v8265 = vadd.f32 %v8264, %v7527
        %v8266 = vadd.f32 %v8265, %v7529
        %v8267 = vadd.f32 %v8266, %v7531
        %v8268 = vadd.f32 %v8267, %v7533
        %v8269 = vadd.f32 %v8268, %v7535
        %v8270 = vadd.f32 %v8269, %v7537
        %v8271 = vadd.f32 %v8270, %v7539
        %v8272 = vadd.f32 %v8271, %v7541
        %v8273 = vadd.f32 %v8272, %v7543
        %v8274 = vadd.f32 %v8273, %v7545
        %v8275 = vadd.f32 %v8274, %v7547
        %v8276 = vadd.f32 %v8275, %v7549
        %v8277 = vadd.f32 %v8276, %v7551
        %v8278 = vadd.f32 %v8277, %v7553
        %v8279 = vadd.f32 %v8278, %v7555
        %v8280 = vadd.f32 %v8279, %v7557
        %v8281 = vrot.slane %v8280, 4
        %v8282 = vadd.f32 %v8280, %v8281
        %v8283 = vrot.slane %v8282, 2
        %v8284 = vadd.f32 %v8282, %v8283
        %v8285 = vrot.slane %v8284, 1
        %v8286 = vadd.f32 %v8284, %v8285
        %v8287 = vadd.f32 %v7559, %v7561
        %v8288 = vadd.f32 %v8287, %v7563
        %v8289 = vadd.f32 %v8288, %v7565
        %v8290 = vadd.f32 %v8289, %v7567
        %v8291 = vadd.f32 %v8290, %v7569
        %v8292 = vadd.f32 %v8291, %v7571
        %v8293 = vadd.f32 %v8292, %v7573
        %v8294 = vadd.f32 %v8293, %v7575
        %v8295 = vadd.f32 %v8294, %v7577
        %v8296 = vadd.f32 %v8295, %v7579
        %v8297 = vadd.f32 %v8296, %v7581
        %v8298 = vadd.f32 %v8297, %v7583
        %v8299 = vadd.f32 %v8298, %v7585
        %v8300 = vadd.f32 %v8299, %v7587
        %v8301 = vadd.f32 %v8300, %v7589
        %v8302 = vadd.f32 %v8301, %v7591
        %v8303 = vadd.f32 %v8302, %v7593
        %v8304 = vadd.f32 %v8303, %v7595
        %v8305 = vadd.f32 %v8304, %v7597
        %v8306 = vadd.f32 %v8305, %v7599
        %v8307 = vadd.f32 %v8306, %v7601
        %v8308 = vadd.f32 %v8307, %v7603
        %v8309 = vadd.f32 %v8308, %v7605
        %v8310 = vadd.f32 %v8309, %v7607
        %v8311 = vadd.f32 %v8310, %v7609
        %v8312 = vadd.f32 %v8311, %v7611
        %v8313 = vadd.f32 %v8312, %v7613
        %v8314 = vadd.f32 %v8313, %v7615
        %v8315 = vadd.f32 %v8314, %v7617
        %v8316 = vadd.f32 %v8315, %v7619
        %v8317 = vadd.f32 %v8316, %v7621
        %v8318 = vadd.f32 %v8317, %v7623
        %v8319 = vadd.f32 %v8318, %v7625
        %v8320 = vadd.f32 %v8319, %v7627
        %v8321 = vadd.f32 %v8320, %v7629
        %v8322 = vadd.f32 %v8321, %v7631
        %v8323 = vadd.f32 %v8322, %v7633
        %v8324 = vadd.f32 %v8323, %v7635
        %v8325 = vadd.f32 %v8324, %v7637
        %v8326 = vadd.f32 %v8325, %v7639
        %v8327 = vadd.f32 %v8326, %v7641
        %v8328 = vadd.f32 %v8327, %v7643
        %v8329 = vadd.f32 %v8328, %v7645
        %v8330 = vadd.f32 %v8329, %v7647
        %v8331 = vadd.f32 %v8330, %v7649
        %v8332 = vadd.f32 %v8331, %v7651
        %v8333 = vadd.f32 %v8332, %v7653
        %v8334 = vadd.f32 %v8333, %v7655
        %v8335 = vadd.f32 %v8334, %v7657
        %v8336 = vadd.f32 %v8335, %v7659
        %v8337 = vadd.f32 %v8336, %v7661
        %v8338 = vadd.f32 %v8337, %v7663
        %v8339 = vadd.f32 %v8338, %v7665
        %v8340 = vadd.f32 %v8339, %v7667
        %v8341 = vadd.f32 %v8340, %v7669
        %v8342 = vadd.f32 %v8341, %v7671
        %v8343 = vadd.f32 %v8342, %v7673
        %v8344 = vadd.f32 %v8343, %v7675
        %v8345 = vadd.f32 %v8344, %v7677
        %v8346 = vadd.f32 %v8345, %v7679
        %v8347 = vadd.f32 %v8346, %v7681
        %v8348 = vadd.f32 %v8347, %v7683
        %v8349 = vadd.f32 %v8348, %v7685
        %v8350 = vrot.slane %v8349, 4
        %v8351 = vadd.f32 %v8349, %v8350
        %v8352 = vrot.slane %v8351, 2
        %v8353 = vadd.f32 %v8351, %v8352
        %v8354 = vrot.slane %v8353, 1
        %v8355 = vadd.f32 %v8353, %v8354
        %v8356 = vadd.f32 %v7687, %v7689
        %v8357 = vadd.f32 %v8356, %v7691
        %v8358 = vadd.f32 %v8357, %v7693
        %v8359 = vadd.f32 %v8358, %v7695
        %v8360 = vadd.f32 %v8359, %v7697
        %v8361 = vadd.f32 %v8360, %v7699
        %v8362 = vadd.f32 %v8361, %v7701
        %v8363 = vadd.f32 %v8362, %v7703
        %v8364 = vadd.f32 %v8363, %v7705
        %v8365 = vadd.f32 %v8364, %v7707
        %v8366 = vadd.f32 %v8365, %v7709
        %v8367 = vadd.f32 %v8366, %v7711
        %v8368 = vadd.f32 %v8367, %v7713
        %v8369 = vadd.f32 %v8368, %v7715
        %v8370 = vadd.f32 %v8369, %v7717
        %v8371 = vadd.f32 %v8370, %v7719
        %v8372 = vadd.f32 %v8371, %v7721
        %v8373 = vadd.f32 %v8372, %v7723
        %v8374 = vadd.f32 %v8373, %v7725
        %v8375 = vadd.f32 %v8374, %v7727
        %v8376 = vadd.f32 %v8375, %v7729
        %v8377 = vadd.f32 %v8376, %v7731
        %v8378 = vadd.f32 %v8377, %v7733
        %v8379 = vadd.f32 %v8378, %v7735
        %v8380 = vadd.f32 %v8379, %v7737
        %v8381 = vadd.f32 %v8380, %v7739
        %v8382 = vadd.f32 %v8381, %v7741
        %v8383 = vadd.f32 %v8382, %v7743
        %v8384 = vadd.f32 %v8383, %v7745
        %v8385 = vadd.f32 %v8384, %v7747
        %v8386 = vadd.f32 %v8385, %v7749
        %v8387 = vadd.f32 %v8386, %v7751
        %v8388 = vadd.f32 %v8387, %v7753
        %v8389 = vadd.f32 %v8388, %v7755
        %v8390 = vadd.f32 %v8389, %v7757
        %v8391 = vadd.f32 %v8390, %v7759
        %v8392 = vadd.f32 %v8391, %v7761
        %v8393 = vadd.f32 %v8392, %v7763
        %v8394 = vadd.f32 %v8393, %v7765
        %v8395 = vadd.f32 %v8394, %v7767
        %v8396 = vadd.f32 %v8395, %v7769
        %v8397 = vadd.f32 %v8396, %v7771
        %v8398 = vadd.f32 %v8397, %v7773
        %v8399 = vadd.f32 %v8398, %v7775
        %v8400 = vadd.f32 %v8399, %v7777
        %v8401 = vadd.f32 %v8400, %v7779
        %v8402 = vadd.f32 %v8401, %v7781
        %v8403 = vadd.f32 %v8402, %v7783
        %v8404 = vadd.f32 %v8403, %v7785
        %v8405 = vadd.f32 %v8404, %v7787
        %v8406 = vadd.f32 %v8405, %v7789
        %v8407 = vadd.f32 %v8406, %v7791
        %v8408 = vadd.f32 %v8407, %v7793
        %v8409 = vadd.f32 %v8408, %v7795
        %v8410 = vadd.f32 %v8409, %v7797
        %v8411 = vadd.f32 %v8410, %v7799
        %v8412 = vadd.f32 %v8411, %v7801
        %v8413 = vadd.f32 %v8412, %v7803
        %v8414 = vadd.f32 %v8413, %v7805
        %v8415 = vadd.f32 %v8414, %v7807
        %v8416 = vadd.f32 %v8415, %v7809
        %v8417 = vadd.f32 %v8416, %v7811
        %v8418 = vadd.f32 %v8417, %v7813
        %v8419 = vrot.slane %v8418, 4
        %v8420 = vadd.f32 %v8418, %v8419
        %v8421 = vrot.slane %v8420, 2
        %v8422 = vadd.f32 %v8420, %v8421
        %v8423 = vrot.slane %v8422, 1
        %v8424 = vadd.f32 %v8422, %v8423
        %v8425 = vadd.f32 %v7815, %v7817
        %v8426 = vadd.f32 %v8425, %v7819
        %v8427 = vadd.f32 %v8426, %v7821
        %v8428 = vadd.f32 %v8427, %v7823
        %v8429 = vadd.f32 %v8428, %v7825
        %v8430 = vadd.f32 %v8429, %v7827
        %v8431 = vadd.f32 %v8430, %v7829
        %v8432 = vadd.f32 %v8431, %v7831
        %v8433 = vadd.f32 %v8432, %v7833
        %v8434 = vadd.f32 %v8433, %v7835
        %v8435 = vadd.f32 %v8434, %v7837
        %v8436 = vadd.f32 %v8435, %v7839
        %v8437 = vadd.f32 %v8436, %v7841
        %v8438 = vadd.f32 %v8437, %v7843
        %v8439 = vadd.f32 %v8438, %v7845
        %v8440 = vadd.f32 %v8439, %v7847
        %v8441 = vadd.f32 %v8440, %v7849
        %v8442 = vadd.f32 %v8441, %v7851
        %v8443 = vadd.f32 %v8442, %v7853
        %v8444 = vadd.f32 %v8443, %v7855
        %v8445 = vadd.f32 %v8444, %v7857
        %v8446 = vadd.f32 %v8445, %v7859
        %v8447 = vadd.f32 %v8446, %v7861
        %v8448 = vadd.f32 %v8447, %v7863
        %v8449 = vadd.f32 %v8448, %v7865
        %v8450 = vadd.f32 %v8449, %v7867
        %v8451 = vadd.f32 %v8450, %v7869
        %v8452 = vadd.f32 %v8451, %v7871
        %v8453 = vadd.f32 %v8452, %v7873
        %v8454 = vadd.f32 %v8453, %v7875
        %v8455 = vadd.f32 %v8454, %v7877
        %v8456 = vadd.f32 %v8455, %v7879
        %v8457 = vadd.f32 %v8456, %v7881
        %v8458 = vadd.f32 %v8457, %v7883
        %v8459 = vadd.f32 %v8458, %v7885
        %v8460 = vadd.f32 %v8459, %v7887
        %v8461 = vadd.f32 %v8460, %v7889
        %v8462 = vadd.f32 %v8461, %v7891
        %v8463 = vadd.f32 %v8462, %v7893
        %v8464 = vadd.f32 %v8463, %v7895
        %v8465 = vadd.f32 %v8464, %v7897
        %v8466 = vadd.f32 %v8465, %v7899
        %v8467 = vadd.f32 %v8466, %v7901
        %v8468 = vadd.f32 %v8467, %v7903
        %v8469 = vadd.f32 %v8468, %v7905
        %v8470 = vadd.f32 %v8469, %v7907
        %v8471 = vadd.f32 %v8470, %v7909
        %v8472 = vadd.f32 %v8471, %v7911
        %v8473 = vadd.f32 %v8472, %v7913
        %v8474 = vadd.f32 %v8473, %v7915
        %v8475 = vadd.f32 %v8474, %v7917
        %v8476 = vadd.f32 %v8475, %v7919
        %v8477 = vadd.f32 %v8476, %v7921
        %v8478 = vadd.f32 %v8477, %v7923
        %v8479 = vadd.f32 %v8478, %v7925
        %v8480 = vadd.f32 %v8479, %v7927
        %v8481 = vadd.f32 %v8480, %v7929
        %v8482 = vadd.f32 %v8481, %v7931
        %v8483 = vadd.f32 %v8482, %v7933
        %v8484 = vadd.f32 %v8483, %v7935
        %v8485 = vadd.f32 %v8484, %v7937
        %v8486 = vadd.f32 %v8485, %v7939
        %v8487 = vadd.f32 %v8486, %v7941
        %v8488 = vrot.slane %v8487, 4
        %v8489 = vadd.f32 %v8487, %v8488
        %v8490 = vrot.slane %v8489, 2
        %v8491 = vadd.f32 %v8489, %v8490
        %v8492 = vrot.slane %v8491, 1
        %v8493 = vadd.f32 %v8491, %v8492
        %v8494 = vmul.f32 %v8010, %v6271
        %v8495 = vmul.f32 %v8079, %v6281
        %v8496 = vmul.f32 %v8148, %v6291
        %v8497 = vmul.f32 %v8217, %v6301
        %v8498 = vmul.f32 %v8286, %v6311
        %v8499 = vmul.f32 %v8355, %v6321
        %v8500 = vmul.f32 %v8424, %v6331
        %v8501 = vmul.f32 %v8493, %v6341
        %vm8502 = vcmask 0
        %8503 = vst.msk [vmem:[%s252] sm:$0x1] %vm8502, %v8494
        %8504 = vst.msk [vmem:[%s252 + $0x1] sm:$0x1] %vm8502, %v8495
        %8505 = vst.msk [vmem:[%s252 + $0x2] sm:$0x1] %vm8502, %v8496
        %8506 = vst.msk [vmem:[%s252 + $0x3] sm:$0x1] %vm8502, %v8497
        %8507 = vst.msk [vmem:[%s252 + $0x4] sm:$0x1] %vm8502, %v8498
        %8508 = vst.msk [vmem:[%s252 + $0x5] sm:$0x1] %vm8502, %v8499
        %8509 = vst.msk [vmem:[%s252 + $0x6] sm:$0x1] %vm8502, %v8500
        %8510 = vst.msk [vmem:[%s252 + $0x7] sm:$0x1] %vm8502, %v8501
        %s8511 = smul.u32 8, %s20
        %p8512 = scmp.lt.s32.totalorder %s8511, 15
        %s8513 = scalar_select %p8512, %s8511, 15
        %s8514 = scalar_lea.vmem %s3, %s8513
        // Predicated region
        $region45: #{tpu_custom_call.1} parent=31 // pred_check
          %p8515 = pneg %p111
        $region46: #{tpu_custom_call.1} parent=31 // pred_check_branch
          %8517 = sbr.rel (%p8515) target = $region48
        $region47: #{tpu_custom_call.1} parent=31 // pred_region
          %s8518 = smul.u32 8, %s20
        $region48: #{tpu_custom_call.1} parent=31 // pred_fallthru
          _
      $region32: #{tpu_custom_call.1} parent=5 // pred_fallthru
        _
      %p8519 = scmp.le.s32.totalorder 2, %s15
      // Predicated region
      $region49: #{tpu_custom_call.1} parent=5 // pred_check
        %p8520 = pneg %p8519
      $region50: #{tpu_custom_call.1} parent=5 // pred_check_branch
        %8522 = sbr.rel (%p8520) target = $region52
      $region51: #{tpu_custom_call.1} parent=5 // pred_region
        %s8523 = ssub.s32 %s15, 2
        // Predicated region
        $region53: #{tpu_custom_call.1} parent=51 // pred_check
          %p8524 = pneg %p117
        $region54: #{tpu_custom_call.1} parent=51 // pred_check_branch
          %8526 = sbr.rel (%p8524) target = $region56
        $region55: #{tpu_custom_call.1} parent=51 // pred_region
          %s8527 = smul.u32 8, %s21
          %p8528 = scmp.lt.s32.totalorder %s8527, 15
          %s8529 = scalar_select %p8528, %s8527, 15
          %s8530 = scalar_lea.vmem %s3, %s8529
        $region56: #{tpu_custom_call.1} parent=51 // pred_fallthru
          _
      $region52: #{tpu_custom_call.1} parent=5 // pred_fallthru
        _
    $region6: #{tpu_custom_call.1} parent=1 // loop_footer
      %s19 = sadd.s32 1, %s15
    $region7: #{tpu_custom_call.1} parent=1 // loop_footer_branch
      %14 = sbr.rel target = $region3
    $region8: #{tpu_custom_call.1} parent=1 // loop_exit
      _
    %8531 = vsyncpa [#allocation3], 1
    %s8532 = scalar_lea.sflag [#allocation3], 1
    %8533 = vsyncpa %s8532, 1
    %8534 = vsyncpa [#allocation5], 1
    %s8535 = scalar_lea.sflag [#allocation5], 1
    %8536 = vsyncpa %s8535, 1

</llo_original>
